<compile_context>
chip_gen: v7x
topology: tpu7x:2x2x1
jax: 0.10.0
libtpu: 0.0.40
codegen_flags: <defaults>
</compile_context>

<pallas_src>
import jax
import jax.numpy as jnp
import numpy as np
from jax.experimental import pallas as pl
from jax.experimental.pallas import tpu as pltpu

HIDDEN = 64          # hidden_channels
HEADS = 4            # heads in conv1 (conv2 uses 1 head)
NEG_SLOPE = 0.2      # GATConv LeakyReLU default
MAXN = 16            # every node set zero-padded to this many rows
F_AUG = 16           # padded input feature dim (+ trailing ones column for bias)

NODE_TYPES = ["playlist", "track", "artist", "album"]
IN_DIMS = {"playlist": 1, "track": 11, "artist": 1, "album": 1}
NT = len(NODE_TYPES)

EDGE_TYPES = [
    ("playlist", "contains", "track"),
    ("track", "in_playlist", "playlist"),
    ("track", "by", "artist"),
    ("artist", "created", "track"),
    ("track", "from_album", "album"),
    ("album", "contains", "track"),
]
NE = len(EDGE_TYPES)
REL_IDX = [(NODE_TYPES.index(s), NODE_TYPES.index(d)) for s, _, d in EDGE_TYPES]


# ------------------------------ fused kernel --------------------------------

def _fused_forward_kernel(x_ref, wp_ref, w1_ref, w2_ref, wo_ref, msk_ref, b_ref,
                          out_ref):
    f32, bf16 = jnp.float32, jnp.bfloat16

    # hoisted constants / shared tensors
    ones_b = jnp.ones((MAXN, MAXN), bf16)          # row-reduce + row-broadcast matmul
    eye_t = msk_ref[2 * NE]                        # [MAXN, HEADS*MAXN] per-head block eye
    adj_l = [msk_ref[r] for r in range(NE)]        # lane-tiled {0,1} adjacency
    neg_l = [msk_ref[NE + r] for r in range(NE)]   # lane-tiled additive -1e30 mask

    # 1) per-node-type input projection (bias folded into the ones column of x)
    h = [jnp.dot(x_ref[t], wp_ref[t], preferred_element_type=f32)
         for t in range(NT)]                       # 4 x [MAXN, HIDDEN] f32

    def hetero(h_in, w_ref, b_row0, heads):
        hc, hw = heads * HIDDEN, heads * MAXN
        doff = ((hc + hw + 127) // 128) * 128      # a_dst slab starts chunk-aligned
        acc = [None] * NT
        for r, (si, di) in enumerate(REL_IDX):
            # fused [W | a_src-rep] projection of the src features (single MXU issue)
            y = jnp.dot(h_in[si].astype(bf16), w_ref[r, :, 0:hc + hw],
                        preferred_element_type=f32)            # [MAXN, hc+hw]
            hs_b = y[:, :hc].astype(bf16)                      # [MAXN, hc]
            als_rep = y[:, hc:hc + hw]                         # [MAXN, hw]
            # dst attention coefficients, lane-expanded per head on the host
            ald = jnp.dot(h_in[di].astype(bf16), w_ref[r, :, doff:doff + hw],
                          preferred_element_type=f32)          # [MAXN, hw]
            # broadcast al_src over dst rows with a per-head diagonal pick + ones
            # matmul (lane-packed [Nd, heads*MAXN] throughout, no transposes)
            als = jnp.dot(ones_b, (als_rep * eye_t[:, :hw]).astype(bf16),
                          preferred_element_type=f32)          # [MAXN, hw]
            e = ald + als
            e = jnp.where(e >= 0.0, e, NEG_SLOPE * e) + neg_l[r][:, :hw]
            # softmax over src per (dst, head); per-row max is a valid shift for
            # every head (constant in the src index, cancels in normalization)
            p = jnp.exp(e - jnp.max(e, axis=-1, keepdims=True)) * adj_l[r][:, :hw]
            cols = []
            for hd in range(heads):
                ph = p[:, hd * MAXN:(hd + 1) * MAXN]
                inv = pl.reciprocal(
                    jnp.maximum(jnp.sum(ph, axis=-1, keepdims=True), 1e-20),
                    approx=True)
                cols.append(inv * jnp.dot(
                    ph.astype(bf16), hs_b[:, hd * HIDDEN:(hd + 1) * HIDDEN],
                    preferred_element_type=f32))
            out = cols[0] if heads == 1 else jnp.concatenate(cols, axis=-1)
            out = out + b_ref[b_row0 + r:b_row0 + r + 1, 0:hc]
            acc[di] = out if acc[di] is None else acc[di] + out   # HeteroConv 'sum'
        return acc

    # 2) conv1 (4 heads) -> ReLU (dropout is identity in eval) -> conv2 (1 head)
    h = hetero(h, w1_ref, 0, HEADS)
    h = [jnp.maximum(v, 0.0) for v in h]
    h = hetero(h, w2_ref, NE, 1)

    # 3) playlist/track output Linears as ONE block-diagonal matmul; artist/album
    #    pass through; single lane-dense [MAXN, NT*HIDDEN] store.
    pt = jnp.concatenate([h[0], h[1]], axis=-1).astype(bf16)       # [MAXN, 128]
    po = (jnp.dot(pt, wo_ref[...], preferred_element_type=f32)
          + b_ref[2 * NE:2 * NE + 1, 0:2 * HIDDEN])                 # [MAXN, 128]
    out_ref[...] = jnp.concatenate([po, h[2], h[3]], axis=-1)       # [MAXN, 256]


# ------------------------------ host-side prep -------------------------------

def _fold_att(w, att):
    """Fold per-head attention vector into the projection: x @ result == per-head
    attention coefficient of (x @ w).  w: [Fin, H*C], att: [H, C] -> [Fin, H]."""
    hds, c = att.shape
    return jnp.einsum("fhc,hc->fh", w.reshape(w.shape[0], hds, c), att)


def prepare_inputs(params, x_dict, edge_index_dict, sizes):
    assert max(sizes.values()) <= MAXN
    assert max(IN_DIMS.values()) <= F_AUG - 1
    f32, bf16 = jnp.float32, jnp.bfloat16

    # features with a trailing ones-column (folds the projection bias into the matmul)
    x = jnp.zeros((NT, MAXN, F_AUG), f32)
    wp = jnp.zeros((NT, F_AUG, HIDDEN), f32)
    for t, nt in enumerate(NODE_TYPES):
        n, f = sizes[nt], IN_DIMS[nt]
        x = x.at[t, :n, :f].set(x_dict[nt])
        x = x.at[t, :, F_AUG - 1].set(1.0)
        wp = wp.at[t, :f, :].set(params[f"{nt}_proj_w"])
        wp = wp.at[t, F_AUG - 1, :].set(params[f"{nt}_proj_b"])

    # dense adjacency + additive mask, lane-tiled per head; last row = per-head eye
    # NOTE: duplicate edges collapse (set, not add); test edges are unique.
    msk = jnp.zeros((2 * NE + 1, MAXN, HEADS * MAXN), f32)
    for r, et in enumerate(EDGE_TYPES):
        ei = edge_index_dict[et]
        adj = jnp.zeros((MAXN, MAXN), f32).at[ei[1], ei[0]].set(1.0)
        adj_l = jnp.tile(adj, (1, HEADS))
        msk = msk.at[r].set(adj_l)
        msk = msk.at[NE + r].set((1.0 - adj_l) * (-1e30))
    msk = msk.at[2 * NE].set(jnp.tile(jnp.eye(MAXN, dtype=f32), (1, HEADS)))

    def pack_conv(conv, fin, heads):
        hc, hw = heads * HIDDEN, heads * MAXN
        doff = ((hc + hw + 127) // 128) * 128
        slab = jnp.zeros((NE, fin, doff + hw), f32)
        for r, et in enumerate(EDGE_TYPES):
            w = conv[et]["w"]
            a_s = _fold_att(w, conv[et]["att_src"])
            a_d = _fold_att(w, conv[et]["att_dst"])
            slab = slab.at[r, :, :hc].set(w)
            slab = slab.at[r, :, hc:hc + hw].set(jnp.repeat(a_s, MAXN, axis=1))
            slab = slab.at[r, :, doff:doff + hw].set(jnp.repeat(a_d, MAXN, axis=1))
        return slab.astype(bf16)

    w1 = pack_conv(params["conv1"], HIDDEN, HEADS)          # [NE, 64, 448]
    w2 = pack_conv(params["conv2"], HIDDEN * HEADS, 1)      # [NE, 256, 144]

    # biases: rows 0..5 conv1, 6..11 conv2, 12 = [playlist_out_b | track_out_b]
    bias = jnp.zeros((2 * NE + 1, HEADS * HIDDEN), f32)
    for r, et in enumerate(EDGE_TYPES):
        bias = bias.at[r, :].set(params["conv1"][et]["bias"])
        bias = bias.at[NE + r, :HIDDEN].set(params["conv2"][et]["bias"])
    bias = bias.at[2 * NE, :HIDDEN].set(params["playlist_out_b"])
    bias = bias.at[2 * NE, HIDDEN:2 * HIDDEN].set(params["track_out_b"])

    # block-diagonal [playlist_out_w ; track_out_w] -> one output matmul
    wo = jnp.zeros((2 * HIDDEN, 2 * HIDDEN), f32)
    wo = wo.at[:HIDDEN, :HIDDEN].set(params["playlist_out_w"])
    wo = wo.at[HIDDEN:, HIDDEN:].set(params["track_out_w"])

    return dict(x=x.astype(bf16), wp=wp.astype(bf16), w1=w1, w2=w2,
                wo=wo.astype(bf16), msk=msk, bias=bias)


def forward(prep, sizes):
    """Single fused pallas_call; per-type outputs sliced from one lane-dense slab."""
    out = pl.pallas_call(
        _fused_forward_kernel,
        out_shape=jax.ShapeDtypeStruct((MAXN, NT * HIDDEN), jnp.float32),
        in_specs=[pl.BlockSpec(memory_space=pltpu.MemorySpace.VMEM)
                  for _ in range(7)],
        out_specs=pl.BlockSpec(memory_space=pltpu.MemorySpace.VMEM),
    )(prep["x"], prep["wp"], prep["w1"], prep["w2"], prep["wo"],
      prep["msk"], prep["bias"])
    return {nt: out[:sizes[nt], t * HIDDEN:(t + 1) * HIDDEN]
            for t, nt in enumerate(NODE_TYPES)}


# ------------------------------ parameters -----------------------------------

def init_params(key):
    params = {}
    keys = iter(jax.random.split(key, 64))

    def nrm(shape, scale=0.1):
        return (scale * jax.random.normal(next(keys), shape)).astype(jnp.float32)

    for nt in NODE_TYPES:
        params[f"{nt}_proj_w"] = nrm((IN_DIMS[nt], HIDDEN))
        params[f"{nt}_proj_b"] = nrm((HIDDEN,))
    for name, fin, heads in [("conv1", HIDDEN, HEADS), ("conv2", HIDDEN * HEADS, 1)]:
        conv = {}
        for et in EDGE_TYPES:
            conv[et] = {
                "w": nrm((fin, heads * HIDDEN)),
                "att_src": nrm((heads, HIDDEN)),
                "att_dst": nrm((heads, HIDDEN)),
                "bias": nrm((heads * HIDDEN,)),
            }
        params[name] = conv
    for nt in ["playlist", "track"]:
        params[f"{nt}_out_w"] = nrm((HIDDEN, HIDDEN))
        params[f"{nt}_out_b"] = nrm((HIDDEN,))
    return params


# -------------------------- pure-JAX reference --------------------------------

def _gat_ref(x_src, x_dst, p, edge_index, n_dst, heads, out_ch):
    hi = jax.lax.Precision.HIGHEST
    hs = jnp.dot(x_src, p["w"], precision=hi).reshape(-1, heads, out_ch)
    hd = jnp.dot(x_dst, p["w"], precision=hi).reshape(-1, heads, out_ch)
    a_s = (hs * p["att_src"][None]).sum(-1)
    a_d = (hd * p["att_dst"][None]).sum(-1)
    src, dst = edge_index
    e = a_s[src] + a_d[dst]
    e = jnp.where(e >= 0, e, NEG_SLOPE * e)
    e_max = jax.ops.segment_max(e, dst, num_segments=n_dst)
    num = jnp.exp(e - e_max[dst])
    den = jax.ops.segment_sum(num, dst, num_segments=n_dst)
    alpha = num / den[dst]
    out = jax.ops.segment_sum(hs[src] * alpha[:, :, None], dst,
                              num_segments=n_dst)
    return out.reshape(n_dst, heads * out_ch) + p["bias"]


def forward_ref(params, x_dict, edge_index_dict, sizes):
    hi = jax.lax.Precision.HIGHEST
    h = {nt: jnp.dot(x_dict[nt], params[f"{nt}_proj_w"], precision=hi)
         + params[f"{nt}_proj_b"] for nt in NODE_TYPES}

    def het(conv_params, h, heads):
        out = {}
        for et in EDGE_TYPES:
            s, _, d = et
            y = _gat_ref(h[s], h[d], conv_params[et], edge_index_dict[et],
                         sizes[d], heads, HIDDEN)
            out[d] = out.get(d, 0.0) + y
        return out

    h = het(params["conv1"], h, HEADS)
    h = {k: jnp.maximum(v, 0.0) for k, v in h.items()}
    h = het(params["conv2"], h, 1)
    h["playlist"] = (jnp.dot(h["playlist"], params["playlist_out_w"], precision=hi)
                     + params["playlist_out_b"])
    h["track"] = (jnp.dot(h["track"], params["track_out_w"], precision=hi)
                  + params["track_out_b"])
    return h


# ----------------------------------- main -------------------------------------

def make_edges(key, n_src, n_dst, n_edges):
    """Deterministic, unique (src, dst) pairs -> edge_index [2, E] int32."""
    flat = jax.random.permutation(key, n_src * n_dst)[:n_edges]
    src = flat // n_dst
    dst = flat % n_dst
    return jnp.stack([src, dst]).astype(jnp.int32)


if __name__ == "__main__":
    key = jax.random.PRNGKey(0)
    k_param, k_feat, k_edge = jax.random.split(key, 3)

    sizes = {"playlist": 8, "track": 16, "artist": 8, "album": 8}

    fkeys = jax.random.split(k_feat, len(NODE_TYPES))
    x_dict = {nt: jax.random.normal(fk, (sizes[nt], IN_DIMS[nt]), jnp.float32)
              for nt, fk in zip(NODE_TYPES, fkeys)}

    ekeys = jax.random.split(k_edge, len(EDGE_TYPES))
    edge_index_dict = {}
    for et, ek in zip(EDGE_TYPES, ekeys):
        s, _, d = et
        n_e = min(24, sizes[s] * sizes[d])
        edge_index_dict[et] = make_edges(ek, sizes[s], sizes[d], n_e)

    params = init_params(k_param)

    prep = prepare_inputs(params, x_dict, edge_index_dict, sizes)
    out = forward(prep, sizes)
    out = {k: jax.block_until_ready(v) for k, v in out.items()}

    ref = forward_ref(params, x_dict, edge_index_dict, sizes)
    for nt in NODE_TYPES:
        assert out[nt].shape == (sizes[nt], HIDDEN)
        np.testing.assert_allclose(np.asarray(out[nt]), np.asarray(ref[nt]),
                                   rtol=2e-2, atol=2e-2)

    print("KERNEL_OK")
</pallas_src>

<mosaic_0001>
module attributes {stable_mosaic.version = 11 : i64} {
  func.func @_fused_forward_kernel(%arg0: memref<4x16x16xbf16, #tpu.memory_space<vmem>>, %arg1: memref<4x16x64xbf16, #tpu.memory_space<vmem>>, %arg2: memref<6x64x448xbf16, #tpu.memory_space<vmem>>, %arg3: memref<6x256x144xbf16, #tpu.memory_space<vmem>>, %arg4: memref<128x128xbf16, #tpu.memory_space<vmem>>, %arg5: memref<13x16x64xf32, #tpu.memory_space<vmem>>, %arg6: memref<13x256xf32, #tpu.memory_space<vmem>>, %arg7: memref<16x256xf32, #tpu.memory_space<vmem>>) attributes {dimension_semantics = [], scalar_prefetch = 0 : i64, scratch_operands = 0 : i64, tpu.core_type = #tpu.core_type<tc>} {
    %cst = arith.constant 1.000000e+00 : bf16
    %0 = vector.broadcast %cst : bf16 to vector<16x16xbf16>
    %c12 = arith.constant 12 : index
    %c0 = arith.constant 0 : index
    %c0_0 = arith.constant 0 : index
    %1 = vector.load %arg5[%c12, %c0, %c0_0] : memref<13x16x64xf32, #tpu.memory_space<vmem>>, vector<1x16x64xf32>
    %2 = vector.shape_cast %1 : vector<1x16x64xf32> to vector<16x64xf32>
    %c0_1 = arith.constant 0 : index
    %c0_2 = arith.constant 0 : index
    %c0_3 = arith.constant 0 : index
    %3 = vector.load %arg5[%c0_1, %c0_2, %c0_3] : memref<13x16x64xf32, #tpu.memory_space<vmem>>, vector<1x16x64xf32>
    %4 = vector.shape_cast %3 : vector<1x16x64xf32> to vector<16x64xf32>
    %c1 = arith.constant 1 : index
    %c0_4 = arith.constant 0 : index
    %c0_5 = arith.constant 0 : index
    %5 = vector.load %arg5[%c1, %c0_4, %c0_5] : memref<13x16x64xf32, #tpu.memory_space<vmem>>, vector<1x16x64xf32>
    %6 = vector.shape_cast %5 : vector<1x16x64xf32> to vector<16x64xf32>
    %c2 = arith.constant 2 : index
    %c0_6 = arith.constant 0 : index
    %c0_7 = arith.constant 0 : index
    %7 = vector.load %arg5[%c2, %c0_6, %c0_7] : memref<13x16x64xf32, #tpu.memory_space<vmem>>, vector<1x16x64xf32>
    %8 = vector.shape_cast %7 : vector<1x16x64xf32> to vector<16x64xf32>
    %c3 = arith.constant 3 : index
    %c0_8 = arith.constant 0 : index
    %c0_9 = arith.constant 0 : index
    %9 = vector.load %arg5[%c3, %c0_8, %c0_9] : memref<13x16x64xf32, #tpu.memory_space<vmem>>, vector<1x16x64xf32>
    %10 = vector.shape_cast %9 : vector<1x16x64xf32> to vector<16x64xf32>
    %c4 = arith.constant 4 : index
    %c0_10 = arith.constant 0 : index
    %c0_11 = arith.constant 0 : index
    %11 = vector.load %arg5[%c4, %c0_10, %c0_11] : memref<13x16x64xf32, #tpu.memory_space<vmem>>, vector<1x16x64xf32>
    %12 = vector.shape_cast %11 : vector<1x16x64xf32> to vector<16x64xf32>
    %c5 = arith.constant 5 : index
    %c0_12 = arith.constant 0 : index
    %c0_13 = arith.constant 0 : index
    %13 = vector.load %arg5[%c5, %c0_12, %c0_13] : memref<13x16x64xf32, #tpu.memory_space<vmem>>, vector<1x16x64xf32>
    %14 = vector.shape_cast %13 : vector<1x16x64xf32> to vector<16x64xf32>
    %c6 = arith.constant 6 : index
    %c0_14 = arith.constant 0 : index
    %c0_15 = arith.constant 0 : index
    %15 = vector.load %arg5[%c6, %c0_14, %c0_15] : memref<13x16x64xf32, #tpu.memory_space<vmem>>, vector<1x16x64xf32>
    %16 = vector.shape_cast %15 : vector<1x16x64xf32> to vector<16x64xf32>
    %c7 = arith.constant 7 : index
    %c0_16 = arith.constant 0 : index
    %c0_17 = arith.constant 0 : index
    %17 = vector.load %arg5[%c7, %c0_16, %c0_17] : memref<13x16x64xf32, #tpu.memory_space<vmem>>, vector<1x16x64xf32>
    %18 = vector.shape_cast %17 : vector<1x16x64xf32> to vector<16x64xf32>
    %c8 = arith.constant 8 : index
    %c0_18 = arith.constant 0 : index
    %c0_19 = arith.constant 0 : index
    %19 = vector.load %arg5[%c8, %c0_18, %c0_19] : memref<13x16x64xf32, #tpu.memory_space<vmem>>, vector<1x16x64xf32>
    %20 = vector.shape_cast %19 : vector<1x16x64xf32> to vector<16x64xf32>
    %c9 = arith.constant 9 : index
    %c0_20 = arith.constant 0 : index
    %c0_21 = arith.constant 0 : index
    %21 = vector.load %arg5[%c9, %c0_20, %c0_21] : memref<13x16x64xf32, #tpu.memory_space<vmem>>, vector<1x16x64xf32>
    %22 = vector.shape_cast %21 : vector<1x16x64xf32> to vector<16x64xf32>
    %c10 = arith.constant 10 : index
    %c0_22 = arith.constant 0 : index
    %c0_23 = arith.constant 0 : index
    %23 = vector.load %arg5[%c10, %c0_22, %c0_23] : memref<13x16x64xf32, #tpu.memory_space<vmem>>, vector<1x16x64xf32>
    %24 = vector.shape_cast %23 : vector<1x16x64xf32> to vector<16x64xf32>
    %c11 = arith.constant 11 : index
    %c0_24 = arith.constant 0 : index
    %c0_25 = arith.constant 0 : index
    %25 = vector.load %arg5[%c11, %c0_24, %c0_25] : memref<13x16x64xf32, #tpu.memory_space<vmem>>, vector<1x16x64xf32>
    %26 = vector.shape_cast %25 : vector<1x16x64xf32> to vector<16x64xf32>
    %c0_26 = arith.constant 0 : index
    %c0_27 = arith.constant 0 : index
    %c0_28 = arith.constant 0 : index
    %27 = vector.load %arg0[%c0_26, %c0_27, %c0_28] : memref<4x16x16xbf16, #tpu.memory_space<vmem>>, vector<1x16x16xbf16>
    %28 = vector.shape_cast %27 : vector<1x16x16xbf16> to vector<16x16xbf16>
    %c0_29 = arith.constant 0 : index
    %c0_30 = arith.constant 0 : index
    %c0_31 = arith.constant 0 : index
    %29 = vector.load %arg1[%c0_29, %c0_30, %c0_31] : memref<4x16x64xbf16, #tpu.memory_space<vmem>>, vector<1x16x64xbf16>
    %30 = vector.shape_cast %29 : vector<1x16x64xbf16> to vector<16x64xbf16>
    %cst_32 = arith.constant dense<0.000000e+00> : vector<16x64xf32>
    %31 = tpu.matmul %28, %30, %cst_32 {dimension_numbers = #tpu.dot_dimension_numbers<[1], [0], [0], [1], [0, 0, 1, 1], [], []>} : vector<16x16xbf16>, vector<16x64xbf16>, vector<16x64xf32> -> vector<16x64xf32>
    %c1_33 = arith.constant 1 : index
    %c0_34 = arith.constant 0 : index
    %c0_35 = arith.constant 0 : index
    %32 = vector.load %arg0[%c1_33, %c0_34, %c0_35] : memref<4x16x16xbf16, #tpu.memory_space<vmem>>, vector<1x16x16xbf16>
    %33 = vector.shape_cast %32 : vector<1x16x16xbf16> to vector<16x16xbf16>
    %c1_36 = arith.constant 1 : index
    %c0_37 = arith.constant 0 : index
    %c0_38 = arith.constant 0 : index
    %34 = vector.load %arg1[%c1_36, %c0_37, %c0_38] : memref<4x16x64xbf16, #tpu.memory_space<vmem>>, vector<1x16x64xbf16>
    %35 = vector.shape_cast %34 : vector<1x16x64xbf16> to vector<16x64xbf16>
    %cst_39 = arith.constant dense<0.000000e+00> : vector<16x64xf32>
    %36 = tpu.matmul %33, %35, %cst_39 {dimension_numbers = #tpu.dot_dimension_numbers<[1], [0], [0], [1], [0, 0, 1, 1], [], []>} : vector<16x16xbf16>, vector<16x64xbf16>, vector<16x64xf32> -> vector<16x64xf32>
    %c2_40 = arith.constant 2 : index
    %c0_41 = arith.constant 0 : index
    %c0_42 = arith.constant 0 : index
    %37 = vector.load %arg0[%c2_40, %c0_41, %c0_42] : memref<4x16x16xbf16, #tpu.memory_space<vmem>>, vector<1x16x16xbf16>
    %38 = vector.shape_cast %37 : vector<1x16x16xbf16> to vector<16x16xbf16>
    %c2_43 = arith.constant 2 : index
    %c0_44 = arith.constant 0 : index
    %c0_45 = arith.constant 0 : index
    %39 = vector.load %arg1[%c2_43, %c0_44, %c0_45] : memref<4x16x64xbf16, #tpu.memory_space<vmem>>, vector<1x16x64xbf16>
    %40 = vector.shape_cast %39 : vector<1x16x64xbf16> to vector<16x64xbf16>
    %cst_46 = arith.constant dense<0.000000e+00> : vector<16x64xf32>
    %41 = tpu.matmul %38, %40, %cst_46 {dimension_numbers = #tpu.dot_dimension_numbers<[1], [0], [0], [1], [0, 0, 1, 1], [], []>} : vector<16x16xbf16>, vector<16x64xbf16>, vector<16x64xf32> -> vector<16x64xf32>
    %c3_47 = arith.constant 3 : index
    %c0_48 = arith.constant 0 : index
    %c0_49 = arith.constant 0 : index
    %42 = vector.load %arg0[%c3_47, %c0_48, %c0_49] : memref<4x16x16xbf16, #tpu.memory_space<vmem>>, vector<1x16x16xbf16>
    %43 = vector.shape_cast %42 : vector<1x16x16xbf16> to vector<16x16xbf16>
    %c3_50 = arith.constant 3 : index
    %c0_51 = arith.constant 0 : index
    %c0_52 = arith.constant 0 : index
    %44 = vector.load %arg1[%c3_50, %c0_51, %c0_52] : memref<4x16x64xbf16, #tpu.memory_space<vmem>>, vector<1x16x64xbf16>
    %45 = vector.shape_cast %44 : vector<1x16x64xbf16> to vector<16x64xbf16>
    %cst_53 = arith.constant dense<0.000000e+00> : vector<16x64xf32>
    %46 = tpu.matmul %43, %45, %cst_53 {dimension_numbers = #tpu.dot_dimension_numbers<[1], [0], [0], [1], [0, 0, 1, 1], [], []>} : vector<16x16xbf16>, vector<16x64xbf16>, vector<16x64xf32> -> vector<16x64xf32>
    %47 = arith.truncf %31 : vector<16x64xf32> to vector<16x64xbf16>
    %c0_54 = arith.constant 0 : index
    %c0_55 = arith.constant 0 : index
    %c0_56 = arith.constant 0 : index
    %48 = vector.load %arg2[%c0_54, %c0_55, %c0_56] : memref<6x64x448xbf16, #tpu.memory_space<vmem>>, vector<1x64x320xbf16>
    %49 = vector.shape_cast %48 : vector<1x64x320xbf16> to vector<64x320xbf16>
    %cst_57 = arith.constant dense<0.000000e+00> : vector<16x320xf32>
    %50 = tpu.matmul %47, %49, %cst_57 {dimension_numbers = #tpu.dot_dimension_numbers<[1], [0], [0], [1], [0, 0, 1, 1], [], []>} : vector<16x64xbf16>, vector<64x320xbf16>, vector<16x320xf32> -> vector<16x320xf32>
    %51 = vector.extract_strided_slice %50 {offsets = [0, 0], sizes = [16, 256], strides = [1, 1]} : vector<16x320xf32> to vector<16x256xf32>
    %52 = arith.truncf %51 : vector<16x256xf32> to vector<16x256xbf16>
    %53 = vector.extract_strided_slice %50 {offsets = [0, 256], sizes = [16, 64], strides = [1, 1]} : vector<16x320xf32> to vector<16x64xf32>
    %54 = arith.truncf %36 : vector<16x64xf32> to vector<16x64xbf16>
    %c0_58 = arith.constant 0 : index
    %c0_59 = arith.constant 0 : index
    %c384 = arith.constant 384 : index
    %55 = vector.load %arg2[%c0_58, %c0_59, %c384] : memref<6x64x448xbf16, #tpu.memory_space<vmem>>, vector<1x64x64xbf16>
    %56 = vector.shape_cast %55 : vector<1x64x64xbf16> to vector<64x64xbf16>
    %cst_60 = arith.constant dense<0.000000e+00> : vector<16x64xf32>
    %57 = tpu.matmul %54, %56, %cst_60 {dimension_numbers = #tpu.dot_dimension_numbers<[1], [0], [0], [1], [0, 0, 1, 1], [], []>} : vector<16x64xbf16>, vector<64x64xbf16>, vector<16x64xf32> -> vector<16x64xf32>
    %58 = arith.mulf %53, %2 : vector<16x64xf32>
    %59 = arith.truncf %58 : vector<16x64xf32> to vector<16x64xbf16>
    %cst_61 = arith.constant dense<0.000000e+00> : vector<16x64xf32>
    %60 = tpu.matmul %0, %59, %cst_61 {dimension_numbers = #tpu.dot_dimension_numbers<[1], [0], [0], [1], [0, 0, 1, 1], [], []>} : vector<16x16xbf16>, vector<16x64xbf16>, vector<16x64xf32> -> vector<16x64xf32>
    %61 = arith.addf %57, %60 : vector<16x64xf32>
    %cst_62 = arith.constant 0.000000e+00 : f32
    %62 = vector.broadcast %cst_62 : f32 to vector<16x64xf32>
    %63 = arith.cmpf oge, %61, %62 : vector<16x64xf32>
    %cst_63 = arith.constant 2.000000e-01 : f32
    %64 = vector.broadcast %cst_63 : f32 to vector<16x64xf32>
    %65 = arith.mulf %64, %61 : vector<16x64xf32>
    %66 = arith.select %63, %61, %65 : vector<16x64xi1>, vector<16x64xf32>
    %67 = arith.addf %66, %16 : vector<16x64xf32>
    %cst_64 = arith.constant dense<0xFF800000> : vector<16xf32>
    %68 = vector.multi_reduction <maximumf>, %67, %cst_64 [1] : vector<16x64xf32> to vector<16xf32>
    %69 = vector.shape_cast %68 : vector<16xf32> to vector<16x1xf32>
    %70 = vector.broadcast %69 : vector<16x1xf32> to vector<16x64xf32>
    %71 = arith.subf %67, %70 : vector<16x64xf32>
    %72 = math.exp %71 : vector<16x64xf32>
    %73 = arith.mulf %72, %4 : vector<16x64xf32>
    %74 = vector.extract_strided_slice %73 {offsets = [0, 0], sizes = [16, 16], strides = [1, 1]} : vector<16x64xf32> to vector<16x16xf32>
    %cst_65 = arith.constant dense<0.000000e+00> : vector<16xf32>
    %75 = vector.multi_reduction <add>, %74, %cst_65 [1] : vector<16x16xf32> to vector<16xf32>
    %76 = vector.shape_cast %75 : vector<16xf32> to vector<16x1xf32>
    %cst_66 = arith.constant 9.99999968E-21 : f32
    %77 = vector.broadcast %cst_66 : f32 to vector<16x1xf32>
    %78 = arith.maximumf %76, %77 : vector<16x1xf32>
    %79 = tpu.reciprocal %78 {approx = true} : vector<16x1xf32> -> vector<16x1xf32>
    %80 = arith.truncf %74 : vector<16x16xf32> to vector<16x16xbf16>
    %81 = vector.extract_strided_slice %52 {offsets = [0, 0], sizes = [16, 64], strides = [1, 1]} : vector<16x256xbf16> to vector<16x64xbf16>
    %cst_67 = arith.constant dense<0.000000e+00> : vector<16x64xf32>
    %82 = tpu.matmul %80, %81, %cst_67 {dimension_numbers = #tpu.dot_dimension_numbers<[1], [0], [0], [1], [0, 0, 1, 1], [], []>} : vector<16x16xbf16>, vector<16x64xbf16>, vector<16x64xf32> -> vector<16x64xf32>
    %83 = vector.broadcast %79 : vector<16x1xf32> to vector<16x64xf32>
    %84 = arith.mulf %83, %82 : vector<16x64xf32>
    %85 = vector.extract_strided_slice %73 {offsets = [0, 16], sizes = [16, 16], strides = [1, 1]} : vector<16x64xf32> to vector<16x16xf32>
    %cst_68 = arith.constant dense<0.000000e+00> : vector<16xf32>
    %86 = vector.multi_reduction <add>, %85, %cst_68 [1] : vector<16x16xf32> to vector<16xf32>
    %87 = vector.shape_cast %86 : vector<16xf32> to vector<16x1xf32>
    %cst_69 = arith.constant 9.99999968E-21 : f32
    %88 = vector.broadcast %cst_69 : f32 to vector<16x1xf32>
    %89 = arith.maximumf %87, %88 : vector<16x1xf32>
    %90 = tpu.reciprocal %89 {approx = true} : vector<16x1xf32> -> vector<16x1xf32>
    %91 = arith.truncf %85 : vector<16x16xf32> to vector<16x16xbf16>
    %92 = vector.extract_strided_slice %52 {offsets = [0, 64], sizes = [16, 64], strides = [1, 1]} : vector<16x256xbf16> to vector<16x64xbf16>
    %cst_70 = arith.constant dense<0.000000e+00> : vector<16x64xf32>
    %93 = tpu.matmul %91, %92, %cst_70 {dimension_numbers = #tpu.dot_dimension_numbers<[1], [0], [0], [1], [0, 0, 1, 1], [], []>} : vector<16x16xbf16>, vector<16x64xbf16>, vector<16x64xf32> -> vector<16x64xf32>
    %94 = vector.broadcast %90 : vector<16x1xf32> to vector<16x64xf32>
    %95 = arith.mulf %94, %93 : vector<16x64xf32>
    %96 = vector.extract_strided_slice %73 {offsets = [0, 32], sizes = [16, 16], strides = [1, 1]} : vector<16x64xf32> to vector<16x16xf32>
    %cst_71 = arith.constant dense<0.000000e+00> : vector<16xf32>
    %97 = vector.multi_reduction <add>, %96, %cst_71 [1] : vector<16x16xf32> to vector<16xf32>
    %98 = vector.shape_cast %97 : vector<16xf32> to vector<16x1xf32>
    %cst_72 = arith.constant 9.99999968E-21 : f32
    %99 = vector.broadcast %cst_72 : f32 to vector<16x1xf32>
    %100 = arith.maximumf %98, %99 : vector<16x1xf32>
    %101 = tpu.reciprocal %100 {approx = true} : vector<16x1xf32> -> vector<16x1xf32>
    %102 = arith.truncf %96 : vector<16x16xf32> to vector<16x16xbf16>
    %103 = vector.extract_strided_slice %52 {offsets = [0, 128], sizes = [16, 64], strides = [1, 1]} : vector<16x256xbf16> to vector<16x64xbf16>
    %cst_73 = arith.constant dense<0.000000e+00> : vector<16x64xf32>
    %104 = tpu.matmul %102, %103, %cst_73 {dimension_numbers = #tpu.dot_dimension_numbers<[1], [0], [0], [1], [0, 0, 1, 1], [], []>} : vector<16x16xbf16>, vector<16x64xbf16>, vector<16x64xf32> -> vector<16x64xf32>
    %105 = vector.broadcast %101 : vector<16x1xf32> to vector<16x64xf32>
    %106 = arith.mulf %105, %104 : vector<16x64xf32>
    %107 = vector.extract_strided_slice %73 {offsets = [0, 48], sizes = [16, 16], strides = [1, 1]} : vector<16x64xf32> to vector<16x16xf32>
    %cst_74 = arith.constant dense<0.000000e+00> : vector<16xf32>
    %108 = vector.multi_reduction <add>, %107, %cst_74 [1] : vector<16x16xf32> to vector<16xf32>
    %109 = vector.shape_cast %108 : vector<16xf32> to vector<16x1xf32>
    %cst_75 = arith.constant 9.99999968E-21 : f32
    %110 = vector.broadcast %cst_75 : f32 to vector<16x1xf32>
    %111 = arith.maximumf %109, %110 : vector<16x1xf32>
    %112 = tpu.reciprocal %111 {approx = true} : vector<16x1xf32> -> vector<16x1xf32>
    %113 = arith.truncf %107 : vector<16x16xf32> to vector<16x16xbf16>
    %114 = vector.extract_strided_slice %52 {offsets = [0, 192], sizes = [16, 64], strides = [1, 1]} : vector<16x256xbf16> to vector<16x64xbf16>
    %cst_76 = arith.constant dense<0.000000e+00> : vector<16x64xf32>
    %115 = tpu.matmul %113, %114, %cst_76 {dimension_numbers = #tpu.dot_dimension_numbers<[1], [0], [0], [1], [0, 0, 1, 1], [], []>} : vector<16x16xbf16>, vector<16x64xbf16>, vector<16x64xf32> -> vector<16x64xf32>
    %116 = vector.broadcast %112 : vector<16x1xf32> to vector<16x64xf32>
    %117 = arith.mulf %116, %115 : vector<16x64xf32>
    %118 = tpu.concatenate %84, %95, %106, %117 in 1 : vector<16x64xf32>, vector<16x64xf32>, vector<16x64xf32>, vector<16x64xf32> -> vector<16x256xf32>
    %c0_77 = arith.constant 0 : index
    %c0_78 = arith.constant 0 : index
    %119 = vector.load %arg6[%c0_77, %c0_78] : memref<13x256xf32, #tpu.memory_space<vmem>>, vector<1x256xf32>
    %120 = vector.broadcast %119 : vector<1x256xf32> to vector<16x256xf32>
    %121 = arith.addf %118, %120 : vector<16x256xf32>
    %122 = arith.truncf %36 : vector<16x64xf32> to vector<16x64xbf16>
    %c1_79 = arith.constant 1 : index
    %c0_80 = arith.constant 0 : index
    %c0_81 = arith.constant 0 : index
    %123 = vector.load %arg2[%c1_79, %c0_80, %c0_81] : memref<6x64x448xbf16, #tpu.memory_space<vmem>>, vector<1x64x320xbf16>
    %124 = vector.shape_cast %123 : vector<1x64x320xbf16> to vector<64x320xbf16>
    %cst_82 = arith.constant dense<0.000000e+00> : vector<16x320xf32>
    %125 = tpu.matmul %122, %124, %cst_82 {dimension_numbers = #tpu.dot_dimension_numbers<[1], [0], [0], [1], [0, 0, 1, 1], [], []>} : vector<16x64xbf16>, vector<64x320xbf16>, vector<16x320xf32> -> vector<16x320xf32>
    %126 = vector.extract_strided_slice %125 {offsets = [0, 0], sizes = [16, 256], strides = [1, 1]} : vector<16x320xf32> to vector<16x256xf32>
    %127 = arith.truncf %126 : vector<16x256xf32> to vector<16x256xbf16>
    %128 = vector.extract_strided_slice %125 {offsets = [0, 256], sizes = [16, 64], strides = [1, 1]} : vector<16x320xf32> to vector<16x64xf32>
    %129 = arith.truncf %31 : vector<16x64xf32> to vector<16x64xbf16>
    %c1_83 = arith.constant 1 : index
    %c0_84 = arith.constant 0 : index
    %c384_85 = arith.constant 384 : index
    %130 = vector.load %arg2[%c1_83, %c0_84, %c384_85] : memref<6x64x448xbf16, #tpu.memory_space<vmem>>, vector<1x64x64xbf16>
    %131 = vector.shape_cast %130 : vector<1x64x64xbf16> to vector<64x64xbf16>
    %cst_86 = arith.constant dense<0.000000e+00> : vector<16x64xf32>
    %132 = tpu.matmul %129, %131, %cst_86 {dimension_numbers = #tpu.dot_dimension_numbers<[1], [0], [0], [1], [0, 0, 1, 1], [], []>} : vector<16x64xbf16>, vector<64x64xbf16>, vector<16x64xf32> -> vector<16x64xf32>
    %133 = arith.mulf %128, %2 : vector<16x64xf32>
    %134 = arith.truncf %133 : vector<16x64xf32> to vector<16x64xbf16>
    %cst_87 = arith.constant dense<0.000000e+00> : vector<16x64xf32>
    %135 = tpu.matmul %0, %134, %cst_87 {dimension_numbers = #tpu.dot_dimension_numbers<[1], [0], [0], [1], [0, 0, 1, 1], [], []>} : vector<16x16xbf16>, vector<16x64xbf16>, vector<16x64xf32> -> vector<16x64xf32>
    %136 = arith.addf %132, %135 : vector<16x64xf32>
    %cst_88 = arith.constant 0.000000e+00 : f32
    %137 = vector.broadcast %cst_88 : f32 to vector<16x64xf32>
    %138 = arith.cmpf oge, %136, %137 : vector<16x64xf32>
    %cst_89 = arith.constant 2.000000e-01 : f32
    %139 = vector.broadcast %cst_89 : f32 to vector<16x64xf32>
    %140 = arith.mulf %139, %136 : vector<16x64xf32>
    %141 = arith.select %138, %136, %140 : vector<16x64xi1>, vector<16x64xf32>
    %142 = arith.addf %141, %18 : vector<16x64xf32>
    %cst_90 = arith.constant dense<0xFF800000> : vector<16xf32>
    %143 = vector.multi_reduction <maximumf>, %142, %cst_90 [1] : vector<16x64xf32> to vector<16xf32>
    %144 = vector.shape_cast %143 : vector<16xf32> to vector<16x1xf32>
    %145 = vector.broadcast %144 : vector<16x1xf32> to vector<16x64xf32>
    %146 = arith.subf %142, %145 : vector<16x64xf32>
    %147 = math.exp %146 : vector<16x64xf32>
    %148 = arith.mulf %147, %6 : vector<16x64xf32>
    %149 = vector.extract_strided_slice %148 {offsets = [0, 0], sizes = [16, 16], strides = [1, 1]} : vector<16x64xf32> to vector<16x16xf32>
    %cst_91 = arith.constant dense<0.000000e+00> : vector<16xf32>
    %150 = vector.multi_reduction <add>, %149, %cst_91 [1] : vector<16x16xf32> to vector<16xf32>
    %151 = vector.shape_cast %150 : vector<16xf32> to vector<16x1xf32>
    %cst_92 = arith.constant 9.99999968E-21 : f32
    %152 = vector.broadcast %cst_92 : f32 to vector<16x1xf32>
    %153 = arith.maximumf %151, %152 : vector<16x1xf32>
    %154 = tpu.reciprocal %153 {approx = true} : vector<16x1xf32> -> vector<16x1xf32>
    %155 = arith.truncf %149 : vector<16x16xf32> to vector<16x16xbf16>
    %156 = vector.extract_strided_slice %127 {offsets = [0, 0], sizes = [16, 64], strides = [1, 1]} : vector<16x256xbf16> to vector<16x64xbf16>
    %cst_93 = arith.constant dense<0.000000e+00> : vector<16x64xf32>
    %157 = tpu.matmul %155, %156, %cst_93 {dimension_numbers = #tpu.dot_dimension_numbers<[1], [0], [0], [1], [0, 0, 1, 1], [], []>} : vector<16x16xbf16>, vector<16x64xbf16>, vector<16x64xf32> -> vector<16x64xf32>
    %158 = vector.broadcast %154 : vector<16x1xf32> to vector<16x64xf32>
    %159 = arith.mulf %158, %157 : vector<16x64xf32>
    %160 = vector.extract_strided_slice %148 {offsets = [0, 16], sizes = [16, 16], strides = [1, 1]} : vector<16x64xf32> to vector<16x16xf32>
    %cst_94 = arith.constant dense<0.000000e+00> : vector<16xf32>
    %161 = vector.multi_reduction <add>, %160, %cst_94 [1] : vector<16x16xf32> to vector<16xf32>
    %162 = vector.shape_cast %161 : vector<16xf32> to vector<16x1xf32>
    %cst_95 = arith.constant 9.99999968E-21 : f32
    %163 = vector.broadcast %cst_95 : f32 to vector<16x1xf32>
    %164 = arith.maximumf %162, %163 : vector<16x1xf32>
    %165 = tpu.reciprocal %164 {approx = true} : vector<16x1xf32> -> vector<16x1xf32>
    %166 = arith.truncf %160 : vector<16x16xf32> to vector<16x16xbf16>
    %167 = vector.extract_strided_slice %127 {offsets = [0, 64], sizes = [16, 64], strides = [1, 1]} : vector<16x256xbf16> to vector<16x64xbf16>
    %cst_96 = arith.constant dense<0.000000e+00> : vector<16x64xf32>
    %168 = tpu.matmul %166, %167, %cst_96 {dimension_numbers = #tpu.dot_dimension_numbers<[1], [0], [0], [1], [0, 0, 1, 1], [], []>} : vector<16x16xbf16>, vector<16x64xbf16>, vector<16x64xf32> -> vector<16x64xf32>
    %169 = vector.broadcast %165 : vector<16x1xf32> to vector<16x64xf32>
    %170 = arith.mulf %169, %168 : vector<16x64xf32>
    %171 = vector.extract_strided_slice %148 {offsets = [0, 32], sizes = [16, 16], strides = [1, 1]} : vector<16x64xf32> to vector<16x16xf32>
    %cst_97 = arith.constant dense<0.000000e+00> : vector<16xf32>
    %172 = vector.multi_reduction <add>, %171, %cst_97 [1] : vector<16x16xf32> to vector<16xf32>
    %173 = vector.shape_cast %172 : vector<16xf32> to vector<16x1xf32>
    %cst_98 = arith.constant 9.99999968E-21 : f32
    %174 = vector.broadcast %cst_98 : f32 to vector<16x1xf32>
    %175 = arith.maximumf %173, %174 : vector<16x1xf32>
    %176 = tpu.reciprocal %175 {approx = true} : vector<16x1xf32> -> vector<16x1xf32>
    %177 = arith.truncf %171 : vector<16x16xf32> to vector<16x16xbf16>
    %178 = vector.extract_strided_slice %127 {offsets = [0, 128], sizes = [16, 64], strides = [1, 1]} : vector<16x256xbf16> to vector<16x64xbf16>
    %cst_99 = arith.constant dense<0.000000e+00> : vector<16x64xf32>
    %179 = tpu.matmul %177, %178, %cst_99 {dimension_numbers = #tpu.dot_dimension_numbers<[1], [0], [0], [1], [0, 0, 1, 1], [], []>} : vector<16x16xbf16>, vector<16x64xbf16>, vector<16x64xf32> -> vector<16x64xf32>
    %180 = vector.broadcast %176 : vector<16x1xf32> to vector<16x64xf32>
    %181 = arith.mulf %180, %179 : vector<16x64xf32>
    %182 = vector.extract_strided_slice %148 {offsets = [0, 48], sizes = [16, 16], strides = [1, 1]} : vector<16x64xf32> to vector<16x16xf32>
    %cst_100 = arith.constant dense<0.000000e+00> : vector<16xf32>
    %183 = vector.multi_reduction <add>, %182, %cst_100 [1] : vector<16x16xf32> to vector<16xf32>
    %184 = vector.shape_cast %183 : vector<16xf32> to vector<16x1xf32>
    %cst_101 = arith.constant 9.99999968E-21 : f32
    %185 = vector.broadcast %cst_101 : f32 to vector<16x1xf32>
    %186 = arith.maximumf %184, %185 : vector<16x1xf32>
    %187 = tpu.reciprocal %186 {approx = true} : vector<16x1xf32> -> vector<16x1xf32>
    %188 = arith.truncf %182 : vector<16x16xf32> to vector<16x16xbf16>
    %189 = vector.extract_strided_slice %127 {offsets = [0, 192], sizes = [16, 64], strides = [1, 1]} : vector<16x256xbf16> to vector<16x64xbf16>
    %cst_102 = arith.constant dense<0.000000e+00> : vector<16x64xf32>
    %190 = tpu.matmul %188, %189, %cst_102 {dimension_numbers = #tpu.dot_dimension_numbers<[1], [0], [0], [1], [0, 0, 1, 1], [], []>} : vector<16x16xbf16>, vector<16x64xbf16>, vector<16x64xf32> -> vector<16x64xf32>
    %191 = vector.broadcast %187 : vector<16x1xf32> to vector<16x64xf32>
    %192 = arith.mulf %191, %190 : vector<16x64xf32>
    %193 = tpu.concatenate %159, %170, %181, %192 in 1 : vector<16x64xf32>, vector<16x64xf32>, vector<16x64xf32>, vector<16x64xf32> -> vector<16x256xf32>
    %c1_103 = arith.constant 1 : index
    %c0_104 = arith.constant 0 : index
    %194 = vector.load %arg6[%c1_103, %c0_104] : memref<13x256xf32, #tpu.memory_space<vmem>>, vector<1x256xf32>
    %195 = vector.broadcast %194 : vector<1x256xf32> to vector<16x256xf32>
    %196 = arith.addf %193, %195 : vector<16x256xf32>
    %197 = arith.truncf %36 : vector<16x64xf32> to vector<16x64xbf16>
    %c2_105 = arith.constant 2 : index
    %c0_106 = arith.constant 0 : index
    %c0_107 = arith.constant 0 : index
    %198 = vector.load %arg2[%c2_105, %c0_106, %c0_107] : memref<6x64x448xbf16, #tpu.memory_space<vmem>>, vector<1x64x320xbf16>
    %199 = vector.shape_cast %198 : vector<1x64x320xbf16> to vector<64x320xbf16>
    %cst_108 = arith.constant dense<0.000000e+00> : vector<16x320xf32>
    %200 = tpu.matmul %197, %199, %cst_108 {dimension_numbers = #tpu.dot_dimension_numbers<[1], [0], [0], [1], [0, 0, 1, 1], [], []>} : vector<16x64xbf16>, vector<64x320xbf16>, vector<16x320xf32> -> vector<16x320xf32>
    %201 = vector.extract_strided_slice %200 {offsets = [0, 0], sizes = [16, 256], strides = [1, 1]} : vector<16x320xf32> to vector<16x256xf32>
    %202 = arith.truncf %201 : vector<16x256xf32> to vector<16x256xbf16>
    %203 = vector.extract_strided_slice %200 {offsets = [0, 256], sizes = [16, 64], strides = [1, 1]} : vector<16x320xf32> to vector<16x64xf32>
    %204 = arith.truncf %41 : vector<16x64xf32> to vector<16x64xbf16>
    %c2_109 = arith.constant 2 : index
    %c0_110 = arith.constant 0 : index
    %c384_111 = arith.constant 384 : index
    %205 = vector.load %arg2[%c2_109, %c0_110, %c384_111] : memref<6x64x448xbf16, #tpu.memory_space<vmem>>, vector<1x64x64xbf16>
    %206 = vector.shape_cast %205 : vector<1x64x64xbf16> to vector<64x64xbf16>
    %cst_112 = arith.constant dense<0.000000e+00> : vector<16x64xf32>
    %207 = tpu.matmul %204, %206, %cst_112 {dimension_numbers = #tpu.dot_dimension_numbers<[1], [0], [0], [1], [0, 0, 1, 1], [], []>} : vector<16x64xbf16>, vector<64x64xbf16>, vector<16x64xf32> -> vector<16x64xf32>
    %208 = arith.mulf %203, %2 : vector<16x64xf32>
    %209 = arith.truncf %208 : vector<16x64xf32> to vector<16x64xbf16>
    %cst_113 = arith.constant dense<0.000000e+00> : vector<16x64xf32>
    %210 = tpu.matmul %0, %209, %cst_113 {dimension_numbers = #tpu.dot_dimension_numbers<[1], [0], [0], [1], [0, 0, 1, 1], [], []>} : vector<16x16xbf16>, vector<16x64xbf16>, vector<16x64xf32> -> vector<16x64xf32>
    %211 = arith.addf %207, %210 : vector<16x64xf32>
    %cst_114 = arith.constant 0.000000e+00 : f32
    %212 = vector.broadcast %cst_114 : f32 to vector<16x64xf32>
    %213 = arith.cmpf oge, %211, %212 : vector<16x64xf32>
    %cst_115 = arith.constant 2.000000e-01 : f32
    %214 = vector.broadcast %cst_115 : f32 to vector<16x64xf32>
    %215 = arith.mulf %214, %211 : vector<16x64xf32>
    %216 = arith.select %213, %211, %215 : vector<16x64xi1>, vector<16x64xf32>
    %217 = arith.addf %216, %20 : vector<16x64xf32>
    %cst_116 = arith.constant dense<0xFF800000> : vector<16xf32>
    %218 = vector.multi_reduction <maximumf>, %217, %cst_116 [1] : vector<16x64xf32> to vector<16xf32>
    %219 = vector.shape_cast %218 : vector<16xf32> to vector<16x1xf32>
    %220 = vector.broadcast %219 : vector<16x1xf32> to vector<16x64xf32>
    %221 = arith.subf %217, %220 : vector<16x64xf32>
    %222 = math.exp %221 : vector<16x64xf32>
    %223 = arith.mulf %222, %8 : vector<16x64xf32>
    %224 = vector.extract_strided_slice %223 {offsets = [0, 0], sizes = [16, 16], strides = [1, 1]} : vector<16x64xf32> to vector<16x16xf32>
    %cst_117 = arith.constant dense<0.000000e+00> : vector<16xf32>
    %225 = vector.multi_reduction <add>, %224, %cst_117 [1] : vector<16x16xf32> to vector<16xf32>
    %226 = vector.shape_cast %225 : vector<16xf32> to vector<16x1xf32>
    %cst_118 = arith.constant 9.99999968E-21 : f32
    %227 = vector.broadcast %cst_118 : f32 to vector<16x1xf32>
    %228 = arith.maximumf %226, %227 : vector<16x1xf32>
    %229 = tpu.reciprocal %228 {approx = true} : vector<16x1xf32> -> vector<16x1xf32>
    %230 = arith.truncf %224 : vector<16x16xf32> to vector<16x16xbf16>
    %231 = vector.extract_strided_slice %202 {offsets = [0, 0], sizes = [16, 64], strides = [1, 1]} : vector<16x256xbf16> to vector<16x64xbf16>
    %cst_119 = arith.constant dense<0.000000e+00> : vector<16x64xf32>
    %232 = tpu.matmul %230, %231, %cst_119 {dimension_numbers = #tpu.dot_dimension_numbers<[1], [0], [0], [1], [0, 0, 1, 1], [], []>} : vector<16x16xbf16>, vector<16x64xbf16>, vector<16x64xf32> -> vector<16x64xf32>
    %233 = vector.broadcast %229 : vector<16x1xf32> to vector<16x64xf32>
    %234 = arith.mulf %233, %232 : vector<16x64xf32>
    %235 = vector.extract_strided_slice %223 {offsets = [0, 16], sizes = [16, 16], strides = [1, 1]} : vector<16x64xf32> to vector<16x16xf32>
    %cst_120 = arith.constant dense<0.000000e+00> : vector<16xf32>
    %236 = vector.multi_reduction <add>, %235, %cst_120 [1] : vector<16x16xf32> to vector<16xf32>
    %237 = vector.shape_cast %236 : vector<16xf32> to vector<16x1xf32>
    %cst_121 = arith.constant 9.99999968E-21 : f32
    %238 = vector.broadcast %cst_121 : f32 to vector<16x1xf32>
    %239 = arith.maximumf %237, %238 : vector<16x1xf32>
    %240 = tpu.reciprocal %239 {approx = true} : vector<16x1xf32> -> vector<16x1xf32>
    %241 = arith.truncf %235 : vector<16x16xf32> to vector<16x16xbf16>
    %242 = vector.extract_strided_slice %202 {offsets = [0, 64], sizes = [16, 64], strides = [1, 1]} : vector<16x256xbf16> to vector<16x64xbf16>
    %cst_122 = arith.constant dense<0.000000e+00> : vector<16x64xf32>
    %243 = tpu.matmul %241, %242, %cst_122 {dimension_numbers = #tpu.dot_dimension_numbers<[1], [0], [0], [1], [0, 0, 1, 1], [], []>} : vector<16x16xbf16>, vector<16x64xbf16>, vector<16x64xf32> -> vector<16x64xf32>
    %244 = vector.broadcast %240 : vector<16x1xf32> to vector<16x64xf32>
    %245 = arith.mulf %244, %243 : vector<16x64xf32>
    %246 = vector.extract_strided_slice %223 {offsets = [0, 32], sizes = [16, 16], strides = [1, 1]} : vector<16x64xf32> to vector<16x16xf32>
    %cst_123 = arith.constant dense<0.000000e+00> : vector<16xf32>
    %247 = vector.multi_reduction <add>, %246, %cst_123 [1] : vector<16x16xf32> to vector<16xf32>
    %248 = vector.shape_cast %247 : vector<16xf32> to vector<16x1xf32>
    %cst_124 = arith.constant 9.99999968E-21 : f32
    %249 = vector.broadcast %cst_124 : f32 to vector<16x1xf32>
    %250 = arith.maximumf %248, %249 : vector<16x1xf32>
    %251 = tpu.reciprocal %250 {approx = true} : vector<16x1xf32> -> vector<16x1xf32>
    %252 = arith.truncf %246 : vector<16x16xf32> to vector<16x16xbf16>
    %253 = vector.extract_strided_slice %202 {offsets = [0, 128], sizes = [16, 64], strides = [1, 1]} : vector<16x256xbf16> to vector<16x64xbf16>
    %cst_125 = arith.constant dense<0.000000e+00> : vector<16x64xf32>
    %254 = tpu.matmul %252, %253, %cst_125 {dimension_numbers = #tpu.dot_dimension_numbers<[1], [0], [0], [1], [0, 0, 1, 1], [], []>} : vector<16x16xbf16>, vector<16x64xbf16>, vector<16x64xf32> -> vector<16x64xf32>
    %255 = vector.broadcast %251 : vector<16x1xf32> to vector<16x64xf32>
    %256 = arith.mulf %255, %254 : vector<16x64xf32>
    %257 = vector.extract_strided_slice %223 {offsets = [0, 48], sizes = [16, 16], strides = [1, 1]} : vector<16x64xf32> to vector<16x16xf32>
    %cst_126 = arith.constant dense<0.000000e+00> : vector<16xf32>
    %258 = vector.multi_reduction <add>, %257, %cst_126 [1] : vector<16x16xf32> to vector<16xf32>
    %259 = vector.shape_cast %258 : vector<16xf32> to vector<16x1xf32>
    %cst_127 = arith.constant 9.99999968E-21 : f32
    %260 = vector.broadcast %cst_127 : f32 to vector<16x1xf32>
    %261 = arith.maximumf %259, %260 : vector<16x1xf32>
    %262 = tpu.reciprocal %261 {approx = true} : vector<16x1xf32> -> vector<16x1xf32>
    %263 = arith.truncf %257 : vector<16x16xf32> to vector<16x16xbf16>
    %264 = vector.extract_strided_slice %202 {offsets = [0, 192], sizes = [16, 64], strides = [1, 1]} : vector<16x256xbf16> to vector<16x64xbf16>
    %cst_128 = arith.constant dense<0.000000e+00> : vector<16x64xf32>
    %265 = tpu.matmul %263, %264, %cst_128 {dimension_numbers = #tpu.dot_dimension_numbers<[1], [0], [0], [1], [0, 0, 1, 1], [], []>} : vector<16x16xbf16>, vector<16x64xbf16>, vector<16x64xf32> -> vector<16x64xf32>
    %266 = vector.broadcast %262 : vector<16x1xf32> to vector<16x64xf32>
    %267 = arith.mulf %266, %265 : vector<16x64xf32>
    %268 = tpu.concatenate %234, %245, %256, %267 in 1 : vector<16x64xf32>, vector<16x64xf32>, vector<16x64xf32>, vector<16x64xf32> -> vector<16x256xf32>
    %c2_129 = arith.constant 2 : index
    %c0_130 = arith.constant 0 : index
    %269 = vector.load %arg6[%c2_129, %c0_130] : memref<13x256xf32, #tpu.memory_space<vmem>>, vector<1x256xf32>
    %270 = vector.broadcast %269 : vector<1x256xf32> to vector<16x256xf32>
    %271 = arith.addf %268, %270 : vector<16x256xf32>
    %272 = arith.truncf %41 : vector<16x64xf32> to vector<16x64xbf16>
    %c3_131 = arith.constant 3 : index
    %c0_132 = arith.constant 0 : index
    %c0_133 = arith.constant 0 : index
    %273 = vector.load %arg2[%c3_131, %c0_132, %c0_133] : memref<6x64x448xbf16, #tpu.memory_space<vmem>>, vector<1x64x320xbf16>
    %274 = vector.shape_cast %273 : vector<1x64x320xbf16> to vector<64x320xbf16>
    %cst_134 = arith.constant dense<0.000000e+00> : vector<16x320xf32>
    %275 = tpu.matmul %272, %274, %cst_134 {dimension_numbers = #tpu.dot_dimension_numbers<[1], [0], [0], [1], [0, 0, 1, 1], [], []>} : vector<16x64xbf16>, vector<64x320xbf16>, vector<16x320xf32> -> vector<16x320xf32>
    %276 = vector.extract_strided_slice %275 {offsets = [0, 0], sizes = [16, 256], strides = [1, 1]} : vector<16x320xf32> to vector<16x256xf32>
    %277 = arith.truncf %276 : vector<16x256xf32> to vector<16x256xbf16>
    %278 = vector.extract_strided_slice %275 {offsets = [0, 256], sizes = [16, 64], strides = [1, 1]} : vector<16x320xf32> to vector<16x64xf32>
    %279 = arith.truncf %36 : vector<16x64xf32> to vector<16x64xbf16>
    %c3_135 = arith.constant 3 : index
    %c0_136 = arith.constant 0 : index
    %c384_137 = arith.constant 384 : index
    %280 = vector.load %arg2[%c3_135, %c0_136, %c384_137] : memref<6x64x448xbf16, #tpu.memory_space<vmem>>, vector<1x64x64xbf16>
    %281 = vector.shape_cast %280 : vector<1x64x64xbf16> to vector<64x64xbf16>
    %cst_138 = arith.constant dense<0.000000e+00> : vector<16x64xf32>
    %282 = tpu.matmul %279, %281, %cst_138 {dimension_numbers = #tpu.dot_dimension_numbers<[1], [0], [0], [1], [0, 0, 1, 1], [], []>} : vector<16x64xbf16>, vector<64x64xbf16>, vector<16x64xf32> -> vector<16x64xf32>
    %283 = arith.mulf %278, %2 : vector<16x64xf32>
    %284 = arith.truncf %283 : vector<16x64xf32> to vector<16x64xbf16>
    %cst_139 = arith.constant dense<0.000000e+00> : vector<16x64xf32>
    %285 = tpu.matmul %0, %284, %cst_139 {dimension_numbers = #tpu.dot_dimension_numbers<[1], [0], [0], [1], [0, 0, 1, 1], [], []>} : vector<16x16xbf16>, vector<16x64xbf16>, vector<16x64xf32> -> vector<16x64xf32>
    %286 = arith.addf %282, %285 : vector<16x64xf32>
    %cst_140 = arith.constant 0.000000e+00 : f32
    %287 = vector.broadcast %cst_140 : f32 to vector<16x64xf32>
    %288 = arith.cmpf oge, %286, %287 : vector<16x64xf32>
    %cst_141 = arith.constant 2.000000e-01 : f32
    %289 = vector.broadcast %cst_141 : f32 to vector<16x64xf32>
    %290 = arith.mulf %289, %286 : vector<16x64xf32>
    %291 = arith.select %288, %286, %290 : vector<16x64xi1>, vector<16x64xf32>
    %292 = arith.addf %291, %22 : vector<16x64xf32>
    %cst_142 = arith.constant dense<0xFF800000> : vector<16xf32>
    %293 = vector.multi_reduction <maximumf>, %292, %cst_142 [1] : vector<16x64xf32> to vector<16xf32>
    %294 = vector.shape_cast %293 : vector<16xf32> to vector<16x1xf32>
    %295 = vector.broadcast %294 : vector<16x1xf32> to vector<16x64xf32>
    %296 = arith.subf %292, %295 : vector<16x64xf32>
    %297 = math.exp %296 : vector<16x64xf32>
    %298 = arith.mulf %297, %10 : vector<16x64xf32>
    %299 = vector.extract_strided_slice %298 {offsets = [0, 0], sizes = [16, 16], strides = [1, 1]} : vector<16x64xf32> to vector<16x16xf32>
    %cst_143 = arith.constant dense<0.000000e+00> : vector<16xf32>
    %300 = vector.multi_reduction <add>, %299, %cst_143 [1] : vector<16x16xf32> to vector<16xf32>
    %301 = vector.shape_cast %300 : vector<16xf32> to vector<16x1xf32>
    %cst_144 = arith.constant 9.99999968E-21 : f32
    %302 = vector.broadcast %cst_144 : f32 to vector<16x1xf32>
    %303 = arith.maximumf %301, %302 : vector<16x1xf32>
    %304 = tpu.reciprocal %303 {approx = true} : vector<16x1xf32> -> vector<16x1xf32>
    %305 = arith.truncf %299 : vector<16x16xf32> to vector<16x16xbf16>
    %306 = vector.extract_strided_slice %277 {offsets = [0, 0], sizes = [16, 64], strides = [1, 1]} : vector<16x256xbf16> to vector<16x64xbf16>
    %cst_145 = arith.constant dense<0.000000e+00> : vector<16x64xf32>
    %307 = tpu.matmul %305, %306, %cst_145 {dimension_numbers = #tpu.dot_dimension_numbers<[1], [0], [0], [1], [0, 0, 1, 1], [], []>} : vector<16x16xbf16>, vector<16x64xbf16>, vector<16x64xf32> -> vector<16x64xf32>
    %308 = vector.broadcast %304 : vector<16x1xf32> to vector<16x64xf32>
    %309 = arith.mulf %308, %307 : vector<16x64xf32>
    %310 = vector.extract_strided_slice %298 {offsets = [0, 16], sizes = [16, 16], strides = [1, 1]} : vector<16x64xf32> to vector<16x16xf32>
    %cst_146 = arith.constant dense<0.000000e+00> : vector<16xf32>
    %311 = vector.multi_reduction <add>, %310, %cst_146 [1] : vector<16x16xf32> to vector<16xf32>
    %312 = vector.shape_cast %311 : vector<16xf32> to vector<16x1xf32>
    %cst_147 = arith.constant 9.99999968E-21 : f32
    %313 = vector.broadcast %cst_147 : f32 to vector<16x1xf32>
    %314 = arith.maximumf %312, %313 : vector<16x1xf32>
    %315 = tpu.reciprocal %314 {approx = true} : vector<16x1xf32> -> vector<16x1xf32>
    %316 = arith.truncf %310 : vector<16x16xf32> to vector<16x16xbf16>
    %317 = vector.extract_strided_slice %277 {offsets = [0, 64], sizes = [16, 64], strides = [1, 1]} : vector<16x256xbf16> to vector<16x64xbf16>
    %cst_148 = arith.constant dense<0.000000e+00> : vector<16x64xf32>
    %318 = tpu.matmul %316, %317, %cst_148 {dimension_numbers = #tpu.dot_dimension_numbers<[1], [0], [0], [1], [0, 0, 1, 1], [], []>} : vector<16x16xbf16>, vector<16x64xbf16>, vector<16x64xf32> -> vector<16x64xf32>
    %319 = vector.broadcast %315 : vector<16x1xf32> to vector<16x64xf32>
    %320 = arith.mulf %319, %318 : vector<16x64xf32>
    %321 = vector.extract_strided_slice %298 {offsets = [0, 32], sizes = [16, 16], strides = [1, 1]} : vector<16x64xf32> to vector<16x16xf32>
    %cst_149 = arith.constant dense<0.000000e+00> : vector<16xf32>
    %322 = vector.multi_reduction <add>, %321, %cst_149 [1] : vector<16x16xf32> to vector<16xf32>
    %323 = vector.shape_cast %322 : vector<16xf32> to vector<16x1xf32>
    %cst_150 = arith.constant 9.99999968E-21 : f32
    %324 = vector.broadcast %cst_150 : f32 to vector<16x1xf32>
    %325 = arith.maximumf %323, %324 : vector<16x1xf32>
    %326 = tpu.reciprocal %325 {approx = true} : vector<16x1xf32> -> vector<16x1xf32>
    %327 = arith.truncf %321 : vector<16x16xf32> to vector<16x16xbf16>
    %328 = vector.extract_strided_slice %277 {offsets = [0, 128], sizes = [16, 64], strides = [1, 1]} : vector<16x256xbf16> to vector<16x64xbf16>
    %cst_151 = arith.constant dense<0.000000e+00> : vector<16x64xf32>
    %329 = tpu.matmul %327, %328, %cst_151 {dimension_numbers = #tpu.dot_dimension_numbers<[1], [0], [0], [1], [0, 0, 1, 1], [], []>} : vector<16x16xbf16>, vector<16x64xbf16>, vector<16x64xf32> -> vector<16x64xf32>
    %330 = vector.broadcast %326 : vector<16x1xf32> to vector<16x64xf32>
    %331 = arith.mulf %330, %329 : vector<16x64xf32>
    %332 = vector.extract_strided_slice %298 {offsets = [0, 48], sizes = [16, 16], strides = [1, 1]} : vector<16x64xf32> to vector<16x16xf32>
    %cst_152 = arith.constant dense<0.000000e+00> : vector<16xf32>
    %333 = vector.multi_reduction <add>, %332, %cst_152 [1] : vector<16x16xf32> to vector<16xf32>
    %334 = vector.shape_cast %333 : vector<16xf32> to vector<16x1xf32>
    %cst_153 = arith.constant 9.99999968E-21 : f32
    %335 = vector.broadcast %cst_153 : f32 to vector<16x1xf32>
    %336 = arith.maximumf %334, %335 : vector<16x1xf32>
    %337 = tpu.reciprocal %336 {approx = true} : vector<16x1xf32> -> vector<16x1xf32>
    %338 = arith.truncf %332 : vector<16x16xf32> to vector<16x16xbf16>
    %339 = vector.extract_strided_slice %277 {offsets = [0, 192], sizes = [16, 64], strides = [1, 1]} : vector<16x256xbf16> to vector<16x64xbf16>
    %cst_154 = arith.constant dense<0.000000e+00> : vector<16x64xf32>
    %340 = tpu.matmul %338, %339, %cst_154 {dimension_numbers = #tpu.dot_dimension_numbers<[1], [0], [0], [1], [0, 0, 1, 1], [], []>} : vector<16x16xbf16>, vector<16x64xbf16>, vector<16x64xf32> -> vector<16x64xf32>
    %341 = vector.broadcast %337 : vector<16x1xf32> to vector<16x64xf32>
    %342 = arith.mulf %341, %340 : vector<16x64xf32>
    %343 = tpu.concatenate %309, %320, %331, %342 in 1 : vector<16x64xf32>, vector<16x64xf32>, vector<16x64xf32>, vector<16x64xf32> -> vector<16x256xf32>
    %c3_155 = arith.constant 3 : index
    %c0_156 = arith.constant 0 : index
    %344 = vector.load %arg6[%c3_155, %c0_156] : memref<13x256xf32, #tpu.memory_space<vmem>>, vector<1x256xf32>
    %345 = vector.broadcast %344 : vector<1x256xf32> to vector<16x256xf32>
    %346 = arith.addf %343, %345 : vector<16x256xf32>
    %347 = arith.addf %121, %346 : vector<16x256xf32>
    %348 = arith.truncf %36 : vector<16x64xf32> to vector<16x64xbf16>
    %c4_157 = arith.constant 4 : index
    %c0_158 = arith.constant 0 : index
    %c0_159 = arith.constant 0 : index
    %349 = vector.load %arg2[%c4_157, %c0_158, %c0_159] : memref<6x64x448xbf16, #tpu.memory_space<vmem>>, vector<1x64x320xbf16>
    %350 = vector.shape_cast %349 : vector<1x64x320xbf16> to vector<64x320xbf16>
    %cst_160 = arith.constant dense<0.000000e+00> : vector<16x320xf32>
    %351 = tpu.matmul %348, %350, %cst_160 {dimension_numbers = #tpu.dot_dimension_numbers<[1], [0], [0], [1], [0, 0, 1, 1], [], []>} : vector<16x64xbf16>, vector<64x320xbf16>, vector<16x320xf32> -> vector<16x320xf32>
    %352 = vector.extract_strided_slice %351 {offsets = [0, 0], sizes = [16, 256], strides = [1, 1]} : vector<16x320xf32> to vector<16x256xf32>
    %353 = arith.truncf %352 : vector<16x256xf32> to vector<16x256xbf16>
    %354 = vector.extract_strided_slice %351 {offsets = [0, 256], sizes = [16, 64], strides = [1, 1]} : vector<16x320xf32> to vector<16x64xf32>
    %355 = arith.truncf %46 : vector<16x64xf32> to vector<16x64xbf16>
    %c4_161 = arith.constant 4 : index
    %c0_162 = arith.constant 0 : index
    %c384_163 = arith.constant 384 : index
    %356 = vector.load %arg2[%c4_161, %c0_162, %c384_163] : memref<6x64x448xbf16, #tpu.memory_space<vmem>>, vector<1x64x64xbf16>
    %357 = vector.shape_cast %356 : vector<1x64x64xbf16> to vector<64x64xbf16>
    %cst_164 = arith.constant dense<0.000000e+00> : vector<16x64xf32>
    %358 = tpu.matmul %355, %357, %cst_164 {dimension_numbers = #tpu.dot_dimension_numbers<[1], [0], [0], [1], [0, 0, 1, 1], [], []>} : vector<16x64xbf16>, vector<64x64xbf16>, vector<16x64xf32> -> vector<16x64xf32>
    %359 = arith.mulf %354, %2 : vector<16x64xf32>
    %360 = arith.truncf %359 : vector<16x64xf32> to vector<16x64xbf16>
    %cst_165 = arith.constant dense<0.000000e+00> : vector<16x64xf32>
    %361 = tpu.matmul %0, %360, %cst_165 {dimension_numbers = #tpu.dot_dimension_numbers<[1], [0], [0], [1], [0, 0, 1, 1], [], []>} : vector<16x16xbf16>, vector<16x64xbf16>, vector<16x64xf32> -> vector<16x64xf32>
    %362 = arith.addf %358, %361 : vector<16x64xf32>
    %cst_166 = arith.constant 0.000000e+00 : f32
    %363 = vector.broadcast %cst_166 : f32 to vector<16x64xf32>
    %364 = arith.cmpf oge, %362, %363 : vector<16x64xf32>
    %cst_167 = arith.constant 2.000000e-01 : f32
    %365 = vector.broadcast %cst_167 : f32 to vector<16x64xf32>
    %366 = arith.mulf %365, %362 : vector<16x64xf32>
    %367 = arith.select %364, %362, %366 : vector<16x64xi1>, vector<16x64xf32>
    %368 = arith.addf %367, %24 : vector<16x64xf32>
    %cst_168 = arith.constant dense<0xFF800000> : vector<16xf32>
    %369 = vector.multi_reduction <maximumf>, %368, %cst_168 [1] : vector<16x64xf32> to vector<16xf32>
    %370 = vector.shape_cast %369 : vector<16xf32> to vector<16x1xf32>
    %371 = vector.broadcast %370 : vector<16x1xf32> to vector<16x64xf32>
    %372 = arith.subf %368, %371 : vector<16x64xf32>
    %373 = math.exp %372 : vector<16x64xf32>
    %374 = arith.mulf %373, %12 : vector<16x64xf32>
    %375 = vector.extract_strided_slice %374 {offsets = [0, 0], sizes = [16, 16], strides = [1, 1]} : vector<16x64xf32> to vector<16x16xf32>
    %cst_169 = arith.constant dense<0.000000e+00> : vector<16xf32>
    %376 = vector.multi_reduction <add>, %375, %cst_169 [1] : vector<16x16xf32> to vector<16xf32>
    %377 = vector.shape_cast %376 : vector<16xf32> to vector<16x1xf32>
    %cst_170 = arith.constant 9.99999968E-21 : f32
    %378 = vector.broadcast %cst_170 : f32 to vector<16x1xf32>
    %379 = arith.maximumf %377, %378 : vector<16x1xf32>
    %380 = tpu.reciprocal %379 {approx = true} : vector<16x1xf32> -> vector<16x1xf32>
    %381 = arith.truncf %375 : vector<16x16xf32> to vector<16x16xbf16>
    %382 = vector.extract_strided_slice %353 {offsets = [0, 0], sizes = [16, 64], strides = [1, 1]} : vector<16x256xbf16> to vector<16x64xbf16>
    %cst_171 = arith.constant dense<0.000000e+00> : vector<16x64xf32>
    %383 = tpu.matmul %381, %382, %cst_171 {dimension_numbers = #tpu.dot_dimension_numbers<[1], [0], [0], [1], [0, 0, 1, 1], [], []>} : vector<16x16xbf16>, vector<16x64xbf16>, vector<16x64xf32> -> vector<16x64xf32>
    %384 = vector.broadcast %380 : vector<16x1xf32> to vector<16x64xf32>
    %385 = arith.mulf %384, %383 : vector<16x64xf32>
    %386 = vector.extract_strided_slice %374 {offsets = [0, 16], sizes = [16, 16], strides = [1, 1]} : vector<16x64xf32> to vector<16x16xf32>
    %cst_172 = arith.constant dense<0.000000e+00> : vector<16xf32>
    %387 = vector.multi_reduction <add>, %386, %cst_172 [1] : vector<16x16xf32> to vector<16xf32>
    %388 = vector.shape_cast %387 : vector<16xf32> to vector<16x1xf32>
    %cst_173 = arith.constant 9.99999968E-21 : f32
    %389 = vector.broadcast %cst_173 : f32 to vector<16x1xf32>
    %390 = arith.maximumf %388, %389 : vector<16x1xf32>
    %391 = tpu.reciprocal %390 {approx = true} : vector<16x1xf32> -> vector<16x1xf32>
    %392 = arith.truncf %386 : vector<16x16xf32> to vector<16x16xbf16>
    %393 = vector.extract_strided_slice %353 {offsets = [0, 64], sizes = [16, 64], strides = [1, 1]} : vector<16x256xbf16> to vector<16x64xbf16>
    %cst_174 = arith.constant dense<0.000000e+00> : vector<16x64xf32>
    %394 = tpu.matmul %392, %393, %cst_174 {dimension_numbers = #tpu.dot_dimension_numbers<[1], [0], [0], [1], [0, 0, 1, 1], [], []>} : vector<16x16xbf16>, vector<16x64xbf16>, vector<16x64xf32> -> vector<16x64xf32>
    %395 = vector.broadcast %391 : vector<16x1xf32> to vector<16x64xf32>
    %396 = arith.mulf %395, %394 : vector<16x64xf32>
    %397 = vector.extract_strided_slice %374 {offsets = [0, 32], sizes = [16, 16], strides = [1, 1]} : vector<16x64xf32> to vector<16x16xf32>
    %cst_175 = arith.constant dense<0.000000e+00> : vector<16xf32>
    %398 = vector.multi_reduction <add>, %397, %cst_175 [1] : vector<16x16xf32> to vector<16xf32>
    %399 = vector.shape_cast %398 : vector<16xf32> to vector<16x1xf32>
    %cst_176 = arith.constant 9.99999968E-21 : f32
    %400 = vector.broadcast %cst_176 : f32 to vector<16x1xf32>
    %401 = arith.maximumf %399, %400 : vector<16x1xf32>
    %402 = tpu.reciprocal %401 {approx = true} : vector<16x1xf32> -> vector<16x1xf32>
    %403 = arith.truncf %397 : vector<16x16xf32> to vector<16x16xbf16>
    %404 = vector.extract_strided_slice %353 {offsets = [0, 128], sizes = [16, 64], strides = [1, 1]} : vector<16x256xbf16> to vector<16x64xbf16>
    %cst_177 = arith.constant dense<0.000000e+00> : vector<16x64xf32>
    %405 = tpu.matmul %403, %404, %cst_177 {dimension_numbers = #tpu.dot_dimension_numbers<[1], [0], [0], [1], [0, 0, 1, 1], [], []>} : vector<16x16xbf16>, vector<16x64xbf16>, vector<16x64xf32> -> vector<16x64xf32>
    %406 = vector.broadcast %402 : vector<16x1xf32> to vector<16x64xf32>
    %407 = arith.mulf %406, %405 : vector<16x64xf32>
    %408 = vector.extract_strided_slice %374 {offsets = [0, 48], sizes = [16, 16], strides = [1, 1]} : vector<16x64xf32> to vector<16x16xf32>
    %cst_178 = arith.constant dense<0.000000e+00> : vector<16xf32>
    %409 = vector.multi_reduction <add>, %408, %cst_178 [1] : vector<16x16xf32> to vector<16xf32>
    %410 = vector.shape_cast %409 : vector<16xf32> to vector<16x1xf32>
    %cst_179 = arith.constant 9.99999968E-21 : f32
    %411 = vector.broadcast %cst_179 : f32 to vector<16x1xf32>
    %412 = arith.maximumf %410, %411 : vector<16x1xf32>
    %413 = tpu.reciprocal %412 {approx = true} : vector<16x1xf32> -> vector<16x1xf32>
    %414 = arith.truncf %408 : vector<16x16xf32> to vector<16x16xbf16>
    %415 = vector.extract_strided_slice %353 {offsets = [0, 192], sizes = [16, 64], strides = [1, 1]} : vector<16x256xbf16> to vector<16x64xbf16>
    %cst_180 = arith.constant dense<0.000000e+00> : vector<16x64xf32>
    %416 = tpu.matmul %414, %415, %cst_180 {dimension_numbers = #tpu.dot_dimension_numbers<[1], [0], [0], [1], [0, 0, 1, 1], [], []>} : vector<16x16xbf16>, vector<16x64xbf16>, vector<16x64xf32> -> vector<16x64xf32>
    %417 = vector.broadcast %413 : vector<16x1xf32> to vector<16x64xf32>
    %418 = arith.mulf %417, %416 : vector<16x64xf32>
    %419 = tpu.concatenate %385, %396, %407, %418 in 1 : vector<16x64xf32>, vector<16x64xf32>, vector<16x64xf32>, vector<16x64xf32> -> vector<16x256xf32>
    %c4_181 = arith.constant 4 : index
    %c0_182 = arith.constant 0 : index
    %420 = vector.load %arg6[%c4_181, %c0_182] : memref<13x256xf32, #tpu.memory_space<vmem>>, vector<1x256xf32>
    %421 = vector.broadcast %420 : vector<1x256xf32> to vector<16x256xf32>
    %422 = arith.addf %419, %421 : vector<16x256xf32>
    %423 = arith.truncf %46 : vector<16x64xf32> to vector<16x64xbf16>
    %c5_183 = arith.constant 5 : index
    %c0_184 = arith.constant 0 : index
    %c0_185 = arith.constant 0 : index
    %424 = vector.load %arg2[%c5_183, %c0_184, %c0_185] : memref<6x64x448xbf16, #tpu.memory_space<vmem>>, vector<1x64x320xbf16>
    %425 = vector.shape_cast %424 : vector<1x64x320xbf16> to vector<64x320xbf16>
    %cst_186 = arith.constant dense<0.000000e+00> : vector<16x320xf32>
    %426 = tpu.matmul %423, %425, %cst_186 {dimension_numbers = #tpu.dot_dimension_numbers<[1], [0], [0], [1], [0, 0, 1, 1], [], []>} : vector<16x64xbf16>, vector<64x320xbf16>, vector<16x320xf32> -> vector<16x320xf32>
    %427 = vector.extract_strided_slice %426 {offsets = [0, 0], sizes = [16, 256], strides = [1, 1]} : vector<16x320xf32> to vector<16x256xf32>
    %428 = arith.truncf %427 : vector<16x256xf32> to vector<16x256xbf16>
    %429 = vector.extract_strided_slice %426 {offsets = [0, 256], sizes = [16, 64], strides = [1, 1]} : vector<16x320xf32> to vector<16x64xf32>
    %430 = arith.truncf %36 : vector<16x64xf32> to vector<16x64xbf16>
    %c5_187 = arith.constant 5 : index
    %c0_188 = arith.constant 0 : index
    %c384_189 = arith.constant 384 : index
    %431 = vector.load %arg2[%c5_187, %c0_188, %c384_189] : memref<6x64x448xbf16, #tpu.memory_space<vmem>>, vector<1x64x64xbf16>
    %432 = vector.shape_cast %431 : vector<1x64x64xbf16> to vector<64x64xbf16>
    %cst_190 = arith.constant dense<0.000000e+00> : vector<16x64xf32>
    %433 = tpu.matmul %430, %432, %cst_190 {dimension_numbers = #tpu.dot_dimension_numbers<[1], [0], [0], [1], [0, 0, 1, 1], [], []>} : vector<16x64xbf16>, vector<64x64xbf16>, vector<16x64xf32> -> vector<16x64xf32>
    %434 = arith.mulf %429, %2 : vector<16x64xf32>
    %435 = arith.truncf %434 : vector<16x64xf32> to vector<16x64xbf16>
    %cst_191 = arith.constant dense<0.000000e+00> : vector<16x64xf32>
    %436 = tpu.matmul %0, %435, %cst_191 {dimension_numbers = #tpu.dot_dimension_numbers<[1], [0], [0], [1], [0, 0, 1, 1], [], []>} : vector<16x16xbf16>, vector<16x64xbf16>, vector<16x64xf32> -> vector<16x64xf32>
    %437 = arith.addf %433, %436 : vector<16x64xf32>
    %cst_192 = arith.constant 0.000000e+00 : f32
    %438 = vector.broadcast %cst_192 : f32 to vector<16x64xf32>
    %439 = arith.cmpf oge, %437, %438 : vector<16x64xf32>
    %cst_193 = arith.constant 2.000000e-01 : f32
    %440 = vector.broadcast %cst_193 : f32 to vector<16x64xf32>
    %441 = arith.mulf %440, %437 : vector<16x64xf32>
    %442 = arith.select %439, %437, %441 : vector<16x64xi1>, vector<16x64xf32>
    %443 = arith.addf %442, %26 : vector<16x64xf32>
    %cst_194 = arith.constant dense<0xFF800000> : vector<16xf32>
    %444 = vector.multi_reduction <maximumf>, %443, %cst_194 [1] : vector<16x64xf32> to vector<16xf32>
    %445 = vector.shape_cast %444 : vector<16xf32> to vector<16x1xf32>
    %446 = vector.broadcast %445 : vector<16x1xf32> to vector<16x64xf32>
    %447 = arith.subf %443, %446 : vector<16x64xf32>
    %448 = math.exp %447 : vector<16x64xf32>
    %449 = arith.mulf %448, %14 : vector<16x64xf32>
    %450 = vector.extract_strided_slice %449 {offsets = [0, 0], sizes = [16, 16], strides = [1, 1]} : vector<16x64xf32> to vector<16x16xf32>
    %cst_195 = arith.constant dense<0.000000e+00> : vector<16xf32>
    %451 = vector.multi_reduction <add>, %450, %cst_195 [1] : vector<16x16xf32> to vector<16xf32>
    %452 = vector.shape_cast %451 : vector<16xf32> to vector<16x1xf32>
    %cst_196 = arith.constant 9.99999968E-21 : f32
    %453 = vector.broadcast %cst_196 : f32 to vector<16x1xf32>
    %454 = arith.maximumf %452, %453 : vector<16x1xf32>
    %455 = tpu.reciprocal %454 {approx = true} : vector<16x1xf32> -> vector<16x1xf32>
    %456 = arith.truncf %450 : vector<16x16xf32> to vector<16x16xbf16>
    %457 = vector.extract_strided_slice %428 {offsets = [0, 0], sizes = [16, 64], strides = [1, 1]} : vector<16x256xbf16> to vector<16x64xbf16>
    %cst_197 = arith.constant dense<0.000000e+00> : vector<16x64xf32>
    %458 = tpu.matmul %456, %457, %cst_197 {dimension_numbers = #tpu.dot_dimension_numbers<[1], [0], [0], [1], [0, 0, 1, 1], [], []>} : vector<16x16xbf16>, vector<16x64xbf16>, vector<16x64xf32> -> vector<16x64xf32>
    %459 = vector.broadcast %455 : vector<16x1xf32> to vector<16x64xf32>
    %460 = arith.mulf %459, %458 : vector<16x64xf32>
    %461 = vector.extract_strided_slice %449 {offsets = [0, 16], sizes = [16, 16], strides = [1, 1]} : vector<16x64xf32> to vector<16x16xf32>
    %cst_198 = arith.constant dense<0.000000e+00> : vector<16xf32>
    %462 = vector.multi_reduction <add>, %461, %cst_198 [1] : vector<16x16xf32> to vector<16xf32>
    %463 = vector.shape_cast %462 : vector<16xf32> to vector<16x1xf32>
    %cst_199 = arith.constant 9.99999968E-21 : f32
    %464 = vector.broadcast %cst_199 : f32 to vector<16x1xf32>
    %465 = arith.maximumf %463, %464 : vector<16x1xf32>
    %466 = tpu.reciprocal %465 {approx = true} : vector<16x1xf32> -> vector<16x1xf32>
    %467 = arith.truncf %461 : vector<16x16xf32> to vector<16x16xbf16>
    %468 = vector.extract_strided_slice %428 {offsets = [0, 64], sizes = [16, 64], strides = [1, 1]} : vector<16x256xbf16> to vector<16x64xbf16>
    %cst_200 = arith.constant dense<0.000000e+00> : vector<16x64xf32>
    %469 = tpu.matmul %467, %468, %cst_200 {dimension_numbers = #tpu.dot_dimension_numbers<[1], [0], [0], [1], [0, 0, 1, 1], [], []>} : vector<16x16xbf16>, vector<16x64xbf16>, vector<16x64xf32> -> vector<16x64xf32>
    %470 = vector.broadcast %466 : vector<16x1xf32> to vector<16x64xf32>
    %471 = arith.mulf %470, %469 : vector<16x64xf32>
    %472 = vector.extract_strided_slice %449 {offsets = [0, 32], sizes = [16, 16], strides = [1, 1]} : vector<16x64xf32> to vector<16x16xf32>
    %cst_201 = arith.constant dense<0.000000e+00> : vector<16xf32>
    %473 = vector.multi_reduction <add>, %472, %cst_201 [1] : vector<16x16xf32> to vector<16xf32>
    %474 = vector.shape_cast %473 : vector<16xf32> to vector<16x1xf32>
    %cst_202 = arith.constant 9.99999968E-21 : f32
    %475 = vector.broadcast %cst_202 : f32 to vector<16x1xf32>
    %476 = arith.maximumf %474, %475 : vector<16x1xf32>
    %477 = tpu.reciprocal %476 {approx = true} : vector<16x1xf32> -> vector<16x1xf32>
    %478 = arith.truncf %472 : vector<16x16xf32> to vector<16x16xbf16>
    %479 = vector.extract_strided_slice %428 {offsets = [0, 128], sizes = [16, 64], strides = [1, 1]} : vector<16x256xbf16> to vector<16x64xbf16>
    %cst_203 = arith.constant dense<0.000000e+00> : vector<16x64xf32>
    %480 = tpu.matmul %478, %479, %cst_203 {dimension_numbers = #tpu.dot_dimension_numbers<[1], [0], [0], [1], [0, 0, 1, 1], [], []>} : vector<16x16xbf16>, vector<16x64xbf16>, vector<16x64xf32> -> vector<16x64xf32>
    %481 = vector.broadcast %477 : vector<16x1xf32> to vector<16x64xf32>
    %482 = arith.mulf %481, %480 : vector<16x64xf32>
    %483 = vector.extract_strided_slice %449 {offsets = [0, 48], sizes = [16, 16], strides = [1, 1]} : vector<16x64xf32> to vector<16x16xf32>
    %cst_204 = arith.constant dense<0.000000e+00> : vector<16xf32>
    %484 = vector.multi_reduction <add>, %483, %cst_204 [1] : vector<16x16xf32> to vector<16xf32>
    %485 = vector.shape_cast %484 : vector<16xf32> to vector<16x1xf32>
    %cst_205 = arith.constant 9.99999968E-21 : f32
    %486 = vector.broadcast %cst_205 : f32 to vector<16x1xf32>
    %487 = arith.maximumf %485, %486 : vector<16x1xf32>
    %488 = tpu.reciprocal %487 {approx = true} : vector<16x1xf32> -> vector<16x1xf32>
    %489 = arith.truncf %483 : vector<16x16xf32> to vector<16x16xbf16>
    %490 = vector.extract_strided_slice %428 {offsets = [0, 192], sizes = [16, 64], strides = [1, 1]} : vector<16x256xbf16> to vector<16x64xbf16>
    %cst_206 = arith.constant dense<0.000000e+00> : vector<16x64xf32>
    %491 = tpu.matmul %489, %490, %cst_206 {dimension_numbers = #tpu.dot_dimension_numbers<[1], [0], [0], [1], [0, 0, 1, 1], [], []>} : vector<16x16xbf16>, vector<16x64xbf16>, vector<16x64xf32> -> vector<16x64xf32>
    %492 = vector.broadcast %488 : vector<16x1xf32> to vector<16x64xf32>
    %493 = arith.mulf %492, %491 : vector<16x64xf32>
    %494 = tpu.concatenate %460, %471, %482, %493 in 1 : vector<16x64xf32>, vector<16x64xf32>, vector<16x64xf32>, vector<16x64xf32> -> vector<16x256xf32>
    %c5_207 = arith.constant 5 : index
    %c0_208 = arith.constant 0 : index
    %495 = vector.load %arg6[%c5_207, %c0_208] : memref<13x256xf32, #tpu.memory_space<vmem>>, vector<1x256xf32>
    %496 = vector.broadcast %495 : vector<1x256xf32> to vector<16x256xf32>
    %497 = arith.addf %494, %496 : vector<16x256xf32>
    %498 = arith.addf %347, %497 : vector<16x256xf32>
    %cst_209 = arith.constant 0.000000e+00 : f32
    %499 = vector.broadcast %cst_209 : f32 to vector<16x256xf32>
    %500 = arith.maximumf %196, %499 : vector<16x256xf32>
    %cst_210 = arith.constant 0.000000e+00 : f32
    %501 = vector.broadcast %cst_210 : f32 to vector<16x256xf32>
    %502 = arith.maximumf %498, %501 : vector<16x256xf32>
    %cst_211 = arith.constant 0.000000e+00 : f32
    %503 = vector.broadcast %cst_211 : f32 to vector<16x256xf32>
    %504 = arith.maximumf %271, %503 : vector<16x256xf32>
    %cst_212 = arith.constant 0.000000e+00 : f32
    %505 = vector.broadcast %cst_212 : f32 to vector<16x256xf32>
    %506 = arith.maximumf %422, %505 : vector<16x256xf32>
    %507 = arith.truncf %500 : vector<16x256xf32> to vector<16x256xbf16>
    %c0_213 = arith.constant 0 : index
    %c0_214 = arith.constant 0 : index
    %c0_215 = arith.constant 0 : index
    %508 = vector.load %arg3[%c0_213, %c0_214, %c0_215] : memref<6x256x144xbf16, #tpu.memory_space<vmem>>, vector<1x256x80xbf16>
    %509 = vector.shape_cast %508 : vector<1x256x80xbf16> to vector<256x80xbf16>
    %cst_216 = arith.constant dense<0.000000e+00> : vector<16x80xf32>
    %510 = tpu.matmul %507, %509, %cst_216 {dimension_numbers = #tpu.dot_dimension_numbers<[1], [0], [0], [1], [0, 0, 1, 1], [], []>} : vector<16x256xbf16>, vector<256x80xbf16>, vector<16x80xf32> -> vector<16x80xf32>
    %511 = vector.extract_strided_slice %510 {offsets = [0, 0], sizes = [16, 64], strides = [1, 1]} : vector<16x80xf32> to vector<16x64xf32>
    %512 = arith.truncf %511 : vector<16x64xf32> to vector<16x64xbf16>
    %513 = vector.extract_strided_slice %510 {offsets = [0, 64], sizes = [16, 16], strides = [1, 1]} : vector<16x80xf32> to vector<16x16xf32>
    %514 = arith.truncf %502 : vector<16x256xf32> to vector<16x256xbf16>
    %c0_217 = arith.constant 0 : index
    %c0_218 = arith.constant 0 : index
    %c128 = arith.constant 128 : index
    %515 = vector.load %arg3[%c0_217, %c0_218, %c128] : memref<6x256x144xbf16, #tpu.memory_space<vmem>>, vector<1x256x16xbf16>
    %516 = vector.shape_cast %515 : vector<1x256x16xbf16> to vector<256x16xbf16>
    %cst_219 = arith.constant dense<0.000000e+00> : vector<16x16xf32>
    %517 = tpu.matmul %514, %516, %cst_219 {dimension_numbers = #tpu.dot_dimension_numbers<[1], [0], [0], [1], [0, 0, 1, 1], [], []>} : vector<16x256xbf16>, vector<256x16xbf16>, vector<16x16xf32> -> vector<16x16xf32>
    %518 = vector.extract_strided_slice %2 {offsets = [0, 0], sizes = [16, 16], strides = [1, 1]} : vector<16x64xf32> to vector<16x16xf32>
    %519 = arith.mulf %513, %518 : vector<16x16xf32>
    %520 = arith.truncf %519 : vector<16x16xf32> to vector<16x16xbf16>
    %cst_220 = arith.constant dense<0.000000e+00> : vector<16x16xf32>
    %521 = tpu.matmul %0, %520, %cst_220 {dimension_numbers = #tpu.dot_dimension_numbers<[1], [0], [0], [1], [0, 0, 1, 1], [], []>} : vector<16x16xbf16>, vector<16x16xbf16>, vector<16x16xf32> -> vector<16x16xf32>
    %522 = arith.addf %517, %521 : vector<16x16xf32>
    %cst_221 = arith.constant 0.000000e+00 : f32
    %523 = vector.broadcast %cst_221 : f32 to vector<16x16xf32>
    %524 = arith.cmpf oge, %522, %523 : vector<16x16xf32>
    %cst_222 = arith.constant 2.000000e-01 : f32
    %525 = vector.broadcast %cst_222 : f32 to vector<16x16xf32>
    %526 = arith.mulf %525, %522 : vector<16x16xf32>
    %527 = arith.select %524, %522, %526 : vector<16x16xi1>, vector<16x16xf32>
    %528 = vector.extract_strided_slice %16 {offsets = [0, 0], sizes = [16, 16], strides = [1, 1]} : vector<16x64xf32> to vector<16x16xf32>
    %529 = arith.addf %527, %528 : vector<16x16xf32>
    %cst_223 = arith.constant dense<0xFF800000> : vector<16xf32>
    %530 = vector.multi_reduction <maximumf>, %529, %cst_223 [1] : vector<16x16xf32> to vector<16xf32>
    %531 = vector.shape_cast %530 : vector<16xf32> to vector<16x1xf32>
    %532 = vector.broadcast %531 : vector<16x1xf32> to vector<16x16xf32>
    %533 = arith.subf %529, %532 : vector<16x16xf32>
    %534 = math.exp %533 : vector<16x16xf32>
    %535 = vector.extract_strided_slice %4 {offsets = [0, 0], sizes = [16, 16], strides = [1, 1]} : vector<16x64xf32> to vector<16x16xf32>
    %536 = arith.mulf %534, %535 : vector<16x16xf32>
    %cst_224 = arith.constant dense<0.000000e+00> : vector<16xf32>
    %537 = vector.multi_reduction <add>, %536, %cst_224 [1] : vector<16x16xf32> to vector<16xf32>
    %538 = vector.shape_cast %537 : vector<16xf32> to vector<16x1xf32>
    %cst_225 = arith.constant 9.99999968E-21 : f32
    %539 = vector.broadcast %cst_225 : f32 to vector<16x1xf32>
    %540 = arith.maximumf %538, %539 : vector<16x1xf32>
    %541 = tpu.reciprocal %540 {approx = true} : vector<16x1xf32> -> vector<16x1xf32>
    %542 = arith.truncf %536 : vector<16x16xf32> to vector<16x16xbf16>
    %cst_226 = arith.constant dense<0.000000e+00> : vector<16x64xf32>
    %543 = tpu.matmul %542, %512, %cst_226 {dimension_numbers = #tpu.dot_dimension_numbers<[1], [0], [0], [1], [0, 0, 1, 1], [], []>} : vector<16x16xbf16>, vector<16x64xbf16>, vector<16x64xf32> -> vector<16x64xf32>
    %544 = vector.broadcast %541 : vector<16x1xf32> to vector<16x64xf32>
    %545 = arith.mulf %544, %543 : vector<16x64xf32>
    %c6_227 = arith.constant 6 : index
    %c0_228 = arith.constant 0 : index
    %546 = vector.load %arg6[%c6_227, %c0_228] : memref<13x256xf32, #tpu.memory_space<vmem>>, vector<1x64xf32>
    %547 = vector.broadcast %546 : vector<1x64xf32> to vector<16x64xf32>
    %548 = arith.addf %545, %547 : vector<16x64xf32>
    %549 = arith.truncf %502 : vector<16x256xf32> to vector<16x256xbf16>
    %c1_229 = arith.constant 1 : index
    %c0_230 = arith.constant 0 : index
    %c0_231 = arith.constant 0 : index
    %550 = vector.load %arg3[%c1_229, %c0_230, %c0_231] : memref<6x256x144xbf16, #tpu.memory_space<vmem>>, vector<1x256x80xbf16>
    %551 = vector.shape_cast %550 : vector<1x256x80xbf16> to vector<256x80xbf16>
    %cst_232 = arith.constant dense<0.000000e+00> : vector<16x80xf32>
    %552 = tpu.matmul %549, %551, %cst_232 {dimension_numbers = #tpu.dot_dimension_numbers<[1], [0], [0], [1], [0, 0, 1, 1], [], []>} : vector<16x256xbf16>, vector<256x80xbf16>, vector<16x80xf32> -> vector<16x80xf32>
    %553 = vector.extract_strided_slice %552 {offsets = [0, 0], sizes = [16, 64], strides = [1, 1]} : vector<16x80xf32> to vector<16x64xf32>
    %554 = arith.truncf %553 : vector<16x64xf32> to vector<16x64xbf16>
    %555 = vector.extract_strided_slice %552 {offsets = [0, 64], sizes = [16, 16], strides = [1, 1]} : vector<16x80xf32> to vector<16x16xf32>
    %556 = arith.truncf %500 : vector<16x256xf32> to vector<16x256xbf16>
    %c1_233 = arith.constant 1 : index
    %c0_234 = arith.constant 0 : index
    %c128_235 = arith.constant 128 : index
    %557 = vector.load %arg3[%c1_233, %c0_234, %c128_235] : memref<6x256x144xbf16, #tpu.memory_space<vmem>>, vector<1x256x16xbf16>
    %558 = vector.shape_cast %557 : vector<1x256x16xbf16> to vector<256x16xbf16>
    %cst_236 = arith.constant dense<0.000000e+00> : vector<16x16xf32>
    %559 = tpu.matmul %556, %558, %cst_236 {dimension_numbers = #tpu.dot_dimension_numbers<[1], [0], [0], [1], [0, 0, 1, 1], [], []>} : vector<16x256xbf16>, vector<256x16xbf16>, vector<16x16xf32> -> vector<16x16xf32>
    %560 = vector.extract_strided_slice %2 {offsets = [0, 0], sizes = [16, 16], strides = [1, 1]} : vector<16x64xf32> to vector<16x16xf32>
    %561 = arith.mulf %555, %560 : vector<16x16xf32>
    %562 = arith.truncf %561 : vector<16x16xf32> to vector<16x16xbf16>
    %cst_237 = arith.constant dense<0.000000e+00> : vector<16x16xf32>
    %563 = tpu.matmul %0, %562, %cst_237 {dimension_numbers = #tpu.dot_dimension_numbers<[1], [0], [0], [1], [0, 0, 1, 1], [], []>} : vector<16x16xbf16>, vector<16x16xbf16>, vector<16x16xf32> -> vector<16x16xf32>
    %564 = arith.addf %559, %563 : vector<16x16xf32>
    %cst_238 = arith.constant 0.000000e+00 : f32
    %565 = vector.broadcast %cst_238 : f32 to vector<16x16xf32>
    %566 = arith.cmpf oge, %564, %565 : vector<16x16xf32>
    %cst_239 = arith.constant 2.000000e-01 : f32
    %567 = vector.broadcast %cst_239 : f32 to vector<16x16xf32>
    %568 = arith.mulf %567, %564 : vector<16x16xf32>
    %569 = arith.select %566, %564, %568 : vector<16x16xi1>, vector<16x16xf32>
    %570 = vector.extract_strided_slice %18 {offsets = [0, 0], sizes = [16, 16], strides = [1, 1]} : vector<16x64xf32> to vector<16x16xf32>
    %571 = arith.addf %569, %570 : vector<16x16xf32>
    %cst_240 = arith.constant dense<0xFF800000> : vector<16xf32>
    %572 = vector.multi_reduction <maximumf>, %571, %cst_240 [1] : vector<16x16xf32> to vector<16xf32>
    %573 = vector.shape_cast %572 : vector<16xf32> to vector<16x1xf32>
    %574 = vector.broadcast %573 : vector<16x1xf32> to vector<16x16xf32>
    %575 = arith.subf %571, %574 : vector<16x16xf32>
    %576 = math.exp %575 : vector<16x16xf32>
    %577 = vector.extract_strided_slice %6 {offsets = [0, 0], sizes = [16, 16], strides = [1, 1]} : vector<16x64xf32> to vector<16x16xf32>
    %578 = arith.mulf %576, %577 : vector<16x16xf32>
    %cst_241 = arith.constant dense<0.000000e+00> : vector<16xf32>
    %579 = vector.multi_reduction <add>, %578, %cst_241 [1] : vector<16x16xf32> to vector<16xf32>
    %580 = vector.shape_cast %579 : vector<16xf32> to vector<16x1xf32>
    %cst_242 = arith.constant 9.99999968E-21 : f32
    %581 = vector.broadcast %cst_242 : f32 to vector<16x1xf32>
    %582 = arith.maximumf %580, %581 : vector<16x1xf32>
    %583 = tpu.reciprocal %582 {approx = true} : vector<16x1xf32> -> vector<16x1xf32>
    %584 = arith.truncf %578 : vector<16x16xf32> to vector<16x16xbf16>
    %cst_243 = arith.constant dense<0.000000e+00> : vector<16x64xf32>
    %585 = tpu.matmul %584, %554, %cst_243 {dimension_numbers = #tpu.dot_dimension_numbers<[1], [0], [0], [1], [0, 0, 1, 1], [], []>} : vector<16x16xbf16>, vector<16x64xbf16>, vector<16x64xf32> -> vector<16x64xf32>
    %586 = vector.broadcast %583 : vector<16x1xf32> to vector<16x64xf32>
    %587 = arith.mulf %586, %585 : vector<16x64xf32>
    %c7_244 = arith.constant 7 : index
    %c0_245 = arith.constant 0 : index
    %588 = vector.load %arg6[%c7_244, %c0_245] : memref<13x256xf32, #tpu.memory_space<vmem>>, vector<1x64xf32>
    %589 = vector.broadcast %588 : vector<1x64xf32> to vector<16x64xf32>
    %590 = arith.addf %587, %589 : vector<16x64xf32>
    %591 = arith.truncf %502 : vector<16x256xf32> to vector<16x256xbf16>
    %c2_246 = arith.constant 2 : index
    %c0_247 = arith.constant 0 : index
    %c0_248 = arith.constant 0 : index
    %592 = vector.load %arg3[%c2_246, %c0_247, %c0_248] : memref<6x256x144xbf16, #tpu.memory_space<vmem>>, vector<1x256x80xbf16>
    %593 = vector.shape_cast %592 : vector<1x256x80xbf16> to vector<256x80xbf16>
    %cst_249 = arith.constant dense<0.000000e+00> : vector<16x80xf32>
    %594 = tpu.matmul %591, %593, %cst_249 {dimension_numbers = #tpu.dot_dimension_numbers<[1], [0], [0], [1], [0, 0, 1, 1], [], []>} : vector<16x256xbf16>, vector<256x80xbf16>, vector<16x80xf32> -> vector<16x80xf32>
    %595 = vector.extract_strided_slice %594 {offsets = [0, 0], sizes = [16, 64], strides = [1, 1]} : vector<16x80xf32> to vector<16x64xf32>
    %596 = arith.truncf %595 : vector<16x64xf32> to vector<16x64xbf16>
    %597 = vector.extract_strided_slice %594 {offsets = [0, 64], sizes = [16, 16], strides = [1, 1]} : vector<16x80xf32> to vector<16x16xf32>
    %598 = arith.truncf %504 : vector<16x256xf32> to vector<16x256xbf16>
    %c2_250 = arith.constant 2 : index
    %c0_251 = arith.constant 0 : index
    %c128_252 = arith.constant 128 : index
    %599 = vector.load %arg3[%c2_250, %c0_251, %c128_252] : memref<6x256x144xbf16, #tpu.memory_space<vmem>>, vector<1x256x16xbf16>
    %600 = vector.shape_cast %599 : vector<1x256x16xbf16> to vector<256x16xbf16>
    %cst_253 = arith.constant dense<0.000000e+00> : vector<16x16xf32>
    %601 = tpu.matmul %598, %600, %cst_253 {dimension_numbers = #tpu.dot_dimension_numbers<[1], [0], [0], [1], [0, 0, 1, 1], [], []>} : vector<16x256xbf16>, vector<256x16xbf16>, vector<16x16xf32> -> vector<16x16xf32>
    %602 = vector.extract_strided_slice %2 {offsets = [0, 0], sizes = [16, 16], strides = [1, 1]} : vector<16x64xf32> to vector<16x16xf32>
    %603 = arith.mulf %597, %602 : vector<16x16xf32>
    %604 = arith.truncf %603 : vector<16x16xf32> to vector<16x16xbf16>
    %cst_254 = arith.constant dense<0.000000e+00> : vector<16x16xf32>
    %605 = tpu.matmul %0, %604, %cst_254 {dimension_numbers = #tpu.dot_dimension_numbers<[1], [0], [0], [1], [0, 0, 1, 1], [], []>} : vector<16x16xbf16>, vector<16x16xbf16>, vector<16x16xf32> -> vector<16x16xf32>
    %606 = arith.addf %601, %605 : vector<16x16xf32>
    %cst_255 = arith.constant 0.000000e+00 : f32
    %607 = vector.broadcast %cst_255 : f32 to vector<16x16xf32>
    %608 = arith.cmpf oge, %606, %607 : vector<16x16xf32>
    %cst_256 = arith.constant 2.000000e-01 : f32
    %609 = vector.broadcast %cst_256 : f32 to vector<16x16xf32>
    %610 = arith.mulf %609, %606 : vector<16x16xf32>
    %611 = arith.select %608, %606, %610 : vector<16x16xi1>, vector<16x16xf32>
    %612 = vector.extract_strided_slice %20 {offsets = [0, 0], sizes = [16, 16], strides = [1, 1]} : vector<16x64xf32> to vector<16x16xf32>
    %613 = arith.addf %611, %612 : vector<16x16xf32>
    %cst_257 = arith.constant dense<0xFF800000> : vector<16xf32>
    %614 = vector.multi_reduction <maximumf>, %613, %cst_257 [1] : vector<16x16xf32> to vector<16xf32>
    %615 = vector.shape_cast %614 : vector<16xf32> to vector<16x1xf32>
    %616 = vector.broadcast %615 : vector<16x1xf32> to vector<16x16xf32>
    %617 = arith.subf %613, %616 : vector<16x16xf32>
    %618 = math.exp %617 : vector<16x16xf32>
    %619 = vector.extract_strided_slice %8 {offsets = [0, 0], sizes = [16, 16], strides = [1, 1]} : vector<16x64xf32> to vector<16x16xf32>
    %620 = arith.mulf %618, %619 : vector<16x16xf32>
    %cst_258 = arith.constant dense<0.000000e+00> : vector<16xf32>
    %621 = vector.multi_reduction <add>, %620, %cst_258 [1] : vector<16x16xf32> to vector<16xf32>
    %622 = vector.shape_cast %621 : vector<16xf32> to vector<16x1xf32>
    %cst_259 = arith.constant 9.99999968E-21 : f32
    %623 = vector.broadcast %cst_259 : f32 to vector<16x1xf32>
    %624 = arith.maximumf %622, %623 : vector<16x1xf32>
    %625 = tpu.reciprocal %624 {approx = true} : vector<16x1xf32> -> vector<16x1xf32>
    %626 = arith.truncf %620 : vector<16x16xf32> to vector<16x16xbf16>
    %cst_260 = arith.constant dense<0.000000e+00> : vector<16x64xf32>
    %627 = tpu.matmul %626, %596, %cst_260 {dimension_numbers = #tpu.dot_dimension_numbers<[1], [0], [0], [1], [0, 0, 1, 1], [], []>} : vector<16x16xbf16>, vector<16x64xbf16>, vector<16x64xf32> -> vector<16x64xf32>
    %628 = vector.broadcast %625 : vector<16x1xf32> to vector<16x64xf32>
    %629 = arith.mulf %628, %627 : vector<16x64xf32>
    %c8_261 = arith.constant 8 : index
    %c0_262 = arith.constant 0 : index
    %630 = vector.load %arg6[%c8_261, %c0_262] : memref<13x256xf32, #tpu.memory_space<vmem>>, vector<1x64xf32>
    %631 = vector.broadcast %630 : vector<1x64xf32> to vector<16x64xf32>
    %632 = arith.addf %629, %631 : vector<16x64xf32>
    %633 = arith.truncf %504 : vector<16x256xf32> to vector<16x256xbf16>
    %c3_263 = arith.constant 3 : index
    %c0_264 = arith.constant 0 : index
    %c0_265 = arith.constant 0 : index
    %634 = vector.load %arg3[%c3_263, %c0_264, %c0_265] : memref<6x256x144xbf16, #tpu.memory_space<vmem>>, vector<1x256x80xbf16>
    %635 = vector.shape_cast %634 : vector<1x256x80xbf16> to vector<256x80xbf16>
    %cst_266 = arith.constant dense<0.000000e+00> : vector<16x80xf32>
    %636 = tpu.matmul %633, %635, %cst_266 {dimension_numbers = #tpu.dot_dimension_numbers<[1], [0], [0], [1], [0, 0, 1, 1], [], []>} : vector<16x256xbf16>, vector<256x80xbf16>, vector<16x80xf32> -> vector<16x80xf32>
    %637 = vector.extract_strided_slice %636 {offsets = [0, 0], sizes = [16, 64], strides = [1, 1]} : vector<16x80xf32> to vector<16x64xf32>
    %638 = arith.truncf %637 : vector<16x64xf32> to vector<16x64xbf16>
    %639 = vector.extract_strided_slice %636 {offsets = [0, 64], sizes = [16, 16], strides = [1, 1]} : vector<16x80xf32> to vector<16x16xf32>
    %640 = arith.truncf %502 : vector<16x256xf32> to vector<16x256xbf16>
    %c3_267 = arith.constant 3 : index
    %c0_268 = arith.constant 0 : index
    %c128_269 = arith.constant 128 : index
    %641 = vector.load %arg3[%c3_267, %c0_268, %c128_269] : memref<6x256x144xbf16, #tpu.memory_space<vmem>>, vector<1x256x16xbf16>
    %642 = vector.shape_cast %641 : vector<1x256x16xbf16> to vector<256x16xbf16>
    %cst_270 = arith.constant dense<0.000000e+00> : vector<16x16xf32>
    %643 = tpu.matmul %640, %642, %cst_270 {dimension_numbers = #tpu.dot_dimension_numbers<[1], [0], [0], [1], [0, 0, 1, 1], [], []>} : vector<16x256xbf16>, vector<256x16xbf16>, vector<16x16xf32> -> vector<16x16xf32>
    %644 = vector.extract_strided_slice %2 {offsets = [0, 0], sizes = [16, 16], strides = [1, 1]} : vector<16x64xf32> to vector<16x16xf32>
    %645 = arith.mulf %639, %644 : vector<16x16xf32>
    %646 = arith.truncf %645 : vector<16x16xf32> to vector<16x16xbf16>
    %cst_271 = arith.constant dense<0.000000e+00> : vector<16x16xf32>
    %647 = tpu.matmul %0, %646, %cst_271 {dimension_numbers = #tpu.dot_dimension_numbers<[1], [0], [0], [1], [0, 0, 1, 1], [], []>} : vector<16x16xbf16>, vector<16x16xbf16>, vector<16x16xf32> -> vector<16x16xf32>
    %648 = arith.addf %643, %647 : vector<16x16xf32>
    %cst_272 = arith.constant 0.000000e+00 : f32
    %649 = vector.broadcast %cst_272 : f32 to vector<16x16xf32>
    %650 = arith.cmpf oge, %648, %649 : vector<16x16xf32>
    %cst_273 = arith.constant 2.000000e-01 : f32
    %651 = vector.broadcast %cst_273 : f32 to vector<16x16xf32>
    %652 = arith.mulf %651, %648 : vector<16x16xf32>
    %653 = arith.select %650, %648, %652 : vector<16x16xi1>, vector<16x16xf32>
    %654 = vector.extract_strided_slice %22 {offsets = [0, 0], sizes = [16, 16], strides = [1, 1]} : vector<16x64xf32> to vector<16x16xf32>
    %655 = arith.addf %653, %654 : vector<16x16xf32>
    %cst_274 = arith.constant dense<0xFF800000> : vector<16xf32>
    %656 = vector.multi_reduction <maximumf>, %655, %cst_274 [1] : vector<16x16xf32> to vector<16xf32>
    %657 = vector.shape_cast %656 : vector<16xf32> to vector<16x1xf32>
    %658 = vector.broadcast %657 : vector<16x1xf32> to vector<16x16xf32>
    %659 = arith.subf %655, %658 : vector<16x16xf32>
    %660 = math.exp %659 : vector<16x16xf32>
    %661 = vector.extract_strided_slice %10 {offsets = [0, 0], sizes = [16, 16], strides = [1, 1]} : vector<16x64xf32> to vector<16x16xf32>
    %662 = arith.mulf %660, %661 : vector<16x16xf32>
    %cst_275 = arith.constant dense<0.000000e+00> : vector<16xf32>
    %663 = vector.multi_reduction <add>, %662, %cst_275 [1] : vector<16x16xf32> to vector<16xf32>
    %664 = vector.shape_cast %663 : vector<16xf32> to vector<16x1xf32>
    %cst_276 = arith.constant 9.99999968E-21 : f32
    %665 = vector.broadcast %cst_276 : f32 to vector<16x1xf32>
    %666 = arith.maximumf %664, %665 : vector<16x1xf32>
    %667 = tpu.reciprocal %666 {approx = true} : vector<16x1xf32> -> vector<16x1xf32>
    %668 = arith.truncf %662 : vector<16x16xf32> to vector<16x16xbf16>
    %cst_277 = arith.constant dense<0.000000e+00> : vector<16x64xf32>
    %669 = tpu.matmul %668, %638, %cst_277 {dimension_numbers = #tpu.dot_dimension_numbers<[1], [0], [0], [1], [0, 0, 1, 1], [], []>} : vector<16x16xbf16>, vector<16x64xbf16>, vector<16x64xf32> -> vector<16x64xf32>
    %670 = vector.broadcast %667 : vector<16x1xf32> to vector<16x64xf32>
    %671 = arith.mulf %670, %669 : vector<16x64xf32>
    %c9_278 = arith.constant 9 : index
    %c0_279 = arith.constant 0 : index
    %672 = vector.load %arg6[%c9_278, %c0_279] : memref<13x256xf32, #tpu.memory_space<vmem>>, vector<1x64xf32>
    %673 = vector.broadcast %672 : vector<1x64xf32> to vector<16x64xf32>
    %674 = arith.addf %671, %673 : vector<16x64xf32>
    %675 = arith.addf %548, %674 : vector<16x64xf32>
    %676 = arith.truncf %502 : vector<16x256xf32> to vector<16x256xbf16>
    %c4_280 = arith.constant 4 : index
    %c0_281 = arith.constant 0 : index
    %c0_282 = arith.constant 0 : index
    %677 = vector.load %arg3[%c4_280, %c0_281, %c0_282] : memref<6x256x144xbf16, #tpu.memory_space<vmem>>, vector<1x256x80xbf16>
    %678 = vector.shape_cast %677 : vector<1x256x80xbf16> to vector<256x80xbf16>
    %cst_283 = arith.constant dense<0.000000e+00> : vector<16x80xf32>
    %679 = tpu.matmul %676, %678, %cst_283 {dimension_numbers = #tpu.dot_dimension_numbers<[1], [0], [0], [1], [0, 0, 1, 1], [], []>} : vector<16x256xbf16>, vector<256x80xbf16>, vector<16x80xf32> -> vector<16x80xf32>
    %680 = vector.extract_strided_slice %679 {offsets = [0, 0], sizes = [16, 64], strides = [1, 1]} : vector<16x80xf32> to vector<16x64xf32>
    %681 = arith.truncf %680 : vector<16x64xf32> to vector<16x64xbf16>
    %682 = vector.extract_strided_slice %679 {offsets = [0, 64], sizes = [16, 16], strides = [1, 1]} : vector<16x80xf32> to vector<16x16xf32>
    %683 = arith.truncf %506 : vector<16x256xf32> to vector<16x256xbf16>
    %c4_284 = arith.constant 4 : index
    %c0_285 = arith.constant 0 : index
    %c128_286 = arith.constant 128 : index
    %684 = vector.load %arg3[%c4_284, %c0_285, %c128_286] : memref<6x256x144xbf16, #tpu.memory_space<vmem>>, vector<1x256x16xbf16>
    %685 = vector.shape_cast %684 : vector<1x256x16xbf16> to vector<256x16xbf16>
    %cst_287 = arith.constant dense<0.000000e+00> : vector<16x16xf32>
    %686 = tpu.matmul %683, %685, %cst_287 {dimension_numbers = #tpu.dot_dimension_numbers<[1], [0], [0], [1], [0, 0, 1, 1], [], []>} : vector<16x256xbf16>, vector<256x16xbf16>, vector<16x16xf32> -> vector<16x16xf32>
    %687 = vector.extract_strided_slice %2 {offsets = [0, 0], sizes = [16, 16], strides = [1, 1]} : vector<16x64xf32> to vector<16x16xf32>
    %688 = arith.mulf %682, %687 : vector<16x16xf32>
    %689 = arith.truncf %688 : vector<16x16xf32> to vector<16x16xbf16>
    %cst_288 = arith.constant dense<0.000000e+00> : vector<16x16xf32>
    %690 = tpu.matmul %0, %689, %cst_288 {dimension_numbers = #tpu.dot_dimension_numbers<[1], [0], [0], [1], [0, 0, 1, 1], [], []>} : vector<16x16xbf16>, vector<16x16xbf16>, vector<16x16xf32> -> vector<16x16xf32>
    %691 = arith.addf %686, %690 : vector<16x16xf32>
    %cst_289 = arith.constant 0.000000e+00 : f32
    %692 = vector.broadcast %cst_289 : f32 to vector<16x16xf32>
    %693 = arith.cmpf oge, %691, %692 : vector<16x16xf32>
    %cst_290 = arith.constant 2.000000e-01 : f32
    %694 = vector.broadcast %cst_290 : f32 to vector<16x16xf32>
    %695 = arith.mulf %694, %691 : vector<16x16xf32>
    %696 = arith.select %693, %691, %695 : vector<16x16xi1>, vector<16x16xf32>
    %697 = vector.extract_strided_slice %24 {offsets = [0, 0], sizes = [16, 16], strides = [1, 1]} : vector<16x64xf32> to vector<16x16xf32>
    %698 = arith.addf %696, %697 : vector<16x16xf32>
    %cst_291 = arith.constant dense<0xFF800000> : vector<16xf32>
    %699 = vector.multi_reduction <maximumf>, %698, %cst_291 [1] : vector<16x16xf32> to vector<16xf32>
    %700 = vector.shape_cast %699 : vector<16xf32> to vector<16x1xf32>
    %701 = vector.broadcast %700 : vector<16x1xf32> to vector<16x16xf32>
    %702 = arith.subf %698, %701 : vector<16x16xf32>
    %703 = math.exp %702 : vector<16x16xf32>
    %704 = vector.extract_strided_slice %12 {offsets = [0, 0], sizes = [16, 16], strides = [1, 1]} : vector<16x64xf32> to vector<16x16xf32>
    %705 = arith.mulf %703, %704 : vector<16x16xf32>
    %cst_292 = arith.constant dense<0.000000e+00> : vector<16xf32>
    %706 = vector.multi_reduction <add>, %705, %cst_292 [1] : vector<16x16xf32> to vector<16xf32>
    %707 = vector.shape_cast %706 : vector<16xf32> to vector<16x1xf32>
    %cst_293 = arith.constant 9.99999968E-21 : f32
    %708 = vector.broadcast %cst_293 : f32 to vector<16x1xf32>
    %709 = arith.maximumf %707, %708 : vector<16x1xf32>
    %710 = tpu.reciprocal %709 {approx = true} : vector<16x1xf32> -> vector<16x1xf32>
    %711 = arith.truncf %705 : vector<16x16xf32> to vector<16x16xbf16>
    %cst_294 = arith.constant dense<0.000000e+00> : vector<16x64xf32>
    %712 = tpu.matmul %711, %681, %cst_294 {dimension_numbers = #tpu.dot_dimension_numbers<[1], [0], [0], [1], [0, 0, 1, 1], [], []>} : vector<16x16xbf16>, vector<16x64xbf16>, vector<16x64xf32> -> vector<16x64xf32>
    %713 = vector.broadcast %710 : vector<16x1xf32> to vector<16x64xf32>
    %714 = arith.mulf %713, %712 : vector<16x64xf32>
    %c10_295 = arith.constant 10 : index
    %c0_296 = arith.constant 0 : index
    %715 = vector.load %arg6[%c10_295, %c0_296] : memref<13x256xf32, #tpu.memory_space<vmem>>, vector<1x64xf32>
    %716 = vector.broadcast %715 : vector<1x64xf32> to vector<16x64xf32>
    %717 = arith.addf %714, %716 : vector<16x64xf32>
    %718 = arith.truncf %506 : vector<16x256xf32> to vector<16x256xbf16>
    %c5_297 = arith.constant 5 : index
    %c0_298 = arith.constant 0 : index
    %c0_299 = arith.constant 0 : index
    %719 = vector.load %arg3[%c5_297, %c0_298, %c0_299] : memref<6x256x144xbf16, #tpu.memory_space<vmem>>, vector<1x256x80xbf16>
    %720 = vector.shape_cast %719 : vector<1x256x80xbf16> to vector<256x80xbf16>
    %cst_300 = arith.constant dense<0.000000e+00> : vector<16x80xf32>
    %721 = tpu.matmul %718, %720, %cst_300 {dimension_numbers = #tpu.dot_dimension_numbers<[1], [0], [0], [1], [0, 0, 1, 1], [], []>} : vector<16x256xbf16>, vector<256x80xbf16>, vector<16x80xf32> -> vector<16x80xf32>
    %722 = vector.extract_strided_slice %721 {offsets = [0, 0], sizes = [16, 64], strides = [1, 1]} : vector<16x80xf32> to vector<16x64xf32>
    %723 = arith.truncf %722 : vector<16x64xf32> to vector<16x64xbf16>
    %724 = vector.extract_strided_slice %721 {offsets = [0, 64], sizes = [16, 16], strides = [1, 1]} : vector<16x80xf32> to vector<16x16xf32>
    %725 = arith.truncf %502 : vector<16x256xf32> to vector<16x256xbf16>
    %c5_301 = arith.constant 5 : index
    %c0_302 = arith.constant 0 : index
    %c128_303 = arith.constant 128 : index
    %726 = vector.load %arg3[%c5_301, %c0_302, %c128_303] : memref<6x256x144xbf16, #tpu.memory_space<vmem>>, vector<1x256x16xbf16>
    %727 = vector.shape_cast %726 : vector<1x256x16xbf16> to vector<256x16xbf16>
    %cst_304 = arith.constant dense<0.000000e+00> : vector<16x16xf32>
    %728 = tpu.matmul %725, %727, %cst_304 {dimension_numbers = #tpu.dot_dimension_numbers<[1], [0], [0], [1], [0, 0, 1, 1], [], []>} : vector<16x256xbf16>, vector<256x16xbf16>, vector<16x16xf32> -> vector<16x16xf32>
    %729 = vector.extract_strided_slice %2 {offsets = [0, 0], sizes = [16, 16], strides = [1, 1]} : vector<16x64xf32> to vector<16x16xf32>
    %730 = arith.mulf %724, %729 : vector<16x16xf32>
    %731 = arith.truncf %730 : vector<16x16xf32> to vector<16x16xbf16>
    %cst_305 = arith.constant dense<0.000000e+00> : vector<16x16xf32>
    %732 = tpu.matmul %0, %731, %cst_305 {dimension_numbers = #tpu.dot_dimension_numbers<[1], [0], [0], [1], [0, 0, 1, 1], [], []>} : vector<16x16xbf16>, vector<16x16xbf16>, vector<16x16xf32> -> vector<16x16xf32>
    %733 = arith.addf %728, %732 : vector<16x16xf32>
    %cst_306 = arith.constant 0.000000e+00 : f32
    %734 = vector.broadcast %cst_306 : f32 to vector<16x16xf32>
    %735 = arith.cmpf oge, %733, %734 : vector<16x16xf32>
    %cst_307 = arith.constant 2.000000e-01 : f32
    %736 = vector.broadcast %cst_307 : f32 to vector<16x16xf32>
    %737 = arith.mulf %736, %733 : vector<16x16xf32>
    %738 = arith.select %735, %733, %737 : vector<16x16xi1>, vector<16x16xf32>
    %739 = vector.extract_strided_slice %26 {offsets = [0, 0], sizes = [16, 16], strides = [1, 1]} : vector<16x64xf32> to vector<16x16xf32>
    %740 = arith.addf %738, %739 : vector<16x16xf32>
    %cst_308 = arith.constant dense<0xFF800000> : vector<16xf32>
    %741 = vector.multi_reduction <maximumf>, %740, %cst_308 [1] : vector<16x16xf32> to vector<16xf32>
    %742 = vector.shape_cast %741 : vector<16xf32> to vector<16x1xf32>
    %743 = vector.broadcast %742 : vector<16x1xf32> to vector<16x16xf32>
    %744 = arith.subf %740, %743 : vector<16x16xf32>
    %745 = math.exp %744 : vector<16x16xf32>
    %746 = vector.extract_strided_slice %14 {offsets = [0, 0], sizes = [16, 16], strides = [1, 1]} : vector<16x64xf32> to vector<16x16xf32>
    %747 = arith.mulf %745, %746 : vector<16x16xf32>
    %cst_309 = arith.constant dense<0.000000e+00> : vector<16xf32>
    %748 = vector.multi_reduction <add>, %747, %cst_309 [1] : vector<16x16xf32> to vector<16xf32>
    %749 = vector.shape_cast %748 : vector<16xf32> to vector<16x1xf32>
    %cst_310 = arith.constant 9.99999968E-21 : f32
    %750 = vector.broadcast %cst_310 : f32 to vector<16x1xf32>
    %751 = arith.maximumf %749, %750 : vector<16x1xf32>
    %752 = tpu.reciprocal %751 {approx = true} : vector<16x1xf32> -> vector<16x1xf32>
    %753 = arith.truncf %747 : vector<16x16xf32> to vector<16x16xbf16>
    %cst_311 = arith.constant dense<0.000000e+00> : vector<16x64xf32>
    %754 = tpu.matmul %753, %723, %cst_311 {dimension_numbers = #tpu.dot_dimension_numbers<[1], [0], [0], [1], [0, 0, 1, 1], [], []>} : vector<16x16xbf16>, vector<16x64xbf16>, vector<16x64xf32> -> vector<16x64xf32>
    %755 = vector.broadcast %752 : vector<16x1xf32> to vector<16x64xf32>
    %756 = arith.mulf %755, %754 : vector<16x64xf32>
    %c11_312 = arith.constant 11 : index
    %c0_313 = arith.constant 0 : index
    %757 = vector.load %arg6[%c11_312, %c0_313] : memref<13x256xf32, #tpu.memory_space<vmem>>, vector<1x64xf32>
    %758 = vector.broadcast %757 : vector<1x64xf32> to vector<16x64xf32>
    %759 = arith.addf %756, %758 : vector<16x64xf32>
    %760 = arith.addf %675, %759 : vector<16x64xf32>
    %761 = tpu.concatenate %590, %760 in 1 : vector<16x64xf32>, vector<16x64xf32> -> vector<16x128xf32>
    %762 = arith.truncf %761 : vector<16x128xf32> to vector<16x128xbf16>
    %c0_314 = arith.constant 0 : index
    %c0_315 = arith.constant 0 : index
    %763 = vector.load %arg4[%c0_314, %c0_315] : memref<128x128xbf16, #tpu.memory_space<vmem>>, vector<128x128xbf16>
    %cst_316 = arith.constant dense<0.000000e+00> : vector<16x128xf32>
    %764 = tpu.matmul %762, %763, %cst_316 {dimension_numbers = #tpu.dot_dimension_numbers<[1], [0], [0], [1], [0, 0, 1, 1], [], []>} : vector<16x128xbf16>, vector<128x128xbf16>, vector<16x128xf32> -> vector<16x128xf32>
    %c12_317 = arith.constant 12 : index
    %c0_318 = arith.constant 0 : index
    %765 = vector.load %arg6[%c12_317, %c0_318] : memref<13x256xf32, #tpu.memory_space<vmem>>, vector<1x128xf32>
    %766 = vector.broadcast %765 : vector<1x128xf32> to vector<16x128xf32>
    %767 = arith.addf %764, %766 : vector<16x128xf32>
    %768 = tpu.concatenate %767, %632, %717 in 1 : vector<16x128xf32>, vector<16x64xf32>, vector<16x64xf32> -> vector<16x256xf32>
    %c0_319 = arith.constant 0 : index
    %c0_320 = arith.constant 0 : index
    %769 = vector.load %arg7[%c0_319, %c0_320] : memref<16x256xf32, #tpu.memory_space<vmem>>, vector<16x256xf32>
    tpu.vector_store %arg7[%c0_319, %c0_320], %768 {strides = array<i32>} : memref<16x256xf32, #tpu.memory_space<vmem>>, vector<16x256xf32>,
    return
  }
}

</mosaic_0001>

<llo_original>
// kernel: tpu_custom_call.1
$region0: #{tpu_custom_call.1}
  #allocation0 [shape = 'u32[]', space=smem, size = 0x4, offset = 0x4, fixed_abs, tag = 'smem constant byte address 0x4 - core index']
  #allocation1 [shape = 'u32[144,128]{1,0:T(1,128)}', space=vmem, size = 0x12000, scoped, tag = 'internal scratch']
  %s0 = inlined_call_operand.vmem [shape: bf16[4,16,16], index: 0, kind: input, shape index: {}]
  %s1 = inlined_call_operand.vmem [shape: bf16[4,16,64], index: 1, kind: input, shape index: {}]
  %s2 = inlined_call_operand.vmem [shape: bf16[6,64,448], index: 2, kind: input, shape index: {}]
  %s3 = inlined_call_operand.vmem [shape: bf16[6,256,144], index: 3, kind: input, shape index: {}]
  %s4 = inlined_call_operand.vmem [shape: bf16[128,128], index: 4, kind: input, shape index: {}]
  %s5 = inlined_call_operand.vmem [shape: f32[13,16,64], index: 5, kind: input, shape index: {}]
  %s6 = inlined_call_operand.vmem [shape: f32[13,256], index: 6, kind: input, shape index: {}]
  %s7 = inlined_call_operand.hbm [shape: f32[16,256], index: 7, kind: output, shape index: {}]
  %s8 = sld [smem:[#allocation0]]
  $region38: #{tpu_custom_call.1} parent=0
    _
  %s10 = ssub.s32 1, %s8
  %s11 = scalar_select 0, %s10, %s8
  $region1: #{tpu_custom_call.1} parent=0
    #allocation2 [shape = 'u8[16384]{0}', space=vmem, size = 0x4000, scoped, tag = 'output window, operand 0, single buffered']
    #allocation3 [shape = 's32[1]{0}', space=sflag, size = 0x4, scoped, tag = 'scoped memory for tpu_custom_call.1']
    %12 = vsyncpa [#allocation3], 0
    // Predicated region
    $region2: #{tpu_custom_call.1} parent=1 // pred_check
      _
    $region3: #{tpu_custom_call.1} parent=1 // pred_check_branch
      %14 = sbr.rel (0) target = $region5
    $region4: #{tpu_custom_call.1} parent=1 // pred_region
      _
    $region5: #{tpu_custom_call.1} parent=1 // pred_fallthru
      _
    // Predicated region
    $region6: #{tpu_custom_call.1} parent=1 // pred_check
      _
    $region7: #{tpu_custom_call.1} parent=1 // pred_check_branch
      %16 = sbr.rel (0) target = $region9
    $region8: #{tpu_custom_call.1} parent=1 // pred_region
      _
    $region9: #{tpu_custom_call.1} parent=1 // pred_fallthru
      _
    // Predicated region
    $region10: #{tpu_custom_call.1} parent=1 // pred_check
      _
    $region11: #{tpu_custom_call.1} parent=1 // pred_check_branch
      %18 = sbr.rel (0) target = $region13
    $region12: #{tpu_custom_call.1} parent=1 // pred_region
      _
    $region13: #{tpu_custom_call.1} parent=1 // pred_fallthru
      _
    // Predicated region
    $region14: #{tpu_custom_call.1} parent=1 // pred_check
      _
    $region15: #{tpu_custom_call.1} parent=1 // pred_check_branch
      %20 = sbr.rel (0) target = $region17
    $region16: #{tpu_custom_call.1} parent=1 // pred_region
      _
    $region17: #{tpu_custom_call.1} parent=1 // pred_fallthru
      _
    // Predicated region
    $region18: #{tpu_custom_call.1} parent=1 // pred_check
      _
    $region19: #{tpu_custom_call.1} parent=1 // pred_check_branch
      %22 = sbr.rel (0) target = $region21
    $region20: #{tpu_custom_call.1} parent=1 // pred_region
      _
    $region21: #{tpu_custom_call.1} parent=1 // pred_fallthru
      _
    // Predicated region
    $region22: #{tpu_custom_call.1} parent=1 // pred_check
      _
    $region23: #{tpu_custom_call.1} parent=1 // pred_check_branch
      %24 = sbr.rel (0) target = $region25
    $region24: #{tpu_custom_call.1} parent=1 // pred_region
      _
    $region25: #{tpu_custom_call.1} parent=1 // pred_fallthru
      _
    // Predicated region
    $region26: #{tpu_custom_call.1} parent=1 // pred_check
      _
    $region27: #{tpu_custom_call.1} parent=1 // pred_check_branch
      %26 = sbr.rel (0) target = $region29
    $region28: #{tpu_custom_call.1} parent=1 // pred_region
      _
    $region29: #{tpu_custom_call.1} parent=1 // pred_fallthru
      _
    %s29 = scalar_lea.vmem %s5, 192
    %v30 = vld [vmem:[%s29] sm:$0xff]
    %v31 = vld [vmem:[%s29 + $0x8] sm:$0xff]
    %v32 = vld [vmem:[%s5] sm:$0xff]
    %v33 = vld [vmem:[%s5 + $0x8] sm:$0xff]
    %s34 = scalar_lea.vmem %s5, 16
    %v35 = vld [vmem:[%s34] sm:$0xff]
    %v36 = vld [vmem:[%s34 + $0x8] sm:$0xff]
    %s37 = scalar_lea.vmem %s5, 32
    %v38 = vld [vmem:[%s37] sm:$0xff]
    %v39 = vld [vmem:[%s37 + $0x8] sm:$0xff]
    %s40 = scalar_lea.vmem %s5, 48
    %v41 = vld [vmem:[%s40] sm:$0xff]
    %v42 = vld [vmem:[%s40 + $0x8] sm:$0xff]
    %s43 = scalar_lea.vmem %s5, 64
    %v44 = vld [vmem:[%s43] sm:$0xff]
    %v45 = vld [vmem:[%s43 + $0x8] sm:$0xff]
    %s46 = scalar_lea.vmem %s5, 80
    %v47 = vld [vmem:[%s46] sm:$0xff]
    %v48 = vld [vmem:[%s46 + $0x8] sm:$0xff]
    %s49 = scalar_lea.vmem %s5, 96
    %v50 = vld [vmem:[%s49] sm:$0xff]
    %v51 = vld [vmem:[%s49 + $0x8] sm:$0xff]
    %s52 = scalar_lea.vmem %s5, 112
    %v53 = vld [vmem:[%s52] sm:$0xff]
    %v54 = vld [vmem:[%s52 + $0x8] sm:$0xff]
    %s55 = scalar_lea.vmem %s5, 128
    %v56 = vld [vmem:[%s55] sm:$0xff]
    %v57 = vld [vmem:[%s55 + $0x8] sm:$0xff]
    %s58 = scalar_lea.vmem %s5, 144
    %v59 = vld [vmem:[%s58] sm:$0xff]
    %v60 = vld [vmem:[%s58 + $0x8] sm:$0xff]
    %s61 = scalar_lea.vmem %s5, 160
    %v62 = vld [vmem:[%s61] sm:$0xff]
    %v63 = vld [vmem:[%s61 + $0x8] sm:$0xff]
    %s64 = scalar_lea.vmem %s5, 176
    %v65 = vld [vmem:[%s64] sm:$0xff]
    %v66 = vld [vmem:[%s64 + $0x8] sm:$0xff]
    %v67 = vld [vmem:[%s0] sm:$0xf]
    %v68 = vld [vmem:[%s0 + $0x4] sm:$0xf]
    %v69 = vld [vmem:[%s1] sm:$0xf]
    %v70 = vld [vmem:[%s1 + $0x4] sm:$0xf]
    %v73 = vunpack.c.l.b16 %v67
    %v74 = vunpack.c.l.b16 %v68
    %v75 = vpack.c.b16 %v74, %v73
    %v78 = vunpack.c.l.b16 %v69
    %v79 = vunpack.c.l.b16 %v70
    %v80 = vpack.c.b16 %v79, %v78
    %vm82 = vcmask 130048
    %v84 = vsel %vm82, %v75, 0
    %86 = vmatprep.subr.bf16.mxu0 0
    %87 = vmatpush1.bf16.msra.mxu0 %v80
    %88 = vmatprep.subr.bf16.mxu0 0
    %89 = vmatpush1.bf16.msra.mxu0 0
    %90 = vmatprep.subr.bf16.mxu0 0
    %91 = vmatpush1.bf16.msra.mxu0 0
    %92 = vmatprep.subr.bf16.mxu0 0
    %93 = vmatpush1.bf16.msra.mxu0 0
    %94 = vmatprep.subr.bf16.mxu0 0
    %95 = vmatpush1.bf16.msra.mxu0 0
    %96 = vmatprep.subr.bf16.mxu0 0
    %97 = vmatpush1.bf16.msra.mxu0 0
    %98 = vmatprep.subr.bf16.mxu0 0
    %99 = vmatpush1.bf16.msra.mxu0 0
    %100 = vmatprep.subr.bf16.mxu0 0
    %101 = vmatpush1.bf16.msra.mxu0 0
    %102 = vmatprep.subr.bf16.mxu0 0
    %103 = vmatpush1.bf16.msra.mxu0 0
    %104 = vmatprep.subr.bf16.mxu0 0
    %105 = vmatpush1.bf16.msra.mxu0 0
    %106 = vmatprep.subr.bf16.mxu0 0
    %107 = vmatpush1.bf16.msra.mxu0 0
    %108 = vmatprep.subr.bf16.mxu0 0
    %109 = vmatpush1.bf16.msra.mxu0 0
    %110 = vmatprep.subr.bf16.mxu0 0
    %111 = vmatpush1.bf16.msra.mxu0 0
    %112 = vmatprep.subr.bf16.mxu0 0
    %113 = vmatpush1.bf16.msra.mxu0 0
    %114 = vmatprep.subr.bf16.mxu0 0
    %115 = vmatpush1.bf16.msra.mxu0 0
    %116 = vmatprep.subr.bf16.mxu0 0
    %117 = vmatpush1.bf16.msra.mxu0 0
    %118 = vmatprep.mubr.bf16.mxu0 0
    %119 = vmatmul.mubr.bf16.gmra.mrb[0].mxu0 %v84
    %v120 = vpop.f32.mrb[0].mxu0
    %v121 = vadd.f32 0.0, %v120
    %v122 = vpop.f32.mrb[0].mxu0
    %v123 = vpop.f32.mrb[0].mxu0
    %v124 = vadd.f32 0.0, %v123
    %v125 = vpop.f32.mrb[0].mxu0
    %126 = vdwg.mxu0
    %s127 = scalar_lea.vmem %s0, 8
    %v128 = vld [vmem:[%s127] sm:$0xf]
    %v129 = vld [vmem:[%s127 + $0x4] sm:$0xf]
    %s130 = scalar_lea.vmem %s1, 8
    %v131 = vld [vmem:[%s130] sm:$0xf]
    %v132 = vld [vmem:[%s130 + $0x4] sm:$0xf]
    %v135 = vunpack.c.l.b16 %v128
    %v136 = vunpack.c.l.b16 %v129
    %v137 = vpack.c.b16 %v136, %v135
    %v140 = vunpack.c.l.b16 %v131
    %v141 = vunpack.c.l.b16 %v132
    %v142 = vpack.c.b16 %v141, %v140
    %v145 = vsel %vm82, %v137, 0
    %147 = vmatprep.subr.bf16.mxu0 0
    %148 = vmatpush1.bf16.msra.mxu0 %v142
    %149 = vmatprep.subr.bf16.mxu0 0
    %150 = vmatpush1.bf16.msra.mxu0 0
    %151 = vmatprep.subr.bf16.mxu0 0
    %152 = vmatpush1.bf16.msra.mxu0 0
    %153 = vmatprep.subr.bf16.mxu0 0
    %154 = vmatpush1.bf16.msra.mxu0 0
    %155 = vmatprep.subr.bf16.mxu0 0
    %156 = vmatpush1.bf16.msra.mxu0 0
    %157 = vmatprep.subr.bf16.mxu0 0
    %158 = vmatpush1.bf16.msra.mxu0 0
    %159 = vmatprep.subr.bf16.mxu0 0
    %160 = vmatpush1.bf16.msra.mxu0 0
    %161 = vmatprep.subr.bf16.mxu0 0
    %162 = vmatpush1.bf16.msra.mxu0 0
    %163 = vmatprep.subr.bf16.mxu0 0
    %164 = vmatpush1.bf16.msra.mxu0 0
    %165 = vmatprep.subr.bf16.mxu0 0
    %166 = vmatpush1.bf16.msra.mxu0 0
    %167 = vmatprep.subr.bf16.mxu0 0
    %168 = vmatpush1.bf16.msra.mxu0 0
    %169 = vmatprep.subr.bf16.mxu0 0
    %170 = vmatpush1.bf16.msra.mxu0 0
    %171 = vmatprep.subr.bf16.mxu0 0
    %172 = vmatpush1.bf16.msra.mxu0 0
    %173 = vmatprep.subr.bf16.mxu0 0
    %174 = vmatpush1.bf16.msra.mxu0 0
    %175 = vmatprep.subr.bf16.mxu0 0
    %176 = vmatpush1.bf16.msra.mxu0 0
    %177 = vmatprep.subr.bf16.mxu0 0
    %178 = vmatpush1.bf16.msra.mxu0 0
    %179 = vmatprep.mubr.bf16.mxu0 0
    %180 = vmatmul.mubr.bf16.gmra.mrb[0].mxu0 %v145
    %v181 = vpop.f32.mrb[0].mxu0
    %v182 = vadd.f32 0.0, %v181
    %v183 = vpop.f32.mrb[0].mxu0
    %v184 = vpop.f32.mrb[0].mxu0
    %v185 = vadd.f32 0.0, %v184
    %v186 = vpop.f32.mrb[0].mxu0
    %187 = vdwg.mxu0
    %s188 = scalar_lea.vmem %s0, 16
    %v189 = vld [vmem:[%s188] sm:$0xf]
    %v190 = vld [vmem:[%s188 + $0x4] sm:$0xf]
    %s191 = scalar_lea.vmem %s1, 16
    %v192 = vld [vmem:[%s191] sm:$0xf]
    %v193 = vld [vmem:[%s191 + $0x4] sm:$0xf]
    %v196 = vunpack.c.l.b16 %v189
    %v197 = vunpack.c.l.b16 %v190
    %v198 = vpack.c.b16 %v197, %v196
    %v201 = vunpack.c.l.b16 %v192
    %v202 = vunpack.c.l.b16 %v193
    %v203 = vpack.c.b16 %v202, %v201
    %v206 = vsel %vm82, %v198, 0
    %208 = vmatprep.subr.bf16.mxu0 0
    %209 = vmatpush1.bf16.msra.mxu0 %v203
    %210 = vmatprep.subr.bf16.mxu0 0
    %211 = vmatpush1.bf16.msra.mxu0 0
    %212 = vmatprep.subr.bf16.mxu0 0
    %213 = vmatpush1.bf16.msra.mxu0 0
    %214 = vmatprep.subr.bf16.mxu0 0
    %215 = vmatpush1.bf16.msra.mxu0 0
    %216 = vmatprep.subr.bf16.mxu0 0
    %217 = vmatpush1.bf16.msra.mxu0 0
    %218 = vmatprep.subr.bf16.mxu0 0
    %219 = vmatpush1.bf16.msra.mxu0 0
    %220 = vmatprep.subr.bf16.mxu0 0
    %221 = vmatpush1.bf16.msra.mxu0 0
    %222 = vmatprep.subr.bf16.mxu0 0
    %223 = vmatpush1.bf16.msra.mxu0 0
    %224 = vmatprep.subr.bf16.mxu0 0
    %225 = vmatpush1.bf16.msra.mxu0 0
    %226 = vmatprep.subr.bf16.mxu0 0
    %227 = vmatpush1.bf16.msra.mxu0 0
    %228 = vmatprep.subr.bf16.mxu0 0
    %229 = vmatpush1.bf16.msra.mxu0 0
    %230 = vmatprep.subr.bf16.mxu0 0
    %231 = vmatpush1.bf16.msra.mxu0 0
    %232 = vmatprep.subr.bf16.mxu0 0
    %233 = vmatpush1.bf16.msra.mxu0 0
    %234 = vmatprep.subr.bf16.mxu0 0
    %235 = vmatpush1.bf16.msra.mxu0 0
    %236 = vmatprep.subr.bf16.mxu0 0
    %237 = vmatpush1.bf16.msra.mxu0 0
    %238 = vmatprep.subr.bf16.mxu0 0
    %239 = vmatpush1.bf16.msra.mxu0 0
    %240 = vmatprep.mubr.bf16.mxu0 0
    %241 = vmatmul.mubr.bf16.gmra.mrb[0].mxu0 %v206
    %v242 = vpop.f32.mrb[0].mxu0
    %v243 = vadd.f32 0.0, %v242
    %v244 = vpop.f32.mrb[0].mxu0
    %v245 = vpop.f32.mrb[0].mxu0
    %v246 = vadd.f32 0.0, %v245
    %v247 = vpop.f32.mrb[0].mxu0
    %248 = vdwg.mxu0
    %s249 = scalar_lea.vmem %s0, 24
    %v250 = vld [vmem:[%s249] sm:$0xf]
    %v251 = vld [vmem:[%s249 + $0x4] sm:$0xf]
    %s252 = scalar_lea.vmem %s1, 24
    %v253 = vld [vmem:[%s252] sm:$0xf]
    %v254 = vld [vmem:[%s252 + $0x4] sm:$0xf]
    %v257 = vunpack.c.l.b16 %v250
    %v258 = vunpack.c.l.b16 %v251
    %v259 = vpack.c.b16 %v258, %v257
    %v262 = vunpack.c.l.b16 %v253
    %v263 = vunpack.c.l.b16 %v254
    %v264 = vpack.c.b16 %v263, %v262
    %v267 = vsel %vm82, %v259, 0
    %269 = vmatprep.subr.bf16.mxu0 0
    %270 = vmatpush1.bf16.msra.mxu0 %v264
    %271 = vmatprep.subr.bf16.mxu0 0
    %272 = vmatpush1.bf16.msra.mxu0 0
    %273 = vmatprep.subr.bf16.mxu0 0
    %274 = vmatpush1.bf16.msra.mxu0 0
    %275 = vmatprep.subr.bf16.mxu0 0
    %276 = vmatpush1.bf16.msra.mxu0 0
    %277 = vmatprep.subr.bf16.mxu0 0
    %278 = vmatpush1.bf16.msra.mxu0 0
    %279 = vmatprep.subr.bf16.mxu0 0
    %280 = vmatpush1.bf16.msra.mxu0 0
    %281 = vmatprep.subr.bf16.mxu0 0
    %282 = vmatpush1.bf16.msra.mxu0 0
    %283 = vmatprep.subr.bf16.mxu0 0
    %284 = vmatpush1.bf16.msra.mxu0 0
    %285 = vmatprep.subr.bf16.mxu0 0
    %286 = vmatpush1.bf16.msra.mxu0 0
    %287 = vmatprep.subr.bf16.mxu0 0
    %288 = vmatpush1.bf16.msra.mxu0 0
    %289 = vmatprep.subr.bf16.mxu0 0
    %290 = vmatpush1.bf16.msra.mxu0 0
    %291 = vmatprep.subr.bf16.mxu0 0
    %292 = vmatpush1.bf16.msra.mxu0 0
    %293 = vmatprep.subr.bf16.mxu0 0
    %294 = vmatpush1.bf16.msra.mxu0 0
    %295 = vmatprep.subr.bf16.mxu0 0
    %296 = vmatpush1.bf16.msra.mxu0 0
    %297 = vmatprep.subr.bf16.mxu0 0
    %298 = vmatpush1.bf16.msra.mxu0 0
    %299 = vmatprep.subr.bf16.mxu0 0
    %300 = vmatpush1.bf16.msra.mxu0 0
    %301 = vmatprep.mubr.bf16.mxu0 0
    %302 = vmatmul.mubr.bf16.gmra.mrb[0].mxu0 %v267
    %v303 = vpop.f32.mrb[0].mxu0
    %v304 = vadd.f32 0.0, %v303
    %v305 = vpop.f32.mrb[0].mxu0
    %v306 = vpop.f32.mrb[0].mxu0
    %v307 = vadd.f32 0.0, %v306
    %v308 = vpop.f32.mrb[0].mxu0
    %309 = vdwg.mxu0
    %v310 = vpack.c.bf16 %v124, %v121
    %v311 = vld [vmem:[%s2] sm:$0xff]
    %v312 = vld [vmem:[%s2 + $0x8] sm:$0xf]
    %v313 = vld [vmem:[%s2 + $0x10] sm:$0xff]
    %v314 = vld [vmem:[%s2 + $0x18] sm:$0xf]
    %v315 = vld [vmem:[%s2 + $0x20] sm:$0xff]
    %v316 = vld [vmem:[%s2 + $0x28] sm:$0xf]
    %v317 = vld [vmem:[%s2 + $0x30] sm:$0xff]
    %v318 = vld [vmem:[%s2 + $0x38] sm:$0xf]
    %v319 = vld [vmem:[%s2 + $0x40] sm:$0xff]
    %v320 = vld [vmem:[%s2 + $0x48] sm:$0xf]
    %v321 = vld [vmem:[%s2 + $0x50] sm:$0xff]
    %v322 = vld [vmem:[%s2 + $0x58] sm:$0xf]
    %v323 = vld [vmem:[%s2 + $0x60] sm:$0xff]
    %v324 = vld [vmem:[%s2 + $0x68] sm:$0xf]
    %v325 = vld [vmem:[%s2 + $0x70] sm:$0xff]
    %v326 = vld [vmem:[%s2 + $0x78] sm:$0xf]
    %v343 = vunpack.c.l.b16 %v311
    %v344 = vunpack.c.h.b16 %v311
    %v345 = vunpack.c.l.b16 %v312
    %v346 = vunpack.c.l.b16 %v313
    %v347 = vunpack.c.h.b16 %v313
    %v348 = vunpack.c.l.b16 %v314
    %v349 = vunpack.c.l.b16 %v315
    %v350 = vunpack.c.h.b16 %v315
    %v351 = vunpack.c.l.b16 %v316
    %v352 = vunpack.c.l.b16 %v317
    %v353 = vunpack.c.h.b16 %v317
    %v354 = vunpack.c.l.b16 %v318
    %v355 = vunpack.c.l.b16 %v319
    %v356 = vunpack.c.h.b16 %v319
    %v357 = vunpack.c.l.b16 %v320
    %v358 = vunpack.c.l.b16 %v321
    %v359 = vunpack.c.h.b16 %v321
    %v360 = vunpack.c.l.b16 %v322
    %v361 = vunpack.c.l.b16 %v323
    %v362 = vunpack.c.h.b16 %v323
    %v363 = vunpack.c.l.b16 %v324
    %v364 = vunpack.c.l.b16 %v325
    %v365 = vunpack.c.h.b16 %v325
    %v366 = vunpack.c.l.b16 %v326
    %v367 = vpack.c.b16 %v346, %v343
    %v368 = vpack.c.b16 %v347, %v344
    %v369 = vpack.c.b16 %v348, %v345
    %v370 = vpack.c.b16 %v352, %v349
    %v371 = vpack.c.b16 %v353, %v350
    %v372 = vpack.c.b16 %v354, %v351
    %v373 = vpack.c.b16 %v358, %v355
    %v374 = vpack.c.b16 %v359, %v356
    %v375 = vpack.c.b16 %v360, %v357
    %v376 = vpack.c.b16 %v364, %v361
    %v377 = vpack.c.b16 %v365, %v362
    %v378 = vpack.c.b16 %v366, %v363
    %vm391 = vcmask 523264
    %v393 = vsel %vm391, %v310, 0
    %395 = vmatprep.subr.bf16.mxu0 %v368
    %396 = vmatpush1.bf16.msra.mxu0 %v367
    %397 = vmatprep.subr.bf16.mxu0 %v371
    %398 = vmatpush1.bf16.msra.mxu0 %v370
    %399 = vmatprep.subr.bf16.mxu0 %v374
    %400 = vmatpush1.bf16.msra.mxu0 %v373
    %401 = vmatprep.subr.bf16.mxu0 %v377
    %402 = vmatpush1.bf16.msra.mxu0 %v376
    %403 = vmatprep.subr.bf16.mxu0 0
    %404 = vmatpush1.bf16.msra.mxu0 0
    %405 = vmatprep.subr.bf16.mxu0 0
    %406 = vmatpush1.bf16.msra.mxu0 0
    %407 = vmatprep.subr.bf16.mxu0 0
    %408 = vmatpush1.bf16.msra.mxu0 0
    %409 = vmatprep.subr.bf16.mxu0 0
    %410 = vmatpush1.bf16.msra.mxu0 0
    %411 = vmatprep.subr.bf16.mxu0 0
    %412 = vmatpush1.bf16.msra.mxu0 0
    %413 = vmatprep.subr.bf16.mxu0 0
    %414 = vmatpush1.bf16.msra.mxu0 0
    %415 = vmatprep.subr.bf16.mxu0 0
    %416 = vmatpush1.bf16.msra.mxu0 0
    %417 = vmatprep.subr.bf16.mxu0 0
    %418 = vmatpush1.bf16.msra.mxu0 0
    %419 = vmatprep.subr.bf16.mxu0 0
    %420 = vmatpush1.bf16.msra.mxu0 0
    %421 = vmatprep.subr.bf16.mxu0 0
    %422 = vmatpush1.bf16.msra.mxu0 0
    %423 = vmatprep.subr.bf16.mxu0 0
    %424 = vmatpush1.bf16.msra.mxu0 0
    %425 = vmatprep.subr.bf16.mxu0 0
    %426 = vmatpush1.bf16.msra.mxu0 0
    %427 = vmatprep.mubr.bf16.mxu0 0
    %428 = vmatmul.mubr.bf16.gmra.mrb[0].mxu0 %v393
    %v429 = vpop.f32.mrb[0].mxu0
    %v430 = vadd.f32 0.0, %v429
    %v431 = vpop.f32.mrb[0].mxu0
    %v432 = vadd.f32 0.0, %v431
    %v433 = vpop.f32.mrb[0].mxu0
    %v434 = vadd.f32 0.0, %v433
    %v435 = vpop.f32.mrb[0].mxu0
    %v436 = vadd.f32 0.0, %v435
    %437 = vdwg.mxu0
    %438 = vmatprep.subr.bf16.mxu0 0
    %439 = vmatpush1.bf16.msra.mxu0 %v369
    %440 = vmatprep.subr.bf16.mxu0 0
    %441 = vmatpush1.bf16.msra.mxu0 %v372
    %442 = vmatprep.subr.bf16.mxu0 0
    %443 = vmatpush1.bf16.msra.mxu0 %v375
    %444 = vmatprep.subr.bf16.mxu0 0
    %445 = vmatpush1.bf16.msra.mxu0 %v378
    %446 = vmatprep.subr.bf16.mxu0 0
    %447 = vmatpush1.bf16.msra.mxu0 0
    %448 = vmatprep.subr.bf16.mxu0 0
    %449 = vmatpush1.bf16.msra.mxu0 0
    %450 = vmatprep.subr.bf16.mxu0 0
    %451 = vmatpush1.bf16.msra.mxu0 0
    %452 = vmatprep.subr.bf16.mxu0 0
    %453 = vmatpush1.bf16.msra.mxu0 0
    %454 = vmatprep.subr.bf16.mxu0 0
    %455 = vmatpush1.bf16.msra.mxu0 0
    %456 = vmatprep.subr.bf16.mxu0 0
    %457 = vmatpush1.bf16.msra.mxu0 0
    %458 = vmatprep.subr.bf16.mxu0 0
    %459 = vmatpush1.bf16.msra.mxu0 0
    %460 = vmatprep.subr.bf16.mxu0 0
    %461 = vmatpush1.bf16.msra.mxu0 0
    %462 = vmatprep.subr.bf16.mxu0 0
    %463 = vmatpush1.bf16.msra.mxu0 0
    %464 = vmatprep.subr.bf16.mxu0 0
    %465 = vmatpush1.bf16.msra.mxu0 0
    %466 = vmatprep.subr.bf16.mxu0 0
    %467 = vmatpush1.bf16.msra.mxu0 0
    %468 = vmatprep.subr.bf16.mxu0 0
    %469 = vmatpush1.bf16.msra.mxu0 0
    %470 = vmatprep.mubr.bf16.mxu0 0
    %471 = vmatmul.mubr.bf16.gmra.mrb[0].mxu0 %v393
    %v472 = vpop.f32.mrb[0].mxu0
    %v473 = vadd.f32 0.0, %v472
    %v474 = vpop.f32.mrb[0].mxu0
    %v475 = vpop.f32.mrb[0].mxu0
    %v476 = vadd.f32 0.0, %v475
    %v477 = vpop.f32.mrb[0].mxu0
    %478 = vdwg.mxu0
    %v479 = vpack.c.bf16 %v434, %v430
    %v480 = vpack.c.bf16 %v436, %v432
    %v481 = vpack.c.bf16 %v185, %v182
    %v482 = vld [vmem:[%s2 + $0xc] sm:$0xf]
    %v483 = vld [vmem:[%s2 + $0x1c] sm:$0xf]
    %v484 = vld [vmem:[%s2 + $0x2c] sm:$0xf]
    %v485 = vld [vmem:[%s2 + $0x3c] sm:$0xf]
    %v486 = vld [vmem:[%s2 + $0x4c] sm:$0xf]
    %v487 = vld [vmem:[%s2 + $0x5c] sm:$0xf]
    %v488 = vld [vmem:[%s2 + $0x6c] sm:$0xf]
    %v489 = vld [vmem:[%s2 + $0x7c] sm:$0xf]
    %v490 = vmul.f32 %v473, %v30
    %v491 = vmul.f32 %v476, %v31
    %v492 = vpack.c.bf16 %v491, %v490
    %v494 = vsel %vm82, 1065369472, 0
    %496 = vmatprep.subr.bf16.mxu0 0
    %497 = vmatpush1.bf16.msra.mxu0 %v492
    %498 = vmatprep.subr.bf16.mxu0 0
    %499 = vmatpush1.bf16.msra.mxu0 0
    %500 = vmatprep.subr.bf16.mxu0 0
    %501 = vmatpush1.bf16.msra.mxu0 0
    %502 = vmatprep.subr.bf16.mxu0 0
    %503 = vmatpush1.bf16.msra.mxu0 0
    %504 = vmatprep.subr.bf16.mxu0 0
    %505 = vmatpush1.bf16.msra.mxu0 0
    %506 = vmatprep.subr.bf16.mxu0 0
    %507 = vmatpush1.bf16.msra.mxu0 0
    %508 = vmatprep.subr.bf16.mxu0 0
    %509 = vmatpush1.bf16.msra.mxu0 0
    %510 = vmatprep.subr.bf16.mxu0 0
    %511 = vmatpush1.bf16.msra.mxu0 0
    %512 = vmatprep.subr.bf16.mxu0 0
    %513 = vmatpush1.bf16.msra.mxu0 0
    %514 = vmatprep.subr.bf16.mxu0 0
    %515 = vmatpush1.bf16.msra.mxu0 0
    %516 = vmatprep.subr.bf16.mxu0 0
    %517 = vmatpush1.bf16.msra.mxu0 0
    %518 = vmatprep.subr.bf16.mxu0 0
    %519 = vmatpush1.bf16.msra.mxu0 0
    %520 = vmatprep.subr.bf16.mxu0 0
    %521 = vmatpush1.bf16.msra.mxu0 0
    %522 = vmatprep.subr.bf16.mxu0 0
    %523 = vmatpush1.bf16.msra.mxu0 0
    %524 = vmatprep.subr.bf16.mxu0 0
    %525 = vmatpush1.bf16.msra.mxu0 0
    %526 = vmatprep.subr.bf16.mxu0 0
    %527 = vmatpush1.bf16.msra.mxu0 0
    %528 = vmatprep.mubr.bf16.mxu0 0
    %529 = vmatmul.mubr.bf16.gmra.mrb[0].mxu0 %v494
    %v530 = vpop.f32.mrb[0].mxu0
    %v531 = vadd.f32 0.0, %v530
    %v532 = vpop.f32.mrb[0].mxu0
    %v533 = vpop.f32.mrb[0].mxu0
    %v534 = vadd.f32 0.0, %v533
    %v535 = vpop.f32.mrb[0].mxu0
    %536 = vdwg.mxu0
    %v545 = vunpack.c.l.b16 %v482
    %v546 = vunpack.c.l.b16 %v483
    %v547 = vunpack.c.l.b16 %v484
    %v548 = vunpack.c.l.b16 %v485
    %v549 = vunpack.c.l.b16 %v486
    %v550 = vunpack.c.l.b16 %v487
    %v551 = vunpack.c.l.b16 %v488
    %v552 = vunpack.c.l.b16 %v489
    %v553 = vpack.c.b16 %v546, %v545
    %v554 = vpack.c.b16 %v548, %v547
    %v555 = vpack.c.b16 %v550, %v549
    %v556 = vpack.c.b16 %v552, %v551
    %v562 = vsel %vm391, %v481, 0
    %564 = vmatprep.subr.bf16.mxu0 0
    %565 = vmatpush1.bf16.msra.mxu0 %v553
    %566 = vmatprep.subr.bf16.mxu0 0
    %567 = vmatpush1.bf16.msra.mxu0 %v554
    %568 = vmatprep.subr.bf16.mxu0 0
    %569 = vmatpush1.bf16.msra.mxu0 %v555
    %570 = vmatprep.subr.bf16.mxu0 0
    %571 = vmatpush1.bf16.msra.mxu0 %v556
    %572 = vmatprep.subr.bf16.mxu0 0
    %573 = vmatpush1.bf16.msra.mxu0 0
    %574 = vmatprep.subr.bf16.mxu0 0
    %575 = vmatpush1.bf16.msra.mxu0 0
    %576 = vmatprep.subr.bf16.mxu0 0
    %577 = vmatpush1.bf16.msra.mxu0 0
    %578 = vmatprep.subr.bf16.mxu0 0
    %579 = vmatpush1.bf16.msra.mxu0 0
    %580 = vmatprep.subr.bf16.mxu0 0
    %581 = vmatpush1.bf16.msra.mxu0 0
    %582 = vmatprep.subr.bf16.mxu0 0
    %583 = vmatpush1.bf16.msra.mxu0 0
    %584 = vmatprep.subr.bf16.mxu0 0
    %585 = vmatpush1.bf16.msra.mxu0 0
    %586 = vmatprep.subr.bf16.mxu0 0
    %587 = vmatpush1.bf16.msra.mxu0 0
    %588 = vmatprep.subr.bf16.mxu0 0
    %589 = vmatpush1.bf16.msra.mxu0 0
    %590 = vmatprep.subr.bf16.mxu0 0
    %591 = vmatpush1.bf16.msra.mxu0 0
    %592 = vmatprep.subr.bf16.mxu0 0
    %593 = vmatpush1.bf16.msra.mxu0 0
    %594 = vmatprep.subr.bf16.mxu0 0
    %595 = vmatpush1.bf16.msra.mxu0 0
    %596 = vmatprep.mubr.bf16.mxu0 0
    %597 = vmatmul.mubr.bf16.gmra.mrb[0].mxu0 %v562
    %v598 = vpop.f32.mrb[0].mxu0
    %v599 = vadd.f32 %v531, %v598
    %v600 = vpop.f32.mrb[0].mxu0
    %v601 = vpop.f32.mrb[0].mxu0
    %v602 = vadd.f32 %v534, %v601
    %v603 = vpop.f32.mrb[0].mxu0
    %604 = vdwg.mxu0
    %vm605 = vcmp.ge.f32.partialorder %v599, 0.0
    %vm606 = vcmp.ge.f32.partialorder %v602, 0.0
    %v607 = vmul.f32 %v599, 0.2
    %v608 = vmul.f32 %v602, 0.2
    %v609 = vsel %vm605, %v599, %v607
    %v610 = vsel %vm606, %v602, %v608
    %v611 = vadd.f32 %v609, %v50
    %v612 = vadd.f32 %v610, %v51
    %v613 = vsel %vm391, %v611, -inf
    %614 = vmax.xlane.f32.xlu0 %v613
    %v615 = vpop.xlane.xlu0 %614
    %v616 = vsel %vm391, %v612, -inf
    %617 = vmax.xlane.f32.xlu0 %v616
    %v618 = vpop.xlane.xlu0 %617
    %v619 = vsub.f32 %v611, %v615
    %v620 = vsub.f32 %v612, %v618
    %v621 = vmul.f32 %v619, 1.442695
    %v622 = vpow.pop %v621
    %v623 = vmul.f32 %v620, 1.442695
    %v624 = vpow.pop %v623
    %v625 = vmul.f32 %v622, %v32
    %v626 = vmul.f32 %v624, %v33
    %v627 = vsel %vm82, %v625, 0.0
    %628 = vadd.xlane.f32.xlu0 %v627
    %v629 = vpop.xlane.xlu0 %628
    %v630 = vsel %vm82, %v626, 0.0
    %631 = vadd.xlane.f32.xlu0 %v630
    %v632 = vpop.xlane.xlu0 %631
    %v633 = vmax.f32 %v629, 1e-20
    %v634 = vmax.f32 %v632, 1e-20
    %v635 = vrcp.pop %v633
    %v636 = vrcp.pop %v634
    %v637 = vpack.c.bf16 %v626, %v625
    %v639 = vsel %vm82, %v637, 0
    %641 = vmatprep.subr.bf16.mxu0 0
    %642 = vmatpush1.bf16.msra.mxu0 %v479
    %643 = vmatprep.subr.bf16.mxu0 0
    %644 = vmatpush1.bf16.msra.mxu0 0
    %645 = vmatprep.subr.bf16.mxu0 0
    %646 = vmatpush1.bf16.msra.mxu0 0
    %647 = vmatprep.subr.bf16.mxu0 0
    %648 = vmatpush1.bf16.msra.mxu0 0
    %649 = vmatprep.subr.bf16.mxu0 0
    %650 = vmatpush1.bf16.msra.mxu0 0
    %651 = vmatprep.subr.bf16.mxu0 0
    %652 = vmatpush1.bf16.msra.mxu0 0
    %653 = vmatprep.subr.bf16.mxu0 0
    %654 = vmatpush1.bf16.msra.mxu0 0
    %655 = vmatprep.subr.bf16.mxu0 0
    %656 = vmatpush1.bf16.msra.mxu0 0
    %657 = vmatprep.subr.bf16.mxu0 0
    %658 = vmatpush1.bf16.msra.mxu0 0
    %659 = vmatprep.subr.bf16.mxu0 0
    %660 = vmatpush1.bf16.msra.mxu0 0
    %661 = vmatprep.subr.bf16.mxu0 0
    %662 = vmatpush1.bf16.msra.mxu0 0
    %663 = vmatprep.subr.bf16.mxu0 0
    %664 = vmatpush1.bf16.msra.mxu0 0
    %665 = vmatprep.subr.bf16.mxu0 0
    %666 = vmatpush1.bf16.msra.mxu0 0
    %667 = vmatprep.subr.bf16.mxu0 0
    %668 = vmatpush1.bf16.msra.mxu0 0
    %669 = vmatprep.subr.bf16.mxu0 0
    %670 = vmatpush1.bf16.msra.mxu0 0
    %671 = vmatprep.subr.bf16.mxu0 0
    %672 = vmatpush1.bf16.msra.mxu0 0
    %673 = vmatprep.mubr.bf16.mxu0 0
    %674 = vmatmul.mubr.bf16.gmra.mrb[0].mxu0 %v639
    %v675 = vpop.f32.mrb[0].mxu0
    %v676 = vadd.f32 0.0, %v675
    %v677 = vpop.f32.mrb[0].mxu0
    %v678 = vpop.f32.mrb[0].mxu0
    %v679 = vadd.f32 0.0, %v678
    %v680 = vpop.f32.mrb[0].mxu0
    %681 = vdwg.mxu0
    %v682 = vmul.f32 %v635, %v676
    %v683 = vmul.f32 %v636, %v679
    %686 = vrot.lane.b32.xlu0 %v625, 112
    %v687 = vpop.permute.xlu0 %686
    %688 = vrot.lane.b32.xlu0 %v626, 112
    %v689 = vpop.permute.xlu0 %688
    %v692 = vsel %vm82, %v687, 0.0
    %693 = vadd.xlane.f32.xlu0 %v692
    %v694 = vpop.xlane.xlu0 %693
    %v695 = vsel %vm82, %v689, 0.0
    %696 = vadd.xlane.f32.xlu0 %v695
    %v697 = vpop.xlane.xlu0 %696
    %v698 = vmax.f32 %v694, 1e-20
    %v699 = vmax.f32 %v697, 1e-20
    %v700 = vrcp.pop %v698
    %v701 = vrcp.pop %v699
    %703 = vrot.lane.b32.xlu0 %v637, 112
    %v704 = vpop.permute.xlu0 %703
    %706 = vrot.lane.b32.xlu0 %v479, 64
    %v707 = vpop.permute.xlu0 %706
    %v710 = vsel %vm82, %v704, 0
    %712 = vmatprep.subr.bf16.mxu0 0
    %713 = vmatpush1.bf16.msra.mxu0 %v707
    %714 = vmatprep.subr.bf16.mxu0 0
    %715 = vmatpush1.bf16.msra.mxu0 0
    %716 = vmatprep.subr.bf16.mxu0 0
    %717 = vmatpush1.bf16.msra.mxu0 0
    %718 = vmatprep.subr.bf16.mxu0 0
    %719 = vmatpush1.bf16.msra.mxu0 0
    %720 = vmatprep.subr.bf16.mxu0 0
    %721 = vmatpush1.bf16.msra.mxu0 0
    %722 = vmatprep.subr.bf16.mxu0 0
    %723 = vmatpush1.bf16.msra.mxu0 0
    %724 = vmatprep.subr.bf16.mxu0 0
    %725 = vmatpush1.bf16.msra.mxu0 0
    %726 = vmatprep.subr.bf16.mxu0 0
    %727 = vmatpush1.bf16.msra.mxu0 0
    %728 = vmatprep.subr.bf16.mxu0 0
    %729 = vmatpush1.bf16.msra.mxu0 0
    %730 = vmatprep.subr.bf16.mxu0 0
    %731 = vmatpush1.bf16.msra.mxu0 0
    %732 = vmatprep.subr.bf16.mxu0 0
    %733 = vmatpush1.bf16.msra.mxu0 0
    %734 = vmatprep.subr.bf16.mxu0 0
    %735 = vmatpush1.bf16.msra.mxu0 0
    %736 = vmatprep.subr.bf16.mxu0 0
    %737 = vmatpush1.bf16.msra.mxu0 0
    %738 = vmatprep.subr.bf16.mxu0 0
    %739 = vmatpush1.bf16.msra.mxu0 0
    %740 = vmatprep.subr.bf16.mxu0 0
    %741 = vmatpush1.bf16.msra.mxu0 0
    %742 = vmatprep.subr.bf16.mxu0 0
    %743 = vmatpush1.bf16.msra.mxu0 0
    %744 = vmatprep.mubr.bf16.mxu0 0
    %745 = vmatmul.mubr.bf16.gmra.mrb[0].mxu0 %v710
    %v746 = vpop.f32.mrb[0].mxu0
    %v747 = vadd.f32 0.0, %v746
    %v748 = vpop.f32.mrb[0].mxu0
    %v749 = vpop.f32.mrb[0].mxu0
    %v750 = vadd.f32 0.0, %v749
    %v751 = vpop.f32.mrb[0].mxu0
    %752 = vdwg.mxu0
    %v753 = vmul.f32 %v700, %v747
    %v754 = vmul.f32 %v701, %v750
    %755 = vrot.lane.b32.xlu0 %v625, 96
    %v756 = vpop.permute.xlu0 %755
    %757 = vrot.lane.b32.xlu0 %v626, 96
    %v758 = vpop.permute.xlu0 %757
    %v761 = vsel %vm82, %v756, 0.0
    %762 = vadd.xlane.f32.xlu0 %v761
    %v763 = vpop.xlane.xlu0 %762
    %v764 = vsel %vm82, %v758, 0.0
    %765 = vadd.xlane.f32.xlu0 %v764
    %v766 = vpop.xlane.xlu0 %765
    %v767 = vmax.f32 %v763, 1e-20
    %v768 = vmax.f32 %v766, 1e-20
    %v769 = vrcp.pop %v767
    %v770 = vrcp.pop %v768
    %771 = vrot.lane.b32.xlu0 %v637, 96
    %v772 = vpop.permute.xlu0 %771
    %v774 = vsel %vm82, %v772, 0
    %776 = vmatprep.subr.bf16.mxu0 0
    %777 = vmatpush1.bf16.msra.mxu0 %v480
    %778 = vmatprep.subr.bf16.mxu0 0
    %779 = vmatpush1.bf16.msra.mxu0 0
    %780 = vmatprep.subr.bf16.mxu0 0
    %781 = vmatpush1.bf16.msra.mxu0 0
    %782 = vmatprep.subr.bf16.mxu0 0
    %783 = vmatpush1.bf16.msra.mxu0 0
    %784 = vmatprep.subr.bf16.mxu0 0
    %785 = vmatpush1.bf16.msra.mxu0 0
    %786 = vmatprep.subr.bf16.mxu0 0
    %787 = vmatpush1.bf16.msra.mxu0 0
    %788 = vmatprep.subr.bf16.mxu0 0
    %789 = vmatpush1.bf16.msra.mxu0 0
    %790 = vmatprep.subr.bf16.mxu0 0
    %791 = vmatpush1.bf16.msra.mxu0 0
    %792 = vmatprep.subr.bf16.mxu0 0
    %793 = vmatpush1.bf16.msra.mxu0 0
    %794 = vmatprep.subr.bf16.mxu0 0
    %795 = vmatpush1.bf16.msra.mxu0 0
    %796 = vmatprep.subr.bf16.mxu0 0
    %797 = vmatpush1.bf16.msra.mxu0 0
    %798 = vmatprep.subr.bf16.mxu0 0
    %799 = vmatpush1.bf16.msra.mxu0 0
    %800 = vmatprep.subr.bf16.mxu0 0
    %801 = vmatpush1.bf16.msra.mxu0 0
    %802 = vmatprep.subr.bf16.mxu0 0
    %803 = vmatpush1.bf16.msra.mxu0 0
    %804 = vmatprep.subr.bf16.mxu0 0
    %805 = vmatpush1.bf16.msra.mxu0 0
    %806 = vmatprep.subr.bf16.mxu0 0
    %807 = vmatpush1.bf16.msra.mxu0 0
    %808 = vmatprep.mubr.bf16.mxu0 0
    %809 = vmatmul.mubr.bf16.gmra.mrb[0].mxu0 %v774
    %v810 = vpop.f32.mrb[0].mxu0
    %v811 = vadd.f32 0.0, %v810
    %v812 = vpop.f32.mrb[0].mxu0
    %v813 = vpop.f32.mrb[0].mxu0
    %v814 = vadd.f32 0.0, %v813
    %v815 = vpop.f32.mrb[0].mxu0
    %816 = vdwg.mxu0
    %v817 = vmul.f32 %v769, %v811
    %v818 = vmul.f32 %v770, %v814
    %819 = vrot.lane.b32.xlu0 %v625, 80
    %v820 = vpop.permute.xlu0 %819
    %821 = vrot.lane.b32.xlu0 %v626, 80
    %v822 = vpop.permute.xlu0 %821
    %v825 = vsel %vm82, %v820, 0.0
    %826 = vadd.xlane.f32.xlu0 %v825
    %v827 = vpop.xlane.xlu0 %826
    %v828 = vsel %vm82, %v822, 0.0
    %829 = vadd.xlane.f32.xlu0 %v828
    %v830 = vpop.xlane.xlu0 %829
    %v831 = vmax.f32 %v827, 1e-20
    %v832 = vmax.f32 %v830, 1e-20
    %v833 = vrcp.pop %v831
    %v834 = vrcp.pop %v832
    %835 = vrot.lane.b32.xlu0 %v637, 80
    %v836 = vpop.permute.xlu0 %835
    %838 = vrot.lane.b32.xlu0 %v480, 64
    %v839 = vpop.permute.xlu0 %838
    %v842 = vsel %vm82, %v836, 0
    %844 = vmatprep.subr.bf16.mxu0 0
    %845 = vmatpush1.bf16.msra.mxu0 %v839
    %846 = vmatprep.subr.bf16.mxu0 0
    %847 = vmatpush1.bf16.msra.mxu0 0
    %848 = vmatprep.subr.bf16.mxu0 0
    %849 = vmatpush1.bf16.msra.mxu0 0
    %850 = vmatprep.subr.bf16.mxu0 0
    %851 = vmatpush1.bf16.msra.mxu0 0
    %852 = vmatprep.subr.bf16.mxu0 0
    %853 = vmatpush1.bf16.msra.mxu0 0
    %854 = vmatprep.subr.bf16.mxu0 0
    %855 = vmatpush1.bf16.msra.mxu0 0
    %856 = vmatprep.subr.bf16.mxu0 0
    %857 = vmatpush1.bf16.msra.mxu0 0
    %858 = vmatprep.subr.bf16.mxu0 0
    %859 = vmatpush1.bf16.msra.mxu0 0
    %860 = vmatprep.subr.bf16.mxu0 0
    %861 = vmatpush1.bf16.msra.mxu0 0
    %862 = vmatprep.subr.bf16.mxu0 0
    %863 = vmatpush1.bf16.msra.mxu0 0
    %864 = vmatprep.subr.bf16.mxu0 0
    %865 = vmatpush1.bf16.msra.mxu0 0
    %866 = vmatprep.subr.bf16.mxu0 0
    %867 = vmatpush1.bf16.msra.mxu0 0
    %868 = vmatprep.subr.bf16.mxu0 0
    %869 = vmatpush1.bf16.msra.mxu0 0
    %870 = vmatprep.subr.bf16.mxu0 0
    %871 = vmatpush1.bf16.msra.mxu0 0
    %872 = vmatprep.subr.bf16.mxu0 0
    %873 = vmatpush1.bf16.msra.mxu0 0
    %874 = vmatprep.subr.bf16.mxu0 0
    %875 = vmatpush1.bf16.msra.mxu0 0
    %876 = vmatprep.mubr.bf16.mxu0 0
    %877 = vmatmul.mubr.bf16.gmra.mrb[0].mxu0 %v842
    %v878 = vpop.f32.mrb[0].mxu0
    %v879 = vadd.f32 0.0, %v878
    %v880 = vpop.f32.mrb[0].mxu0
    %v881 = vpop.f32.mrb[0].mxu0
    %v882 = vadd.f32 0.0, %v881
    %v883 = vpop.f32.mrb[0].mxu0
    %884 = vdwg.mxu0
    %v885 = vmul.f32 %v833, %v879
    %v886 = vmul.f32 %v834, %v882
    %889 = vrot.lane.b32.xlu0 %v753, 64
    %v890 = vpop.permute.xlu0 %889
    %891 = vrot.lane.b32.xlu0 %v754, 64
    %v892 = vpop.permute.xlu0 %891
    %897 = vrot.lane.b32.xlu0 %v885, 64
    %v898 = vpop.permute.xlu0 %897
    %899 = vrot.lane.b32.xlu0 %v886, 64
    %v900 = vpop.permute.xlu0 %899
    %v903 = vsel %vm391, %v682, %v890
    %v904 = vsel %vm391, %v683, %v892
    %v905 = vsel %vm391, %v817, %v898
    %v906 = vsel %vm391, %v818, %v900
    %v907 = vld [vmem:[%s6] ss:$8 sm:$0x3]
    %v909 = vlaneseq
    %v910 = vshrl.u32 %v909, 7
    %v911 = vsub.s32 0, %v910
    %v912 = vrot.slane %v907, %v911
    %v913 = vlaneseq
    %v914 = vshrl.u32 %v913, 7
    %v915 = vsub.s32 1, %v914
    %v916 = vrot.slane %v907, %v915
    %v919 = vadd.f32 %v903, %v912
    %v920 = vadd.f32 %v905, %v916
    %v921 = vadd.f32 %v904, %v912
    %v922 = vadd.f32 %v906, %v916
    %s923 = scalar_lea.vmem %s2, 128
    %v924 = vld [vmem:[%s923] sm:$0xff]
    %v925 = vld [vmem:[%s923 + $0x8] sm:$0xf]
    %v926 = vld [vmem:[%s923 + $0x10] sm:$0xff]
    %v927 = vld [vmem:[%s923 + $0x18] sm:$0xf]
    %v928 = vld [vmem:[%s923 + $0x20] sm:$0xff]
    %v929 = vld [vmem:[%s923 + $0x28] sm:$0xf]
    %v930 = vld [vmem:[%s923 + $0x30] sm:$0xff]
    %v931 = vld [vmem:[%s923 + $0x38] sm:$0xf]
    %v932 = vld [vmem:[%s923 + $0x40] sm:$0xff]
    %v933 = vld [vmem:[%s923 + $0x48] sm:$0xf]
    %v934 = vld [vmem:[%s923 + $0x50] sm:$0xff]
    %v935 = vld [vmem:[%s923 + $0x58] sm:$0xf]
    %v936 = vld [vmem:[%s923 + $0x60] sm:$0xff]
    %v937 = vld [vmem:[%s923 + $0x68] sm:$0xf]
    %v938 = vld [vmem:[%s923 + $0x70] sm:$0xff]
    %v939 = vld [vmem:[%s923 + $0x78] sm:$0xf]
    %v956 = vunpack.c.l.b16 %v924
    %v957 = vunpack.c.h.b16 %v924
    %v958 = vunpack.c.l.b16 %v925
    %v959 = vunpack.c.l.b16 %v926
    %v960 = vunpack.c.h.b16 %v926
    %v961 = vunpack.c.l.b16 %v927
    %v962 = vunpack.c.l.b16 %v928
    %v963 = vunpack.c.h.b16 %v928
    %v964 = vunpack.c.l.b16 %v929
    %v965 = vunpack.c.l.b16 %v930
    %v966 = vunpack.c.h.b16 %v930
    %v967 = vunpack.c.l.b16 %v931
    %v968 = vunpack.c.l.b16 %v932
    %v969 = vunpack.c.h.b16 %v932
    %v970 = vunpack.c.l.b16 %v933
    %v971 = vunpack.c.l.b16 %v934
    %v972 = vunpack.c.h.b16 %v934
    %v973 = vunpack.c.l.b16 %v935
    %v974 = vunpack.c.l.b16 %v936
    %v975 = vunpack.c.h.b16 %v936
    %v976 = vunpack.c.l.b16 %v937
    %v977 = vunpack.c.l.b16 %v938
    %v978 = vunpack.c.h.b16 %v938
    %v979 = vunpack.c.l.b16 %v939
    %v980 = vpack.c.b16 %v959, %v956
    %v981 = vpack.c.b16 %v960, %v957
    %v982 = vpack.c.b16 %v961, %v958
    %v983 = vpack.c.b16 %v965, %v962
    %v984 = vpack.c.b16 %v966, %v963
    %v985 = vpack.c.b16 %v967, %v964
    %v986 = vpack.c.b16 %v971, %v968
    %v987 = vpack.c.b16 %v972, %v969
    %v988 = vpack.c.b16 %v973, %v970
    %v989 = vpack.c.b16 %v977, %v974
    %v990 = vpack.c.b16 %v978, %v975
    %v991 = vpack.c.b16 %v979, %v976
    %1004 = vmatprep.subr.bf16.mxu0 %v981
    %1005 = vmatpush1.bf16.msra.mxu0 %v980
    %1006 = vmatprep.subr.bf16.mxu0 %v984
    %1007 = vmatpush1.bf16.msra.mxu0 %v983
    %1008 = vmatprep.subr.bf16.mxu0 %v987
    %1009 = vmatpush1.bf16.msra.mxu0 %v986
    %1010 = vmatprep.subr.bf16.mxu0 %v990
    %1011 = vmatpush1.bf16.msra.mxu0 %v989
    %1012 = vmatprep.subr.bf16.mxu0 0
    %1013 = vmatpush1.bf16.msra.mxu0 0
    %1014 = vmatprep.subr.bf16.mxu0 0
    %1015 = vmatpush1.bf16.msra.mxu0 0
    %1016 = vmatprep.subr.bf16.mxu0 0
    %1017 = vmatpush1.bf16.msra.mxu0 0
    %1018 = vmatprep.subr.bf16.mxu0 0
    %1019 = vmatpush1.bf16.msra.mxu0 0
    %1020 = vmatprep.subr.bf16.mxu0 0
    %1021 = vmatpush1.bf16.msra.mxu0 0
    %1022 = vmatprep.subr.bf16.mxu0 0
    %1023 = vmatpush1.bf16.msra.mxu0 0
    %1024 = vmatprep.subr.bf16.mxu0 0
    %1025 = vmatpush1.bf16.msra.mxu0 0
    %1026 = vmatprep.subr.bf16.mxu0 0
    %1027 = vmatpush1.bf16.msra.mxu0 0
    %1028 = vmatprep.subr.bf16.mxu0 0
    %1029 = vmatpush1.bf16.msra.mxu0 0
    %1030 = vmatprep.subr.bf16.mxu0 0
    %1031 = vmatpush1.bf16.msra.mxu0 0
    %1032 = vmatprep.subr.bf16.mxu0 0
    %1033 = vmatpush1.bf16.msra.mxu0 0
    %1034 = vmatprep.subr.bf16.mxu0 0
    %1035 = vmatpush1.bf16.msra.mxu0 0
    %1036 = vmatprep.mubr.bf16.mxu0 0
    %1037 = vmatmul.mubr.bf16.gmra.mrb[0].mxu0 %v562
    %v1038 = vpop.f32.mrb[0].mxu0
    %v1039 = vadd.f32 0.0, %v1038
    %v1040 = vpop.f32.mrb[0].mxu0
    %v1041 = vadd.f32 0.0, %v1040
    %v1042 = vpop.f32.mrb[0].mxu0
    %v1043 = vadd.f32 0.0, %v1042
    %v1044 = vpop.f32.mrb[0].mxu0
    %v1045 = vadd.f32 0.0, %v1044
    %1046 = vdwg.mxu0
    %1047 = vmatprep.subr.bf16.mxu0 0
    %1048 = vmatpush1.bf16.msra.mxu0 %v982
    %1049 = vmatprep.subr.bf16.mxu0 0
    %1050 = vmatpush1.bf16.msra.mxu0 %v985
    %1051 = vmatprep.subr.bf16.mxu0 0
    %1052 = vmatpush1.bf16.msra.mxu0 %v988
    %1053 = vmatprep.subr.bf16.mxu0 0
    %1054 = vmatpush1.bf16.msra.mxu0 %v991
    %1055 = vmatprep.subr.bf16.mxu0 0
    %1056 = vmatpush1.bf16.msra.mxu0 0
    %1057 = vmatprep.subr.bf16.mxu0 0
    %1058 = vmatpush1.bf16.msra.mxu0 0
    %1059 = vmatprep.subr.bf16.mxu0 0
    %1060 = vmatpush1.bf16.msra.mxu0 0
    %1061 = vmatprep.subr.bf16.mxu0 0
    %1062 = vmatpush1.bf16.msra.mxu0 0
    %1063 = vmatprep.subr.bf16.mxu0 0
    %1064 = vmatpush1.bf16.msra.mxu0 0
    %1065 = vmatprep.subr.bf16.mxu0 0
    %1066 = vmatpush1.bf16.msra.mxu0 0
    %1067 = vmatprep.subr.bf16.mxu0 0
    %1068 = vmatpush1.bf16.msra.mxu0 0
    %1069 = vmatprep.subr.bf16.mxu0 0
    %1070 = vmatpush1.bf16.msra.mxu0 0
    %1071 = vmatprep.subr.bf16.mxu0 0
    %1072 = vmatpush1.bf16.msra.mxu0 0
    %1073 = vmatprep.subr.bf16.mxu0 0
    %1074 = vmatpush1.bf16.msra.mxu0 0
    %1075 = vmatprep.subr.bf16.mxu0 0
    %1076 = vmatpush1.bf16.msra.mxu0 0
    %1077 = vmatprep.subr.bf16.mxu0 0
    %1078 = vmatpush1.bf16.msra.mxu0 0
    %1079 = vmatprep.mubr.bf16.mxu0 0
    %1080 = vmatmul.mubr.bf16.gmra.mrb[0].mxu0 %v562
    %v1081 = vpop.f32.mrb[0].mxu0
    %v1082 = vadd.f32 0.0, %v1081
    %v1083 = vpop.f32.mrb[0].mxu0
    %v1084 = vpop.f32.mrb[0].mxu0
    %v1085 = vadd.f32 0.0, %v1084
    %v1086 = vpop.f32.mrb[0].mxu0
    %1087 = vdwg.mxu0
    %v1088 = vpack.c.bf16 %v1043, %v1039
    %v1089 = vpack.c.bf16 %v1045, %v1041
    %v1090 = vld [vmem:[%s923 + $0xc] sm:$0xf]
    %v1091 = vld [vmem:[%s923 + $0x1c] sm:$0xf]
    %v1092 = vld [vmem:[%s923 + $0x2c] sm:$0xf]
    %v1093 = vld [vmem:[%s923 + $0x3c] sm:$0xf]
    %v1094 = vld [vmem:[%s923 + $0x4c] sm:$0xf]
    %v1095 = vld [vmem:[%s923 + $0x5c] sm:$0xf]
    %v1096 = vld [vmem:[%s923 + $0x6c] sm:$0xf]
    %v1097 = vld [vmem:[%s923 + $0x7c] sm:$0xf]
    %v1098 = vmul.f32 %v1082, %v30
    %v1099 = vmul.f32 %v1085, %v31
    %v1100 = vpack.c.bf16 %v1099, %v1098
    %1101 = vmatprep.subr.bf16.mxu0 0
    %1102 = vmatpush1.bf16.msra.mxu0 %v1100
    %1103 = vmatprep.subr.bf16.mxu0 0
    %1104 = vmatpush1.bf16.msra.mxu0 0
    %1105 = vmatprep.subr.bf16.mxu0 0
    %1106 = vmatpush1.bf16.msra.mxu0 0
    %1107 = vmatprep.subr.bf16.mxu0 0
    %1108 = vmatpush1.bf16.msra.mxu0 0
    %1109 = vmatprep.subr.bf16.mxu0 0
    %1110 = vmatpush1.bf16.msra.mxu0 0
    %1111 = vmatprep.subr.bf16.mxu0 0
    %1112 = vmatpush1.bf16.msra.mxu0 0
    %1113 = vmatprep.subr.bf16.mxu0 0
    %1114 = vmatpush1.bf16.msra.mxu0 0
    %1115 = vmatprep.subr.bf16.mxu0 0
    %1116 = vmatpush1.bf16.msra.mxu0 0
    %1117 = vmatprep.subr.bf16.mxu0 0
    %1118 = vmatpush1.bf16.msra.mxu0 0
    %1119 = vmatprep.subr.bf16.mxu0 0
    %1120 = vmatpush1.bf16.msra.mxu0 0
    %1121 = vmatprep.subr.bf16.mxu0 0
    %1122 = vmatpush1.bf16.msra.mxu0 0
    %1123 = vmatprep.subr.bf16.mxu0 0
    %1124 = vmatpush1.bf16.msra.mxu0 0
    %1125 = vmatprep.subr.bf16.mxu0 0
    %1126 = vmatpush1.bf16.msra.mxu0 0
    %1127 = vmatprep.subr.bf16.mxu0 0
    %1128 = vmatpush1.bf16.msra.mxu0 0
    %1129 = vmatprep.subr.bf16.mxu0 0
    %1130 = vmatpush1.bf16.msra.mxu0 0
    %1131 = vmatprep.subr.bf16.mxu0 0
    %1132 = vmatpush1.bf16.msra.mxu0 0
    %1133 = vmatprep.mubr.bf16.mxu0 0
    %1134 = vmatmul.mubr.bf16.gmra.mrb[0].mxu0 %v494
    %v1135 = vpop.f32.mrb[0].mxu0
    %v1136 = vadd.f32 0.0, %v1135
    %v1137 = vpop.f32.mrb[0].mxu0
    %v1138 = vpop.f32.mrb[0].mxu0
    %v1139 = vadd.f32 0.0, %v1138
    %v1140 = vpop.f32.mrb[0].mxu0
    %1141 = vdwg.mxu0
    %v1150 = vunpack.c.l.b16 %v1090
    %v1151 = vunpack.c.l.b16 %v1091
    %v1152 = vunpack.c.l.b16 %v1092
    %v1153 = vunpack.c.l.b16 %v1093
    %v1154 = vunpack.c.l.b16 %v1094
    %v1155 = vunpack.c.l.b16 %v1095
    %v1156 = vunpack.c.l.b16 %v1096
    %v1157 = vunpack.c.l.b16 %v1097
    %v1158 = vpack.c.b16 %v1151, %v1150
    %v1159 = vpack.c.b16 %v1153, %v1152
    %v1160 = vpack.c.b16 %v1155, %v1154
    %v1161 = vpack.c.b16 %v1157, %v1156
    %1166 = vmatprep.subr.bf16.mxu0 0
    %1167 = vmatpush1.bf16.msra.mxu0 %v1158
    %1168 = vmatprep.subr.bf16.mxu0 0
    %1169 = vmatpush1.bf16.msra.mxu0 %v1159
    %1170 = vmatprep.subr.bf16.mxu0 0
    %1171 = vmatpush1.bf16.msra.mxu0 %v1160
    %1172 = vmatprep.subr.bf16.mxu0 0
    %1173 = vmatpush1.bf16.msra.mxu0 %v1161
    %1174 = vmatprep.subr.bf16.mxu0 0
    %1175 = vmatpush1.bf16.msra.mxu0 0
    %1176 = vmatprep.subr.bf16.mxu0 0
    %1177 = vmatpush1.bf16.msra.mxu0 0
    %1178 = vmatprep.subr.bf16.mxu0 0
    %1179 = vmatpush1.bf16.msra.mxu0 0
    %1180 = vmatprep.subr.bf16.mxu0 0
    %1181 = vmatpush1.bf16.msra.mxu0 0
    %1182 = vmatprep.subr.bf16.mxu0 0
    %1183 = vmatpush1.bf16.msra.mxu0 0
    %1184 = vmatprep.subr.bf16.mxu0 0
    %1185 = vmatpush1.bf16.msra.mxu0 0
    %1186 = vmatprep.subr.bf16.mxu0 0
    %1187 = vmatpush1.bf16.msra.mxu0 0
    %1188 = vmatprep.subr.bf16.mxu0 0
    %1189 = vmatpush1.bf16.msra.mxu0 0
    %1190 = vmatprep.subr.bf16.mxu0 0
    %1191 = vmatpush1.bf16.msra.mxu0 0
    %1192 = vmatprep.subr.bf16.mxu0 0
    %1193 = vmatpush1.bf16.msra.mxu0 0
    %1194 = vmatprep.subr.bf16.mxu0 0
    %1195 = vmatpush1.bf16.msra.mxu0 0
    %1196 = vmatprep.subr.bf16.mxu0 0
    %1197 = vmatpush1.bf16.msra.mxu0 0
    %1198 = vmatprep.mubr.bf16.mxu0 0
    %1199 = vmatmul.mubr.bf16.gmra.mrb[0].mxu0 %v393
    %v1200 = vpop.f32.mrb[0].mxu0
    %v1201 = vadd.f32 %v1136, %v1200
    %v1202 = vpop.f32.mrb[0].mxu0
    %v1203 = vpop.f32.mrb[0].mxu0
    %v1204 = vadd.f32 %v1139, %v1203
    %v1205 = vpop.f32.mrb[0].mxu0
    %1206 = vdwg.mxu0
    %vm1207 = vcmp.ge.f32.partialorder %v1201, 0.0
    %vm1208 = vcmp.ge.f32.partialorder %v1204, 0.0
    %v1209 = vmul.f32 %v1201, 0.2
    %v1210 = vmul.f32 %v1204, 0.2
    %v1211 = vsel %vm1207, %v1201, %v1209
    %v1212 = vsel %vm1208, %v1204, %v1210
    %v1213 = vadd.f32 %v1211, %v53
    %v1214 = vadd.f32 %v1212, %v54
    %v1215 = vsel %vm391, %v1213, -inf
    %1216 = vmax.xlane.f32.xlu0 %v1215
    %v1217 = vpop.xlane.xlu0 %1216
    %v1218 = vsel %vm391, %v1214, -inf
    %1219 = vmax.xlane.f32.xlu0 %v1218
    %v1220 = vpop.xlane.xlu0 %1219
    %v1221 = vsub.f32 %v1213, %v1217
    %v1222 = vsub.f32 %v1214, %v1220
    %v1223 = vmul.f32 %v1221, 1.442695
    %v1224 = vpow.pop %v1223
    %v1225 = vmul.f32 %v1222, 1.442695
    %v1226 = vpow.pop %v1225
    %v1227 = vmul.f32 %v1224, %v35
    %v1228 = vmul.f32 %v1226, %v36
    %v1229 = vsel %vm82, %v1227, 0.0
    %1230 = vadd.xlane.f32.xlu0 %v1229
    %v1231 = vpop.xlane.xlu0 %1230
    %v1232 = vsel %vm82, %v1228, 0.0
    %1233 = vadd.xlane.f32.xlu0 %v1232
    %v1234 = vpop.xlane.xlu0 %1233
    %v1235 = vmax.f32 %v1231, 1e-20
    %v1236 = vmax.f32 %v1234, 1e-20
    %v1237 = vrcp.pop %v1235
    %v1238 = vrcp.pop %v1236
    %v1239 = vpack.c.bf16 %v1228, %v1227
    %v1241 = vsel %vm82, %v1239, 0
    %1243 = vmatprep.subr.bf16.mxu0 0
    %1244 = vmatpush1.bf16.msra.mxu0 %v1088
    %1245 = vmatprep.subr.bf16.mxu0 0
    %1246 = vmatpush1.bf16.msra.mxu0 0
    %1247 = vmatprep.subr.bf16.mxu0 0
    %1248 = vmatpush1.bf16.msra.mxu0 0
    %1249 = vmatprep.subr.bf16.mxu0 0
    %1250 = vmatpush1.bf16.msra.mxu0 0
    %1251 = vmatprep.subr.bf16.mxu0 0
    %1252 = vmatpush1.bf16.msra.mxu0 0
    %1253 = vmatprep.subr.bf16.mxu0 0
    %1254 = vmatpush1.bf16.msra.mxu0 0
    %1255 = vmatprep.subr.bf16.mxu0 0
    %1256 = vmatpush1.bf16.msra.mxu0 0
    %1257 = vmatprep.subr.bf16.mxu0 0
    %1258 = vmatpush1.bf16.msra.mxu0 0
    %1259 = vmatprep.subr.bf16.mxu0 0
    %1260 = vmatpush1.bf16.msra.mxu0 0
    %1261 = vmatprep.subr.bf16.mxu0 0
    %1262 = vmatpush1.bf16.msra.mxu0 0
    %1263 = vmatprep.subr.bf16.mxu0 0
    %1264 = vmatpush1.bf16.msra.mxu0 0
    %1265 = vmatprep.subr.bf16.mxu0 0
    %1266 = vmatpush1.bf16.msra.mxu0 0
    %1267 = vmatprep.subr.bf16.mxu0 0
    %1268 = vmatpush1.bf16.msra.mxu0 0
    %1269 = vmatprep.subr.bf16.mxu0 0
    %1270 = vmatpush1.bf16.msra.mxu0 0
    %1271 = vmatprep.subr.bf16.mxu0 0
    %1272 = vmatpush1.bf16.msra.mxu0 0
    %1273 = vmatprep.subr.bf16.mxu0 0
    %1274 = vmatpush1.bf16.msra.mxu0 0
    %1275 = vmatprep.mubr.bf16.mxu0 0
    %1276 = vmatmul.mubr.bf16.gmra.mrb[0].mxu0 %v1241
    %v1277 = vpop.f32.mrb[0].mxu0
    %v1278 = vadd.f32 0.0, %v1277
    %v1279 = vpop.f32.mrb[0].mxu0
    %v1280 = vpop.f32.mrb[0].mxu0
    %v1281 = vadd.f32 0.0, %v1280
    %v1282 = vpop.f32.mrb[0].mxu0
    %1283 = vdwg.mxu0
    %v1284 = vmul.f32 %v1237, %v1278
    %v1285 = vmul.f32 %v1238, %v1281
    %1288 = vrot.lane.b32.xlu0 %v1227, 112
    %v1289 = vpop.permute.xlu0 %1288
    %1290 = vrot.lane.b32.xlu0 %v1228, 112
    %v1291 = vpop.permute.xlu0 %1290
    %v1294 = vsel %vm82, %v1289, 0.0
    %1295 = vadd.xlane.f32.xlu0 %v1294
    %v1296 = vpop.xlane.xlu0 %1295
    %v1297 = vsel %vm82, %v1291, 0.0
    %1298 = vadd.xlane.f32.xlu0 %v1297
    %v1299 = vpop.xlane.xlu0 %1298
    %v1300 = vmax.f32 %v1296, 1e-20
    %v1301 = vmax.f32 %v1299, 1e-20
    %v1302 = vrcp.pop %v1300
    %v1303 = vrcp.pop %v1301
    %1305 = vrot.lane.b32.xlu0 %v1239, 112
    %v1306 = vpop.permute.xlu0 %1305
    %1308 = vrot.lane.b32.xlu0 %v1088, 64
    %v1309 = vpop.permute.xlu0 %1308
    %v1312 = vsel %vm82, %v1306, 0
    %1314 = vmatprep.subr.bf16.mxu0 0
    %1315 = vmatpush1.bf16.msra.mxu0 %v1309
    %1316 = vmatprep.subr.bf16.mxu0 0
    %1317 = vmatpush1.bf16.msra.mxu0 0
    %1318 = vmatprep.subr.bf16.mxu0 0
    %1319 = vmatpush1.bf16.msra.mxu0 0
    %1320 = vmatprep.subr.bf16.mxu0 0
    %1321 = vmatpush1.bf16.msra.mxu0 0
    %1322 = vmatprep.subr.bf16.mxu0 0
    %1323 = vmatpush1.bf16.msra.mxu0 0
    %1324 = vmatprep.subr.bf16.mxu0 0
    %1325 = vmatpush1.bf16.msra.mxu0 0
    %1326 = vmatprep.subr.bf16.mxu0 0
    %1327 = vmatpush1.bf16.msra.mxu0 0
    %1328 = vmatprep.subr.bf16.mxu0 0
    %1329 = vmatpush1.bf16.msra.mxu0 0
    %1330 = vmatprep.subr.bf16.mxu0 0
    %1331 = vmatpush1.bf16.msra.mxu0 0
    %1332 = vmatprep.subr.bf16.mxu0 0
    %1333 = vmatpush1.bf16.msra.mxu0 0
    %1334 = vmatprep.subr.bf16.mxu0 0
    %1335 = vmatpush1.bf16.msra.mxu0 0
    %1336 = vmatprep.subr.bf16.mxu0 0
    %1337 = vmatpush1.bf16.msra.mxu0 0
    %1338 = vmatprep.subr.bf16.mxu0 0
    %1339 = vmatpush1.bf16.msra.mxu0 0
    %1340 = vmatprep.subr.bf16.mxu0 0
    %1341 = vmatpush1.bf16.msra.mxu0 0
    %1342 = vmatprep.subr.bf16.mxu0 0
    %1343 = vmatpush1.bf16.msra.mxu0 0
    %1344 = vmatprep.subr.bf16.mxu0 0
    %1345 = vmatpush1.bf16.msra.mxu0 0
    %1346 = vmatprep.mubr.bf16.mxu0 0
    %1347 = vmatmul.mubr.bf16.gmra.mrb[0].mxu0 %v1312
    %v1348 = vpop.f32.mrb[0].mxu0
    %v1349 = vadd.f32 0.0, %v1348
    %v1350 = vpop.f32.mrb[0].mxu0
    %v1351 = vpop.f32.mrb[0].mxu0
    %v1352 = vadd.f32 0.0, %v1351
    %v1353 = vpop.f32.mrb[0].mxu0
    %1354 = vdwg.mxu0
    %v1355 = vmul.f32 %v1302, %v1349
    %v1356 = vmul.f32 %v1303, %v1352
    %1357 = vrot.lane.b32.xlu0 %v1227, 96
    %v1358 = vpop.permute.xlu0 %1357
    %1359 = vrot.lane.b32.xlu0 %v1228, 96
    %v1360 = vpop.permute.xlu0 %1359
    %v1363 = vsel %vm82, %v1358, 0.0
    %1364 = vadd.xlane.f32.xlu0 %v1363
    %v1365 = vpop.xlane.xlu0 %1364
    %v1366 = vsel %vm82, %v1360, 0.0
    %1367 = vadd.xlane.f32.xlu0 %v1366
    %v1368 = vpop.xlane.xlu0 %1367
    %v1369 = vmax.f32 %v1365, 1e-20
    %v1370 = vmax.f32 %v1368, 1e-20
    %v1371 = vrcp.pop %v1369
    %v1372 = vrcp.pop %v1370
    %1373 = vrot.lane.b32.xlu0 %v1239, 96
    %v1374 = vpop.permute.xlu0 %1373
    %v1376 = vsel %vm82, %v1374, 0
    %1378 = vmatprep.subr.bf16.mxu0 0
    %1379 = vmatpush1.bf16.msra.mxu0 %v1089
    %1380 = vmatprep.subr.bf16.mxu0 0
    %1381 = vmatpush1.bf16.msra.mxu0 0
    %1382 = vmatprep.subr.bf16.mxu0 0
    %1383 = vmatpush1.bf16.msra.mxu0 0
    %1384 = vmatprep.subr.bf16.mxu0 0
    %1385 = vmatpush1.bf16.msra.mxu0 0
    %1386 = vmatprep.subr.bf16.mxu0 0
    %1387 = vmatpush1.bf16.msra.mxu0 0
    %1388 = vmatprep.subr.bf16.mxu0 0
    %1389 = vmatpush1.bf16.msra.mxu0 0
    %1390 = vmatprep.subr.bf16.mxu0 0
    %1391 = vmatpush1.bf16.msra.mxu0 0
    %1392 = vmatprep.subr.bf16.mxu0 0
    %1393 = vmatpush1.bf16.msra.mxu0 0
    %1394 = vmatprep.subr.bf16.mxu0 0
    %1395 = vmatpush1.bf16.msra.mxu0 0
    %1396 = vmatprep.subr.bf16.mxu0 0
    %1397 = vmatpush1.bf16.msra.mxu0 0
    %1398 = vmatprep.subr.bf16.mxu0 0
    %1399 = vmatpush1.bf16.msra.mxu0 0
    %1400 = vmatprep.subr.bf16.mxu0 0
    %1401 = vmatpush1.bf16.msra.mxu0 0
    %1402 = vmatprep.subr.bf16.mxu0 0
    %1403 = vmatpush1.bf16.msra.mxu0 0
    %1404 = vmatprep.subr.bf16.mxu0 0
    %1405 = vmatpush1.bf16.msra.mxu0 0
    %1406 = vmatprep.subr.bf16.mxu0 0
    %1407 = vmatpush1.bf16.msra.mxu0 0
    %1408 = vmatprep.subr.bf16.mxu0 0
    %1409 = vmatpush1.bf16.msra.mxu0 0
    %1410 = vmatprep.mubr.bf16.mxu0 0
    %1411 = vmatmul.mubr.bf16.gmra.mrb[0].mxu0 %v1376
    %v1412 = vpop.f32.mrb[0].mxu0
    %v1413 = vadd.f32 0.0, %v1412
    %v1414 = vpop.f32.mrb[0].mxu0
    %v1415 = vpop.f32.mrb[0].mxu0
    %v1416 = vadd.f32 0.0, %v1415
    %v1417 = vpop.f32.mrb[0].mxu0
    %1418 = vdwg.mxu0
    %v1419 = vmul.f32 %v1371, %v1413
    %v1420 = vmul.f32 %v1372, %v1416
    %1421 = vrot.lane.b32.xlu0 %v1227, 80
    %v1422 = vpop.permute.xlu0 %1421
    %1423 = vrot.lane.b32.xlu0 %v1228, 80
    %v1424 = vpop.permute.xlu0 %1423
    %v1427 = vsel %vm82, %v1422, 0.0
    %1428 = vadd.xlane.f32.xlu0 %v1427
    %v1429 = vpop.xlane.xlu0 %1428
    %v1430 = vsel %vm82, %v1424, 0.0
    %1431 = vadd.xlane.f32.xlu0 %v1430
    %v1432 = vpop.xlane.xlu0 %1431
    %v1433 = vmax.f32 %v1429, 1e-20
    %v1434 = vmax.f32 %v1432, 1e-20
    %v1435 = vrcp.pop %v1433
    %v1436 = vrcp.pop %v1434
    %1437 = vrot.lane.b32.xlu0 %v1239, 80
    %v1438 = vpop.permute.xlu0 %1437
    %1440 = vrot.lane.b32.xlu0 %v1089, 64
    %v1441 = vpop.permute.xlu0 %1440
    %v1444 = vsel %vm82, %v1438, 0
    %1446 = vmatprep.subr.bf16.mxu0 0
    %1447 = vmatpush1.bf16.msra.mxu0 %v1441
    %1448 = vmatprep.subr.bf16.mxu0 0
    %1449 = vmatpush1.bf16.msra.mxu0 0
    %1450 = vmatprep.subr.bf16.mxu0 0
    %1451 = vmatpush1.bf16.msra.mxu0 0
    %1452 = vmatprep.subr.bf16.mxu0 0
    %1453 = vmatpush1.bf16.msra.mxu0 0
    %1454 = vmatprep.subr.bf16.mxu0 0
    %1455 = vmatpush1.bf16.msra.mxu0 0
    %1456 = vmatprep.subr.bf16.mxu0 0
    %1457 = vmatpush1.bf16.msra.mxu0 0
    %1458 = vmatprep.subr.bf16.mxu0 0
    %1459 = vmatpush1.bf16.msra.mxu0 0
    %1460 = vmatprep.subr.bf16.mxu0 0
    %1461 = vmatpush1.bf16.msra.mxu0 0
    %1462 = vmatprep.subr.bf16.mxu0 0
    %1463 = vmatpush1.bf16.msra.mxu0 0
    %1464 = vmatprep.subr.bf16.mxu0 0
    %1465 = vmatpush1.bf16.msra.mxu0 0
    %1466 = vmatprep.subr.bf16.mxu0 0
    %1467 = vmatpush1.bf16.msra.mxu0 0
    %1468 = vmatprep.subr.bf16.mxu0 0
    %1469 = vmatpush1.bf16.msra.mxu0 0
    %1470 = vmatprep.subr.bf16.mxu0 0
    %1471 = vmatpush1.bf16.msra.mxu0 0
    %1472 = vmatprep.subr.bf16.mxu0 0
    %1473 = vmatpush1.bf16.msra.mxu0 0
    %1474 = vmatprep.subr.bf16.mxu0 0
    %1475 = vmatpush1.bf16.msra.mxu0 0
    %1476 = vmatprep.subr.bf16.mxu0 0
    %1477 = vmatpush1.bf16.msra.mxu0 0
    %1478 = vmatprep.mubr.bf16.mxu0 0
    %1479 = vmatmul.mubr.bf16.gmra.mrb[0].mxu0 %v1444
    %v1480 = vpop.f32.mrb[0].mxu0
    %v1481 = vadd.f32 0.0, %v1480
    %v1482 = vpop.f32.mrb[0].mxu0
    %v1483 = vpop.f32.mrb[0].mxu0
    %v1484 = vadd.f32 0.0, %v1483
    %v1485 = vpop.f32.mrb[0].mxu0
    %1486 = vdwg.mxu0
    %v1487 = vmul.f32 %v1435, %v1481
    %v1488 = vmul.f32 %v1436, %v1484
    %1491 = vrot.lane.b32.xlu0 %v1355, 64
    %v1492 = vpop.permute.xlu0 %1491
    %1493 = vrot.lane.b32.xlu0 %v1356, 64
    %v1494 = vpop.permute.xlu0 %1493
    %1499 = vrot.lane.b32.xlu0 %v1487, 64
    %v1500 = vpop.permute.xlu0 %1499
    %1501 = vrot.lane.b32.xlu0 %v1488, 64
    %v1502 = vpop.permute.xlu0 %1501
    %v1505 = vsel %vm391, %v1284, %v1492
    %v1506 = vsel %vm391, %v1285, %v1494
    %v1507 = vsel %vm391, %v1419, %v1500
    %v1508 = vsel %vm391, %v1420, %v1502
    %s1509 = scalar_lea.vmem %s6, 1
    %v1510 = vld [vmem:[%s1509] ss:$8 sm:$0x3]
    %v1512 = vlaneseq
    %v1513 = vshrl.u32 %v1512, 7
    %v1514 = vsub.s32 0, %v1513
    %v1515 = vrot.slane %v1510, %v1514
    %v1516 = vlaneseq
    %v1517 = vshrl.u32 %v1516, 7
    %v1518 = vsub.s32 1, %v1517
    %v1519 = vrot.slane %v1510, %v1518
    %v1522 = vadd.f32 %v1505, %v1515
    %v1523 = vadd.f32 %v1507, %v1519
    %v1524 = vadd.f32 %v1506, %v1515
    %v1525 = vadd.f32 %v1508, %v1519
    %s1526 = scalar_lea.vmem %s2, 256
    %v1527 = vld [vmem:[%s1526] sm:$0xff]
    %v1528 = vld [vmem:[%s1526 + $0x8] sm:$0xf]
    %v1529 = vld [vmem:[%s1526 + $0x10] sm:$0xff]
    %v1530 = vld [vmem:[%s1526 + $0x18] sm:$0xf]
    %v1531 = vld [vmem:[%s1526 + $0x20] sm:$0xff]
    %v1532 = vld [vmem:[%s1526 + $0x28] sm:$0xf]
    %v1533 = vld [vmem:[%s1526 + $0x30] sm:$0xff]
    %v1534 = vld [vmem:[%s1526 + $0x38] sm:$0xf]
    %v1535 = vld [vmem:[%s1526 + $0x40] sm:$0xff]
    %v1536 = vld [vmem:[%s1526 + $0x48] sm:$0xf]
    %v1537 = vld [vmem:[%s1526 + $0x50] sm:$0xff]
    %v1538 = vld [vmem:[%s1526 + $0x58] sm:$0xf]
    %v1539 = vld [vmem:[%s1526 + $0x60] sm:$0xff]
    %v1540 = vld [vmem:[%s1526 + $0x68] sm:$0xf]
    %v1541 = vld [vmem:[%s1526 + $0x70] sm:$0xff]
    %v1542 = vld [vmem:[%s1526 + $0x78] sm:$0xf]
    %v1559 = vunpack.c.l.b16 %v1527
    %v1560 = vunpack.c.h.b16 %v1527
    %v1561 = vunpack.c.l.b16 %v1528
    %v1562 = vunpack.c.l.b16 %v1529
    %v1563 = vunpack.c.h.b16 %v1529
    %v1564 = vunpack.c.l.b16 %v1530
    %v1565 = vunpack.c.l.b16 %v1531
    %v1566 = vunpack.c.h.b16 %v1531
    %v1567 = vunpack.c.l.b16 %v1532
    %v1568 = vunpack.c.l.b16 %v1533
    %v1569 = vunpack.c.h.b16 %v1533
    %v1570 = vunpack.c.l.b16 %v1534
    %v1571 = vunpack.c.l.b16 %v1535
    %v1572 = vunpack.c.h.b16 %v1535
    %v1573 = vunpack.c.l.b16 %v1536
    %v1574 = vunpack.c.l.b16 %v1537
    %v1575 = vunpack.c.h.b16 %v1537
    %v1576 = vunpack.c.l.b16 %v1538
    %v1577 = vunpack.c.l.b16 %v1539
    %v1578 = vunpack.c.h.b16 %v1539
    %v1579 = vunpack.c.l.b16 %v1540
    %v1580 = vunpack.c.l.b16 %v1541
    %v1581 = vunpack.c.h.b16 %v1541
    %v1582 = vunpack.c.l.b16 %v1542
    %v1583 = vpack.c.b16 %v1562, %v1559
    %v1584 = vpack.c.b16 %v1563, %v1560
    %v1585 = vpack.c.b16 %v1564, %v1561
    %v1586 = vpack.c.b16 %v1568, %v1565
    %v1587 = vpack.c.b16 %v1569, %v1566
    %v1588 = vpack.c.b16 %v1570, %v1567
    %v1589 = vpack.c.b16 %v1574, %v1571
    %v1590 = vpack.c.b16 %v1575, %v1572
    %v1591 = vpack.c.b16 %v1576, %v1573
    %v1592 = vpack.c.b16 %v1580, %v1577
    %v1593 = vpack.c.b16 %v1581, %v1578
    %v1594 = vpack.c.b16 %v1582, %v1579
    %1607 = vmatprep.subr.bf16.mxu0 %v1584
    %1608 = vmatpush1.bf16.msra.mxu0 %v1583
    %1609 = vmatprep.subr.bf16.mxu0 %v1587
    %1610 = vmatpush1.bf16.msra.mxu0 %v1586
    %1611 = vmatprep.subr.bf16.mxu0 %v1590
    %1612 = vmatpush1.bf16.msra.mxu0 %v1589
    %1613 = vmatprep.subr.bf16.mxu0 %v1593
    %1614 = vmatpush1.bf16.msra.mxu0 %v1592
    %1615 = vmatprep.subr.bf16.mxu0 0
    %1616 = vmatpush1.bf16.msra.mxu0 0
    %1617 = vmatprep.subr.bf16.mxu0 0
    %1618 = vmatpush1.bf16.msra.mxu0 0
    %1619 = vmatprep.subr.bf16.mxu0 0
    %1620 = vmatpush1.bf16.msra.mxu0 0
    %1621 = vmatprep.subr.bf16.mxu0 0
    %1622 = vmatpush1.bf16.msra.mxu0 0
    %1623 = vmatprep.subr.bf16.mxu0 0
    %1624 = vmatpush1.bf16.msra.mxu0 0
    %1625 = vmatprep.subr.bf16.mxu0 0
    %1626 = vmatpush1.bf16.msra.mxu0 0
    %1627 = vmatprep.subr.bf16.mxu0 0
    %1628 = vmatpush1.bf16.msra.mxu0 0
    %1629 = vmatprep.subr.bf16.mxu0 0
    %1630 = vmatpush1.bf16.msra.mxu0 0
    %1631 = vmatprep.subr.bf16.mxu0 0
    %1632 = vmatpush1.bf16.msra.mxu0 0
    %1633 = vmatprep.subr.bf16.mxu0 0
    %1634 = vmatpush1.bf16.msra.mxu0 0
    %1635 = vmatprep.subr.bf16.mxu0 0
    %1636 = vmatpush1.bf16.msra.mxu0 0
    %1637 = vmatprep.subr.bf16.mxu0 0
    %1638 = vmatpush1.bf16.msra.mxu0 0
    %1639 = vmatprep.mubr.bf16.mxu0 0
    %1640 = vmatmul.mubr.bf16.gmra.mrb[0].mxu0 %v562
    %v1641 = vpop.f32.mrb[0].mxu0
    %v1642 = vadd.f32 0.0, %v1641
    %v1643 = vpop.f32.mrb[0].mxu0
    %v1644 = vadd.f32 0.0, %v1643
    %v1645 = vpop.f32.mrb[0].mxu0
    %v1646 = vadd.f32 0.0, %v1645
    %v1647 = vpop.f32.mrb[0].mxu0
    %v1648 = vadd.f32 0.0, %v1647
    %1649 = vdwg.mxu0
    %1650 = vmatprep.subr.bf16.mxu0 0
    %1651 = vmatpush1.bf16.msra.mxu0 %v1585
    %1652 = vmatprep.subr.bf16.mxu0 0
    %1653 = vmatpush1.bf16.msra.mxu0 %v1588
    %1654 = vmatprep.subr.bf16.mxu0 0
    %1655 = vmatpush1.bf16.msra.mxu0 %v1591
    %1656 = vmatprep.subr.bf16.mxu0 0
    %1657 = vmatpush1.bf16.msra.mxu0 %v1594
    %1658 = vmatprep.subr.bf16.mxu0 0
    %1659 = vmatpush1.bf16.msra.mxu0 0
    %1660 = vmatprep.subr.bf16.mxu0 0
    %1661 = vmatpush1.bf16.msra.mxu0 0
    %1662 = vmatprep.subr.bf16.mxu0 0
    %1663 = vmatpush1.bf16.msra.mxu0 0
    %1664 = vmatprep.subr.bf16.mxu0 0
    %1665 = vmatpush1.bf16.msra.mxu0 0
    %1666 = vmatprep.subr.bf16.mxu0 0
    %1667 = vmatpush1.bf16.msra.mxu0 0
    %1668 = vmatprep.subr.bf16.mxu0 0
    %1669 = vmatpush1.bf16.msra.mxu0 0
    %1670 = vmatprep.subr.bf16.mxu0 0
    %1671 = vmatpush1.bf16.msra.mxu0 0
    %1672 = vmatprep.subr.bf16.mxu0 0
    %1673 = vmatpush1.bf16.msra.mxu0 0
    %1674 = vmatprep.subr.bf16.mxu0 0
    %1675 = vmatpush1.bf16.msra.mxu0 0
    %1676 = vmatprep.subr.bf16.mxu0 0
    %1677 = vmatpush1.bf16.msra.mxu0 0
    %1678 = vmatprep.subr.bf16.mxu0 0
    %1679 = vmatpush1.bf16.msra.mxu0 0
    %1680 = vmatprep.subr.bf16.mxu0 0
    %1681 = vmatpush1.bf16.msra.mxu0 0
    %1682 = vmatprep.mubr.bf16.mxu0 0
    %1683 = vmatmul.mubr.bf16.gmra.mrb[0].mxu0 %v562
    %v1684 = vpop.f32.mrb[0].mxu0
    %v1685 = vadd.f32 0.0, %v1684
    %v1686 = vpop.f32.mrb[0].mxu0
    %v1687 = vpop.f32.mrb[0].mxu0
    %v1688 = vadd.f32 0.0, %v1687
    %v1689 = vpop.f32.mrb[0].mxu0
    %1690 = vdwg.mxu0
    %v1691 = vpack.c.bf16 %v1646, %v1642
    %v1692 = vpack.c.bf16 %v1648, %v1644
    %v1693 = vpack.c.bf16 %v246, %v243
    %v1694 = vld [vmem:[%s1526 + $0xc] sm:$0xf]
    %v1695 = vld [vmem:[%s1526 + $0x1c] sm:$0xf]
    %v1696 = vld [vmem:[%s1526 + $0x2c] sm:$0xf]
    %v1697 = vld [vmem:[%s1526 + $0x3c] sm:$0xf]
    %v1698 = vld [vmem:[%s1526 + $0x4c] sm:$0xf]
    %v1699 = vld [vmem:[%s1526 + $0x5c] sm:$0xf]
    %v1700 = vld [vmem:[%s1526 + $0x6c] sm:$0xf]
    %v1701 = vld [vmem:[%s1526 + $0x7c] sm:$0xf]
    %v1702 = vmul.f32 %v1685, %v30
    %v1703 = vmul.f32 %v1688, %v31
    %v1704 = vpack.c.bf16 %v1703, %v1702
    %1705 = vmatprep.subr.bf16.mxu0 0
    %1706 = vmatpush1.bf16.msra.mxu0 %v1704
    %1707 = vmatprep.subr.bf16.mxu0 0
    %1708 = vmatpush1.bf16.msra.mxu0 0
    %1709 = vmatprep.subr.bf16.mxu0 0
    %1710 = vmatpush1.bf16.msra.mxu0 0
    %1711 = vmatprep.subr.bf16.mxu0 0
    %1712 = vmatpush1.bf16.msra.mxu0 0
    %1713 = vmatprep.subr.bf16.mxu0 0
    %1714 = vmatpush1.bf16.msra.mxu0 0
    %1715 = vmatprep.subr.bf16.mxu0 0
    %1716 = vmatpush1.bf16.msra.mxu0 0
    %1717 = vmatprep.subr.bf16.mxu0 0
    %1718 = vmatpush1.bf16.msra.mxu0 0
    %1719 = vmatprep.subr.bf16.mxu0 0
    %1720 = vmatpush1.bf16.msra.mxu0 0
    %1721 = vmatprep.subr.bf16.mxu0 0
    %1722 = vmatpush1.bf16.msra.mxu0 0
    %1723 = vmatprep.subr.bf16.mxu0 0
    %1724 = vmatpush1.bf16.msra.mxu0 0
    %1725 = vmatprep.subr.bf16.mxu0 0
    %1726 = vmatpush1.bf16.msra.mxu0 0
    %1727 = vmatprep.subr.bf16.mxu0 0
    %1728 = vmatpush1.bf16.msra.mxu0 0
    %1729 = vmatprep.subr.bf16.mxu0 0
    %1730 = vmatpush1.bf16.msra.mxu0 0
    %1731 = vmatprep.subr.bf16.mxu0 0
    %1732 = vmatpush1.bf16.msra.mxu0 0
    %1733 = vmatprep.subr.bf16.mxu0 0
    %1734 = vmatpush1.bf16.msra.mxu0 0
    %1735 = vmatprep.subr.bf16.mxu0 0
    %1736 = vmatpush1.bf16.msra.mxu0 0
    %1737 = vmatprep.mubr.bf16.mxu0 0
    %1738 = vmatmul.mubr.bf16.gmra.mrb[0].mxu0 %v494
    %v1739 = vpop.f32.mrb[0].mxu0
    %v1740 = vadd.f32 0.0, %v1739
    %v1741 = vpop.f32.mrb[0].mxu0
    %v1742 = vpop.f32.mrb[0].mxu0
    %v1743 = vadd.f32 0.0, %v1742
    %v1744 = vpop.f32.mrb[0].mxu0
    %1745 = vdwg.mxu0
    %v1754 = vunpack.c.l.b16 %v1694
    %v1755 = vunpack.c.l.b16 %v1695
    %v1756 = vunpack.c.l.b16 %v1696
    %v1757 = vunpack.c.l.b16 %v1697
    %v1758 = vunpack.c.l.b16 %v1698
    %v1759 = vunpack.c.l.b16 %v1699
    %v1760 = vunpack.c.l.b16 %v1700
    %v1761 = vunpack.c.l.b16 %v1701
    %v1762 = vpack.c.b16 %v1755, %v1754
    %v1763 = vpack.c.b16 %v1757, %v1756
    %v1764 = vpack.c.b16 %v1759, %v1758
    %v1765 = vpack.c.b16 %v1761, %v1760
    %v1771 = vsel %vm391, %v1693, 0
    %1773 = vmatprep.subr.bf16.mxu0 0
    %1774 = vmatpush1.bf16.msra.mxu0 %v1762
    %1775 = vmatprep.subr.bf16.mxu0 0
    %1776 = vmatpush1.bf16.msra.mxu0 %v1763
    %1777 = vmatprep.subr.bf16.mxu0 0
    %1778 = vmatpush1.bf16.msra.mxu0 %v1764
    %1779 = vmatprep.subr.bf16.mxu0 0
    %1780 = vmatpush1.bf16.msra.mxu0 %v1765
    %1781 = vmatprep.subr.bf16.mxu0 0
    %1782 = vmatpush1.bf16.msra.mxu0 0
    %1783 = vmatprep.subr.bf16.mxu0 0
    %1784 = vmatpush1.bf16.msra.mxu0 0
    %1785 = vmatprep.subr.bf16.mxu0 0
    %1786 = vmatpush1.bf16.msra.mxu0 0
    %1787 = vmatprep.subr.bf16.mxu0 0
    %1788 = vmatpush1.bf16.msra.mxu0 0
    %1789 = vmatprep.subr.bf16.mxu0 0
    %1790 = vmatpush1.bf16.msra.mxu0 0
    %1791 = vmatprep.subr.bf16.mxu0 0
    %1792 = vmatpush1.bf16.msra.mxu0 0
    %1793 = vmatprep.subr.bf16.mxu0 0
    %1794 = vmatpush1.bf16.msra.mxu0 0
    %1795 = vmatprep.subr.bf16.mxu0 0
    %1796 = vmatpush1.bf16.msra.mxu0 0
    %1797 = vmatprep.subr.bf16.mxu0 0
    %1798 = vmatpush1.bf16.msra.mxu0 0
    %1799 = vmatprep.subr.bf16.mxu0 0
    %1800 = vmatpush1.bf16.msra.mxu0 0
    %1801 = vmatprep.subr.bf16.mxu0 0
    %1802 = vmatpush1.bf16.msra.mxu0 0
    %1803 = vmatprep.subr.bf16.mxu0 0
    %1804 = vmatpush1.bf16.msra.mxu0 0
    %1805 = vmatprep.mubr.bf16.mxu0 0
    %1806 = vmatmul.mubr.bf16.gmra.mrb[0].mxu0 %v1771
    %v1807 = vpop.f32.mrb[0].mxu0
    %v1808 = vadd.f32 %v1740, %v1807
    %v1809 = vpop.f32.mrb[0].mxu0
    %v1810 = vpop.f32.mrb[0].mxu0
    %v1811 = vadd.f32 %v1743, %v1810
    %v1812 = vpop.f32.mrb[0].mxu0
    %1813 = vdwg.mxu0
    %vm1814 = vcmp.ge.f32.partialorder %v1808, 0.0
    %vm1815 = vcmp.ge.f32.partialorder %v1811, 0.0
    %v1816 = vmul.f32 %v1808, 0.2
    %v1817 = vmul.f32 %v1811, 0.2
    %v1818 = vsel %vm1814, %v1808, %v1816
    %v1819 = vsel %vm1815, %v1811, %v1817
    %v1820 = vadd.f32 %v1818, %v56
    %v1821 = vadd.f32 %v1819, %v57
    %v1822 = vsel %vm391, %v1820, -inf
    %1823 = vmax.xlane.f32.xlu0 %v1822
    %v1824 = vpop.xlane.xlu0 %1823
    %v1825 = vsel %vm391, %v1821, -inf
    %1826 = vmax.xlane.f32.xlu0 %v1825
    %v1827 = vpop.xlane.xlu0 %1826
    %v1828 = vsub.f32 %v1820, %v1824
    %v1829 = vsub.f32 %v1821, %v1827
    %v1830 = vmul.f32 %v1828, 1.442695
    %v1831 = vpow.pop %v1830
    %v1832 = vmul.f32 %v1829, 1.442695
    %v1833 = vpow.pop %v1832
    %v1834 = vmul.f32 %v1831, %v38
    %v1835 = vmul.f32 %v1833, %v39
    %v1836 = vsel %vm82, %v1834, 0.0
    %1837 = vadd.xlane.f32.xlu0 %v1836
    %v1838 = vpop.xlane.xlu0 %1837
    %v1839 = vsel %vm82, %v1835, 0.0
    %1840 = vadd.xlane.f32.xlu0 %v1839
    %v1841 = vpop.xlane.xlu0 %1840
    %v1842 = vmax.f32 %v1838, 1e-20
    %v1843 = vmax.f32 %v1841, 1e-20
    %v1844 = vrcp.pop %v1842
    %v1845 = vrcp.pop %v1843
    %v1846 = vpack.c.bf16 %v1835, %v1834
    %v1848 = vsel %vm82, %v1846, 0
    %1850 = vmatprep.subr.bf16.mxu0 0
    %1851 = vmatpush1.bf16.msra.mxu0 %v1691
    %1852 = vmatprep.subr.bf16.mxu0 0
    %1853 = vmatpush1.bf16.msra.mxu0 0
    %1854 = vmatprep.subr.bf16.mxu0 0
    %1855 = vmatpush1.bf16.msra.mxu0 0
    %1856 = vmatprep.subr.bf16.mxu0 0
    %1857 = vmatpush1.bf16.msra.mxu0 0
    %1858 = vmatprep.subr.bf16.mxu0 0
    %1859 = vmatpush1.bf16.msra.mxu0 0
    %1860 = vmatprep.subr.bf16.mxu0 0
    %1861 = vmatpush1.bf16.msra.mxu0 0
    %1862 = vmatprep.subr.bf16.mxu0 0
    %1863 = vmatpush1.bf16.msra.mxu0 0
    %1864 = vmatprep.subr.bf16.mxu0 0
    %1865 = vmatpush1.bf16.msra.mxu0 0
    %1866 = vmatprep.subr.bf16.mxu0 0
    %1867 = vmatpush1.bf16.msra.mxu0 0
    %1868 = vmatprep.subr.bf16.mxu0 0
    %1869 = vmatpush1.bf16.msra.mxu0 0
    %1870 = vmatprep.subr.bf16.mxu0 0
    %1871 = vmatpush1.bf16.msra.mxu0 0
    %1872 = vmatprep.subr.bf16.mxu0 0
    %1873 = vmatpush1.bf16.msra.mxu0 0
    %1874 = vmatprep.subr.bf16.mxu0 0
    %1875 = vmatpush1.bf16.msra.mxu0 0
    %1876 = vmatprep.subr.bf16.mxu0 0
    %1877 = vmatpush1.bf16.msra.mxu0 0
    %1878 = vmatprep.subr.bf16.mxu0 0
    %1879 = vmatpush1.bf16.msra.mxu0 0
    %1880 = vmatprep.subr.bf16.mxu0 0
    %1881 = vmatpush1.bf16.msra.mxu0 0
    %1882 = vmatprep.mubr.bf16.mxu0 0
    %1883 = vmatmul.mubr.bf16.gmra.mrb[0].mxu0 %v1848
    %v1884 = vpop.f32.mrb[0].mxu0
    %v1885 = vadd.f32 0.0, %v1884
    %v1886 = vpop.f32.mrb[0].mxu0
    %v1887 = vpop.f32.mrb[0].mxu0
    %v1888 = vadd.f32 0.0, %v1887
    %v1889 = vpop.f32.mrb[0].mxu0
    %1890 = vdwg.mxu0
    %v1891 = vmul.f32 %v1844, %v1885
    %v1892 = vmul.f32 %v1845, %v1888
    %1895 = vrot.lane.b32.xlu0 %v1834, 112
    %v1896 = vpop.permute.xlu0 %1895
    %1897 = vrot.lane.b32.xlu0 %v1835, 112
    %v1898 = vpop.permute.xlu0 %1897
    %v1901 = vsel %vm82, %v1896, 0.0
    %1902 = vadd.xlane.f32.xlu0 %v1901
    %v1903 = vpop.xlane.xlu0 %1902
    %v1904 = vsel %vm82, %v1898, 0.0
    %1905 = vadd.xlane.f32.xlu0 %v1904
    %v1906 = vpop.xlane.xlu0 %1905
    %v1907 = vmax.f32 %v1903, 1e-20
    %v1908 = vmax.f32 %v1906, 1e-20
    %v1909 = vrcp.pop %v1907
    %v1910 = vrcp.pop %v1908
    %1912 = vrot.lane.b32.xlu0 %v1846, 112
    %v1913 = vpop.permute.xlu0 %1912
    %1915 = vrot.lane.b32.xlu0 %v1691, 64
    %v1916 = vpop.permute.xlu0 %1915
    %v1919 = vsel %vm82, %v1913, 0
    %1921 = vmatprep.subr.bf16.mxu0 0
    %1922 = vmatpush1.bf16.msra.mxu0 %v1916
    %1923 = vmatprep.subr.bf16.mxu0 0
    %1924 = vmatpush1.bf16.msra.mxu0 0
    %1925 = vmatprep.subr.bf16.mxu0 0
    %1926 = vmatpush1.bf16.msra.mxu0 0
    %1927 = vmatprep.subr.bf16.mxu0 0
    %1928 = vmatpush1.bf16.msra.mxu0 0
    %1929 = vmatprep.subr.bf16.mxu0 0
    %1930 = vmatpush1.bf16.msra.mxu0 0
    %1931 = vmatprep.subr.bf16.mxu0 0
    %1932 = vmatpush1.bf16.msra.mxu0 0
    %1933 = vmatprep.subr.bf16.mxu0 0
    %1934 = vmatpush1.bf16.msra.mxu0 0
    %1935 = vmatprep.subr.bf16.mxu0 0
    %1936 = vmatpush1.bf16.msra.mxu0 0
    %1937 = vmatprep.subr.bf16.mxu0 0
    %1938 = vmatpush1.bf16.msra.mxu0 0
    %1939 = vmatprep.subr.bf16.mxu0 0
    %1940 = vmatpush1.bf16.msra.mxu0 0
    %1941 = vmatprep.subr.bf16.mxu0 0
    %1942 = vmatpush1.bf16.msra.mxu0 0
    %1943 = vmatprep.subr.bf16.mxu0 0
    %1944 = vmatpush1.bf16.msra.mxu0 0
    %1945 = vmatprep.subr.bf16.mxu0 0
    %1946 = vmatpush1.bf16.msra.mxu0 0
    %1947 = vmatprep.subr.bf16.mxu0 0
    %1948 = vmatpush1.bf16.msra.mxu0 0
    %1949 = vmatprep.subr.bf16.mxu0 0
    %1950 = vmatpush1.bf16.msra.mxu0 0
    %1951 = vmatprep.subr.bf16.mxu0 0
    %1952 = vmatpush1.bf16.msra.mxu0 0
    %1953 = vmatprep.mubr.bf16.mxu0 0
    %1954 = vmatmul.mubr.bf16.gmra.mrb[0].mxu0 %v1919
    %v1955 = vpop.f32.mrb[0].mxu0
    %v1956 = vadd.f32 0.0, %v1955
    %v1957 = vpop.f32.mrb[0].mxu0
    %v1958 = vpop.f32.mrb[0].mxu0
    %v1959 = vadd.f32 0.0, %v1958
    %v1960 = vpop.f32.mrb[0].mxu0
    %1961 = vdwg.mxu0
    %v1962 = vmul.f32 %v1909, %v1956
    %v1963 = vmul.f32 %v1910, %v1959
    %1964 = vrot.lane.b32.xlu0 %v1834, 96
    %v1965 = vpop.permute.xlu0 %1964
    %1966 = vrot.lane.b32.xlu0 %v1835, 96
    %v1967 = vpop.permute.xlu0 %1966
    %v1970 = vsel %vm82, %v1965, 0.0
    %1971 = vadd.xlane.f32.xlu0 %v1970
    %v1972 = vpop.xlane.xlu0 %1971
    %v1973 = vsel %vm82, %v1967, 0.0
    %1974 = vadd.xlane.f32.xlu0 %v1973
    %v1975 = vpop.xlane.xlu0 %1974
    %v1976 = vmax.f32 %v1972, 1e-20
    %v1977 = vmax.f32 %v1975, 1e-20
    %v1978 = vrcp.pop %v1976
    %v1979 = vrcp.pop %v1977
    %1980 = vrot.lane.b32.xlu0 %v1846, 96
    %v1981 = vpop.permute.xlu0 %1980
    %v1983 = vsel %vm82, %v1981, 0
    %1985 = vmatprep.subr.bf16.mxu0 0
    %1986 = vmatpush1.bf16.msra.mxu0 %v1692
    %1987 = vmatprep.subr.bf16.mxu0 0
    %1988 = vmatpush1.bf16.msra.mxu0 0
    %1989 = vmatprep.subr.bf16.mxu0 0
    %1990 = vmatpush1.bf16.msra.mxu0 0
    %1991 = vmatprep.subr.bf16.mxu0 0
    %1992 = vmatpush1.bf16.msra.mxu0 0
    %1993 = vmatprep.subr.bf16.mxu0 0
    %1994 = vmatpush1.bf16.msra.mxu0 0
    %1995 = vmatprep.subr.bf16.mxu0 0
    %1996 = vmatpush1.bf16.msra.mxu0 0
    %1997 = vmatprep.subr.bf16.mxu0 0
    %1998 = vmatpush1.bf16.msra.mxu0 0
    %1999 = vmatprep.subr.bf16.mxu0 0
    %2000 = vmatpush1.bf16.msra.mxu0 0
    %2001 = vmatprep.subr.bf16.mxu0 0
    %2002 = vmatpush1.bf16.msra.mxu0 0
    %2003 = vmatprep.subr.bf16.mxu0 0
    %2004 = vmatpush1.bf16.msra.mxu0 0
    %2005 = vmatprep.subr.bf16.mxu0 0
    %2006 = vmatpush1.bf16.msra.mxu0 0
    %2007 = vmatprep.subr.bf16.mxu0 0
    %2008 = vmatpush1.bf16.msra.mxu0 0
    %2009 = vmatprep.subr.bf16.mxu0 0
    %2010 = vmatpush1.bf16.msra.mxu0 0
    %2011 = vmatprep.subr.bf16.mxu0 0
    %2012 = vmatpush1.bf16.msra.mxu0 0
    %2013 = vmatprep.subr.bf16.mxu0 0
    %2014 = vmatpush1.bf16.msra.mxu0 0
    %2015 = vmatprep.subr.bf16.mxu0 0
    %2016 = vmatpush1.bf16.msra.mxu0 0
    %2017 = vmatprep.mubr.bf16.mxu0 0
    %2018 = vmatmul.mubr.bf16.gmra.mrb[0].mxu0 %v1983
    %v2019 = vpop.f32.mrb[0].mxu0
    %v2020 = vadd.f32 0.0, %v2019
    %v2021 = vpop.f32.mrb[0].mxu0
    %v2022 = vpop.f32.mrb[0].mxu0
    %v2023 = vadd.f32 0.0, %v2022
    %v2024 = vpop.f32.mrb[0].mxu0
    %2025 = vdwg.mxu0
    %v2026 = vmul.f32 %v1978, %v2020
    %v2027 = vmul.f32 %v1979, %v2023
    %2028 = vrot.lane.b32.xlu0 %v1834, 80
    %v2029 = vpop.permute.xlu0 %2028
    %2030 = vrot.lane.b32.xlu0 %v1835, 80
    %v2031 = vpop.permute.xlu0 %2030
    %v2034 = vsel %vm82, %v2029, 0.0
    %2035 = vadd.xlane.f32.xlu0 %v2034
    %v2036 = vpop.xlane.xlu0 %2035
    %v2037 = vsel %vm82, %v2031, 0.0
    %2038 = vadd.xlane.f32.xlu0 %v2037
    %v2039 = vpop.xlane.xlu0 %2038
    %v2040 = vmax.f32 %v2036, 1e-20
    %v2041 = vmax.f32 %v2039, 1e-20
    %v2042 = vrcp.pop %v2040
    %v2043 = vrcp.pop %v2041
    %2044 = vrot.lane.b32.xlu0 %v1846, 80
    %v2045 = vpop.permute.xlu0 %2044
    %2047 = vrot.lane.b32.xlu0 %v1692, 64
    %v2048 = vpop.permute.xlu0 %2047
    %v2051 = vsel %vm82, %v2045, 0
    %2053 = vmatprep.subr.bf16.mxu0 0
    %2054 = vmatpush1.bf16.msra.mxu0 %v2048
    %2055 = vmatprep.subr.bf16.mxu0 0
    %2056 = vmatpush1.bf16.msra.mxu0 0
    %2057 = vmatprep.subr.bf16.mxu0 0
    %2058 = vmatpush1.bf16.msra.mxu0 0
    %2059 = vmatprep.subr.bf16.mxu0 0
    %2060 = vmatpush1.bf16.msra.mxu0 0
    %2061 = vmatprep.subr.bf16.mxu0 0
    %2062 = vmatpush1.bf16.msra.mxu0 0
    %2063 = vmatprep.subr.bf16.mxu0 0
    %2064 = vmatpush1.bf16.msra.mxu0 0
    %2065 = vmatprep.subr.bf16.mxu0 0
    %2066 = vmatpush1.bf16.msra.mxu0 0
    %2067 = vmatprep.subr.bf16.mxu0 0
    %2068 = vmatpush1.bf16.msra.mxu0 0
    %2069 = vmatprep.subr.bf16.mxu0 0
    %2070 = vmatpush1.bf16.msra.mxu0 0
    %2071 = vmatprep.subr.bf16.mxu0 0
    %2072 = vmatpush1.bf16.msra.mxu0 0
    %2073 = vmatprep.subr.bf16.mxu0 0
    %2074 = vmatpush1.bf16.msra.mxu0 0
    %2075 = vmatprep.subr.bf16.mxu0 0
    %2076 = vmatpush1.bf16.msra.mxu0 0
    %2077 = vmatprep.subr.bf16.mxu0 0
    %2078 = vmatpush1.bf16.msra.mxu0 0
    %2079 = vmatprep.subr.bf16.mxu0 0
    %2080 = vmatpush1.bf16.msra.mxu0 0
    %2081 = vmatprep.subr.bf16.mxu0 0
    %2082 = vmatpush1.bf16.msra.mxu0 0
    %2083 = vmatprep.subr.bf16.mxu0 0
    %2084 = vmatpush1.bf16.msra.mxu0 0
    %2085 = vmatprep.mubr.bf16.mxu0 0
    %2086 = vmatmul.mubr.bf16.gmra.mrb[0].mxu0 %v2051
    %v2087 = vpop.f32.mrb[0].mxu0
    %v2088 = vadd.f32 0.0, %v2087
    %v2089 = vpop.f32.mrb[0].mxu0
    %v2090 = vpop.f32.mrb[0].mxu0
    %v2091 = vadd.f32 0.0, %v2090
    %v2092 = vpop.f32.mrb[0].mxu0
    %2093 = vdwg.mxu0
    %v2094 = vmul.f32 %v2042, %v2088
    %v2095 = vmul.f32 %v2043, %v2091
    %2098 = vrot.lane.b32.xlu0 %v1962, 64
    %v2099 = vpop.permute.xlu0 %2098
    %2100 = vrot.lane.b32.xlu0 %v1963, 64
    %v2101 = vpop.permute.xlu0 %2100
    %2106 = vrot.lane.b32.xlu0 %v2094, 64
    %v2107 = vpop.permute.xlu0 %2106
    %2108 = vrot.lane.b32.xlu0 %v2095, 64
    %v2109 = vpop.permute.xlu0 %2108
    %v2112 = vsel %vm391, %v1891, %v2099
    %v2113 = vsel %vm391, %v1892, %v2101
    %v2114 = vsel %vm391, %v2026, %v2107
    %v2115 = vsel %vm391, %v2027, %v2109
    %s2116 = scalar_lea.vmem %s6, 2
    %v2117 = vld [vmem:[%s2116] ss:$8 sm:$0x3]
    %v2119 = vlaneseq
    %v2120 = vshrl.u32 %v2119, 7
    %v2121 = vsub.s32 0, %v2120
    %v2122 = vrot.slane %v2117, %v2121
    %v2123 = vlaneseq
    %v2124 = vshrl.u32 %v2123, 7
    %v2125 = vsub.s32 1, %v2124
    %v2126 = vrot.slane %v2117, %v2125
    %v2129 = vadd.f32 %v2112, %v2122
    %v2130 = vadd.f32 %v2114, %v2126
    %v2131 = vadd.f32 %v2113, %v2122
    %v2132 = vadd.f32 %v2115, %v2126
    %s2133 = scalar_lea.vmem %s2, 384
    %v2134 = vld [vmem:[%s2133] sm:$0xff]
    %v2135 = vld [vmem:[%s2133 + $0x8] sm:$0xf]
    %v2136 = vld [vmem:[%s2133 + $0x10] sm:$0xff]
    %v2137 = vld [vmem:[%s2133 + $0x18] sm:$0xf]
    %v2138 = vld [vmem:[%s2133 + $0x20] sm:$0xff]
    %v2139 = vld [vmem:[%s2133 + $0x28] sm:$0xf]
    %v2140 = vld [vmem:[%s2133 + $0x30] sm:$0xff]
    %v2141 = vld [vmem:[%s2133 + $0x38] sm:$0xf]
    %v2142 = vld [vmem:[%s2133 + $0x40] sm:$0xff]
    %v2143 = vld [vmem:[%s2133 + $0x48] sm:$0xf]
    %v2144 = vld [vmem:[%s2133 + $0x50] sm:$0xff]
    %v2145 = vld [vmem:[%s2133 + $0x58] sm:$0xf]
    %v2146 = vld [vmem:[%s2133 + $0x60] sm:$0xff]
    %v2147 = vld [vmem:[%s2133 + $0x68] sm:$0xf]
    %v2148 = vld [vmem:[%s2133 + $0x70] sm:$0xff]
    %v2149 = vld [vmem:[%s2133 + $0x78] sm:$0xf]
    %v2166 = vunpack.c.l.b16 %v2134
    %v2167 = vunpack.c.h.b16 %v2134
    %v2168 = vunpack.c.l.b16 %v2135
    %v2169 = vunpack.c.l.b16 %v2136
    %v2170 = vunpack.c.h.b16 %v2136
    %v2171 = vunpack.c.l.b16 %v2137
    %v2172 = vunpack.c.l.b16 %v2138
    %v2173 = vunpack.c.h.b16 %v2138
    %v2174 = vunpack.c.l.b16 %v2139
    %v2175 = vunpack.c.l.b16 %v2140
    %v2176 = vunpack.c.h.b16 %v2140
    %v2177 = vunpack.c.l.b16 %v2141
    %v2178 = vunpack.c.l.b16 %v2142
    %v2179 = vunpack.c.h.b16 %v2142
    %v2180 = vunpack.c.l.b16 %v2143
    %v2181 = vunpack.c.l.b16 %v2144
    %v2182 = vunpack.c.h.b16 %v2144
    %v2183 = vunpack.c.l.b16 %v2145
    %v2184 = vunpack.c.l.b16 %v2146
    %v2185 = vunpack.c.h.b16 %v2146
    %v2186 = vunpack.c.l.b16 %v2147
    %v2187 = vunpack.c.l.b16 %v2148
    %v2188 = vunpack.c.h.b16 %v2148
    %v2189 = vunpack.c.l.b16 %v2149
    %v2190 = vpack.c.b16 %v2169, %v2166
    %v2191 = vpack.c.b16 %v2170, %v2167
    %v2192 = vpack.c.b16 %v2171, %v2168
    %v2193 = vpack.c.b16 %v2175, %v2172
    %v2194 = vpack.c.b16 %v2176, %v2173
    %v2195 = vpack.c.b16 %v2177, %v2174
    %v2196 = vpack.c.b16 %v2181, %v2178
    %v2197 = vpack.c.b16 %v2182, %v2179
    %v2198 = vpack.c.b16 %v2183, %v2180
    %v2199 = vpack.c.b16 %v2187, %v2184
    %v2200 = vpack.c.b16 %v2188, %v2185
    %v2201 = vpack.c.b16 %v2189, %v2186
    %2214 = vmatprep.subr.bf16.mxu0 %v2191
    %2215 = vmatpush1.bf16.msra.mxu0 %v2190
    %2216 = vmatprep.subr.bf16.mxu0 %v2194
    %2217 = vmatpush1.bf16.msra.mxu0 %v2193
    %2218 = vmatprep.subr.bf16.mxu0 %v2197
    %2219 = vmatpush1.bf16.msra.mxu0 %v2196
    %2220 = vmatprep.subr.bf16.mxu0 %v2200
    %2221 = vmatpush1.bf16.msra.mxu0 %v2199
    %2222 = vmatprep.subr.bf16.mxu0 0
    %2223 = vmatpush1.bf16.msra.mxu0 0
    %2224 = vmatprep.subr.bf16.mxu0 0
    %2225 = vmatpush1.bf16.msra.mxu0 0
    %2226 = vmatprep.subr.bf16.mxu0 0
    %2227 = vmatpush1.bf16.msra.mxu0 0
    %2228 = vmatprep.subr.bf16.mxu0 0
    %2229 = vmatpush1.bf16.msra.mxu0 0
    %2230 = vmatprep.subr.bf16.mxu0 0
    %2231 = vmatpush1.bf16.msra.mxu0 0
    %2232 = vmatprep.subr.bf16.mxu0 0
    %2233 = vmatpush1.bf16.msra.mxu0 0
    %2234 = vmatprep.subr.bf16.mxu0 0
    %2235 = vmatpush1.bf16.msra.mxu0 0
    %2236 = vmatprep.subr.bf16.mxu0 0
    %2237 = vmatpush1.bf16.msra.mxu0 0
    %2238 = vmatprep.subr.bf16.mxu0 0
    %2239 = vmatpush1.bf16.msra.mxu0 0
    %2240 = vmatprep.subr.bf16.mxu0 0
    %2241 = vmatpush1.bf16.msra.mxu0 0
    %2242 = vmatprep.subr.bf16.mxu0 0
    %2243 = vmatpush1.bf16.msra.mxu0 0
    %2244 = vmatprep.subr.bf16.mxu0 0
    %2245 = vmatpush1.bf16.msra.mxu0 0
    %2246 = vmatprep.mubr.bf16.mxu0 0
    %2247 = vmatmul.mubr.bf16.gmra.mrb[0].mxu0 %v1771
    %v2248 = vpop.f32.mrb[0].mxu0
    %v2249 = vadd.f32 0.0, %v2248
    %v2250 = vpop.f32.mrb[0].mxu0
    %v2251 = vadd.f32 0.0, %v2250
    %v2252 = vpop.f32.mrb[0].mxu0
    %v2253 = vadd.f32 0.0, %v2252
    %v2254 = vpop.f32.mrb[0].mxu0
    %v2255 = vadd.f32 0.0, %v2254
    %2256 = vdwg.mxu0
    %2257 = vmatprep.subr.bf16.mxu0 0
    %2258 = vmatpush1.bf16.msra.mxu0 %v2192
    %2259 = vmatprep.subr.bf16.mxu0 0
    %2260 = vmatpush1.bf16.msra.mxu0 %v2195
    %2261 = vmatprep.subr.bf16.mxu0 0
    %2262 = vmatpush1.bf16.msra.mxu0 %v2198
    %2263 = vmatprep.subr.bf16.mxu0 0
    %2264 = vmatpush1.bf16.msra.mxu0 %v2201
    %2265 = vmatprep.subr.bf16.mxu0 0
    %2266 = vmatpush1.bf16.msra.mxu0 0
    %2267 = vmatprep.subr.bf16.mxu0 0
    %2268 = vmatpush1.bf16.msra.mxu0 0
    %2269 = vmatprep.subr.bf16.mxu0 0
    %2270 = vmatpush1.bf16.msra.mxu0 0
    %2271 = vmatprep.subr.bf16.mxu0 0
    %2272 = vmatpush1.bf16.msra.mxu0 0
    %2273 = vmatprep.subr.bf16.mxu0 0
    %2274 = vmatpush1.bf16.msra.mxu0 0
    %2275 = vmatprep.subr.bf16.mxu0 0
    %2276 = vmatpush1.bf16.msra.mxu0 0
    %2277 = vmatprep.subr.bf16.mxu0 0
    %2278 = vmatpush1.bf16.msra.mxu0 0
    %2279 = vmatprep.subr.bf16.mxu0 0
    %2280 = vmatpush1.bf16.msra.mxu0 0
    %2281 = vmatprep.subr.bf16.mxu0 0
    %2282 = vmatpush1.bf16.msra.mxu0 0
    %2283 = vmatprep.subr.bf16.mxu0 0
    %2284 = vmatpush1.bf16.msra.mxu0 0
    %2285 = vmatprep.subr.bf16.mxu0 0
    %2286 = vmatpush1.bf16.msra.mxu0 0
    %2287 = vmatprep.subr.bf16.mxu0 0
    %2288 = vmatpush1.bf16.msra.mxu0 0
    %2289 = vmatprep.mubr.bf16.mxu0 0
    %2290 = vmatmul.mubr.bf16.gmra.mrb[0].mxu0 %v1771
    %v2291 = vpop.f32.mrb[0].mxu0
    %v2292 = vadd.f32 0.0, %v2291
    %v2293 = vpop.f32.mrb[0].mxu0
    %v2294 = vpop.f32.mrb[0].mxu0
    %v2295 = vadd.f32 0.0, %v2294
    %v2296 = vpop.f32.mrb[0].mxu0
    %2297 = vdwg.mxu0
    %v2298 = vpack.c.bf16 %v2253, %v2249
    %v2299 = vpack.c.bf16 %v2255, %v2251
    %v2300 = vld [vmem:[%s2133 + $0xc] sm:$0xf]
    %v2301 = vld [vmem:[%s2133 + $0x1c] sm:$0xf]
    %v2302 = vld [vmem:[%s2133 + $0x2c] sm:$0xf]
    %v2303 = vld [vmem:[%s2133 + $0x3c] sm:$0xf]
    %v2304 = vld [vmem:[%s2133 + $0x4c] sm:$0xf]
    %v2305 = vld [vmem:[%s2133 + $0x5c] sm:$0xf]
    %v2306 = vld [vmem:[%s2133 + $0x6c] sm:$0xf]
    %v2307 = vld [vmem:[%s2133 + $0x7c] sm:$0xf]
    %v2308 = vmul.f32 %v2292, %v30
    %v2309 = vmul.f32 %v2295, %v31
    %v2310 = vpack.c.bf16 %v2309, %v2308
    %2311 = vmatprep.subr.bf16.mxu0 0
    %2312 = vmatpush1.bf16.msra.mxu0 %v2310
    %2313 = vmatprep.subr.bf16.mxu0 0
    %2314 = vmatpush1.bf16.msra.mxu0 0
    %2315 = vmatprep.subr.bf16.mxu0 0
    %2316 = vmatpush1.bf16.msra.mxu0 0
    %2317 = vmatprep.subr.bf16.mxu0 0
    %2318 = vmatpush1.bf16.msra.mxu0 0
    %2319 = vmatprep.subr.bf16.mxu0 0
    %2320 = vmatpush1.bf16.msra.mxu0 0
    %2321 = vmatprep.subr.bf16.mxu0 0
    %2322 = vmatpush1.bf16.msra.mxu0 0
    %2323 = vmatprep.subr.bf16.mxu0 0
    %2324 = vmatpush1.bf16.msra.mxu0 0
    %2325 = vmatprep.subr.bf16.mxu0 0
    %2326 = vmatpush1.bf16.msra.mxu0 0
    %2327 = vmatprep.subr.bf16.mxu0 0
    %2328 = vmatpush1.bf16.msra.mxu0 0
    %2329 = vmatprep.subr.bf16.mxu0 0
    %2330 = vmatpush1.bf16.msra.mxu0 0
    %2331 = vmatprep.subr.bf16.mxu0 0
    %2332 = vmatpush1.bf16.msra.mxu0 0
    %2333 = vmatprep.subr.bf16.mxu0 0
    %2334 = vmatpush1.bf16.msra.mxu0 0
    %2335 = vmatprep.subr.bf16.mxu0 0
    %2336 = vmatpush1.bf16.msra.mxu0 0
    %2337 = vmatprep.subr.bf16.mxu0 0
    %2338 = vmatpush1.bf16.msra.mxu0 0
    %2339 = vmatprep.subr.bf16.mxu0 0
    %2340 = vmatpush1.bf16.msra.mxu0 0
    %2341 = vmatprep.subr.bf16.mxu0 0
    %2342 = vmatpush1.bf16.msra.mxu0 0
    %2343 = vmatprep.mubr.bf16.mxu0 0
    %2344 = vmatmul.mubr.bf16.gmra.mrb[0].mxu0 %v494
    %v2345 = vpop.f32.mrb[0].mxu0
    %v2346 = vadd.f32 0.0, %v2345
    %v2347 = vpop.f32.mrb[0].mxu0
    %v2348 = vpop.f32.mrb[0].mxu0
    %v2349 = vadd.f32 0.0, %v2348
    %v2350 = vpop.f32.mrb[0].mxu0
    %2351 = vdwg.mxu0
    %v2360 = vunpack.c.l.b16 %v2300
    %v2361 = vunpack.c.l.b16 %v2301
    %v2362 = vunpack.c.l.b16 %v2302
    %v2363 = vunpack.c.l.b16 %v2303
    %v2364 = vunpack.c.l.b16 %v2304
    %v2365 = vunpack.c.l.b16 %v2305
    %v2366 = vunpack.c.l.b16 %v2306
    %v2367 = vunpack.c.l.b16 %v2307
    %v2368 = vpack.c.b16 %v2361, %v2360
    %v2369 = vpack.c.b16 %v2363, %v2362
    %v2370 = vpack.c.b16 %v2365, %v2364
    %v2371 = vpack.c.b16 %v2367, %v2366
    %2376 = vmatprep.subr.bf16.mxu0 0
    %2377 = vmatpush1.bf16.msra.mxu0 %v2368
    %2378 = vmatprep.subr.bf16.mxu0 0
    %2379 = vmatpush1.bf16.msra.mxu0 %v2369
    %2380 = vmatprep.subr.bf16.mxu0 0
    %2381 = vmatpush1.bf16.msra.mxu0 %v2370
    %2382 = vmatprep.subr.bf16.mxu0 0
    %2383 = vmatpush1.bf16.msra.mxu0 %v2371
    %2384 = vmatprep.subr.bf16.mxu0 0
    %2385 = vmatpush1.bf16.msra.mxu0 0
    %2386 = vmatprep.subr.bf16.mxu0 0
    %2387 = vmatpush1.bf16.msra.mxu0 0
    %2388 = vmatprep.subr.bf16.mxu0 0
    %2389 = vmatpush1.bf16.msra.mxu0 0
    %2390 = vmatprep.subr.bf16.mxu0 0
    %2391 = vmatpush1.bf16.msra.mxu0 0
    %2392 = vmatprep.subr.bf16.mxu0 0
    %2393 = vmatpush1.bf16.msra.mxu0 0
    %2394 = vmatprep.subr.bf16.mxu0 0
    %2395 = vmatpush1.bf16.msra.mxu0 0
    %2396 = vmatprep.subr.bf16.mxu0 0
    %2397 = vmatpush1.bf16.msra.mxu0 0
    %2398 = vmatprep.subr.bf16.mxu0 0
    %2399 = vmatpush1.bf16.msra.mxu0 0
    %2400 = vmatprep.subr.bf16.mxu0 0
    %2401 = vmatpush1.bf16.msra.mxu0 0
    %2402 = vmatprep.subr.bf16.mxu0 0
    %2403 = vmatpush1.bf16.msra.mxu0 0
    %2404 = vmatprep.subr.bf16.mxu0 0
    %2405 = vmatpush1.bf16.msra.mxu0 0
    %2406 = vmatprep.subr.bf16.mxu0 0
    %2407 = vmatpush1.bf16.msra.mxu0 0
    %2408 = vmatprep.mubr.bf16.mxu0 0
    %2409 = vmatmul.mubr.bf16.gmra.mrb[0].mxu0 %v562
    %v2410 = vpop.f32.mrb[0].mxu0
    %v2411 = vadd.f32 %v2346, %v2410
    %v2412 = vpop.f32.mrb[0].mxu0
    %v2413 = vpop.f32.mrb[0].mxu0
    %v2414 = vadd.f32 %v2349, %v2413
    %v2415 = vpop.f32.mrb[0].mxu0
    %2416 = vdwg.mxu0
    %vm2417 = vcmp.ge.f32.partialorder %v2411, 0.0
    %vm2418 = vcmp.ge.f32.partialorder %v2414, 0.0
    %v2419 = vmul.f32 %v2411, 0.2
    %v2420 = vmul.f32 %v2414, 0.2
    %v2421 = vsel %vm2417, %v2411, %v2419
    %v2422 = vsel %vm2418, %v2414, %v2420
    %v2423 = vadd.f32 %v2421, %v59
    %v2424 = vadd.f32 %v2422, %v60
    %v2425 = vsel %vm391, %v2423, -inf
    %2426 = vmax.xlane.f32.xlu0 %v2425
    %v2427 = vpop.xlane.xlu0 %2426
    %v2428 = vsel %vm391, %v2424, -inf
    %2429 = vmax.xlane.f32.xlu0 %v2428
    %v2430 = vpop.xlane.xlu0 %2429
    %v2431 = vsub.f32 %v2423, %v2427
    %v2432 = vsub.f32 %v2424, %v2430
    %v2433 = vmul.f32 %v2431, 1.442695
    %v2434 = vpow.pop %v2433
    %v2435 = vmul.f32 %v2432, 1.442695
    %v2436 = vpow.pop %v2435
    %v2437 = vmul.f32 %v2434, %v41
    %v2438 = vmul.f32 %v2436, %v42
    %v2439 = vsel %vm82, %v2437, 0.0
    %2440 = vadd.xlane.f32.xlu0 %v2439
    %v2441 = vpop.xlane.xlu0 %2440
    %v2442 = vsel %vm82, %v2438, 0.0
    %2443 = vadd.xlane.f32.xlu0 %v2442
    %v2444 = vpop.xlane.xlu0 %2443
    %v2445 = vmax.f32 %v2441, 1e-20
    %v2446 = vmax.f32 %v2444, 1e-20
    %v2447 = vrcp.pop %v2445
    %v2448 = vrcp.pop %v2446
    %v2449 = vpack.c.bf16 %v2438, %v2437
    %v2451 = vsel %vm82, %v2449, 0
    %2453 = vmatprep.subr.bf16.mxu0 0
    %2454 = vmatpush1.bf16.msra.mxu0 %v2298
    %2455 = vmatprep.subr.bf16.mxu0 0
    %2456 = vmatpush1.bf16.msra.mxu0 0
    %2457 = vmatprep.subr.bf16.mxu0 0
    %2458 = vmatpush1.bf16.msra.mxu0 0
    %2459 = vmatprep.subr.bf16.mxu0 0
    %2460 = vmatpush1.bf16.msra.mxu0 0
    %2461 = vmatprep.subr.bf16.mxu0 0
    %2462 = vmatpush1.bf16.msra.mxu0 0
    %2463 = vmatprep.subr.bf16.mxu0 0
    %2464 = vmatpush1.bf16.msra.mxu0 0
    %2465 = vmatprep.subr.bf16.mxu0 0
    %2466 = vmatpush1.bf16.msra.mxu0 0
    %2467 = vmatprep.subr.bf16.mxu0 0
    %2468 = vmatpush1.bf16.msra.mxu0 0
    %2469 = vmatprep.subr.bf16.mxu0 0
    %2470 = vmatpush1.bf16.msra.mxu0 0
    %2471 = vmatprep.subr.bf16.mxu0 0
    %2472 = vmatpush1.bf16.msra.mxu0 0
    %2473 = vmatprep.subr.bf16.mxu0 0
    %2474 = vmatpush1.bf16.msra.mxu0 0
    %2475 = vmatprep.subr.bf16.mxu0 0
    %2476 = vmatpush1.bf16.msra.mxu0 0
    %2477 = vmatprep.subr.bf16.mxu0 0
    %2478 = vmatpush1.bf16.msra.mxu0 0
    %2479 = vmatprep.subr.bf16.mxu0 0
    %2480 = vmatpush1.bf16.msra.mxu0 0
    %2481 = vmatprep.subr.bf16.mxu0 0
    %2482 = vmatpush1.bf16.msra.mxu0 0
    %2483 = vmatprep.subr.bf16.mxu0 0
    %2484 = vmatpush1.bf16.msra.mxu0 0
    %2485 = vmatprep.mubr.bf16.mxu0 0
    %2486 = vmatmul.mubr.bf16.gmra.mrb[0].mxu0 %v2451
    %v2487 = vpop.f32.mrb[0].mxu0
    %v2488 = vadd.f32 0.0, %v2487
    %v2489 = vpop.f32.mrb[0].mxu0
    %v2490 = vpop.f32.mrb[0].mxu0
    %v2491 = vadd.f32 0.0, %v2490
    %v2492 = vpop.f32.mrb[0].mxu0
    %2493 = vdwg.mxu0
    %v2494 = vmul.f32 %v2447, %v2488
    %v2495 = vmul.f32 %v2448, %v2491
    %2498 = vrot.lane.b32.xlu0 %v2437, 112
    %v2499 = vpop.permute.xlu0 %2498
    %2500 = vrot.lane.b32.xlu0 %v2438, 112
    %v2501 = vpop.permute.xlu0 %2500
    %v2504 = vsel %vm82, %v2499, 0.0
    %2505 = vadd.xlane.f32.xlu0 %v2504
    %v2506 = vpop.xlane.xlu0 %2505
    %v2507 = vsel %vm82, %v2501, 0.0
    %2508 = vadd.xlane.f32.xlu0 %v2507
    %v2509 = vpop.xlane.xlu0 %2508
    %v2510 = vmax.f32 %v2506, 1e-20
    %v2511 = vmax.f32 %v2509, 1e-20
    %v2512 = vrcp.pop %v2510
    %v2513 = vrcp.pop %v2511
    %2515 = vrot.lane.b32.xlu0 %v2449, 112
    %v2516 = vpop.permute.xlu0 %2515
    %2518 = vrot.lane.b32.xlu0 %v2298, 64
    %v2519 = vpop.permute.xlu0 %2518
    %v2522 = vsel %vm82, %v2516, 0
    %2524 = vmatprep.subr.bf16.mxu0 0
    %2525 = vmatpush1.bf16.msra.mxu0 %v2519
    %2526 = vmatprep.subr.bf16.mxu0 0
    %2527 = vmatpush1.bf16.msra.mxu0 0
    %2528 = vmatprep.subr.bf16.mxu0 0
    %2529 = vmatpush1.bf16.msra.mxu0 0
    %2530 = vmatprep.subr.bf16.mxu0 0
    %2531 = vmatpush1.bf16.msra.mxu0 0
    %2532 = vmatprep.subr.bf16.mxu0 0
    %2533 = vmatpush1.bf16.msra.mxu0 0
    %2534 = vmatprep.subr.bf16.mxu0 0
    %2535 = vmatpush1.bf16.msra.mxu0 0
    %2536 = vmatprep.subr.bf16.mxu0 0
    %2537 = vmatpush1.bf16.msra.mxu0 0
    %2538 = vmatprep.subr.bf16.mxu0 0
    %2539 = vmatpush1.bf16.msra.mxu0 0
    %2540 = vmatprep.subr.bf16.mxu0 0
    %2541 = vmatpush1.bf16.msra.mxu0 0
    %2542 = vmatprep.subr.bf16.mxu0 0
    %2543 = vmatpush1.bf16.msra.mxu0 0
    %2544 = vmatprep.subr.bf16.mxu0 0
    %2545 = vmatpush1.bf16.msra.mxu0 0
    %2546 = vmatprep.subr.bf16.mxu0 0
    %2547 = vmatpush1.bf16.msra.mxu0 0
    %2548 = vmatprep.subr.bf16.mxu0 0
    %2549 = vmatpush1.bf16.msra.mxu0 0
    %2550 = vmatprep.subr.bf16.mxu0 0
    %2551 = vmatpush1.bf16.msra.mxu0 0
    %2552 = vmatprep.subr.bf16.mxu0 0
    %2553 = vmatpush1.bf16.msra.mxu0 0
    %2554 = vmatprep.subr.bf16.mxu0 0
    %2555 = vmatpush1.bf16.msra.mxu0 0
    %2556 = vmatprep.mubr.bf16.mxu0 0
    %2557 = vmatmul.mubr.bf16.gmra.mrb[0].mxu0 %v2522
    %v2558 = vpop.f32.mrb[0].mxu0
    %v2559 = vadd.f32 0.0, %v2558
    %v2560 = vpop.f32.mrb[0].mxu0
    %v2561 = vpop.f32.mrb[0].mxu0
    %v2562 = vadd.f32 0.0, %v2561
    %v2563 = vpop.f32.mrb[0].mxu0
    %2564 = vdwg.mxu0
    %v2565 = vmul.f32 %v2512, %v2559
    %v2566 = vmul.f32 %v2513, %v2562
    %2567 = vrot.lane.b32.xlu0 %v2437, 96
    %v2568 = vpop.permute.xlu0 %2567
    %2569 = vrot.lane.b32.xlu0 %v2438, 96
    %v2570 = vpop.permute.xlu0 %2569
    %v2573 = vsel %vm82, %v2568, 0.0
    %2574 = vadd.xlane.f32.xlu0 %v2573
    %v2575 = vpop.xlane.xlu0 %2574
    %v2576 = vsel %vm82, %v2570, 0.0
    %2577 = vadd.xlane.f32.xlu0 %v2576
    %v2578 = vpop.xlane.xlu0 %2577
    %v2579 = vmax.f32 %v2575, 1e-20
    %v2580 = vmax.f32 %v2578, 1e-20
    %v2581 = vrcp.pop %v2579
    %v2582 = vrcp.pop %v2580
    %2583 = vrot.lane.b32.xlu0 %v2449, 96
    %v2584 = vpop.permute.xlu0 %2583
    %v2586 = vsel %vm82, %v2584, 0
    %2588 = vmatprep.subr.bf16.mxu0 0
    %2589 = vmatpush1.bf16.msra.mxu0 %v2299
    %2590 = vmatprep.subr.bf16.mxu0 0
    %2591 = vmatpush1.bf16.msra.mxu0 0
    %2592 = vmatprep.subr.bf16.mxu0 0
    %2593 = vmatpush1.bf16.msra.mxu0 0
    %2594 = vmatprep.subr.bf16.mxu0 0
    %2595 = vmatpush1.bf16.msra.mxu0 0
    %2596 = vmatprep.subr.bf16.mxu0 0
    %2597 = vmatpush1.bf16.msra.mxu0 0
    %2598 = vmatprep.subr.bf16.mxu0 0
    %2599 = vmatpush1.bf16.msra.mxu0 0
    %2600 = vmatprep.subr.bf16.mxu0 0
    %2601 = vmatpush1.bf16.msra.mxu0 0
    %2602 = vmatprep.subr.bf16.mxu0 0
    %2603 = vmatpush1.bf16.msra.mxu0 0
    %2604 = vmatprep.subr.bf16.mxu0 0
    %2605 = vmatpush1.bf16.msra.mxu0 0
    %2606 = vmatprep.subr.bf16.mxu0 0
    %2607 = vmatpush1.bf16.msra.mxu0 0
    %2608 = vmatprep.subr.bf16.mxu0 0
    %2609 = vmatpush1.bf16.msra.mxu0 0
    %2610 = vmatprep.subr.bf16.mxu0 0
    %2611 = vmatpush1.bf16.msra.mxu0 0
    %2612 = vmatprep.subr.bf16.mxu0 0
    %2613 = vmatpush1.bf16.msra.mxu0 0
    %2614 = vmatprep.subr.bf16.mxu0 0
    %2615 = vmatpush1.bf16.msra.mxu0 0
    %2616 = vmatprep.subr.bf16.mxu0 0
    %2617 = vmatpush1.bf16.msra.mxu0 0
    %2618 = vmatprep.subr.bf16.mxu0 0
    %2619 = vmatpush1.bf16.msra.mxu0 0
    %2620 = vmatprep.mubr.bf16.mxu0 0
    %2621 = vmatmul.mubr.bf16.gmra.mrb[0].mxu0 %v2586
    %v2622 = vpop.f32.mrb[0].mxu0
    %v2623 = vadd.f32 0.0, %v2622
    %v2624 = vpop.f32.mrb[0].mxu0
    %v2625 = vpop.f32.mrb[0].mxu0
    %v2626 = vadd.f32 0.0, %v2625
    %v2627 = vpop.f32.mrb[0].mxu0
    %2628 = vdwg.mxu0
    %v2629 = vmul.f32 %v2581, %v2623
    %v2630 = vmul.f32 %v2582, %v2626
    %2631 = vrot.lane.b32.xlu0 %v2437, 80
    %v2632 = vpop.permute.xlu0 %2631
    %2633 = vrot.lane.b32.xlu0 %v2438, 80
    %v2634 = vpop.permute.xlu0 %2633
    %v2637 = vsel %vm82, %v2632, 0.0
    %2638 = vadd.xlane.f32.xlu0 %v2637
    %v2639 = vpop.xlane.xlu0 %2638
    %v2640 = vsel %vm82, %v2634, 0.0
    %2641 = vadd.xlane.f32.xlu0 %v2640
    %v2642 = vpop.xlane.xlu0 %2641
    %v2643 = vmax.f32 %v2639, 1e-20
    %v2644 = vmax.f32 %v2642, 1e-20
    %v2645 = vrcp.pop %v2643
    %v2646 = vrcp.pop %v2644
    %2647 = vrot.lane.b32.xlu0 %v2449, 80
    %v2648 = vpop.permute.xlu0 %2647
    %2650 = vrot.lane.b32.xlu0 %v2299, 64
    %v2651 = vpop.permute.xlu0 %2650
    %v2654 = vsel %vm82, %v2648, 0
    %2656 = vmatprep.subr.bf16.mxu0 0
    %2657 = vmatpush1.bf16.msra.mxu0 %v2651
    %2658 = vmatprep.subr.bf16.mxu0 0
    %2659 = vmatpush1.bf16.msra.mxu0 0
    %2660 = vmatprep.subr.bf16.mxu0 0
    %2661 = vmatpush1.bf16.msra.mxu0 0
    %2662 = vmatprep.subr.bf16.mxu0 0
    %2663 = vmatpush1.bf16.msra.mxu0 0
    %2664 = vmatprep.subr.bf16.mxu0 0
    %2665 = vmatpush1.bf16.msra.mxu0 0
    %2666 = vmatprep.subr.bf16.mxu0 0
    %2667 = vmatpush1.bf16.msra.mxu0 0
    %2668 = vmatprep.subr.bf16.mxu0 0
    %2669 = vmatpush1.bf16.msra.mxu0 0
    %2670 = vmatprep.subr.bf16.mxu0 0
    %2671 = vmatpush1.bf16.msra.mxu0 0
    %2672 = vmatprep.subr.bf16.mxu0 0
    %2673 = vmatpush1.bf16.msra.mxu0 0
    %2674 = vmatprep.subr.bf16.mxu0 0
    %2675 = vmatpush1.bf16.msra.mxu0 0
    %2676 = vmatprep.subr.bf16.mxu0 0
    %2677 = vmatpush1.bf16.msra.mxu0 0
    %2678 = vmatprep.subr.bf16.mxu0 0
    %2679 = vmatpush1.bf16.msra.mxu0 0
    %2680 = vmatprep.subr.bf16.mxu0 0
    %2681 = vmatpush1.bf16.msra.mxu0 0
    %2682 = vmatprep.subr.bf16.mxu0 0
    %2683 = vmatpush1.bf16.msra.mxu0 0
    %2684 = vmatprep.subr.bf16.mxu0 0
    %2685 = vmatpush1.bf16.msra.mxu0 0
    %2686 = vmatprep.subr.bf16.mxu0 0
    %2687 = vmatpush1.bf16.msra.mxu0 0
    %2688 = vmatprep.mubr.bf16.mxu0 0
    %2689 = vmatmul.mubr.bf16.gmra.mrb[0].mxu0 %v2654
    %v2690 = vpop.f32.mrb[0].mxu0
    %v2691 = vadd.f32 0.0, %v2690
    %v2692 = vpop.f32.mrb[0].mxu0
    %v2693 = vpop.f32.mrb[0].mxu0
    %v2694 = vadd.f32 0.0, %v2693
    %v2695 = vpop.f32.mrb[0].mxu0
    %2696 = vdwg.mxu0
    %v2697 = vmul.f32 %v2645, %v2691
    %v2698 = vmul.f32 %v2646, %v2694
    %2701 = vrot.lane.b32.xlu0 %v2565, 64
    %v2702 = vpop.permute.xlu0 %2701
    %2703 = vrot.lane.b32.xlu0 %v2566, 64
    %v2704 = vpop.permute.xlu0 %2703
    %2709 = vrot.lane.b32.xlu0 %v2697, 64
    %v2710 = vpop.permute.xlu0 %2709
    %2711 = vrot.lane.b32.xlu0 %v2698, 64
    %v2712 = vpop.permute.xlu0 %2711
    %v2715 = vsel %vm391, %v2494, %v2702
    %v2716 = vsel %vm391, %v2495, %v2704
    %v2717 = vsel %vm391, %v2629, %v2710
    %v2718 = vsel %vm391, %v2630, %v2712
    %s2719 = scalar_lea.vmem %s6, 3
    %v2720 = vld [vmem:[%s2719] ss:$8 sm:$0x3]
    %v2722 = vlaneseq
    %v2723 = vshrl.u32 %v2722, 7
    %v2724 = vsub.s32 0, %v2723
    %v2725 = vrot.slane %v2720, %v2724
    %v2726 = vlaneseq
    %v2727 = vshrl.u32 %v2726, 7
    %v2728 = vsub.s32 1, %v2727
    %v2729 = vrot.slane %v2720, %v2728
    %v2732 = vadd.f32 %v2715, %v2725
    %v2733 = vadd.f32 %v2717, %v2729
    %v2734 = vadd.f32 %v2716, %v2725
    %v2735 = vadd.f32 %v2718, %v2729
    %v2736 = vadd.f32 %v919, %v2732
    %v2737 = vadd.f32 %v920, %v2733
    %v2738 = vadd.f32 %v921, %v2734
    %v2739 = vadd.f32 %v922, %v2735
    %s2740 = scalar_lea.vmem %s2, 512
    %v2741 = vld [vmem:[%s2740] sm:$0xff]
    %v2742 = vld [vmem:[%s2740 + $0x8] sm:$0xf]
    %v2743 = vld [vmem:[%s2740 + $0x10] sm:$0xff]
    %v2744 = vld [vmem:[%s2740 + $0x18] sm:$0xf]
    %v2745 = vld [vmem:[%s2740 + $0x20] sm:$0xff]
    %v2746 = vld [vmem:[%s2740 + $0x28] sm:$0xf]
    %v2747 = vld [vmem:[%s2740 + $0x30] sm:$0xff]
    %v2748 = vld [vmem:[%s2740 + $0x38] sm:$0xf]
    %v2749 = vld [vmem:[%s2740 + $0x40] sm:$0xff]
    %v2750 = vld [vmem:[%s2740 + $0x48] sm:$0xf]
    %v2751 = vld [vmem:[%s2740 + $0x50] sm:$0xff]
    %v2752 = vld [vmem:[%s2740 + $0x58] sm:$0xf]
    %v2753 = vld [vmem:[%s2740 + $0x60] sm:$0xff]
    %v2754 = vld [vmem:[%s2740 + $0x68] sm:$0xf]
    %v2755 = vld [vmem:[%s2740 + $0x70] sm:$0xff]
    %v2756 = vld [vmem:[%s2740 + $0x78] sm:$0xf]
    %v2773 = vunpack.c.l.b16 %v2741
    %v2774 = vunpack.c.h.b16 %v2741
    %v2775 = vunpack.c.l.b16 %v2742
    %v2776 = vunpack.c.l.b16 %v2743
    %v2777 = vunpack.c.h.b16 %v2743
    %v2778 = vunpack.c.l.b16 %v2744
    %v2779 = vunpack.c.l.b16 %v2745
    %v2780 = vunpack.c.h.b16 %v2745
    %v2781 = vunpack.c.l.b16 %v2746
    %v2782 = vunpack.c.l.b16 %v2747
    %v2783 = vunpack.c.h.b16 %v2747
    %v2784 = vunpack.c.l.b16 %v2748
    %v2785 = vunpack.c.l.b16 %v2749
    %v2786 = vunpack.c.h.b16 %v2749
    %v2787 = vunpack.c.l.b16 %v2750
    %v2788 = vunpack.c.l.b16 %v2751
    %v2789 = vunpack.c.h.b16 %v2751
    %v2790 = vunpack.c.l.b16 %v2752
    %v2791 = vunpack.c.l.b16 %v2753
    %v2792 = vunpack.c.h.b16 %v2753
    %v2793 = vunpack.c.l.b16 %v2754
    %v2794 = vunpack.c.l.b16 %v2755
    %v2795 = vunpack.c.h.b16 %v2755
    %v2796 = vunpack.c.l.b16 %v2756
    %v2797 = vpack.c.b16 %v2776, %v2773
    %v2798 = vpack.c.b16 %v2777, %v2774
    %v2799 = vpack.c.b16 %v2778, %v2775
    %v2800 = vpack.c.b16 %v2782, %v2779
    %v2801 = vpack.c.b16 %v2783, %v2780
    %v2802 = vpack.c.b16 %v2784, %v2781
    %v2803 = vpack.c.b16 %v2788, %v2785
    %v2804 = vpack.c.b16 %v2789, %v2786
    %v2805 = vpack.c.b16 %v2790, %v2787
    %v2806 = vpack.c.b16 %v2794, %v2791
    %v2807 = vpack.c.b16 %v2795, %v2792
    %v2808 = vpack.c.b16 %v2796, %v2793
    %2821 = vmatprep.subr.bf16.mxu0 %v2798
    %2822 = vmatpush1.bf16.msra.mxu0 %v2797
    %2823 = vmatprep.subr.bf16.mxu0 %v2801
    %2824 = vmatpush1.bf16.msra.mxu0 %v2800
    %2825 = vmatprep.subr.bf16.mxu0 %v2804
    %2826 = vmatpush1.bf16.msra.mxu0 %v2803
    %2827 = vmatprep.subr.bf16.mxu0 %v2807
    %2828 = vmatpush1.bf16.msra.mxu0 %v2806
    %2829 = vmatprep.subr.bf16.mxu0 0
    %2830 = vmatpush1.bf16.msra.mxu0 0
    %2831 = vmatprep.subr.bf16.mxu0 0
    %2832 = vmatpush1.bf16.msra.mxu0 0
    %2833 = vmatprep.subr.bf16.mxu0 0
    %2834 = vmatpush1.bf16.msra.mxu0 0
    %2835 = vmatprep.subr.bf16.mxu0 0
    %2836 = vmatpush1.bf16.msra.mxu0 0
    %2837 = vmatprep.subr.bf16.mxu0 0
    %2838 = vmatpush1.bf16.msra.mxu0 0
    %2839 = vmatprep.subr.bf16.mxu0 0
    %2840 = vmatpush1.bf16.msra.mxu0 0
    %2841 = vmatprep.subr.bf16.mxu0 0
    %2842 = vmatpush1.bf16.msra.mxu0 0
    %2843 = vmatprep.subr.bf16.mxu0 0
    %2844 = vmatpush1.bf16.msra.mxu0 0
    %2845 = vmatprep.subr.bf16.mxu0 0
    %2846 = vmatpush1.bf16.msra.mxu0 0
    %2847 = vmatprep.subr.bf16.mxu0 0
    %2848 = vmatpush1.bf16.msra.mxu0 0
    %2849 = vmatprep.subr.bf16.mxu0 0
    %2850 = vmatpush1.bf16.msra.mxu0 0
    %2851 = vmatprep.subr.bf16.mxu0 0
    %2852 = vmatpush1.bf16.msra.mxu0 0
    %2853 = vmatprep.mubr.bf16.mxu0 0
    %2854 = vmatmul.mubr.bf16.gmra.mrb[0].mxu0 %v562
    %v2855 = vpop.f32.mrb[0].mxu0
    %v2856 = vadd.f32 0.0, %v2855
    %v2857 = vpop.f32.mrb[0].mxu0
    %v2858 = vadd.f32 0.0, %v2857
    %v2859 = vpop.f32.mrb[0].mxu0
    %v2860 = vadd.f32 0.0, %v2859
    %v2861 = vpop.f32.mrb[0].mxu0
    %v2862 = vadd.f32 0.0, %v2861
    %2863 = vdwg.mxu0
    %2864 = vmatprep.subr.bf16.mxu0 0
    %2865 = vmatpush1.bf16.msra.mxu0 %v2799
    %2866 = vmatprep.subr.bf16.mxu0 0
    %2867 = vmatpush1.bf16.msra.mxu0 %v2802
    %2868 = vmatprep.subr.bf16.mxu0 0
    %2869 = vmatpush1.bf16.msra.mxu0 %v2805
    %2870 = vmatprep.subr.bf16.mxu0 0
    %2871 = vmatpush1.bf16.msra.mxu0 %v2808
    %2872 = vmatprep.subr.bf16.mxu0 0
    %2873 = vmatpush1.bf16.msra.mxu0 0
    %2874 = vmatprep.subr.bf16.mxu0 0
    %2875 = vmatpush1.bf16.msra.mxu0 0
    %2876 = vmatprep.subr.bf16.mxu0 0
    %2877 = vmatpush1.bf16.msra.mxu0 0
    %2878 = vmatprep.subr.bf16.mxu0 0
    %2879 = vmatpush1.bf16.msra.mxu0 0
    %2880 = vmatprep.subr.bf16.mxu0 0
    %2881 = vmatpush1.bf16.msra.mxu0 0
    %2882 = vmatprep.subr.bf16.mxu0 0
    %2883 = vmatpush1.bf16.msra.mxu0 0
    %2884 = vmatprep.subr.bf16.mxu0 0
    %2885 = vmatpush1.bf16.msra.mxu0 0
    %2886 = vmatprep.subr.bf16.mxu0 0
    %2887 = vmatpush1.bf16.msra.mxu0 0
    %2888 = vmatprep.subr.bf16.mxu0 0
    %2889 = vmatpush1.bf16.msra.mxu0 0
    %2890 = vmatprep.subr.bf16.mxu0 0
    %2891 = vmatpush1.bf16.msra.mxu0 0
    %2892 = vmatprep.subr.bf16.mxu0 0
    %2893 = vmatpush1.bf16.msra.mxu0 0
    %2894 = vmatprep.subr.bf16.mxu0 0
    %2895 = vmatpush1.bf16.msra.mxu0 0
    %2896 = vmatprep.mubr.bf16.mxu0 0
    %2897 = vmatmul.mubr.bf16.gmra.mrb[0].mxu0 %v562
    %v2898 = vpop.f32.mrb[0].mxu0
    %v2899 = vadd.f32 0.0, %v2898
    %v2900 = vpop.f32.mrb[0].mxu0
    %v2901 = vpop.f32.mrb[0].mxu0
    %v2902 = vadd.f32 0.0, %v2901
    %v2903 = vpop.f32.mrb[0].mxu0
    %2904 = vdwg.mxu0
    %v2905 = vpack.c.bf16 %v2860, %v2856
    %v2906 = vpack.c.bf16 %v2862, %v2858
    %v2907 = vpack.c.bf16 %v307, %v304
    %v2908 = vld [vmem:[%s2740 + $0xc] sm:$0xf]
    %v2909 = vld [vmem:[%s2740 + $0x1c] sm:$0xf]
    %v2910 = vld [vmem:[%s2740 + $0x2c] sm:$0xf]
    %v2911 = vld [vmem:[%s2740 + $0x3c] sm:$0xf]
    %v2912 = vld [vmem:[%s2740 + $0x4c] sm:$0xf]
    %v2913 = vld [vmem:[%s2740 + $0x5c] sm:$0xf]
    %v2914 = vld [vmem:[%s2740 + $0x6c] sm:$0xf]
    %v2915 = vld [vmem:[%s2740 + $0x7c] sm:$0xf]
    %v2916 = vmul.f32 %v2899, %v30
    %v2917 = vmul.f32 %v2902, %v31
    %v2918 = vpack.c.bf16 %v2917, %v2916
    %2919 = vmatprep.subr.bf16.mxu0 0
    %2920 = vmatpush1.bf16.msra.mxu0 %v2918
    %2921 = vmatprep.subr.bf16.mxu0 0
    %2922 = vmatpush1.bf16.msra.mxu0 0
    %2923 = vmatprep.subr.bf16.mxu0 0
    %2924 = vmatpush1.bf16.msra.mxu0 0
    %2925 = vmatprep.subr.bf16.mxu0 0
    %2926 = vmatpush1.bf16.msra.mxu0 0
    %2927 = vmatprep.subr.bf16.mxu0 0
    %2928 = vmatpush1.bf16.msra.mxu0 0
    %2929 = vmatprep.subr.bf16.mxu0 0
    %2930 = vmatpush1.bf16.msra.mxu0 0
    %2931 = vmatprep.subr.bf16.mxu0 0
    %2932 = vmatpush1.bf16.msra.mxu0 0
    %2933 = vmatprep.subr.bf16.mxu0 0
    %2934 = vmatpush1.bf16.msra.mxu0 0
    %2935 = vmatprep.subr.bf16.mxu0 0
    %2936 = vmatpush1.bf16.msra.mxu0 0
    %2937 = vmatprep.subr.bf16.mxu0 0
    %2938 = vmatpush1.bf16.msra.mxu0 0
    %2939 = vmatprep.subr.bf16.mxu0 0
    %2940 = vmatpush1.bf16.msra.mxu0 0
    %2941 = vmatprep.subr.bf16.mxu0 0
    %2942 = vmatpush1.bf16.msra.mxu0 0
    %2943 = vmatprep.subr.bf16.mxu0 0
    %2944 = vmatpush1.bf16.msra.mxu0 0
    %2945 = vmatprep.subr.bf16.mxu0 0
    %2946 = vmatpush1.bf16.msra.mxu0 0
    %2947 = vmatprep.subr.bf16.mxu0 0
    %2948 = vmatpush1.bf16.msra.mxu0 0
    %2949 = vmatprep.subr.bf16.mxu0 0
    %2950 = vmatpush1.bf16.msra.mxu0 0
    %2951 = vmatprep.mubr.bf16.mxu0 0
    %2952 = vmatmul.mubr.bf16.gmra.mrb[0].mxu0 %v494
    %v2953 = vpop.f32.mrb[0].mxu0
    %v2954 = vadd.f32 0.0, %v2953
    %v2955 = vpop.f32.mrb[0].mxu0
    %v2956 = vpop.f32.mrb[0].mxu0
    %v2957 = vadd.f32 0.0, %v2956
    %v2958 = vpop.f32.mrb[0].mxu0
    %2959 = vdwg.mxu0
    %v2968 = vunpack.c.l.b16 %v2908
    %v2969 = vunpack.c.l.b16 %v2909
    %v2970 = vunpack.c.l.b16 %v2910
    %v2971 = vunpack.c.l.b16 %v2911
    %v2972 = vunpack.c.l.b16 %v2912
    %v2973 = vunpack.c.l.b16 %v2913
    %v2974 = vunpack.c.l.b16 %v2914
    %v2975 = vunpack.c.l.b16 %v2915
    %v2976 = vpack.c.b16 %v2969, %v2968
    %v2977 = vpack.c.b16 %v2971, %v2970
    %v2978 = vpack.c.b16 %v2973, %v2972
    %v2979 = vpack.c.b16 %v2975, %v2974
    %v2985 = vsel %vm391, %v2907, 0
    %2987 = vmatprep.subr.bf16.mxu0 0
    %2988 = vmatpush1.bf16.msra.mxu0 %v2976
    %2989 = vmatprep.subr.bf16.mxu0 0
    %2990 = vmatpush1.bf16.msra.mxu0 %v2977
    %2991 = vmatprep.subr.bf16.mxu0 0
    %2992 = vmatpush1.bf16.msra.mxu0 %v2978
    %2993 = vmatprep.subr.bf16.mxu0 0
    %2994 = vmatpush1.bf16.msra.mxu0 %v2979
    %2995 = vmatprep.subr.bf16.mxu0 0
    %2996 = vmatpush1.bf16.msra.mxu0 0
    %2997 = vmatprep.subr.bf16.mxu0 0
    %2998 = vmatpush1.bf16.msra.mxu0 0
    %2999 = vmatprep.subr.bf16.mxu0 0
    %3000 = vmatpush1.bf16.msra.mxu0 0
    %3001 = vmatprep.subr.bf16.mxu0 0
    %3002 = vmatpush1.bf16.msra.mxu0 0
    %3003 = vmatprep.subr.bf16.mxu0 0
    %3004 = vmatpush1.bf16.msra.mxu0 0
    %3005 = vmatprep.subr.bf16.mxu0 0
    %3006 = vmatpush1.bf16.msra.mxu0 0
    %3007 = vmatprep.subr.bf16.mxu0 0
    %3008 = vmatpush1.bf16.msra.mxu0 0
    %3009 = vmatprep.subr.bf16.mxu0 0
    %3010 = vmatpush1.bf16.msra.mxu0 0
    %3011 = vmatprep.subr.bf16.mxu0 0
    %3012 = vmatpush1.bf16.msra.mxu0 0
    %3013 = vmatprep.subr.bf16.mxu0 0
    %3014 = vmatpush1.bf16.msra.mxu0 0
    %3015 = vmatprep.subr.bf16.mxu0 0
    %3016 = vmatpush1.bf16.msra.mxu0 0
    %3017 = vmatprep.subr.bf16.mxu0 0
    %3018 = vmatpush1.bf16.msra.mxu0 0
    %3019 = vmatprep.mubr.bf16.mxu0 0
    %3020 = vmatmul.mubr.bf16.gmra.mrb[0].mxu0 %v2985
    %v3021 = vpop.f32.mrb[0].mxu0
    %v3022 = vadd.f32 %v2954, %v3021
    %v3023 = vpop.f32.mrb[0].mxu0
    %v3024 = vpop.f32.mrb[0].mxu0
    %v3025 = vadd.f32 %v2957, %v3024
    %v3026 = vpop.f32.mrb[0].mxu0
    %3027 = vdwg.mxu0
    %vm3028 = vcmp.ge.f32.partialorder %v3022, 0.0
    %vm3029 = vcmp.ge.f32.partialorder %v3025, 0.0
    %v3030 = vmul.f32 %v3022, 0.2
    %v3031 = vmul.f32 %v3025, 0.2
    %v3032 = vsel %vm3028, %v3022, %v3030
    %v3033 = vsel %vm3029, %v3025, %v3031
    %v3034 = vadd.f32 %v3032, %v62
    %v3035 = vadd.f32 %v3033, %v63
    %v3036 = vsel %vm391, %v3034, -inf
    %3037 = vmax.xlane.f32.xlu0 %v3036
    %v3038 = vpop.xlane.xlu0 %3037
    %v3039 = vsel %vm391, %v3035, -inf
    %3040 = vmax.xlane.f32.xlu0 %v3039
    %v3041 = vpop.xlane.xlu0 %3040
    %v3042 = vsub.f32 %v3034, %v3038
    %v3043 = vsub.f32 %v3035, %v3041
    %v3044 = vmul.f32 %v3042, 1.442695
    %v3045 = vpow.pop %v3044
    %v3046 = vmul.f32 %v3043, 1.442695
    %v3047 = vpow.pop %v3046
    %v3048 = vmul.f32 %v3045, %v44
    %v3049 = vmul.f32 %v3047, %v45
    %v3050 = vsel %vm82, %v3048, 0.0
    %3051 = vadd.xlane.f32.xlu0 %v3050
    %v3052 = vpop.xlane.xlu0 %3051
    %v3053 = vsel %vm82, %v3049, 0.0
    %3054 = vadd.xlane.f32.xlu0 %v3053
    %v3055 = vpop.xlane.xlu0 %3054
    %v3056 = vmax.f32 %v3052, 1e-20
    %v3057 = vmax.f32 %v3055, 1e-20
    %v3058 = vrcp.pop %v3056
    %v3059 = vrcp.pop %v3057
    %v3060 = vpack.c.bf16 %v3049, %v3048
    %v3062 = vsel %vm82, %v3060, 0
    %3064 = vmatprep.subr.bf16.mxu0 0
    %3065 = vmatpush1.bf16.msra.mxu0 %v2905
    %3066 = vmatprep.subr.bf16.mxu0 0
    %3067 = vmatpush1.bf16.msra.mxu0 0
    %3068 = vmatprep.subr.bf16.mxu0 0
    %3069 = vmatpush1.bf16.msra.mxu0 0
    %3070 = vmatprep.subr.bf16.mxu0 0
    %3071 = vmatpush1.bf16.msra.mxu0 0
    %3072 = vmatprep.subr.bf16.mxu0 0
    %3073 = vmatpush1.bf16.msra.mxu0 0
    %3074 = vmatprep.subr.bf16.mxu0 0
    %3075 = vmatpush1.bf16.msra.mxu0 0
    %3076 = vmatprep.subr.bf16.mxu0 0
    %3077 = vmatpush1.bf16.msra.mxu0 0
    %3078 = vmatprep.subr.bf16.mxu0 0
    %3079 = vmatpush1.bf16.msra.mxu0 0
    %3080 = vmatprep.subr.bf16.mxu0 0
    %3081 = vmatpush1.bf16.msra.mxu0 0
    %3082 = vmatprep.subr.bf16.mxu0 0
    %3083 = vmatpush1.bf16.msra.mxu0 0
    %3084 = vmatprep.subr.bf16.mxu0 0
    %3085 = vmatpush1.bf16.msra.mxu0 0
    %3086 = vmatprep.subr.bf16.mxu0 0
    %3087 = vmatpush1.bf16.msra.mxu0 0
    %3088 = vmatprep.subr.bf16.mxu0 0
    %3089 = vmatpush1.bf16.msra.mxu0 0
    %3090 = vmatprep.subr.bf16.mxu0 0
    %3091 = vmatpush1.bf16.msra.mxu0 0
    %3092 = vmatprep.subr.bf16.mxu0 0
    %3093 = vmatpush1.bf16.msra.mxu0 0
    %3094 = vmatprep.subr.bf16.mxu0 0
    %3095 = vmatpush1.bf16.msra.mxu0 0
    %3096 = vmatprep.mubr.bf16.mxu0 0
    %3097 = vmatmul.mubr.bf16.gmra.mrb[0].mxu0 %v3062
    %v3098 = vpop.f32.mrb[0].mxu0
    %v3099 = vadd.f32 0.0, %v3098
    %v3100 = vpop.f32.mrb[0].mxu0
    %v3101 = vpop.f32.mrb[0].mxu0
    %v3102 = vadd.f32 0.0, %v3101
    %v3103 = vpop.f32.mrb[0].mxu0
    %3104 = vdwg.mxu0
    %v3105 = vmul.f32 %v3058, %v3099
    %v3106 = vmul.f32 %v3059, %v3102
    %3109 = vrot.lane.b32.xlu0 %v3048, 112
    %v3110 = vpop.permute.xlu0 %3109
    %3111 = vrot.lane.b32.xlu0 %v3049, 112
    %v3112 = vpop.permute.xlu0 %3111
    %v3115 = vsel %vm82, %v3110, 0.0
    %3116 = vadd.xlane.f32.xlu0 %v3115
    %v3117 = vpop.xlane.xlu0 %3116
    %v3118 = vsel %vm82, %v3112, 0.0
    %3119 = vadd.xlane.f32.xlu0 %v3118
    %v3120 = vpop.xlane.xlu0 %3119
    %v3121 = vmax.f32 %v3117, 1e-20
    %v3122 = vmax.f32 %v3120, 1e-20
    %v3123 = vrcp.pop %v3121
    %v3124 = vrcp.pop %v3122
    %3126 = vrot.lane.b32.xlu0 %v3060, 112
    %v3127 = vpop.permute.xlu0 %3126
    %3129 = vrot.lane.b32.xlu0 %v2905, 64
    %v3130 = vpop.permute.xlu0 %3129
    %v3133 = vsel %vm82, %v3127, 0
    %3135 = vmatprep.subr.bf16.mxu0 0
    %3136 = vmatpush1.bf16.msra.mxu0 %v3130
    %3137 = vmatprep.subr.bf16.mxu0 0
    %3138 = vmatpush1.bf16.msra.mxu0 0
    %3139 = vmatprep.subr.bf16.mxu0 0
    %3140 = vmatpush1.bf16.msra.mxu0 0
    %3141 = vmatprep.subr.bf16.mxu0 0
    %3142 = vmatpush1.bf16.msra.mxu0 0
    %3143 = vmatprep.subr.bf16.mxu0 0
    %3144 = vmatpush1.bf16.msra.mxu0 0
    %3145 = vmatprep.subr.bf16.mxu0 0
    %3146 = vmatpush1.bf16.msra.mxu0 0
    %3147 = vmatprep.subr.bf16.mxu0 0
    %3148 = vmatpush1.bf16.msra.mxu0 0
    %3149 = vmatprep.subr.bf16.mxu0 0
    %3150 = vmatpush1.bf16.msra.mxu0 0
    %3151 = vmatprep.subr.bf16.mxu0 0
    %3152 = vmatpush1.bf16.msra.mxu0 0
    %3153 = vmatprep.subr.bf16.mxu0 0
    %3154 = vmatpush1.bf16.msra.mxu0 0
    %3155 = vmatprep.subr.bf16.mxu0 0
    %3156 = vmatpush1.bf16.msra.mxu0 0
    %3157 = vmatprep.subr.bf16.mxu0 0
    %3158 = vmatpush1.bf16.msra.mxu0 0
    %3159 = vmatprep.subr.bf16.mxu0 0
    %3160 = vmatpush1.bf16.msra.mxu0 0
    %3161 = vmatprep.subr.bf16.mxu0 0
    %3162 = vmatpush1.bf16.msra.mxu0 0
    %3163 = vmatprep.subr.bf16.mxu0 0
    %3164 = vmatpush1.bf16.msra.mxu0 0
    %3165 = vmatprep.subr.bf16.mxu0 0
    %3166 = vmatpush1.bf16.msra.mxu0 0
    %3167 = vmatprep.mubr.bf16.mxu0 0
    %3168 = vmatmul.mubr.bf16.gmra.mrb[0].mxu0 %v3133
    %v3169 = vpop.f32.mrb[0].mxu0
    %v3170 = vadd.f32 0.0, %v3169
    %v3171 = vpop.f32.mrb[0].mxu0
    %v3172 = vpop.f32.mrb[0].mxu0
    %v3173 = vadd.f32 0.0, %v3172
    %v3174 = vpop.f32.mrb[0].mxu0
    %3175 = vdwg.mxu0
    %v3176 = vmul.f32 %v3123, %v3170
    %v3177 = vmul.f32 %v3124, %v3173
    %3178 = vrot.lane.b32.xlu0 %v3048, 96
    %v3179 = vpop.permute.xlu0 %3178
    %3180 = vrot.lane.b32.xlu0 %v3049, 96
    %v3181 = vpop.permute.xlu0 %3180
    %v3184 = vsel %vm82, %v3179, 0.0
    %3185 = vadd.xlane.f32.xlu0 %v3184
    %v3186 = vpop.xlane.xlu0 %3185
    %v3187 = vsel %vm82, %v3181, 0.0
    %3188 = vadd.xlane.f32.xlu0 %v3187
    %v3189 = vpop.xlane.xlu0 %3188
    %v3190 = vmax.f32 %v3186, 1e-20
    %v3191 = vmax.f32 %v3189, 1e-20
    %v3192 = vrcp.pop %v3190
    %v3193 = vrcp.pop %v3191
    %3194 = vrot.lane.b32.xlu0 %v3060, 96
    %v3195 = vpop.permute.xlu0 %3194
    %v3197 = vsel %vm82, %v3195, 0
    %3199 = vmatprep.subr.bf16.mxu0 0
    %3200 = vmatpush1.bf16.msra.mxu0 %v2906
    %3201 = vmatprep.subr.bf16.mxu0 0
    %3202 = vmatpush1.bf16.msra.mxu0 0
    %3203 = vmatprep.subr.bf16.mxu0 0
    %3204 = vmatpush1.bf16.msra.mxu0 0
    %3205 = vmatprep.subr.bf16.mxu0 0
    %3206 = vmatpush1.bf16.msra.mxu0 0
    %3207 = vmatprep.subr.bf16.mxu0 0
    %3208 = vmatpush1.bf16.msra.mxu0 0
    %3209 = vmatprep.subr.bf16.mxu0 0
    %3210 = vmatpush1.bf16.msra.mxu0 0
    %3211 = vmatprep.subr.bf16.mxu0 0
    %3212 = vmatpush1.bf16.msra.mxu0 0
    %3213 = vmatprep.subr.bf16.mxu0 0
    %3214 = vmatpush1.bf16.msra.mxu0 0
    %3215 = vmatprep.subr.bf16.mxu0 0
    %3216 = vmatpush1.bf16.msra.mxu0 0
    %3217 = vmatprep.subr.bf16.mxu0 0
    %3218 = vmatpush1.bf16.msra.mxu0 0
    %3219 = vmatprep.subr.bf16.mxu0 0
    %3220 = vmatpush1.bf16.msra.mxu0 0
    %3221 = vmatprep.subr.bf16.mxu0 0
    %3222 = vmatpush1.bf16.msra.mxu0 0
    %3223 = vmatprep.subr.bf16.mxu0 0
    %3224 = vmatpush1.bf16.msra.mxu0 0
    %3225 = vmatprep.subr.bf16.mxu0 0
    %3226 = vmatpush1.bf16.msra.mxu0 0
    %3227 = vmatprep.subr.bf16.mxu0 0
    %3228 = vmatpush1.bf16.msra.mxu0 0
    %3229 = vmatprep.subr.bf16.mxu0 0
    %3230 = vmatpush1.bf16.msra.mxu0 0
    %3231 = vmatprep.mubr.bf16.mxu0 0
    %3232 = vmatmul.mubr.bf16.gmra.mrb[0].mxu0 %v3197
    %v3233 = vpop.f32.mrb[0].mxu0
    %v3234 = vadd.f32 0.0, %v3233
    %v3235 = vpop.f32.mrb[0].mxu0
    %v3236 = vpop.f32.mrb[0].mxu0
    %v3237 = vadd.f32 0.0, %v3236
    %v3238 = vpop.f32.mrb[0].mxu0
    %3239 = vdwg.mxu0
    %v3240 = vmul.f32 %v3192, %v3234
    %v3241 = vmul.f32 %v3193, %v3237
    %3242 = vrot.lane.b32.xlu0 %v3048, 80
    %v3243 = vpop.permute.xlu0 %3242
    %3244 = vrot.lane.b32.xlu0 %v3049, 80
    %v3245 = vpop.permute.xlu0 %3244
    %v3248 = vsel %vm82, %v3243, 0.0
    %3249 = vadd.xlane.f32.xlu0 %v3248
    %v3250 = vpop.xlane.xlu0 %3249
    %v3251 = vsel %vm82, %v3245, 0.0
    %3252 = vadd.xlane.f32.xlu0 %v3251
    %v3253 = vpop.xlane.xlu0 %3252
    %v3254 = vmax.f32 %v3250, 1e-20
    %v3255 = vmax.f32 %v3253, 1e-20
    %v3256 = vrcp.pop %v3254
    %v3257 = vrcp.pop %v3255
    %3258 = vrot.lane.b32.xlu0 %v3060, 80
    %v3259 = vpop.permute.xlu0 %3258
    %3261 = vrot.lane.b32.xlu0 %v2906, 64
    %v3262 = vpop.permute.xlu0 %3261
    %v3265 = vsel %vm82, %v3259, 0
    %3267 = vmatprep.subr.bf16.mxu0 0
    %3268 = vmatpush1.bf16.msra.mxu0 %v3262
    %3269 = vmatprep.subr.bf16.mxu0 0
    %3270 = vmatpush1.bf16.msra.mxu0 0
    %3271 = vmatprep.subr.bf16.mxu0 0
    %3272 = vmatpush1.bf16.msra.mxu0 0
    %3273 = vmatprep.subr.bf16.mxu0 0
    %3274 = vmatpush1.bf16.msra.mxu0 0
    %3275 = vmatprep.subr.bf16.mxu0 0
    %3276 = vmatpush1.bf16.msra.mxu0 0
    %3277 = vmatprep.subr.bf16.mxu0 0
    %3278 = vmatpush1.bf16.msra.mxu0 0
    %3279 = vmatprep.subr.bf16.mxu0 0
    %3280 = vmatpush1.bf16.msra.mxu0 0
    %3281 = vmatprep.subr.bf16.mxu0 0
    %3282 = vmatpush1.bf16.msra.mxu0 0
    %3283 = vmatprep.subr.bf16.mxu0 0
    %3284 = vmatpush1.bf16.msra.mxu0 0
    %3285 = vmatprep.subr.bf16.mxu0 0
    %3286 = vmatpush1.bf16.msra.mxu0 0
    %3287 = vmatprep.subr.bf16.mxu0 0
    %3288 = vmatpush1.bf16.msra.mxu0 0
    %3289 = vmatprep.subr.bf16.mxu0 0
    %3290 = vmatpush1.bf16.msra.mxu0 0
    %3291 = vmatprep.subr.bf16.mxu0 0
    %3292 = vmatpush1.bf16.msra.mxu0 0
    %3293 = vmatprep.subr.bf16.mxu0 0
    %3294 = vmatpush1.bf16.msra.mxu0 0
    %3295 = vmatprep.subr.bf16.mxu0 0
    %3296 = vmatpush1.bf16.msra.mxu0 0
    %3297 = vmatprep.subr.bf16.mxu0 0
    %3298 = vmatpush1.bf16.msra.mxu0 0
    %3299 = vmatprep.mubr.bf16.mxu0 0
    %3300 = vmatmul.mubr.bf16.gmra.mrb[0].mxu0 %v3265
    %v3301 = vpop.f32.mrb[0].mxu0
    %v3302 = vadd.f32 0.0, %v3301
    %v3303 = vpop.f32.mrb[0].mxu0
    %v3304 = vpop.f32.mrb[0].mxu0
    %v3305 = vadd.f32 0.0, %v3304
    %v3306 = vpop.f32.mrb[0].mxu0
    %3307 = vdwg.mxu0
    %v3308 = vmul.f32 %v3256, %v3302
    %v3309 = vmul.f32 %v3257, %v3305
    %3312 = vrot.lane.b32.xlu0 %v3176, 64
    %v3313 = vpop.permute.xlu0 %3312
    %3314 = vrot.lane.b32.xlu0 %v3177, 64
    %v3315 = vpop.permute.xlu0 %3314
    %3320 = vrot.lane.b32.xlu0 %v3308, 64
    %v3321 = vpop.permute.xlu0 %3320
    %3322 = vrot.lane.b32.xlu0 %v3309, 64
    %v3323 = vpop.permute.xlu0 %3322
    %v3326 = vsel %vm391, %v3105, %v3313
    %v3327 = vsel %vm391, %v3106, %v3315
    %v3328 = vsel %vm391, %v3240, %v3321
    %v3329 = vsel %vm391, %v3241, %v3323
    %s3330 = scalar_lea.vmem %s6, 4
    %v3331 = vld [vmem:[%s3330] ss:$8 sm:$0x3]
    %v3333 = vlaneseq
    %v3334 = vshrl.u32 %v3333, 7
    %v3335 = vsub.s32 0, %v3334
    %v3336 = vrot.slane %v3331, %v3335
    %v3337 = vlaneseq
    %v3338 = vshrl.u32 %v3337, 7
    %v3339 = vsub.s32 1, %v3338
    %v3340 = vrot.slane %v3331, %v3339
    %v3343 = vadd.f32 %v3326, %v3336
    %v3344 = vadd.f32 %v3328, %v3340
    %v3345 = vadd.f32 %v3327, %v3336
    %v3346 = vadd.f32 %v3329, %v3340
    %s3347 = scalar_lea.vmem %s2, 640
    %v3348 = vld [vmem:[%s3347] sm:$0xff]
    %v3349 = vld [vmem:[%s3347 + $0x8] sm:$0xf]
    %v3350 = vld [vmem:[%s3347 + $0x10] sm:$0xff]
    %v3351 = vld [vmem:[%s3347 + $0x18] sm:$0xf]
    %v3352 = vld [vmem:[%s3347 + $0x20] sm:$0xff]
    %v3353 = vld [vmem:[%s3347 + $0x28] sm:$0xf]
    %v3354 = vld [vmem:[%s3347 + $0x30] sm:$0xff]
    %v3355 = vld [vmem:[%s3347 + $0x38] sm:$0xf]
    %v3356 = vld [vmem:[%s3347 + $0x40] sm:$0xff]
    %v3357 = vld [vmem:[%s3347 + $0x48] sm:$0xf]
    %v3358 = vld [vmem:[%s3347 + $0x50] sm:$0xff]
    %v3359 = vld [vmem:[%s3347 + $0x58] sm:$0xf]
    %v3360 = vld [vmem:[%s3347 + $0x60] sm:$0xff]
    %v3361 = vld [vmem:[%s3347 + $0x68] sm:$0xf]
    %v3362 = vld [vmem:[%s3347 + $0x70] sm:$0xff]
    %v3363 = vld [vmem:[%s3347 + $0x78] sm:$0xf]
    %v3380 = vunpack.c.l.b16 %v3348
    %v3381 = vunpack.c.h.b16 %v3348
    %v3382 = vunpack.c.l.b16 %v3349
    %v3383 = vunpack.c.l.b16 %v3350
    %v3384 = vunpack.c.h.b16 %v3350
    %v3385 = vunpack.c.l.b16 %v3351
    %v3386 = vunpack.c.l.b16 %v3352
    %v3387 = vunpack.c.h.b16 %v3352
    %v3388 = vunpack.c.l.b16 %v3353
    %v3389 = vunpack.c.l.b16 %v3354
    %v3390 = vunpack.c.h.b16 %v3354
    %v3391 = vunpack.c.l.b16 %v3355
    %v3392 = vunpack.c.l.b16 %v3356
    %v3393 = vunpack.c.h.b16 %v3356
    %v3394 = vunpack.c.l.b16 %v3357
    %v3395 = vunpack.c.l.b16 %v3358
    %v3396 = vunpack.c.h.b16 %v3358
    %v3397 = vunpack.c.l.b16 %v3359
    %v3398 = vunpack.c.l.b16 %v3360
    %v3399 = vunpack.c.h.b16 %v3360
    %v3400 = vunpack.c.l.b16 %v3361
    %v3401 = vunpack.c.l.b16 %v3362
    %v3402 = vunpack.c.h.b16 %v3362
    %v3403 = vunpack.c.l.b16 %v3363
    %v3404 = vpack.c.b16 %v3383, %v3380
    %v3405 = vpack.c.b16 %v3384, %v3381
    %v3406 = vpack.c.b16 %v3385, %v3382
    %v3407 = vpack.c.b16 %v3389, %v3386
    %v3408 = vpack.c.b16 %v3390, %v3387
    %v3409 = vpack.c.b16 %v3391, %v3388
    %v3410 = vpack.c.b16 %v3395, %v3392
    %v3411 = vpack.c.b16 %v3396, %v3393
    %v3412 = vpack.c.b16 %v3397, %v3394
    %v3413 = vpack.c.b16 %v3401, %v3398
    %v3414 = vpack.c.b16 %v3402, %v3399
    %v3415 = vpack.c.b16 %v3403, %v3400
    %3428 = vmatprep.subr.bf16.mxu0 %v3405
    %3429 = vmatpush1.bf16.msra.mxu0 %v3404
    %3430 = vmatprep.subr.bf16.mxu0 %v3408
    %3431 = vmatpush1.bf16.msra.mxu0 %v3407
    %3432 = vmatprep.subr.bf16.mxu0 %v3411
    %3433 = vmatpush1.bf16.msra.mxu0 %v3410
    %3434 = vmatprep.subr.bf16.mxu0 %v3414
    %3435 = vmatpush1.bf16.msra.mxu0 %v3413
    %3436 = vmatprep.subr.bf16.mxu0 0
    %3437 = vmatpush1.bf16.msra.mxu0 0
    %3438 = vmatprep.subr.bf16.mxu0 0
    %3439 = vmatpush1.bf16.msra.mxu0 0
    %3440 = vmatprep.subr.bf16.mxu0 0
    %3441 = vmatpush1.bf16.msra.mxu0 0
    %3442 = vmatprep.subr.bf16.mxu0 0
    %3443 = vmatpush1.bf16.msra.mxu0 0
    %3444 = vmatprep.subr.bf16.mxu0 0
    %3445 = vmatpush1.bf16.msra.mxu0 0
    %3446 = vmatprep.subr.bf16.mxu0 0
    %3447 = vmatpush1.bf16.msra.mxu0 0
    %3448 = vmatprep.subr.bf16.mxu0 0
    %3449 = vmatpush1.bf16.msra.mxu0 0
    %3450 = vmatprep.subr.bf16.mxu0 0
    %3451 = vmatpush1.bf16.msra.mxu0 0
    %3452 = vmatprep.subr.bf16.mxu0 0
    %3453 = vmatpush1.bf16.msra.mxu0 0
    %3454 = vmatprep.subr.bf16.mxu0 0
    %3455 = vmatpush1.bf16.msra.mxu0 0
    %3456 = vmatprep.subr.bf16.mxu0 0
    %3457 = vmatpush1.bf16.msra.mxu0 0
    %3458 = vmatprep.subr.bf16.mxu0 0
    %3459 = vmatpush1.bf16.msra.mxu0 0
    %3460 = vmatprep.mubr.bf16.mxu0 0
    %3461 = vmatmul.mubr.bf16.gmra.mrb[0].mxu0 %v2985
    %v3462 = vpop.f32.mrb[0].mxu0
    %v3463 = vadd.f32 0.0, %v3462
    %v3464 = vpop.f32.mrb[0].mxu0
    %v3465 = vadd.f32 0.0, %v3464
    %v3466 = vpop.f32.mrb[0].mxu0
    %v3467 = vadd.f32 0.0, %v3466
    %v3468 = vpop.f32.mrb[0].mxu0
    %v3469 = vadd.f32 0.0, %v3468
    %3470 = vdwg.mxu0
    %3471 = vmatprep.subr.bf16.mxu0 0
    %3472 = vmatpush1.bf16.msra.mxu0 %v3406
    %3473 = vmatprep.subr.bf16.mxu0 0
    %3474 = vmatpush1.bf16.msra.mxu0 %v3409
    %3475 = vmatprep.subr.bf16.mxu0 0
    %3476 = vmatpush1.bf16.msra.mxu0 %v3412
    %3477 = vmatprep.subr.bf16.mxu0 0
    %3478 = vmatpush1.bf16.msra.mxu0 %v3415
    %3479 = vmatprep.subr.bf16.mxu0 0
    %3480 = vmatpush1.bf16.msra.mxu0 0
    %3481 = vmatprep.subr.bf16.mxu0 0
    %3482 = vmatpush1.bf16.msra.mxu0 0
    %3483 = vmatprep.subr.bf16.mxu0 0
    %3484 = vmatpush1.bf16.msra.mxu0 0
    %3485 = vmatprep.subr.bf16.mxu0 0
    %3486 = vmatpush1.bf16.msra.mxu0 0
    %3487 = vmatprep.subr.bf16.mxu0 0
    %3488 = vmatpush1.bf16.msra.mxu0 0
    %3489 = vmatprep.subr.bf16.mxu0 0
    %3490 = vmatpush1.bf16.msra.mxu0 0
    %3491 = vmatprep.subr.bf16.mxu0 0
    %3492 = vmatpush1.bf16.msra.mxu0 0
    %3493 = vmatprep.subr.bf16.mxu0 0
    %3494 = vmatpush1.bf16.msra.mxu0 0
    %3495 = vmatprep.subr.bf16.mxu0 0
    %3496 = vmatpush1.bf16.msra.mxu0 0
    %3497 = vmatprep.subr.bf16.mxu0 0
    %3498 = vmatpush1.bf16.msra.mxu0 0
    %3499 = vmatprep.subr.bf16.mxu0 0
    %3500 = vmatpush1.bf16.msra.mxu0 0
    %3501 = vmatprep.subr.bf16.mxu0 0
    %3502 = vmatpush1.bf16.msra.mxu0 0
    %3503 = vmatprep.mubr.bf16.mxu0 0
    %3504 = vmatmul.mubr.bf16.gmra.mrb[0].mxu0 %v2985
    %v3505 = vpop.f32.mrb[0].mxu0
    %v3506 = vadd.f32 0.0, %v3505
    %v3507 = vpop.f32.mrb[0].mxu0
    %v3508 = vpop.f32.mrb[0].mxu0
    %v3509 = vadd.f32 0.0, %v3508
    %v3510 = vpop.f32.mrb[0].mxu0
    %3511 = vdwg.mxu0
    %v3512 = vpack.c.bf16 %v3467, %v3463
    %v3513 = vpack.c.bf16 %v3469, %v3465
    %v3514 = vld [vmem:[%s3347 + $0xc] sm:$0xf]
    %v3515 = vld [vmem:[%s3347 + $0x1c] sm:$0xf]
    %v3516 = vld [vmem:[%s3347 + $0x2c] sm:$0xf]
    %v3517 = vld [vmem:[%s3347 + $0x3c] sm:$0xf]
    %v3518 = vld [vmem:[%s3347 + $0x4c] sm:$0xf]
    %v3519 = vld [vmem:[%s3347 + $0x5c] sm:$0xf]
    %v3520 = vld [vmem:[%s3347 + $0x6c] sm:$0xf]
    %v3521 = vld [vmem:[%s3347 + $0x7c] sm:$0xf]
    %v3522 = vmul.f32 %v3506, %v30
    %v3523 = vmul.f32 %v3509, %v31
    %v3524 = vpack.c.bf16 %v3523, %v3522
    %3525 = vmatprep.subr.bf16.mxu0 0
    %3526 = vmatpush1.bf16.msra.mxu0 %v3524
    %3527 = vmatprep.subr.bf16.mxu0 0
    %3528 = vmatpush1.bf16.msra.mxu0 0
    %3529 = vmatprep.subr.bf16.mxu0 0
    %3530 = vmatpush1.bf16.msra.mxu0 0
    %3531 = vmatprep.subr.bf16.mxu0 0
    %3532 = vmatpush1.bf16.msra.mxu0 0
    %3533 = vmatprep.subr.bf16.mxu0 0
    %3534 = vmatpush1.bf16.msra.mxu0 0
    %3535 = vmatprep.subr.bf16.mxu0 0
    %3536 = vmatpush1.bf16.msra.mxu0 0
    %3537 = vmatprep.subr.bf16.mxu0 0
    %3538 = vmatpush1.bf16.msra.mxu0 0
    %3539 = vmatprep.subr.bf16.mxu0 0
    %3540 = vmatpush1.bf16.msra.mxu0 0
    %3541 = vmatprep.subr.bf16.mxu0 0
    %3542 = vmatpush1.bf16.msra.mxu0 0
    %3543 = vmatprep.subr.bf16.mxu0 0
    %3544 = vmatpush1.bf16.msra.mxu0 0
    %3545 = vmatprep.subr.bf16.mxu0 0
    %3546 = vmatpush1.bf16.msra.mxu0 0
    %3547 = vmatprep.subr.bf16.mxu0 0
    %3548 = vmatpush1.bf16.msra.mxu0 0
    %3549 = vmatprep.subr.bf16.mxu0 0
    %3550 = vmatpush1.bf16.msra.mxu0 0
    %3551 = vmatprep.subr.bf16.mxu0 0
    %3552 = vmatpush1.bf16.msra.mxu0 0
    %3553 = vmatprep.subr.bf16.mxu0 0
    %3554 = vmatpush1.bf16.msra.mxu0 0
    %3555 = vmatprep.subr.bf16.mxu0 0
    %3556 = vmatpush1.bf16.msra.mxu0 0
    %3557 = vmatprep.mubr.bf16.mxu0 0
    %3558 = vmatmul.mubr.bf16.gmra.mrb[0].mxu0 %v494
    %v3559 = vpop.f32.mrb[0].mxu0
    %v3560 = vadd.f32 0.0, %v3559
    %v3561 = vpop.f32.mrb[0].mxu0
    %v3562 = vpop.f32.mrb[0].mxu0
    %v3563 = vadd.f32 0.0, %v3562
    %v3564 = vpop.f32.mrb[0].mxu0
    %3565 = vdwg.mxu0
    %v3574 = vunpack.c.l.b16 %v3514
    %v3575 = vunpack.c.l.b16 %v3515
    %v3576 = vunpack.c.l.b16 %v3516
    %v3577 = vunpack.c.l.b16 %v3517
    %v3578 = vunpack.c.l.b16 %v3518
    %v3579 = vunpack.c.l.b16 %v3519
    %v3580 = vunpack.c.l.b16 %v3520
    %v3581 = vunpack.c.l.b16 %v3521
    %v3582 = vpack.c.b16 %v3575, %v3574
    %v3583 = vpack.c.b16 %v3577, %v3576
    %v3584 = vpack.c.b16 %v3579, %v3578
    %v3585 = vpack.c.b16 %v3581, %v3580
    %3590 = vmatprep.subr.bf16.mxu0 0
    %3591 = vmatpush1.bf16.msra.mxu0 %v3582
    %3592 = vmatprep.subr.bf16.mxu0 0
    %3593 = vmatpush1.bf16.msra.mxu0 %v3583
    %3594 = vmatprep.subr.bf16.mxu0 0
    %3595 = vmatpush1.bf16.msra.mxu0 %v3584
    %3596 = vmatprep.subr.bf16.mxu0 0
    %3597 = vmatpush1.bf16.msra.mxu0 %v3585
    %3598 = vmatprep.subr.bf16.mxu0 0
    %3599 = vmatpush1.bf16.msra.mxu0 0
    %3600 = vmatprep.subr.bf16.mxu0 0
    %3601 = vmatpush1.bf16.msra.mxu0 0
    %3602 = vmatprep.subr.bf16.mxu0 0
    %3603 = vmatpush1.bf16.msra.mxu0 0
    %3604 = vmatprep.subr.bf16.mxu0 0
    %3605 = vmatpush1.bf16.msra.mxu0 0
    %3606 = vmatprep.subr.bf16.mxu0 0
    %3607 = vmatpush1.bf16.msra.mxu0 0
    %3608 = vmatprep.subr.bf16.mxu0 0
    %3609 = vmatpush1.bf16.msra.mxu0 0
    %3610 = vmatprep.subr.bf16.mxu0 0
    %3611 = vmatpush1.bf16.msra.mxu0 0
    %3612 = vmatprep.subr.bf16.mxu0 0
    %3613 = vmatpush1.bf16.msra.mxu0 0
    %3614 = vmatprep.subr.bf16.mxu0 0
    %3615 = vmatpush1.bf16.msra.mxu0 0
    %3616 = vmatprep.subr.bf16.mxu0 0
    %3617 = vmatpush1.bf16.msra.mxu0 0
    %3618 = vmatprep.subr.bf16.mxu0 0
    %3619 = vmatpush1.bf16.msra.mxu0 0
    %3620 = vmatprep.subr.bf16.mxu0 0
    %3621 = vmatpush1.bf16.msra.mxu0 0
    %3622 = vmatprep.mubr.bf16.mxu0 0
    %3623 = vmatmul.mubr.bf16.gmra.mrb[0].mxu0 %v562
    %v3624 = vpop.f32.mrb[0].mxu0
    %v3625 = vadd.f32 %v3560, %v3624
    %v3626 = vpop.f32.mrb[0].mxu0
    %v3627 = vpop.f32.mrb[0].mxu0
    %v3628 = vadd.f32 %v3563, %v3627
    %v3629 = vpop.f32.mrb[0].mxu0
    %3630 = vdwg.mxu0
    %vm3631 = vcmp.ge.f32.partialorder %v3625, 0.0
    %vm3632 = vcmp.ge.f32.partialorder %v3628, 0.0
    %v3633 = vmul.f32 %v3625, 0.2
    %v3634 = vmul.f32 %v3628, 0.2
    %v3635 = vsel %vm3631, %v3625, %v3633
    %v3636 = vsel %vm3632, %v3628, %v3634
    %v3637 = vadd.f32 %v3635, %v65
    %v3638 = vadd.f32 %v3636, %v66
    %v3639 = vsel %vm391, %v3637, -inf
    %3640 = vmax.xlane.f32.xlu0 %v3639
    %v3641 = vpop.xlane.xlu0 %3640
    %v3642 = vsel %vm391, %v3638, -inf
    %3643 = vmax.xlane.f32.xlu0 %v3642
    %v3644 = vpop.xlane.xlu0 %3643
    %v3645 = vsub.f32 %v3637, %v3641
    %v3646 = vsub.f32 %v3638, %v3644
    %v3647 = vmul.f32 %v3645, 1.442695
    %v3648 = vpow.pop %v3647
    %v3649 = vmul.f32 %v3646, 1.442695
    %v3650 = vpow.pop %v3649
    %v3651 = vmul.f32 %v3648, %v47
    %v3652 = vmul.f32 %v3650, %v48
    %v3653 = vsel %vm82, %v3651, 0.0
    %3654 = vadd.xlane.f32.xlu0 %v3653
    %v3655 = vpop.xlane.xlu0 %3654
    %v3656 = vsel %vm82, %v3652, 0.0
    %3657 = vadd.xlane.f32.xlu0 %v3656
    %v3658 = vpop.xlane.xlu0 %3657
    %v3659 = vmax.f32 %v3655, 1e-20
    %v3660 = vmax.f32 %v3658, 1e-20
    %v3661 = vrcp.pop %v3659
    %v3662 = vrcp.pop %v3660
    %v3663 = vpack.c.bf16 %v3652, %v3651
    %v3665 = vsel %vm82, %v3663, 0
    %3667 = vmatprep.subr.bf16.mxu0 0
    %3668 = vmatpush1.bf16.msra.mxu0 %v3512
    %3669 = vmatprep.subr.bf16.mxu0 0
    %3670 = vmatpush1.bf16.msra.mxu0 0
    %3671 = vmatprep.subr.bf16.mxu0 0
    %3672 = vmatpush1.bf16.msra.mxu0 0
    %3673 = vmatprep.subr.bf16.mxu0 0
    %3674 = vmatpush1.bf16.msra.mxu0 0
    %3675 = vmatprep.subr.bf16.mxu0 0
    %3676 = vmatpush1.bf16.msra.mxu0 0
    %3677 = vmatprep.subr.bf16.mxu0 0
    %3678 = vmatpush1.bf16.msra.mxu0 0
    %3679 = vmatprep.subr.bf16.mxu0 0
    %3680 = vmatpush1.bf16.msra.mxu0 0
    %3681 = vmatprep.subr.bf16.mxu0 0
    %3682 = vmatpush1.bf16.msra.mxu0 0
    %3683 = vmatprep.subr.bf16.mxu0 0
    %3684 = vmatpush1.bf16.msra.mxu0 0
    %3685 = vmatprep.subr.bf16.mxu0 0
    %3686 = vmatpush1.bf16.msra.mxu0 0
    %3687 = vmatprep.subr.bf16.mxu0 0
    %3688 = vmatpush1.bf16.msra.mxu0 0
    %3689 = vmatprep.subr.bf16.mxu0 0
    %3690 = vmatpush1.bf16.msra.mxu0 0
    %3691 = vmatprep.subr.bf16.mxu0 0
    %3692 = vmatpush1.bf16.msra.mxu0 0
    %3693 = vmatprep.subr.bf16.mxu0 0
    %3694 = vmatpush1.bf16.msra.mxu0 0
    %3695 = vmatprep.subr.bf16.mxu0 0
    %3696 = vmatpush1.bf16.msra.mxu0 0
    %3697 = vmatprep.subr.bf16.mxu0 0
    %3698 = vmatpush1.bf16.msra.mxu0 0
    %3699 = vmatprep.mubr.bf16.mxu0 0
    %3700 = vmatmul.mubr.bf16.gmra.mrb[0].mxu0 %v3665
    %v3701 = vpop.f32.mrb[0].mxu0
    %v3702 = vadd.f32 0.0, %v3701
    %v3703 = vpop.f32.mrb[0].mxu0
    %v3704 = vpop.f32.mrb[0].mxu0
    %v3705 = vadd.f32 0.0, %v3704
    %v3706 = vpop.f32.mrb[0].mxu0
    %3707 = vdwg.mxu0
    %v3708 = vmul.f32 %v3661, %v3702
    %v3709 = vmul.f32 %v3662, %v3705
    %3712 = vrot.lane.b32.xlu0 %v3651, 112
    %v3713 = vpop.permute.xlu0 %3712
    %3714 = vrot.lane.b32.xlu0 %v3652, 112
    %v3715 = vpop.permute.xlu0 %3714
    %v3718 = vsel %vm82, %v3713, 0.0
    %3719 = vadd.xlane.f32.xlu0 %v3718
    %v3720 = vpop.xlane.xlu0 %3719
    %v3721 = vsel %vm82, %v3715, 0.0
    %3722 = vadd.xlane.f32.xlu0 %v3721
    %v3723 = vpop.xlane.xlu0 %3722
    %v3724 = vmax.f32 %v3720, 1e-20
    %v3725 = vmax.f32 %v3723, 1e-20
    %v3726 = vrcp.pop %v3724
    %v3727 = vrcp.pop %v3725
    %3729 = vrot.lane.b32.xlu0 %v3663, 112
    %v3730 = vpop.permute.xlu0 %3729
    %3732 = vrot.lane.b32.xlu0 %v3512, 64
    %v3733 = vpop.permute.xlu0 %3732
    %v3736 = vsel %vm82, %v3730, 0
    %3738 = vmatprep.subr.bf16.mxu0 0
    %3739 = vmatpush1.bf16.msra.mxu0 %v3733
    %3740 = vmatprep.subr.bf16.mxu0 0
    %3741 = vmatpush1.bf16.msra.mxu0 0
    %3742 = vmatprep.subr.bf16.mxu0 0
    %3743 = vmatpush1.bf16.msra.mxu0 0
    %3744 = vmatprep.subr.bf16.mxu0 0
    %3745 = vmatpush1.bf16.msra.mxu0 0
    %3746 = vmatprep.subr.bf16.mxu0 0
    %3747 = vmatpush1.bf16.msra.mxu0 0
    %3748 = vmatprep.subr.bf16.mxu0 0
    %3749 = vmatpush1.bf16.msra.mxu0 0
    %3750 = vmatprep.subr.bf16.mxu0 0
    %3751 = vmatpush1.bf16.msra.mxu0 0
    %3752 = vmatprep.subr.bf16.mxu0 0
    %3753 = vmatpush1.bf16.msra.mxu0 0
    %3754 = vmatprep.subr.bf16.mxu0 0
    %3755 = vmatpush1.bf16.msra.mxu0 0
    %3756 = vmatprep.subr.bf16.mxu0 0
    %3757 = vmatpush1.bf16.msra.mxu0 0
    %3758 = vmatprep.subr.bf16.mxu0 0
    %3759 = vmatpush1.bf16.msra.mxu0 0
    %3760 = vmatprep.subr.bf16.mxu0 0
    %3761 = vmatpush1.bf16.msra.mxu0 0
    %3762 = vmatprep.subr.bf16.mxu0 0
    %3763 = vmatpush1.bf16.msra.mxu0 0
    %3764 = vmatprep.subr.bf16.mxu0 0
    %3765 = vmatpush1.bf16.msra.mxu0 0
    %3766 = vmatprep.subr.bf16.mxu0 0
    %3767 = vmatpush1.bf16.msra.mxu0 0
    %3768 = vmatprep.subr.bf16.mxu0 0
    %3769 = vmatpush1.bf16.msra.mxu0 0
    %3770 = vmatprep.mubr.bf16.mxu0 0
    %3771 = vmatmul.mubr.bf16.gmra.mrb[0].mxu0 %v3736
    %v3772 = vpop.f32.mrb[0].mxu0
    %v3773 = vadd.f32 0.0, %v3772
    %v3774 = vpop.f32.mrb[0].mxu0
    %v3775 = vpop.f32.mrb[0].mxu0
    %v3776 = vadd.f32 0.0, %v3775
    %v3777 = vpop.f32.mrb[0].mxu0
    %3778 = vdwg.mxu0
    %v3779 = vmul.f32 %v3726, %v3773
    %v3780 = vmul.f32 %v3727, %v3776
    %3781 = vrot.lane.b32.xlu0 %v3651, 96
    %v3782 = vpop.permute.xlu0 %3781
    %3783 = vrot.lane.b32.xlu0 %v3652, 96
    %v3784 = vpop.permute.xlu0 %3783
    %v3787 = vsel %vm82, %v3782, 0.0
    %3788 = vadd.xlane.f32.xlu0 %v3787
    %v3789 = vpop.xlane.xlu0 %3788
    %v3790 = vsel %vm82, %v3784, 0.0
    %3791 = vadd.xlane.f32.xlu0 %v3790
    %v3792 = vpop.xlane.xlu0 %3791
    %v3793 = vmax.f32 %v3789, 1e-20
    %v3794 = vmax.f32 %v3792, 1e-20
    %v3795 = vrcp.pop %v3793
    %v3796 = vrcp.pop %v3794
    %3797 = vrot.lane.b32.xlu0 %v3663, 96
    %v3798 = vpop.permute.xlu0 %3797
    %v3800 = vsel %vm82, %v3798, 0
    %3802 = vmatprep.subr.bf16.mxu0 0
    %3803 = vmatpush1.bf16.msra.mxu0 %v3513
    %3804 = vmatprep.subr.bf16.mxu0 0
    %3805 = vmatpush1.bf16.msra.mxu0 0
    %3806 = vmatprep.subr.bf16.mxu0 0
    %3807 = vmatpush1.bf16.msra.mxu0 0
    %3808 = vmatprep.subr.bf16.mxu0 0
    %3809 = vmatpush1.bf16.msra.mxu0 0
    %3810 = vmatprep.subr.bf16.mxu0 0
    %3811 = vmatpush1.bf16.msra.mxu0 0
    %3812 = vmatprep.subr.bf16.mxu0 0
    %3813 = vmatpush1.bf16.msra.mxu0 0
    %3814 = vmatprep.subr.bf16.mxu0 0
    %3815 = vmatpush1.bf16.msra.mxu0 0
    %3816 = vmatprep.subr.bf16.mxu0 0
    %3817 = vmatpush1.bf16.msra.mxu0 0
    %3818 = vmatprep.subr.bf16.mxu0 0
    %3819 = vmatpush1.bf16.msra.mxu0 0
    %3820 = vmatprep.subr.bf16.mxu0 0
    %3821 = vmatpush1.bf16.msra.mxu0 0
    %3822 = vmatprep.subr.bf16.mxu0 0
    %3823 = vmatpush1.bf16.msra.mxu0 0
    %3824 = vmatprep.subr.bf16.mxu0 0
    %3825 = vmatpush1.bf16.msra.mxu0 0
    %3826 = vmatprep.subr.bf16.mxu0 0
    %3827 = vmatpush1.bf16.msra.mxu0 0
    %3828 = vmatprep.subr.bf16.mxu0 0
    %3829 = vmatpush1.bf16.msra.mxu0 0
    %3830 = vmatprep.subr.bf16.mxu0 0
    %3831 = vmatpush1.bf16.msra.mxu0 0
    %3832 = vmatprep.subr.bf16.mxu0 0
    %3833 = vmatpush1.bf16.msra.mxu0 0
    %3834 = vmatprep.mubr.bf16.mxu0 0
    %3835 = vmatmul.mubr.bf16.gmra.mrb[0].mxu0 %v3800
    %v3836 = vpop.f32.mrb[0].mxu0
    %v3837 = vadd.f32 0.0, %v3836
    %v3838 = vpop.f32.mrb[0].mxu0
    %v3839 = vpop.f32.mrb[0].mxu0
    %v3840 = vadd.f32 0.0, %v3839
    %v3841 = vpop.f32.mrb[0].mxu0
    %3842 = vdwg.mxu0
    %v3843 = vmul.f32 %v3795, %v3837
    %v3844 = vmul.f32 %v3796, %v3840
    %3845 = vrot.lane.b32.xlu0 %v3651, 80
    %v3846 = vpop.permute.xlu0 %3845
    %3847 = vrot.lane.b32.xlu0 %v3652, 80
    %v3848 = vpop.permute.xlu0 %3847
    %v3851 = vsel %vm82, %v3846, 0.0
    %3852 = vadd.xlane.f32.xlu0 %v3851
    %v3853 = vpop.xlane.xlu0 %3852
    %v3854 = vsel %vm82, %v3848, 0.0
    %3855 = vadd.xlane.f32.xlu0 %v3854
    %v3856 = vpop.xlane.xlu0 %3855
    %v3857 = vmax.f32 %v3853, 1e-20
    %v3858 = vmax.f32 %v3856, 1e-20
    %v3859 = vrcp.pop %v3857
    %v3860 = vrcp.pop %v3858
    %3861 = vrot.lane.b32.xlu0 %v3663, 80
    %v3862 = vpop.permute.xlu0 %3861
    %3864 = vrot.lane.b32.xlu0 %v3513, 64
    %v3865 = vpop.permute.xlu0 %3864
    %v3868 = vsel %vm82, %v3862, 0
    %3870 = vmatprep.subr.bf16.mxu0 0
    %3871 = vmatpush1.bf16.msra.mxu0 %v3865
    %3872 = vmatprep.subr.bf16.mxu0 0
    %3873 = vmatpush1.bf16.msra.mxu0 0
    %3874 = vmatprep.subr.bf16.mxu0 0
    %3875 = vmatpush1.bf16.msra.mxu0 0
    %3876 = vmatprep.subr.bf16.mxu0 0
    %3877 = vmatpush1.bf16.msra.mxu0 0
    %3878 = vmatprep.subr.bf16.mxu0 0
    %3879 = vmatpush1.bf16.msra.mxu0 0
    %3880 = vmatprep.subr.bf16.mxu0 0
    %3881 = vmatpush1.bf16.msra.mxu0 0
    %3882 = vmatprep.subr.bf16.mxu0 0
    %3883 = vmatpush1.bf16.msra.mxu0 0
    %3884 = vmatprep.subr.bf16.mxu0 0
    %3885 = vmatpush1.bf16.msra.mxu0 0
    %3886 = vmatprep.subr.bf16.mxu0 0
    %3887 = vmatpush1.bf16.msra.mxu0 0
    %3888 = vmatprep.subr.bf16.mxu0 0
    %3889 = vmatpush1.bf16.msra.mxu0 0
    %3890 = vmatprep.subr.bf16.mxu0 0
    %3891 = vmatpush1.bf16.msra.mxu0 0
    %3892 = vmatprep.subr.bf16.mxu0 0
    %3893 = vmatpush1.bf16.msra.mxu0 0
    %3894 = vmatprep.subr.bf16.mxu0 0
    %3895 = vmatpush1.bf16.msra.mxu0 0
    %3896 = vmatprep.subr.bf16.mxu0 0
    %3897 = vmatpush1.bf16.msra.mxu0 0
    %3898 = vmatprep.subr.bf16.mxu0 0
    %3899 = vmatpush1.bf16.msra.mxu0 0
    %3900 = vmatprep.subr.bf16.mxu0 0
    %3901 = vmatpush1.bf16.msra.mxu0 0
    %3902 = vmatprep.mubr.bf16.mxu0 0
    %3903 = vmatmul.mubr.bf16.gmra.mrb[0].mxu0 %v3868
    %v3904 = vpop.f32.mrb[0].mxu0
    %v3905 = vadd.f32 0.0, %v3904
    %v3906 = vpop.f32.mrb[0].mxu0
    %v3907 = vpop.f32.mrb[0].mxu0
    %v3908 = vadd.f32 0.0, %v3907
    %v3909 = vpop.f32.mrb[0].mxu0
    %3910 = vdwg.mxu0
    %v3911 = vmul.f32 %v3859, %v3905
    %v3912 = vmul.f32 %v3860, %v3908
    %3915 = vrot.lane.b32.xlu0 %v3779, 64
    %v3916 = vpop.permute.xlu0 %3915
    %3917 = vrot.lane.b32.xlu0 %v3780, 64
    %v3918 = vpop.permute.xlu0 %3917
    %3923 = vrot.lane.b32.xlu0 %v3911, 64
    %v3924 = vpop.permute.xlu0 %3923
    %3925 = vrot.lane.b32.xlu0 %v3912, 64
    %v3926 = vpop.permute.xlu0 %3925
    %v3929 = vsel %vm391, %v3708, %v3916
    %v3930 = vsel %vm391, %v3709, %v3918
    %v3931 = vsel %vm391, %v3843, %v3924
    %v3932 = vsel %vm391, %v3844, %v3926
    %s3933 = scalar_lea.vmem %s6, 5
    %v3934 = vld [vmem:[%s3933] ss:$8 sm:$0x3]
    %v3936 = vlaneseq
    %v3937 = vshrl.u32 %v3936, 7
    %v3938 = vsub.s32 0, %v3937
    %v3939 = vrot.slane %v3934, %v3938
    %v3940 = vlaneseq
    %v3941 = vshrl.u32 %v3940, 7
    %v3942 = vsub.s32 1, %v3941
    %v3943 = vrot.slane %v3934, %v3942
    %v3946 = vadd.f32 %v3929, %v3939
    %v3947 = vadd.f32 %v3931, %v3943
    %v3948 = vadd.f32 %v3930, %v3939
    %v3949 = vadd.f32 %v3932, %v3943
    %v3950 = vadd.f32 %v2736, %v3946
    %v3951 = vadd.f32 %v2737, %v3947
    %v3952 = vadd.f32 %v2738, %v3948
    %v3953 = vadd.f32 %v2739, %v3949
    %v3954 = vmax.f32 %v1522, 0.0
    %v3955 = vmax.f32 %v1523, 0.0
    %v3956 = vmax.f32 %v1524, 0.0
    %v3957 = vmax.f32 %v1525, 0.0
    %v3958 = vmax.f32 %v3950, 0.0
    %v3959 = vmax.f32 %v3951, 0.0
    %v3960 = vmax.f32 %v3952, 0.0
    %v3961 = vmax.f32 %v3953, 0.0
    %v3962 = vmax.f32 %v2129, 0.0
    %v3963 = vmax.f32 %v2130, 0.0
    %v3964 = vmax.f32 %v2131, 0.0
    %v3965 = vmax.f32 %v2132, 0.0
    %v3966 = vmax.f32 %v3343, 0.0
    %v3967 = vmax.f32 %v3344, 0.0
    %v3968 = vmax.f32 %v3345, 0.0
    %v3969 = vmax.f32 %v3346, 0.0
    %v3970 = vpack.c.bf16 %v3956, %v3954
    %v3971 = vpack.c.bf16 %v3957, %v3955
    %v3972 = vld [vmem:[%s3] sm:$0xf]
    %v3973 = vld [vmem:[%s3 + $0x8] sm:$0xf]
    %v3974 = vld [vmem:[%s3 + $0x10] sm:$0xf]
    %v3975 = vld [vmem:[%s3 + $0x18] sm:$0xf]
    %v3976 = vld [vmem:[%s3 + $0x20] sm:$0xf]
    %v3977 = vld [vmem:[%s3 + $0x28] sm:$0xf]
    %v3978 = vld [vmem:[%s3 + $0x30] sm:$0xf]
    %v3979 = vld [vmem:[%s3 + $0x38] sm:$0xf]
    %v3980 = vld [vmem:[%s3 + $0x40] sm:$0xf]
    %v3981 = vld [vmem:[%s3 + $0x48] sm:$0xf]
    %v3982 = vld [vmem:[%s3 + $0x50] sm:$0xf]
    %v3983 = vld [vmem:[%s3 + $0x58] sm:$0xf]
    %v3984 = vld [vmem:[%s3 + $0x60] sm:$0xf]
    %v3985 = vld [vmem:[%s3 + $0x68] sm:$0xf]
    %v3986 = vld [vmem:[%s3 + $0x70] sm:$0xf]
    %v3987 = vld [vmem:[%s3 + $0x78] sm:$0xf]
    %v3988 = vld [vmem:[%s3 + $0x80] sm:$0xf]
    %v3989 = vld [vmem:[%s3 + $0x88] sm:$0xf]
    %v3990 = vld [vmem:[%s3 + $0x90] sm:$0xf]
    %v3991 = vld [vmem:[%s3 + $0x98] sm:$0xf]
    %v3992 = vld [vmem:[%s3 + $0xa0] sm:$0xf]
    %v3993 = vld [vmem:[%s3 + $0xa8] sm:$0xf]
    %v3994 = vld [vmem:[%s3 + $0xb0] sm:$0xf]
    %v3995 = vld [vmem:[%s3 + $0xb8] sm:$0xf]
    %v3996 = vld [vmem:[%s3 + $0xc0] sm:$0xf]
    %v3997 = vld [vmem:[%s3 + $0xc8] sm:$0xf]
    %v3998 = vld [vmem:[%s3 + $0xd0] sm:$0xf]
    %v3999 = vld [vmem:[%s3 + $0xd8] sm:$0xf]
    %v4000 = vld [vmem:[%s3 + $0xe0] sm:$0xf]
    %v4001 = vld [vmem:[%s3 + $0xe8] sm:$0xf]
    %v4002 = vld [vmem:[%s3 + $0xf0] sm:$0xf]
    %v4003 = vld [vmem:[%s3 + $0xf8] sm:$0xf]
    %v4036 = vunpack.c.l.b16 %v3972
    %v4037 = vunpack.c.l.b16 %v3973
    %v4038 = vunpack.c.l.b16 %v3974
    %v4039 = vunpack.c.l.b16 %v3975
    %v4040 = vunpack.c.l.b16 %v3976
    %v4041 = vunpack.c.l.b16 %v3977
    %v4042 = vunpack.c.l.b16 %v3978
    %v4043 = vunpack.c.l.b16 %v3979
    %v4044 = vunpack.c.l.b16 %v3980
    %v4045 = vunpack.c.l.b16 %v3981
    %v4046 = vunpack.c.l.b16 %v3982
    %v4047 = vunpack.c.l.b16 %v3983
    %v4048 = vunpack.c.l.b16 %v3984
    %v4049 = vunpack.c.l.b16 %v3985
    %v4050 = vunpack.c.l.b16 %v3986
    %v4051 = vunpack.c.l.b16 %v3987
    %v4052 = vunpack.c.l.b16 %v3988
    %v4053 = vunpack.c.l.b16 %v3989
    %v4054 = vunpack.c.l.b16 %v3990
    %v4055 = vunpack.c.l.b16 %v3991
    %v4056 = vunpack.c.l.b16 %v3992
    %v4057 = vunpack.c.l.b16 %v3993
    %v4058 = vunpack.c.l.b16 %v3994
    %v4059 = vunpack.c.l.b16 %v3995
    %v4060 = vunpack.c.l.b16 %v3996
    %v4061 = vunpack.c.l.b16 %v3997
    %v4062 = vunpack.c.l.b16 %v3998
    %v4063 = vunpack.c.l.b16 %v3999
    %v4064 = vunpack.c.l.b16 %v4000
    %v4065 = vunpack.c.l.b16 %v4001
    %v4066 = vunpack.c.l.b16 %v4002
    %v4067 = vunpack.c.l.b16 %v4003
    %v4068 = vpack.c.b16 %v4037, %v4036
    %v4069 = vpack.c.b16 %v4039, %v4038
    %v4070 = vpack.c.b16 %v4041, %v4040
    %v4071 = vpack.c.b16 %v4043, %v4042
    %v4072 = vpack.c.b16 %v4045, %v4044
    %v4073 = vpack.c.b16 %v4047, %v4046
    %v4074 = vpack.c.b16 %v4049, %v4048
    %v4075 = vpack.c.b16 %v4051, %v4050
    %v4076 = vpack.c.b16 %v4053, %v4052
    %v4077 = vpack.c.b16 %v4055, %v4054
    %v4078 = vpack.c.b16 %v4057, %v4056
    %v4079 = vpack.c.b16 %v4059, %v4058
    %v4080 = vpack.c.b16 %v4061, %v4060
    %v4081 = vpack.c.b16 %v4063, %v4062
    %v4082 = vpack.c.b16 %v4065, %v4064
    %v4083 = vpack.c.b16 %v4067, %v4066
    %4100 = vmatprep.subr.bf16.mxu0 0
    %4101 = vmatpush1.bf16.msra.mxu0 %v4068
    %4102 = vmatprep.subr.bf16.mxu0 0
    %4103 = vmatpush1.bf16.msra.mxu0 %v4069
    %4104 = vmatprep.subr.bf16.mxu0 0
    %4105 = vmatpush1.bf16.msra.mxu0 %v4070
    %4106 = vmatprep.subr.bf16.mxu0 0
    %4107 = vmatpush1.bf16.msra.mxu0 %v4071
    %4108 = vmatprep.subr.bf16.mxu0 0
    %4109 = vmatpush1.bf16.msra.mxu0 %v4072
    %4110 = vmatprep.subr.bf16.mxu0 0
    %4111 = vmatpush1.bf16.msra.mxu0 %v4073
    %4112 = vmatprep.subr.bf16.mxu0 0
    %4113 = vmatpush1.bf16.msra.mxu0 %v4074
    %4114 = vmatprep.subr.bf16.mxu0 0
    %4115 = vmatpush1.bf16.msra.mxu0 %v4075
    %4116 = vmatprep.subr.bf16.mxu0 0
    %4117 = vmatpush1.bf16.msra.mxu0 %v4076
    %4118 = vmatprep.subr.bf16.mxu0 0
    %4119 = vmatpush1.bf16.msra.mxu0 %v4077
    %4120 = vmatprep.subr.bf16.mxu0 0
    %4121 = vmatpush1.bf16.msra.mxu0 %v4078
    %4122 = vmatprep.subr.bf16.mxu0 0
    %4123 = vmatpush1.bf16.msra.mxu0 %v4079
    %4124 = vmatprep.subr.bf16.mxu0 0
    %4125 = vmatpush1.bf16.msra.mxu0 %v4080
    %4126 = vmatprep.subr.bf16.mxu0 0
    %4127 = vmatpush1.bf16.msra.mxu0 %v4081
    %4128 = vmatprep.subr.bf16.mxu0 0
    %4129 = vmatpush1.bf16.msra.mxu0 %v4082
    %4130 = vmatprep.subr.bf16.mxu0 0
    %4131 = vmatpush1.bf16.msra.mxu0 %v4083
    %4132 = vmatprep.mubr.bf16.mxu0 %v3971
    %4133 = vmatmul.mubr.bf16.gmra.mrb[0].mxu0 %v3970
    %v4134 = vpop.f32.mrb[0].mxu0
    %v4135 = vadd.f32 0.0, %v4134
    %v4136 = vpop.f32.mrb[0].mxu0
    %v4137 = vpop.f32.mrb[0].mxu0
    %v4138 = vadd.f32 0.0, %v4137
    %v4139 = vpop.f32.mrb[0].mxu0
    %4140 = vdwg.mxu0
    %v4141 = vpack.c.bf16 %v4138, %v4135
    %v4142 = vpack.c.bf16 %v3960, %v3958
    %v4143 = vpack.c.bf16 %v3961, %v3959
    %v4144 = vld [vmem:[%s3 + $0x4] sm:$0xf]
    %v4145 = vld [vmem:[%s3 + $0xc] sm:$0xf]
    %v4146 = vld [vmem:[%s3 + $0x14] sm:$0xf]
    %v4147 = vld [vmem:[%s3 + $0x1c] sm:$0xf]
    %v4148 = vld [vmem:[%s3 + $0x24] sm:$0xf]
    %v4149 = vld [vmem:[%s3 + $0x2c] sm:$0xf]
    %v4150 = vld [vmem:[%s3 + $0x34] sm:$0xf]
    %v4151 = vld [vmem:[%s3 + $0x3c] sm:$0xf]
    %v4152 = vld [vmem:[%s3 + $0x44] sm:$0xf]
    %v4153 = vld [vmem:[%s3 + $0x4c] sm:$0xf]
    %v4154 = vld [vmem:[%s3 + $0x54] sm:$0xf]
    %v4155 = vld [vmem:[%s3 + $0x5c] sm:$0xf]
    %v4156 = vld [vmem:[%s3 + $0x64] sm:$0xf]
    %v4157 = vld [vmem:[%s3 + $0x6c] sm:$0xf]
    %v4158 = vld [vmem:[%s3 + $0x74] sm:$0xf]
    %v4159 = vld [vmem:[%s3 + $0x7c] sm:$0xf]
    %v4160 = vld [vmem:[%s3 + $0x84] sm:$0xf]
    %v4161 = vld [vmem:[%s3 + $0x8c] sm:$0xf]
    %v4162 = vld [vmem:[%s3 + $0x94] sm:$0xf]
    %v4163 = vld [vmem:[%s3 + $0x9c] sm:$0xf]
    %v4164 = vld [vmem:[%s3 + $0xa4] sm:$0xf]
    %v4165 = vld [vmem:[%s3 + $0xac] sm:$0xf]
    %v4166 = vld [vmem:[%s3 + $0xb4] sm:$0xf]
    %v4167 = vld [vmem:[%s3 + $0xbc] sm:$0xf]
    %v4168 = vld [vmem:[%s3 + $0xc4] sm:$0xf]
    %v4169 = vld [vmem:[%s3 + $0xcc] sm:$0xf]
    %v4170 = vld [vmem:[%s3 + $0xd4] sm:$0xf]
    %v4171 = vld [vmem:[%s3 + $0xdc] sm:$0xf]
    %v4172 = vld [vmem:[%s3 + $0xe4] sm:$0xf]
    %v4173 = vld [vmem:[%s3 + $0xec] sm:$0xf]
    %v4174 = vld [vmem:[%s3 + $0xf4] sm:$0xf]
    %v4175 = vld [vmem:[%s3 + $0xfc] sm:$0xf]
    %4178 = vrot.lane.b32.xlu0 %v30, 64
    %v4179 = vpop.permute.xlu0 %4178
    %4180 = vrot.lane.b32.xlu0 %v31, 64
    %v4181 = vpop.permute.xlu0 %4180
    %v4184 = vmul.f32 %v4135, %v4179
    %v4185 = vmul.f32 %v4138, %v4181
    %v4186 = vpack.c.bf16 %v4185, %v4184
    %4188 = vrot.lane.b32.xlu0 %v4186, 64
    %v4189 = vpop.permute.xlu0 %4188
    %4191 = vmatprep.subr.bf16.mxu0 0
    %4192 = vmatpush1.bf16.msra.mxu0 %v4189
    %4193 = vmatprep.subr.bf16.mxu0 0
    %4194 = vmatpush1.bf16.msra.mxu0 0
    %4195 = vmatprep.subr.bf16.mxu0 0
    %4196 = vmatpush1.bf16.msra.mxu0 0
    %4197 = vmatprep.subr.bf16.mxu0 0
    %4198 = vmatpush1.bf16.msra.mxu0 0
    %4199 = vmatprep.subr.bf16.mxu0 0
    %4200 = vmatpush1.bf16.msra.mxu0 0
    %4201 = vmatprep.subr.bf16.mxu0 0
    %4202 = vmatpush1.bf16.msra.mxu0 0
    %4203 = vmatprep.subr.bf16.mxu0 0
    %4204 = vmatpush1.bf16.msra.mxu0 0
    %4205 = vmatprep.subr.bf16.mxu0 0
    %4206 = vmatpush1.bf16.msra.mxu0 0
    %4207 = vmatprep.subr.bf16.mxu0 0
    %4208 = vmatpush1.bf16.msra.mxu0 0
    %4209 = vmatprep.subr.bf16.mxu0 0
    %4210 = vmatpush1.bf16.msra.mxu0 0
    %4211 = vmatprep.subr.bf16.mxu0 0
    %4212 = vmatpush1.bf16.msra.mxu0 0
    %4213 = vmatprep.subr.bf16.mxu0 0
    %4214 = vmatpush1.bf16.msra.mxu0 0
    %4215 = vmatprep.subr.bf16.mxu0 0
    %4216 = vmatpush1.bf16.msra.mxu0 0
    %4217 = vmatprep.subr.bf16.mxu0 0
    %4218 = vmatpush1.bf16.msra.mxu0 0
    %4219 = vmatprep.subr.bf16.mxu0 0
    %4220 = vmatpush1.bf16.msra.mxu0 0
    %4221 = vmatprep.subr.bf16.mxu0 0
    %4222 = vmatpush1.bf16.msra.mxu0 0
    %4223 = vmatprep.mubr.bf16.mxu0 0
    %4224 = vmatmul.mubr.bf16.gmra.mrb[0].mxu0 %v494
    %v4225 = vpop.f32.mrb[0].mxu0
    %v4226 = vadd.f32 0.0, %v4225
    %v4227 = vpop.f32.mrb[0].mxu0
    %v4228 = vpop.f32.mrb[0].mxu0
    %v4229 = vadd.f32 0.0, %v4228
    %v4230 = vpop.f32.mrb[0].mxu0
    %4231 = vdwg.mxu0
    %v4264 = vunpack.c.l.b16 %v4144
    %v4265 = vunpack.c.l.b16 %v4145
    %v4266 = vunpack.c.l.b16 %v4146
    %v4267 = vunpack.c.l.b16 %v4147
    %v4268 = vunpack.c.l.b16 %v4148
    %v4269 = vunpack.c.l.b16 %v4149
    %v4270 = vunpack.c.l.b16 %v4150
    %v4271 = vunpack.c.l.b16 %v4151
    %v4272 = vunpack.c.l.b16 %v4152
    %v4273 = vunpack.c.l.b16 %v4153
    %v4274 = vunpack.c.l.b16 %v4154
    %v4275 = vunpack.c.l.b16 %v4155
    %v4276 = vunpack.c.l.b16 %v4156
    %v4277 = vunpack.c.l.b16 %v4157
    %v4278 = vunpack.c.l.b16 %v4158
    %v4279 = vunpack.c.l.b16 %v4159
    %v4280 = vunpack.c.l.b16 %v4160
    %v4281 = vunpack.c.l.b16 %v4161
    %v4282 = vunpack.c.l.b16 %v4162
    %v4283 = vunpack.c.l.b16 %v4163
    %v4284 = vunpack.c.l.b16 %v4164
    %v4285 = vunpack.c.l.b16 %v4165
    %v4286 = vunpack.c.l.b16 %v4166
    %v4287 = vunpack.c.l.b16 %v4167
    %v4288 = vunpack.c.l.b16 %v4168
    %v4289 = vunpack.c.l.b16 %v4169
    %v4290 = vunpack.c.l.b16 %v4170
    %v4291 = vunpack.c.l.b16 %v4171
    %v4292 = vunpack.c.l.b16 %v4172
    %v4293 = vunpack.c.l.b16 %v4173
    %v4294 = vunpack.c.l.b16 %v4174
    %v4295 = vunpack.c.l.b16 %v4175
    %v4296 = vpack.c.b16 %v4265, %v4264
    %v4297 = vpack.c.b16 %v4267, %v4266
    %v4298 = vpack.c.b16 %v4269, %v4268
    %v4299 = vpack.c.b16 %v4271, %v4270
    %v4300 = vpack.c.b16 %v4273, %v4272
    %v4301 = vpack.c.b16 %v4275, %v4274
    %v4302 = vpack.c.b16 %v4277, %v4276
    %v4303 = vpack.c.b16 %v4279, %v4278
    %v4304 = vpack.c.b16 %v4281, %v4280
    %v4305 = vpack.c.b16 %v4283, %v4282
    %v4306 = vpack.c.b16 %v4285, %v4284
    %v4307 = vpack.c.b16 %v4287, %v4286
    %v4308 = vpack.c.b16 %v4289, %v4288
    %v4309 = vpack.c.b16 %v4291, %v4290
    %v4310 = vpack.c.b16 %v4293, %v4292
    %v4311 = vpack.c.b16 %v4295, %v4294
    %4328 = vmatprep.subr.bf16.mxu0 0
    %4329 = vmatpush1.bf16.msra.mxu0 %v4296
    %4330 = vmatprep.subr.bf16.mxu0 0
    %4331 = vmatpush1.bf16.msra.mxu0 %v4297
    %4332 = vmatprep.subr.bf16.mxu0 0
    %4333 = vmatpush1.bf16.msra.mxu0 %v4298
    %4334 = vmatprep.subr.bf16.mxu0 0
    %4335 = vmatpush1.bf16.msra.mxu0 %v4299
    %4336 = vmatprep.subr.bf16.mxu0 0
    %4337 = vmatpush1.bf16.msra.mxu0 %v4300
    %4338 = vmatprep.subr.bf16.mxu0 0
    %4339 = vmatpush1.bf16.msra.mxu0 %v4301
    %4340 = vmatprep.subr.bf16.mxu0 0
    %4341 = vmatpush1.bf16.msra.mxu0 %v4302
    %4342 = vmatprep.subr.bf16.mxu0 0
    %4343 = vmatpush1.bf16.msra.mxu0 %v4303
    %4344 = vmatprep.subr.bf16.mxu0 0
    %4345 = vmatpush1.bf16.msra.mxu0 %v4304
    %4346 = vmatprep.subr.bf16.mxu0 0
    %4347 = vmatpush1.bf16.msra.mxu0 %v4305
    %4348 = vmatprep.subr.bf16.mxu0 0
    %4349 = vmatpush1.bf16.msra.mxu0 %v4306
    %4350 = vmatprep.subr.bf16.mxu0 0
    %4351 = vmatpush1.bf16.msra.mxu0 %v4307
    %4352 = vmatprep.subr.bf16.mxu0 0
    %4353 = vmatpush1.bf16.msra.mxu0 %v4308
    %4354 = vmatprep.subr.bf16.mxu0 0
    %4355 = vmatpush1.bf16.msra.mxu0 %v4309
    %4356 = vmatprep.subr.bf16.mxu0 0
    %4357 = vmatpush1.bf16.msra.mxu0 %v4310
    %4358 = vmatprep.subr.bf16.mxu0 0
    %4359 = vmatpush1.bf16.msra.mxu0 %v4311
    %4360 = vmatprep.mubr.bf16.mxu0 %v4143
    %4361 = vmatmul.mubr.bf16.gmra.mrb[0].mxu0 %v4142
    %v4362 = vpop.f32.mrb[0].mxu0
    %v4363 = vadd.f32 %v4226, %v4362
    %v4364 = vpop.f32.mrb[0].mxu0
    %v4365 = vpop.f32.mrb[0].mxu0
    %v4366 = vadd.f32 %v4229, %v4365
    %v4367 = vpop.f32.mrb[0].mxu0
    %4368 = vdwg.mxu0
    %vm4369 = vcmp.ge.f32.partialorder %v4363, 0.0
    %vm4370 = vcmp.ge.f32.partialorder %v4366, 0.0
    %v4371 = vmul.f32 %v4363, 0.2
    %v4372 = vmul.f32 %v4366, 0.2
    %v4373 = vsel %vm4369, %v4363, %v4371
    %v4374 = vsel %vm4370, %v4366, %v4372
    %v4375 = vadd.f32 %v4373, %v50
    %v4376 = vadd.f32 %v4374, %v51
    %v4377 = vsel %vm82, %v4375, -inf
    %4378 = vmax.xlane.f32.xlu0 %v4377
    %v4379 = vpop.xlane.xlu0 %4378
    %v4380 = vsel %vm82, %v4376, -inf
    %4381 = vmax.xlane.f32.xlu0 %v4380
    %v4382 = vpop.xlane.xlu0 %4381
    %v4383 = vsub.f32 %v4375, %v4379
    %v4384 = vsub.f32 %v4376, %v4382
    %v4385 = vmul.f32 %v4383, 1.442695
    %v4386 = vpow.pop %v4385
    %v4387 = vmul.f32 %v4384, 1.442695
    %v4388 = vpow.pop %v4387
    %v4389 = vmul.f32 %v4386, %v32
    %v4390 = vmul.f32 %v4388, %v33
    %v4391 = vsel %vm82, %v4389, 0.0
    %4392 = vadd.xlane.f32.xlu0 %v4391
    %v4393 = vpop.xlane.xlu0 %4392
    %v4394 = vsel %vm82, %v4390, 0.0
    %4395 = vadd.xlane.f32.xlu0 %v4394
    %v4396 = vpop.xlane.xlu0 %4395
    %v4397 = vmax.f32 %v4393, 1e-20
    %v4398 = vmax.f32 %v4396, 1e-20
    %v4399 = vrcp.pop %v4397
    %v4400 = vrcp.pop %v4398
    %v4401 = vpack.c.bf16 %v4390, %v4389
    %v4403 = vsel %vm82, %v4401, 0
    %4405 = vmatprep.subr.bf16.mxu0 0
    %4406 = vmatpush1.bf16.msra.mxu0 %v4141
    %4407 = vmatprep.subr.bf16.mxu0 0
    %4408 = vmatpush1.bf16.msra.mxu0 0
    %4409 = vmatprep.subr.bf16.mxu0 0
    %4410 = vmatpush1.bf16.msra.mxu0 0
    %4411 = vmatprep.subr.bf16.mxu0 0
    %4412 = vmatpush1.bf16.msra.mxu0 0
    %4413 = vmatprep.subr.bf16.mxu0 0
    %4414 = vmatpush1.bf16.msra.mxu0 0
    %4415 = vmatprep.subr.bf16.mxu0 0
    %4416 = vmatpush1.bf16.msra.mxu0 0
    %4417 = vmatprep.subr.bf16.mxu0 0
    %4418 = vmatpush1.bf16.msra.mxu0 0
    %4419 = vmatprep.subr.bf16.mxu0 0
    %4420 = vmatpush1.bf16.msra.mxu0 0
    %4421 = vmatprep.subr.bf16.mxu0 0
    %4422 = vmatpush1.bf16.msra.mxu0 0
    %4423 = vmatprep.subr.bf16.mxu0 0
    %4424 = vmatpush1.bf16.msra.mxu0 0
    %4425 = vmatprep.subr.bf16.mxu0 0
    %4426 = vmatpush1.bf16.msra.mxu0 0
    %4427 = vmatprep.subr.bf16.mxu0 0
    %4428 = vmatpush1.bf16.msra.mxu0 0
    %4429 = vmatprep.subr.bf16.mxu0 0
    %4430 = vmatpush1.bf16.msra.mxu0 0
    %4431 = vmatprep.subr.bf16.mxu0 0
    %4432 = vmatpush1.bf16.msra.mxu0 0
    %4433 = vmatprep.subr.bf16.mxu0 0
    %4434 = vmatpush1.bf16.msra.mxu0 0
    %4435 = vmatprep.subr.bf16.mxu0 0
    %4436 = vmatpush1.bf16.msra.mxu0 0
    %4437 = vmatprep.mubr.bf16.mxu0 0
    %4438 = vmatmul.mubr.bf16.gmra.mrb[0].mxu0 %v4403
    %v4439 = vpop.f32.mrb[0].mxu0
    %v4440 = vadd.f32 0.0, %v4439
    %v4441 = vpop.f32.mrb[0].mxu0
    %v4442 = vpop.f32.mrb[0].mxu0
    %v4443 = vadd.f32 0.0, %v4442
    %v4444 = vpop.f32.mrb[0].mxu0
    %4445 = vdwg.mxu0
    %v4446 = vmul.f32 %v4399, %v4440
    %v4447 = vmul.f32 %v4400, %v4443
    %v4448 = vld [vmem:[%s6 + $0x6] ss:$0 sm:$0xff]
    %v4449 = vadd.f32 %v4446, %v4448
    %v4450 = vadd.f32 %v4447, %v4448
    %s4451 = scalar_lea.vmem %s3, 256
    %v4452 = vld [vmem:[%s4451] sm:$0xf]
    %v4453 = vld [vmem:[%s4451 + $0x8] sm:$0xf]
    %v4454 = vld [vmem:[%s4451 + $0x10] sm:$0xf]
    %v4455 = vld [vmem:[%s4451 + $0x18] sm:$0xf]
    %v4456 = vld [vmem:[%s4451 + $0x20] sm:$0xf]
    %v4457 = vld [vmem:[%s4451 + $0x28] sm:$0xf]
    %v4458 = vld [vmem:[%s4451 + $0x30] sm:$0xf]
    %v4459 = vld [vmem:[%s4451 + $0x38] sm:$0xf]
    %v4460 = vld [vmem:[%s4451 + $0x40] sm:$0xf]
    %v4461 = vld [vmem:[%s4451 + $0x48] sm:$0xf]
    %v4462 = vld [vmem:[%s4451 + $0x50] sm:$0xf]
    %v4463 = vld [vmem:[%s4451 + $0x58] sm:$0xf]
    %v4464 = vld [vmem:[%s4451 + $0x60] sm:$0xf]
    %v4465 = vld [vmem:[%s4451 + $0x68] sm:$0xf]
    %v4466 = vld [vmem:[%s4451 + $0x70] sm:$0xf]
    %v4467 = vld [vmem:[%s4451 + $0x78] sm:$0xf]
    %v4468 = vld [vmem:[%s4451 + $0x80] sm:$0xf]
    %v4469 = vld [vmem:[%s4451 + $0x88] sm:$0xf]
    %v4470 = vld [vmem:[%s4451 + $0x90] sm:$0xf]
    %v4471 = vld [vmem:[%s4451 + $0x98] sm:$0xf]
    %v4472 = vld [vmem:[%s4451 + $0xa0] sm:$0xf]
    %v4473 = vld [vmem:[%s4451 + $0xa8] sm:$0xf]
    %v4474 = vld [vmem:[%s4451 + $0xb0] sm:$0xf]
    %v4475 = vld [vmem:[%s4451 + $0xb8] sm:$0xf]
    %v4476 = vld [vmem:[%s4451 + $0xc0] sm:$0xf]
    %v4477 = vld [vmem:[%s4451 + $0xc8] sm:$0xf]
    %v4478 = vld [vmem:[%s4451 + $0xd0] sm:$0xf]
    %v4479 = vld [vmem:[%s4451 + $0xd8] sm:$0xf]
    %v4480 = vld [vmem:[%s4451 + $0xe0] sm:$0xf]
    %v4481 = vld [vmem:[%s4451 + $0xe8] sm:$0xf]
    %v4482 = vld [vmem:[%s4451 + $0xf0] sm:$0xf]
    %v4483 = vld [vmem:[%s4451 + $0xf8] sm:$0xf]
    %v4516 = vunpack.c.l.b16 %v4452
    %v4517 = vunpack.c.l.b16 %v4453
    %v4518 = vunpack.c.l.b16 %v4454
    %v4519 = vunpack.c.l.b16 %v4455
    %v4520 = vunpack.c.l.b16 %v4456
    %v4521 = vunpack.c.l.b16 %v4457
    %v4522 = vunpack.c.l.b16 %v4458
    %v4523 = vunpack.c.l.b16 %v4459
    %v4524 = vunpack.c.l.b16 %v4460
    %v4525 = vunpack.c.l.b16 %v4461
    %v4526 = vunpack.c.l.b16 %v4462
    %v4527 = vunpack.c.l.b16 %v4463
    %v4528 = vunpack.c.l.b16 %v4464
    %v4529 = vunpack.c.l.b16 %v4465
    %v4530 = vunpack.c.l.b16 %v4466
    %v4531 = vunpack.c.l.b16 %v4467
    %v4532 = vunpack.c.l.b16 %v4468
    %v4533 = vunpack.c.l.b16 %v4469
    %v4534 = vunpack.c.l.b16 %v4470
    %v4535 = vunpack.c.l.b16 %v4471
    %v4536 = vunpack.c.l.b16 %v4472
    %v4537 = vunpack.c.l.b16 %v4473
    %v4538 = vunpack.c.l.b16 %v4474
    %v4539 = vunpack.c.l.b16 %v4475
    %v4540 = vunpack.c.l.b16 %v4476
    %v4541 = vunpack.c.l.b16 %v4477
    %v4542 = vunpack.c.l.b16 %v4478
    %v4543 = vunpack.c.l.b16 %v4479
    %v4544 = vunpack.c.l.b16 %v4480
    %v4545 = vunpack.c.l.b16 %v4481
    %v4546 = vunpack.c.l.b16 %v4482
    %v4547 = vunpack.c.l.b16 %v4483
    %v4548 = vpack.c.b16 %v4517, %v4516
    %v4549 = vpack.c.b16 %v4519, %v4518
    %v4550 = vpack.c.b16 %v4521, %v4520
    %v4551 = vpack.c.b16 %v4523, %v4522
    %v4552 = vpack.c.b16 %v4525, %v4524
    %v4553 = vpack.c.b16 %v4527, %v4526
    %v4554 = vpack.c.b16 %v4529, %v4528
    %v4555 = vpack.c.b16 %v4531, %v4530
    %v4556 = vpack.c.b16 %v4533, %v4532
    %v4557 = vpack.c.b16 %v4535, %v4534
    %v4558 = vpack.c.b16 %v4537, %v4536
    %v4559 = vpack.c.b16 %v4539, %v4538
    %v4560 = vpack.c.b16 %v4541, %v4540
    %v4561 = vpack.c.b16 %v4543, %v4542
    %v4562 = vpack.c.b16 %v4545, %v4544
    %v4563 = vpack.c.b16 %v4547, %v4546
    %4580 = vmatprep.subr.bf16.mxu0 0
    %4581 = vmatpush1.bf16.msra.mxu0 %v4548
    %4582 = vmatprep.subr.bf16.mxu0 0
    %4583 = vmatpush1.bf16.msra.mxu0 %v4549
    %4584 = vmatprep.subr.bf16.mxu0 0
    %4585 = vmatpush1.bf16.msra.mxu0 %v4550
    %4586 = vmatprep.subr.bf16.mxu0 0
    %4587 = vmatpush1.bf16.msra.mxu0 %v4551
    %4588 = vmatprep.subr.bf16.mxu0 0
    %4589 = vmatpush1.bf16.msra.mxu0 %v4552
    %4590 = vmatprep.subr.bf16.mxu0 0
    %4591 = vmatpush1.bf16.msra.mxu0 %v4553
    %4592 = vmatprep.subr.bf16.mxu0 0
    %4593 = vmatpush1.bf16.msra.mxu0 %v4554
    %4594 = vmatprep.subr.bf16.mxu0 0
    %4595 = vmatpush1.bf16.msra.mxu0 %v4555
    %4596 = vmatprep.subr.bf16.mxu0 0
    %4597 = vmatpush1.bf16.msra.mxu0 %v4556
    %4598 = vmatprep.subr.bf16.mxu0 0
    %4599 = vmatpush1.bf16.msra.mxu0 %v4557
    %4600 = vmatprep.subr.bf16.mxu0 0
    %4601 = vmatpush1.bf16.msra.mxu0 %v4558
    %4602 = vmatprep.subr.bf16.mxu0 0
    %4603 = vmatpush1.bf16.msra.mxu0 %v4559
    %4604 = vmatprep.subr.bf16.mxu0 0
    %4605 = vmatpush1.bf16.msra.mxu0 %v4560
    %4606 = vmatprep.subr.bf16.mxu0 0
    %4607 = vmatpush1.bf16.msra.mxu0 %v4561
    %4608 = vmatprep.subr.bf16.mxu0 0
    %4609 = vmatpush1.bf16.msra.mxu0 %v4562
    %4610 = vmatprep.subr.bf16.mxu0 0
    %4611 = vmatpush1.bf16.msra.mxu0 %v4563
    %4612 = vmatprep.mubr.bf16.mxu0 %v4143
    %4613 = vmatmul.mubr.bf16.gmra.mrb[0].mxu0 %v4142
    %v4614 = vpop.f32.mrb[0].mxu0
    %v4615 = vadd.f32 0.0, %v4614
    %v4616 = vpop.f32.mrb[0].mxu0
    %v4617 = vpop.f32.mrb[0].mxu0
    %v4618 = vadd.f32 0.0, %v4617
    %v4619 = vpop.f32.mrb[0].mxu0
    %4620 = vdwg.mxu0
    %v4621 = vpack.c.bf16 %v4618, %v4615
    %v4622 = vld [vmem:[%s4451 + $0x4] sm:$0xf]
    %v4623 = vld [vmem:[%s4451 + $0xc] sm:$0xf]
    %v4624 = vld [vmem:[%s4451 + $0x14] sm:$0xf]
    %v4625 = vld [vmem:[%s4451 + $0x1c] sm:$0xf]
    %v4626 = vld [vmem:[%s4451 + $0x24] sm:$0xf]
    %v4627 = vld [vmem:[%s4451 + $0x2c] sm:$0xf]
    %v4628 = vld [vmem:[%s4451 + $0x34] sm:$0xf]
    %v4629 = vld [vmem:[%s4451 + $0x3c] sm:$0xf]
    %v4630 = vld [vmem:[%s4451 + $0x44] sm:$0xf]
    %v4631 = vld [vmem:[%s4451 + $0x4c] sm:$0xf]
    %v4632 = vld [vmem:[%s4451 + $0x54] sm:$0xf]
    %v4633 = vld [vmem:[%s4451 + $0x5c] sm:$0xf]
    %v4634 = vld [vmem:[%s4451 + $0x64] sm:$0xf]
    %v4635 = vld [vmem:[%s4451 + $0x6c] sm:$0xf]
    %v4636 = vld [vmem:[%s4451 + $0x74] sm:$0xf]
    %v4637 = vld [vmem:[%s4451 + $0x7c] sm:$0xf]
    %v4638 = vld [vmem:[%s4451 + $0x84] sm:$0xf]
    %v4639 = vld [vmem:[%s4451 + $0x8c] sm:$0xf]
    %v4640 = vld [vmem:[%s4451 + $0x94] sm:$0xf]
    %v4641 = vld [vmem:[%s4451 + $0x9c] sm:$0xf]
    %v4642 = vld [vmem:[%s4451 + $0xa4] sm:$0xf]
    %v4643 = vld [vmem:[%s4451 + $0xac] sm:$0xf]
    %v4644 = vld [vmem:[%s4451 + $0xb4] sm:$0xf]
    %v4645 = vld [vmem:[%s4451 + $0xbc] sm:$0xf]
    %v4646 = vld [vmem:[%s4451 + $0xc4] sm:$0xf]
    %v4647 = vld [vmem:[%s4451 + $0xcc] sm:$0xf]
    %v4648 = vld [vmem:[%s4451 + $0xd4] sm:$0xf]
    %v4649 = vld [vmem:[%s4451 + $0xdc] sm:$0xf]
    %v4650 = vld [vmem:[%s4451 + $0xe4] sm:$0xf]
    %v4651 = vld [vmem:[%s4451 + $0xec] sm:$0xf]
    %v4652 = vld [vmem:[%s4451 + $0xf4] sm:$0xf]
    %v4653 = vld [vmem:[%s4451 + $0xfc] sm:$0xf]
    %v4654 = vmul.f32 %v4615, %v4179
    %v4655 = vmul.f32 %v4618, %v4181
    %v4656 = vpack.c.bf16 %v4655, %v4654
    %4658 = vrot.lane.b32.xlu0 %v4656, 64
    %v4659 = vpop.permute.xlu0 %4658
    %4661 = vmatprep.subr.bf16.mxu0 0
    %4662 = vmatpush1.bf16.msra.mxu0 %v4659
    %4663 = vmatprep.subr.bf16.mxu0 0
    %4664 = vmatpush1.bf16.msra.mxu0 0
    %4665 = vmatprep.subr.bf16.mxu0 0
    %4666 = vmatpush1.bf16.msra.mxu0 0
    %4667 = vmatprep.subr.bf16.mxu0 0
    %4668 = vmatpush1.bf16.msra.mxu0 0
    %4669 = vmatprep.subr.bf16.mxu0 0
    %4670 = vmatpush1.bf16.msra.mxu0 0
    %4671 = vmatprep.subr.bf16.mxu0 0
    %4672 = vmatpush1.bf16.msra.mxu0 0
    %4673 = vmatprep.subr.bf16.mxu0 0
    %4674 = vmatpush1.bf16.msra.mxu0 0
    %4675 = vmatprep.subr.bf16.mxu0 0
    %4676 = vmatpush1.bf16.msra.mxu0 0
    %4677 = vmatprep.subr.bf16.mxu0 0
    %4678 = vmatpush1.bf16.msra.mxu0 0
    %4679 = vmatprep.subr.bf16.mxu0 0
    %4680 = vmatpush1.bf16.msra.mxu0 0
    %4681 = vmatprep.subr.bf16.mxu0 0
    %4682 = vmatpush1.bf16.msra.mxu0 0
    %4683 = vmatprep.subr.bf16.mxu0 0
    %4684 = vmatpush1.bf16.msra.mxu0 0
    %4685 = vmatprep.subr.bf16.mxu0 0
    %4686 = vmatpush1.bf16.msra.mxu0 0
    %4687 = vmatprep.subr.bf16.mxu0 0
    %4688 = vmatpush1.bf16.msra.mxu0 0
    %4689 = vmatprep.subr.bf16.mxu0 0
    %4690 = vmatpush1.bf16.msra.mxu0 0
    %4691 = vmatprep.subr.bf16.mxu0 0
    %4692 = vmatpush1.bf16.msra.mxu0 0
    %4693 = vmatprep.mubr.bf16.mxu0 0
    %4694 = vmatmul.mubr.bf16.gmra.mrb[0].mxu0 %v494
    %v4695 = vpop.f32.mrb[0].mxu0
    %v4696 = vadd.f32 0.0, %v4695
    %v4697 = vpop.f32.mrb[0].mxu0
    %v4698 = vpop.f32.mrb[0].mxu0
    %v4699 = vadd.f32 0.0, %v4698
    %v4700 = vpop.f32.mrb[0].mxu0
    %4701 = vdwg.mxu0
    %v4734 = vunpack.c.l.b16 %v4622
    %v4735 = vunpack.c.l.b16 %v4623
    %v4736 = vunpack.c.l.b16 %v4624
    %v4737 = vunpack.c.l.b16 %v4625
    %v4738 = vunpack.c.l.b16 %v4626
    %v4739 = vunpack.c.l.b16 %v4627
    %v4740 = vunpack.c.l.b16 %v4628
    %v4741 = vunpack.c.l.b16 %v4629
    %v4742 = vunpack.c.l.b16 %v4630
    %v4743 = vunpack.c.l.b16 %v4631
    %v4744 = vunpack.c.l.b16 %v4632
    %v4745 = vunpack.c.l.b16 %v4633
    %v4746 = vunpack.c.l.b16 %v4634
    %v4747 = vunpack.c.l.b16 %v4635
    %v4748 = vunpack.c.l.b16 %v4636
    %v4749 = vunpack.c.l.b16 %v4637
    %v4750 = vunpack.c.l.b16 %v4638
    %v4751 = vunpack.c.l.b16 %v4639
    %v4752 = vunpack.c.l.b16 %v4640
    %v4753 = vunpack.c.l.b16 %v4641
    %v4754 = vunpack.c.l.b16 %v4642
    %v4755 = vunpack.c.l.b16 %v4643
    %v4756 = vunpack.c.l.b16 %v4644
    %v4757 = vunpack.c.l.b16 %v4645
    %v4758 = vunpack.c.l.b16 %v4646
    %v4759 = vunpack.c.l.b16 %v4647
    %v4760 = vunpack.c.l.b16 %v4648
    %v4761 = vunpack.c.l.b16 %v4649
    %v4762 = vunpack.c.l.b16 %v4650
    %v4763 = vunpack.c.l.b16 %v4651
    %v4764 = vunpack.c.l.b16 %v4652
    %v4765 = vunpack.c.l.b16 %v4653
    %v4766 = vpack.c.b16 %v4735, %v4734
    %v4767 = vpack.c.b16 %v4737, %v4736
    %v4768 = vpack.c.b16 %v4739, %v4738
    %v4769 = vpack.c.b16 %v4741, %v4740
    %v4770 = vpack.c.b16 %v4743, %v4742
    %v4771 = vpack.c.b16 %v4745, %v4744
    %v4772 = vpack.c.b16 %v4747, %v4746
    %v4773 = vpack.c.b16 %v4749, %v4748
    %v4774 = vpack.c.b16 %v4751, %v4750
    %v4775 = vpack.c.b16 %v4753, %v4752
    %v4776 = vpack.c.b16 %v4755, %v4754
    %v4777 = vpack.c.b16 %v4757, %v4756
    %v4778 = vpack.c.b16 %v4759, %v4758
    %v4779 = vpack.c.b16 %v4761, %v4760
    %v4780 = vpack.c.b16 %v4763, %v4762
    %v4781 = vpack.c.b16 %v4765, %v4764
    %4798 = vmatprep.subr.bf16.mxu0 0
    %4799 = vmatpush1.bf16.msra.mxu0 %v4766
    %4800 = vmatprep.subr.bf16.mxu0 0
    %4801 = vmatpush1.bf16.msra.mxu0 %v4767
    %4802 = vmatprep.subr.bf16.mxu0 0
    %4803 = vmatpush1.bf16.msra.mxu0 %v4768
    %4804 = vmatprep.subr.bf16.mxu0 0
    %4805 = vmatpush1.bf16.msra.mxu0 %v4769
    %4806 = vmatprep.subr.bf16.mxu0 0
    %4807 = vmatpush1.bf16.msra.mxu0 %v4770
    %4808 = vmatprep.subr.bf16.mxu0 0
    %4809 = vmatpush1.bf16.msra.mxu0 %v4771
    %4810 = vmatprep.subr.bf16.mxu0 0
    %4811 = vmatpush1.bf16.msra.mxu0 %v4772
    %4812 = vmatprep.subr.bf16.mxu0 0
    %4813 = vmatpush1.bf16.msra.mxu0 %v4773
    %4814 = vmatprep.subr.bf16.mxu0 0
    %4815 = vmatpush1.bf16.msra.mxu0 %v4774
    %4816 = vmatprep.subr.bf16.mxu0 0
    %4817 = vmatpush1.bf16.msra.mxu0 %v4775
    %4818 = vmatprep.subr.bf16.mxu0 0
    %4819 = vmatpush1.bf16.msra.mxu0 %v4776
    %4820 = vmatprep.subr.bf16.mxu0 0
    %4821 = vmatpush1.bf16.msra.mxu0 %v4777
    %4822 = vmatprep.subr.bf16.mxu0 0
    %4823 = vmatpush1.bf16.msra.mxu0 %v4778
    %4824 = vmatprep.subr.bf16.mxu0 0
    %4825 = vmatpush1.bf16.msra.mxu0 %v4779
    %4826 = vmatprep.subr.bf16.mxu0 0
    %4827 = vmatpush1.bf16.msra.mxu0 %v4780
    %4828 = vmatprep.subr.bf16.mxu0 0
    %4829 = vmatpush1.bf16.msra.mxu0 %v4781
    %4830 = vmatprep.mubr.bf16.mxu0 %v3971
    %4831 = vmatmul.mubr.bf16.gmra.mrb[0].mxu0 %v3970
    %v4832 = vpop.f32.mrb[0].mxu0
    %v4833 = vadd.f32 %v4696, %v4832
    %v4834 = vpop.f32.mrb[0].mxu0
    %v4835 = vpop.f32.mrb[0].mxu0
    %v4836 = vadd.f32 %v4699, %v4835
    %v4837 = vpop.f32.mrb[0].mxu0
    %4838 = vdwg.mxu0
    %vm4839 = vcmp.ge.f32.partialorder %v4833, 0.0
    %vm4840 = vcmp.ge.f32.partialorder %v4836, 0.0
    %v4841 = vmul.f32 %v4833, 0.2
    %v4842 = vmul.f32 %v4836, 0.2
    %v4843 = vsel %vm4839, %v4833, %v4841
    %v4844 = vsel %vm4840, %v4836, %v4842
    %v4845 = vadd.f32 %v4843, %v53
    %v4846 = vadd.f32 %v4844, %v54
    %v4847 = vsel %vm82, %v4845, -inf
    %4848 = vmax.xlane.f32.xlu0 %v4847
    %v4849 = vpop.xlane.xlu0 %4848
    %v4850 = vsel %vm82, %v4846, -inf
    %4851 = vmax.xlane.f32.xlu0 %v4850
    %v4852 = vpop.xlane.xlu0 %4851
    %v4853 = vsub.f32 %v4845, %v4849
    %v4854 = vsub.f32 %v4846, %v4852
    %v4855 = vmul.f32 %v4853, 1.442695
    %v4856 = vpow.pop %v4855
    %v4857 = vmul.f32 %v4854, 1.442695
    %v4858 = vpow.pop %v4857
    %v4859 = vmul.f32 %v4856, %v35
    %v4860 = vmul.f32 %v4858, %v36
    %v4861 = vsel %vm82, %v4859, 0.0
    %4862 = vadd.xlane.f32.xlu0 %v4861
    %v4863 = vpop.xlane.xlu0 %4862
    %v4864 = vsel %vm82, %v4860, 0.0
    %4865 = vadd.xlane.f32.xlu0 %v4864
    %v4866 = vpop.xlane.xlu0 %4865
    %v4867 = vmax.f32 %v4863, 1e-20
    %v4868 = vmax.f32 %v4866, 1e-20
    %v4869 = vrcp.pop %v4867
    %v4870 = vrcp.pop %v4868
    %v4871 = vpack.c.bf16 %v4860, %v4859
    %v4873 = vsel %vm82, %v4871, 0
    %4875 = vmatprep.subr.bf16.mxu0 0
    %4876 = vmatpush1.bf16.msra.mxu0 %v4621
    %4877 = vmatprep.subr.bf16.mxu0 0
    %4878 = vmatpush1.bf16.msra.mxu0 0
    %4879 = vmatprep.subr.bf16.mxu0 0
    %4880 = vmatpush1.bf16.msra.mxu0 0
    %4881 = vmatprep.subr.bf16.mxu0 0
    %4882 = vmatpush1.bf16.msra.mxu0 0
    %4883 = vmatprep.subr.bf16.mxu0 0
    %4884 = vmatpush1.bf16.msra.mxu0 0
    %4885 = vmatprep.subr.bf16.mxu0 0
    %4886 = vmatpush1.bf16.msra.mxu0 0
    %4887 = vmatprep.subr.bf16.mxu0 0
    %4888 = vmatpush1.bf16.msra.mxu0 0
    %4889 = vmatprep.subr.bf16.mxu0 0
    %4890 = vmatpush1.bf16.msra.mxu0 0
    %4891 = vmatprep.subr.bf16.mxu0 0
    %4892 = vmatpush1.bf16.msra.mxu0 0
    %4893 = vmatprep.subr.bf16.mxu0 0
    %4894 = vmatpush1.bf16.msra.mxu0 0
    %4895 = vmatprep.subr.bf16.mxu0 0
    %4896 = vmatpush1.bf16.msra.mxu0 0
    %4897 = vmatprep.subr.bf16.mxu0 0
    %4898 = vmatpush1.bf16.msra.mxu0 0
    %4899 = vmatprep.subr.bf16.mxu0 0
    %4900 = vmatpush1.bf16.msra.mxu0 0
    %4901 = vmatprep.subr.bf16.mxu0 0
    %4902 = vmatpush1.bf16.msra.mxu0 0
    %4903 = vmatprep.subr.bf16.mxu0 0
    %4904 = vmatpush1.bf16.msra.mxu0 0
    %4905 = vmatprep.subr.bf16.mxu0 0
    %4906 = vmatpush1.bf16.msra.mxu0 0
    %4907 = vmatprep.mubr.bf16.mxu0 0
    %4908 = vmatmul.mubr.bf16.gmra.mrb[0].mxu0 %v4873
    %v4909 = vpop.f32.mrb[0].mxu0
    %v4910 = vadd.f32 0.0, %v4909
    %v4911 = vpop.f32.mrb[0].mxu0
    %v4912 = vpop.f32.mrb[0].mxu0
    %v4913 = vadd.f32 0.0, %v4912
    %v4914 = vpop.f32.mrb[0].mxu0
    %4915 = vdwg.mxu0
    %v4916 = vmul.f32 %v4869, %v4910
    %v4917 = vmul.f32 %v4870, %v4913
    %v4918 = vld [vmem:[%s6 + $0x7] ss:$0 sm:$0xff]
    %v4919 = vadd.f32 %v4916, %v4918
    %v4920 = vadd.f32 %v4917, %v4918
    %s4921 = scalar_lea.vmem %s3, 512
    %v4922 = vld [vmem:[%s4921] sm:$0xf]
    %v4923 = vld [vmem:[%s4921 + $0x8] sm:$0xf]
    %v4924 = vld [vmem:[%s4921 + $0x10] sm:$0xf]
    %v4925 = vld [vmem:[%s4921 + $0x18] sm:$0xf]
    %v4926 = vld [vmem:[%s4921 + $0x20] sm:$0xf]
    %v4927 = vld [vmem:[%s4921 + $0x28] sm:$0xf]
    %v4928 = vld [vmem:[%s4921 + $0x30] sm:$0xf]
    %v4929 = vld [vmem:[%s4921 + $0x38] sm:$0xf]
    %v4930 = vld [vmem:[%s4921 + $0x40] sm:$0xf]
    %v4931 = vld [vmem:[%s4921 + $0x48] sm:$0xf]
    %v4932 = vld [vmem:[%s4921 + $0x50] sm:$0xf]
    %v4933 = vld [vmem:[%s4921 + $0x58] sm:$0xf]
    %v4934 = vld [vmem:[%s4921 + $0x60] sm:$0xf]
    %v4935 = vld [vmem:[%s4921 + $0x68] sm:$0xf]
    %v4936 = vld [vmem:[%s4921 + $0x70] sm:$0xf]
    %v4937 = vld [vmem:[%s4921 + $0x78] sm:$0xf]
    %v4938 = vld [vmem:[%s4921 + $0x80] sm:$0xf]
    %v4939 = vld [vmem:[%s4921 + $0x88] sm:$0xf]
    %v4940 = vld [vmem:[%s4921 + $0x90] sm:$0xf]
    %v4941 = vld [vmem:[%s4921 + $0x98] sm:$0xf]
    %v4942 = vld [vmem:[%s4921 + $0xa0] sm:$0xf]
    %v4943 = vld [vmem:[%s4921 + $0xa8] sm:$0xf]
    %v4944 = vld [vmem:[%s4921 + $0xb0] sm:$0xf]
    %v4945 = vld [vmem:[%s4921 + $0xb8] sm:$0xf]
    %v4946 = vld [vmem:[%s4921 + $0xc0] sm:$0xf]
    %v4947 = vld [vmem:[%s4921 + $0xc8] sm:$0xf]
    %v4948 = vld [vmem:[%s4921 + $0xd0] sm:$0xf]
    %v4949 = vld [vmem:[%s4921 + $0xd8] sm:$0xf]
    %v4950 = vld [vmem:[%s4921 + $0xe0] sm:$0xf]
    %v4951 = vld [vmem:[%s4921 + $0xe8] sm:$0xf]
    %v4952 = vld [vmem:[%s4921 + $0xf0] sm:$0xf]
    %v4953 = vld [vmem:[%s4921 + $0xf8] sm:$0xf]
    %v4986 = vunpack.c.l.b16 %v4922
    %v4987 = vunpack.c.l.b16 %v4923
    %v4988 = vunpack.c.l.b16 %v4924
    %v4989 = vunpack.c.l.b16 %v4925
    %v4990 = vunpack.c.l.b16 %v4926
    %v4991 = vunpack.c.l.b16 %v4927
    %v4992 = vunpack.c.l.b16 %v4928
    %v4993 = vunpack.c.l.b16 %v4929
    %v4994 = vunpack.c.l.b16 %v4930
    %v4995 = vunpack.c.l.b16 %v4931
    %v4996 = vunpack.c.l.b16 %v4932
    %v4997 = vunpack.c.l.b16 %v4933
    %v4998 = vunpack.c.l.b16 %v4934
    %v4999 = vunpack.c.l.b16 %v4935
    %v5000 = vunpack.c.l.b16 %v4936
    %v5001 = vunpack.c.l.b16 %v4937
    %v5002 = vunpack.c.l.b16 %v4938
    %v5003 = vunpack.c.l.b16 %v4939
    %v5004 = vunpack.c.l.b16 %v4940
    %v5005 = vunpack.c.l.b16 %v4941
    %v5006 = vunpack.c.l.b16 %v4942
    %v5007 = vunpack.c.l.b16 %v4943
    %v5008 = vunpack.c.l.b16 %v4944
    %v5009 = vunpack.c.l.b16 %v4945
    %v5010 = vunpack.c.l.b16 %v4946
    %v5011 = vunpack.c.l.b16 %v4947
    %v5012 = vunpack.c.l.b16 %v4948
    %v5013 = vunpack.c.l.b16 %v4949
    %v5014 = vunpack.c.l.b16 %v4950
    %v5015 = vunpack.c.l.b16 %v4951
    %v5016 = vunpack.c.l.b16 %v4952
    %v5017 = vunpack.c.l.b16 %v4953
    %v5018 = vpack.c.b16 %v4987, %v4986
    %v5019 = vpack.c.b16 %v4989, %v4988
    %v5020 = vpack.c.b16 %v4991, %v4990
    %v5021 = vpack.c.b16 %v4993, %v4992
    %v5022 = vpack.c.b16 %v4995, %v4994
    %v5023 = vpack.c.b16 %v4997, %v4996
    %v5024 = vpack.c.b16 %v4999, %v4998
    %v5025 = vpack.c.b16 %v5001, %v5000
    %v5026 = vpack.c.b16 %v5003, %v5002
    %v5027 = vpack.c.b16 %v5005, %v5004
    %v5028 = vpack.c.b16 %v5007, %v5006
    %v5029 = vpack.c.b16 %v5009, %v5008
    %v5030 = vpack.c.b16 %v5011, %v5010
    %v5031 = vpack.c.b16 %v5013, %v5012
    %v5032 = vpack.c.b16 %v5015, %v5014
    %v5033 = vpack.c.b16 %v5017, %v5016
    %5050 = vmatprep.subr.bf16.mxu0 0
    %5051 = vmatpush1.bf16.msra.mxu0 %v5018
    %5052 = vmatprep.subr.bf16.mxu0 0
    %5053 = vmatpush1.bf16.msra.mxu0 %v5019
    %5054 = vmatprep.subr.bf16.mxu0 0
    %5055 = vmatpush1.bf16.msra.mxu0 %v5020
    %5056 = vmatprep.subr.bf16.mxu0 0
    %5057 = vmatpush1.bf16.msra.mxu0 %v5021
    %5058 = vmatprep.subr.bf16.mxu0 0
    %5059 = vmatpush1.bf16.msra.mxu0 %v5022
    %5060 = vmatprep.subr.bf16.mxu0 0
    %5061 = vmatpush1.bf16.msra.mxu0 %v5023
    %5062 = vmatprep.subr.bf16.mxu0 0
    %5063 = vmatpush1.bf16.msra.mxu0 %v5024
    %5064 = vmatprep.subr.bf16.mxu0 0
    %5065 = vmatpush1.bf16.msra.mxu0 %v5025
    %5066 = vmatprep.subr.bf16.mxu0 0
    %5067 = vmatpush1.bf16.msra.mxu0 %v5026
    %5068 = vmatprep.subr.bf16.mxu0 0
    %5069 = vmatpush1.bf16.msra.mxu0 %v5027
    %5070 = vmatprep.subr.bf16.mxu0 0
    %5071 = vmatpush1.bf16.msra.mxu0 %v5028
    %5072 = vmatprep.subr.bf16.mxu0 0
    %5073 = vmatpush1.bf16.msra.mxu0 %v5029
    %5074 = vmatprep.subr.bf16.mxu0 0
    %5075 = vmatpush1.bf16.msra.mxu0 %v5030
    %5076 = vmatprep.subr.bf16.mxu0 0
    %5077 = vmatpush1.bf16.msra.mxu0 %v5031
    %5078 = vmatprep.subr.bf16.mxu0 0
    %5079 = vmatpush1.bf16.msra.mxu0 %v5032
    %5080 = vmatprep.subr.bf16.mxu0 0
    %5081 = vmatpush1.bf16.msra.mxu0 %v5033
    %5082 = vmatprep.mubr.bf16.mxu0 %v4143
    %5083 = vmatmul.mubr.bf16.gmra.mrb[0].mxu0 %v4142
    %v5084 = vpop.f32.mrb[0].mxu0
    %v5085 = vadd.f32 0.0, %v5084
    %v5086 = vpop.f32.mrb[0].mxu0
    %v5087 = vpop.f32.mrb[0].mxu0
    %v5088 = vadd.f32 0.0, %v5087
    %v5089 = vpop.f32.mrb[0].mxu0
    %5090 = vdwg.mxu0
    %v5091 = vpack.c.bf16 %v5088, %v5085
    %v5092 = vpack.c.bf16 %v3964, %v3962
    %v5093 = vpack.c.bf16 %v3965, %v3963
    %v5094 = vld [vmem:[%s4921 + $0x4] sm:$0xf]
    %v5095 = vld [vmem:[%s4921 + $0xc] sm:$0xf]
    %v5096 = vld [vmem:[%s4921 + $0x14] sm:$0xf]
    %v5097 = vld [vmem:[%s4921 + $0x1c] sm:$0xf]
    %v5098 = vld [vmem:[%s4921 + $0x24] sm:$0xf]
    %v5099 = vld [vmem:[%s4921 + $0x2c] sm:$0xf]
    %v5100 = vld [vmem:[%s4921 + $0x34] sm:$0xf]
    %v5101 = vld [vmem:[%s4921 + $0x3c] sm:$0xf]
    %v5102 = vld [vmem:[%s4921 + $0x44] sm:$0xf]
    %v5103 = vld [vmem:[%s4921 + $0x4c] sm:$0xf]
    %v5104 = vld [vmem:[%s4921 + $0x54] sm:$0xf]
    %v5105 = vld [vmem:[%s4921 + $0x5c] sm:$0xf]
    %v5106 = vld [vmem:[%s4921 + $0x64] sm:$0xf]
    %v5107 = vld [vmem:[%s4921 + $0x6c] sm:$0xf]
    %v5108 = vld [vmem:[%s4921 + $0x74] sm:$0xf]
    %v5109 = vld [vmem:[%s4921 + $0x7c] sm:$0xf]
    %v5110 = vld [vmem:[%s4921 + $0x84] sm:$0xf]
    %v5111 = vld [vmem:[%s4921 + $0x8c] sm:$0xf]
    %v5112 = vld [vmem:[%s4921 + $0x94] sm:$0xf]
    %v5113 = vld [vmem:[%s4921 + $0x9c] sm:$0xf]
    %v5114 = vld [vmem:[%s4921 + $0xa4] sm:$0xf]
    %v5115 = vld [vmem:[%s4921 + $0xac] sm:$0xf]
    %v5116 = vld [vmem:[%s4921 + $0xb4] sm:$0xf]
    %v5117 = vld [vmem:[%s4921 + $0xbc] sm:$0xf]
    %v5118 = vld [vmem:[%s4921 + $0xc4] sm:$0xf]
    %v5119 = vld [vmem:[%s4921 + $0xcc] sm:$0xf]
    %v5120 = vld [vmem:[%s4921 + $0xd4] sm:$0xf]
    %v5121 = vld [vmem:[%s4921 + $0xdc] sm:$0xf]
    %v5122 = vld [vmem:[%s4921 + $0xe4] sm:$0xf]
    %v5123 = vld [vmem:[%s4921 + $0xec] sm:$0xf]
    %v5124 = vld [vmem:[%s4921 + $0xf4] sm:$0xf]
    %v5125 = vld [vmem:[%s4921 + $0xfc] sm:$0xf]
    %v5126 = vmul.f32 %v5085, %v4179
    %v5127 = vmul.f32 %v5088, %v4181
    %v5128 = vpack.c.bf16 %v5127, %v5126
    %5130 = vrot.lane.b32.xlu0 %v5128, 64
    %v5131 = vpop.permute.xlu0 %5130
    %5133 = vmatprep.subr.bf16.mxu0 0
    %5134 = vmatpush1.bf16.msra.mxu0 %v5131
    %5135 = vmatprep.subr.bf16.mxu0 0
    %5136 = vmatpush1.bf16.msra.mxu0 0
    %5137 = vmatprep.subr.bf16.mxu0 0
    %5138 = vmatpush1.bf16.msra.mxu0 0
    %5139 = vmatprep.subr.bf16.mxu0 0
    %5140 = vmatpush1.bf16.msra.mxu0 0
    %5141 = vmatprep.subr.bf16.mxu0 0
    %5142 = vmatpush1.bf16.msra.mxu0 0
    %5143 = vmatprep.subr.bf16.mxu0 0
    %5144 = vmatpush1.bf16.msra.mxu0 0
    %5145 = vmatprep.subr.bf16.mxu0 0
    %5146 = vmatpush1.bf16.msra.mxu0 0
    %5147 = vmatprep.subr.bf16.mxu0 0
    %5148 = vmatpush1.bf16.msra.mxu0 0
    %5149 = vmatprep.subr.bf16.mxu0 0
    %5150 = vmatpush1.bf16.msra.mxu0 0
    %5151 = vmatprep.subr.bf16.mxu0 0
    %5152 = vmatpush1.bf16.msra.mxu0 0
    %5153 = vmatprep.subr.bf16.mxu0 0
    %5154 = vmatpush1.bf16.msra.mxu0 0
    %5155 = vmatprep.subr.bf16.mxu0 0
    %5156 = vmatpush1.bf16.msra.mxu0 0
    %5157 = vmatprep.subr.bf16.mxu0 0
    %5158 = vmatpush1.bf16.msra.mxu0 0
    %5159 = vmatprep.subr.bf16.mxu0 0
    %5160 = vmatpush1.bf16.msra.mxu0 0
    %5161 = vmatprep.subr.bf16.mxu0 0
    %5162 = vmatpush1.bf16.msra.mxu0 0
    %5163 = vmatprep.subr.bf16.mxu0 0
    %5164 = vmatpush1.bf16.msra.mxu0 0
    %5165 = vmatprep.mubr.bf16.mxu0 0
    %5166 = vmatmul.mubr.bf16.gmra.mrb[0].mxu0 %v494
    %v5167 = vpop.f32.mrb[0].mxu0
    %v5168 = vadd.f32 0.0, %v5167
    %v5169 = vpop.f32.mrb[0].mxu0
    %v5170 = vpop.f32.mrb[0].mxu0
    %v5171 = vadd.f32 0.0, %v5170
    %v5172 = vpop.f32.mrb[0].mxu0
    %5173 = vdwg.mxu0
    %v5206 = vunpack.c.l.b16 %v5094
    %v5207 = vunpack.c.l.b16 %v5095
    %v5208 = vunpack.c.l.b16 %v5096
    %v5209 = vunpack.c.l.b16 %v5097
    %v5210 = vunpack.c.l.b16 %v5098
    %v5211 = vunpack.c.l.b16 %v5099
    %v5212 = vunpack.c.l.b16 %v5100
    %v5213 = vunpack.c.l.b16 %v5101
    %v5214 = vunpack.c.l.b16 %v5102
    %v5215 = vunpack.c.l.b16 %v5103
    %v5216 = vunpack.c.l.b16 %v5104
    %v5217 = vunpack.c.l.b16 %v5105
    %v5218 = vunpack.c.l.b16 %v5106
    %v5219 = vunpack.c.l.b16 %v5107
    %v5220 = vunpack.c.l.b16 %v5108
    %v5221 = vunpack.c.l.b16 %v5109
    %v5222 = vunpack.c.l.b16 %v5110
    %v5223 = vunpack.c.l.b16 %v5111
    %v5224 = vunpack.c.l.b16 %v5112
    %v5225 = vunpack.c.l.b16 %v5113
    %v5226 = vunpack.c.l.b16 %v5114
    %v5227 = vunpack.c.l.b16 %v5115
    %v5228 = vunpack.c.l.b16 %v5116
    %v5229 = vunpack.c.l.b16 %v5117
    %v5230 = vunpack.c.l.b16 %v5118
    %v5231 = vunpack.c.l.b16 %v5119
    %v5232 = vunpack.c.l.b16 %v5120
    %v5233 = vunpack.c.l.b16 %v5121
    %v5234 = vunpack.c.l.b16 %v5122
    %v5235 = vunpack.c.l.b16 %v5123
    %v5236 = vunpack.c.l.b16 %v5124
    %v5237 = vunpack.c.l.b16 %v5125
    %v5238 = vpack.c.b16 %v5207, %v5206
    %v5239 = vpack.c.b16 %v5209, %v5208
    %v5240 = vpack.c.b16 %v5211, %v5210
    %v5241 = vpack.c.b16 %v5213, %v5212
    %v5242 = vpack.c.b16 %v5215, %v5214
    %v5243 = vpack.c.b16 %v5217, %v5216
    %v5244 = vpack.c.b16 %v5219, %v5218
    %v5245 = vpack.c.b16 %v5221, %v5220
    %v5246 = vpack.c.b16 %v5223, %v5222
    %v5247 = vpack.c.b16 %v5225, %v5224
    %v5248 = vpack.c.b16 %v5227, %v5226
    %v5249 = vpack.c.b16 %v5229, %v5228
    %v5250 = vpack.c.b16 %v5231, %v5230
    %v5251 = vpack.c.b16 %v5233, %v5232
    %v5252 = vpack.c.b16 %v5235, %v5234
    %v5253 = vpack.c.b16 %v5237, %v5236
    %5270 = vmatprep.subr.bf16.mxu0 0
    %5271 = vmatpush1.bf16.msra.mxu0 %v5238
    %5272 = vmatprep.subr.bf16.mxu0 0
    %5273 = vmatpush1.bf16.msra.mxu0 %v5239
    %5274 = vmatprep.subr.bf16.mxu0 0
    %5275 = vmatpush1.bf16.msra.mxu0 %v5240
    %5276 = vmatprep.subr.bf16.mxu0 0
    %5277 = vmatpush1.bf16.msra.mxu0 %v5241
    %5278 = vmatprep.subr.bf16.mxu0 0
    %5279 = vmatpush1.bf16.msra.mxu0 %v5242
    %5280 = vmatprep.subr.bf16.mxu0 0
    %5281 = vmatpush1.bf16.msra.mxu0 %v5243
    %5282 = vmatprep.subr.bf16.mxu0 0
    %5283 = vmatpush1.bf16.msra.mxu0 %v5244
    %5284 = vmatprep.subr.bf16.mxu0 0
    %5285 = vmatpush1.bf16.msra.mxu0 %v5245
    %5286 = vmatprep.subr.bf16.mxu0 0
    %5287 = vmatpush1.bf16.msra.mxu0 %v5246
    %5288 = vmatprep.subr.bf16.mxu0 0
    %5289 = vmatpush1.bf16.msra.mxu0 %v5247
    %5290 = vmatprep.subr.bf16.mxu0 0
    %5291 = vmatpush1.bf16.msra.mxu0 %v5248
    %5292 = vmatprep.subr.bf16.mxu0 0
    %5293 = vmatpush1.bf16.msra.mxu0 %v5249
    %5294 = vmatprep.subr.bf16.mxu0 0
    %5295 = vmatpush1.bf16.msra.mxu0 %v5250
    %5296 = vmatprep.subr.bf16.mxu0 0
    %5297 = vmatpush1.bf16.msra.mxu0 %v5251
    %5298 = vmatprep.subr.bf16.mxu0 0
    %5299 = vmatpush1.bf16.msra.mxu0 %v5252
    %5300 = vmatprep.subr.bf16.mxu0 0
    %5301 = vmatpush1.bf16.msra.mxu0 %v5253
    %5302 = vmatprep.mubr.bf16.mxu0 %v5093
    %5303 = vmatmul.mubr.bf16.gmra.mrb[0].mxu0 %v5092
    %v5304 = vpop.f32.mrb[0].mxu0
    %v5305 = vadd.f32 %v5168, %v5304
    %v5306 = vpop.f32.mrb[0].mxu0
    %v5307 = vpop.f32.mrb[0].mxu0
    %v5308 = vadd.f32 %v5171, %v5307
    %v5309 = vpop.f32.mrb[0].mxu0
    %5310 = vdwg.mxu0
    %vm5311 = vcmp.ge.f32.partialorder %v5305, 0.0
    %vm5312 = vcmp.ge.f32.partialorder %v5308, 0.0
    %v5313 = vmul.f32 %v5305, 0.2
    %v5314 = vmul.f32 %v5308, 0.2
    %v5315 = vsel %vm5311, %v5305, %v5313
    %v5316 = vsel %vm5312, %v5308, %v5314
    %v5317 = vadd.f32 %v5315, %v56
    %v5318 = vadd.f32 %v5316, %v57
    %v5319 = vsel %vm82, %v5317, -inf
    %5320 = vmax.xlane.f32.xlu0 %v5319
    %v5321 = vpop.xlane.xlu0 %5320
    %v5322 = vsel %vm82, %v5318, -inf
    %5323 = vmax.xlane.f32.xlu0 %v5322
    %v5324 = vpop.xlane.xlu0 %5323
    %v5325 = vsub.f32 %v5317, %v5321
    %v5326 = vsub.f32 %v5318, %v5324
    %v5327 = vmul.f32 %v5325, 1.442695
    %v5328 = vpow.pop %v5327
    %v5329 = vmul.f32 %v5326, 1.442695
    %v5330 = vpow.pop %v5329
    %v5331 = vmul.f32 %v5328, %v38
    %v5332 = vmul.f32 %v5330, %v39
    %v5333 = vsel %vm82, %v5331, 0.0
    %5334 = vadd.xlane.f32.xlu0 %v5333
    %v5335 = vpop.xlane.xlu0 %5334
    %v5336 = vsel %vm82, %v5332, 0.0
    %5337 = vadd.xlane.f32.xlu0 %v5336
    %v5338 = vpop.xlane.xlu0 %5337
    %v5339 = vmax.f32 %v5335, 1e-20
    %v5340 = vmax.f32 %v5338, 1e-20
    %v5341 = vrcp.pop %v5339
    %v5342 = vrcp.pop %v5340
    %v5343 = vpack.c.bf16 %v5332, %v5331
    %v5345 = vsel %vm82, %v5343, 0
    %5347 = vmatprep.subr.bf16.mxu0 0
    %5348 = vmatpush1.bf16.msra.mxu0 %v5091
    %5349 = vmatprep.subr.bf16.mxu0 0
    %5350 = vmatpush1.bf16.msra.mxu0 0
    %5351 = vmatprep.subr.bf16.mxu0 0
    %5352 = vmatpush1.bf16.msra.mxu0 0
    %5353 = vmatprep.subr.bf16.mxu0 0
    %5354 = vmatpush1.bf16.msra.mxu0 0
    %5355 = vmatprep.subr.bf16.mxu0 0
    %5356 = vmatpush1.bf16.msra.mxu0 0
    %5357 = vmatprep.subr.bf16.mxu0 0
    %5358 = vmatpush1.bf16.msra.mxu0 0
    %5359 = vmatprep.subr.bf16.mxu0 0
    %5360 = vmatpush1.bf16.msra.mxu0 0
    %5361 = vmatprep.subr.bf16.mxu0 0
    %5362 = vmatpush1.bf16.msra.mxu0 0
    %5363 = vmatprep.subr.bf16.mxu0 0
    %5364 = vmatpush1.bf16.msra.mxu0 0
    %5365 = vmatprep.subr.bf16.mxu0 0
    %5366 = vmatpush1.bf16.msra.mxu0 0
    %5367 = vmatprep.subr.bf16.mxu0 0
    %5368 = vmatpush1.bf16.msra.mxu0 0
    %5369 = vmatprep.subr.bf16.mxu0 0
    %5370 = vmatpush1.bf16.msra.mxu0 0
    %5371 = vmatprep.subr.bf16.mxu0 0
    %5372 = vmatpush1.bf16.msra.mxu0 0
    %5373 = vmatprep.subr.bf16.mxu0 0
    %5374 = vmatpush1.bf16.msra.mxu0 0
    %5375 = vmatprep.subr.bf16.mxu0 0
    %5376 = vmatpush1.bf16.msra.mxu0 0
    %5377 = vmatprep.subr.bf16.mxu0 0
    %5378 = vmatpush1.bf16.msra.mxu0 0
    %5379 = vmatprep.mubr.bf16.mxu0 0
    %5380 = vmatmul.mubr.bf16.gmra.mrb[0].mxu0 %v5345
    %v5381 = vpop.f32.mrb[0].mxu0
    %v5382 = vadd.f32 0.0, %v5381
    %v5383 = vpop.f32.mrb[0].mxu0
    %v5384 = vpop.f32.mrb[0].mxu0
    %v5385 = vadd.f32 0.0, %v5384
    %v5386 = vpop.f32.mrb[0].mxu0
    %5387 = vdwg.mxu0
    %v5388 = vmul.f32 %v5341, %v5382
    %v5389 = vmul.f32 %v5342, %v5385
    %v5390 = vld [vmem:[%s6 + $0x10] ss:$0 sm:$0xff]
    %v5391 = vadd.f32 %v5388, %v5390
    %v5392 = vadd.f32 %v5389, %v5390
    %s5393 = scalar_lea.vmem %s3, 768
    %v5394 = vld [vmem:[%s5393] sm:$0xf]
    %v5395 = vld [vmem:[%s5393 + $0x8] sm:$0xf]
    %v5396 = vld [vmem:[%s5393 + $0x10] sm:$0xf]
    %v5397 = vld [vmem:[%s5393 + $0x18] sm:$0xf]
    %v5398 = vld [vmem:[%s5393 + $0x20] sm:$0xf]
    %v5399 = vld [vmem:[%s5393 + $0x28] sm:$0xf]
    %v5400 = vld [vmem:[%s5393 + $0x30] sm:$0xf]
    %v5401 = vld [vmem:[%s5393 + $0x38] sm:$0xf]
    %v5402 = vld [vmem:[%s5393 + $0x40] sm:$0xf]
    %v5403 = vld [vmem:[%s5393 + $0x48] sm:$0xf]
    %v5404 = vld [vmem:[%s5393 + $0x50] sm:$0xf]
    %v5405 = vld [vmem:[%s5393 + $0x58] sm:$0xf]
    %v5406 = vld [vmem:[%s5393 + $0x60] sm:$0xf]
    %v5407 = vld [vmem:[%s5393 + $0x68] sm:$0xf]
    %v5408 = vld [vmem:[%s5393 + $0x70] sm:$0xf]
    %v5409 = vld [vmem:[%s5393 + $0x78] sm:$0xf]
    %v5410 = vld [vmem:[%s5393 + $0x80] sm:$0xf]
    %v5411 = vld [vmem:[%s5393 + $0x88] sm:$0xf]
    %v5412 = vld [vmem:[%s5393 + $0x90] sm:$0xf]
    %v5413 = vld [vmem:[%s5393 + $0x98] sm:$0xf]
    %v5414 = vld [vmem:[%s5393 + $0xa0] sm:$0xf]
    %v5415 = vld [vmem:[%s5393 + $0xa8] sm:$0xf]
    %v5416 = vld [vmem:[%s5393 + $0xb0] sm:$0xf]
    %v5417 = vld [vmem:[%s5393 + $0xb8] sm:$0xf]
    %v5418 = vld [vmem:[%s5393 + $0xc0] sm:$0xf]
    %v5419 = vld [vmem:[%s5393 + $0xc8] sm:$0xf]
    %v5420 = vld [vmem:[%s5393 + $0xd0] sm:$0xf]
    %v5421 = vld [vmem:[%s5393 + $0xd8] sm:$0xf]
    %v5422 = vld [vmem:[%s5393 + $0xe0] sm:$0xf]
    %v5423 = vld [vmem:[%s5393 + $0xe8] sm:$0xf]
    %v5424 = vld [vmem:[%s5393 + $0xf0] sm:$0xf]
    %v5425 = vld [vmem:[%s5393 + $0xf8] sm:$0xf]
    %v5458 = vunpack.c.l.b16 %v5394
    %v5459 = vunpack.c.l.b16 %v5395
    %v5460 = vunpack.c.l.b16 %v5396
    %v5461 = vunpack.c.l.b16 %v5397
    %v5462 = vunpack.c.l.b16 %v5398
    %v5463 = vunpack.c.l.b16 %v5399
    %v5464 = vunpack.c.l.b16 %v5400
    %v5465 = vunpack.c.l.b16 %v5401
    %v5466 = vunpack.c.l.b16 %v5402
    %v5467 = vunpack.c.l.b16 %v5403
    %v5468 = vunpack.c.l.b16 %v5404
    %v5469 = vunpack.c.l.b16 %v5405
    %v5470 = vunpack.c.l.b16 %v5406
    %v5471 = vunpack.c.l.b16 %v5407
    %v5472 = vunpack.c.l.b16 %v5408
    %v5473 = vunpack.c.l.b16 %v5409
    %v5474 = vunpack.c.l.b16 %v5410
    %v5475 = vunpack.c.l.b16 %v5411
    %v5476 = vunpack.c.l.b16 %v5412
    %v5477 = vunpack.c.l.b16 %v5413
    %v5478 = vunpack.c.l.b16 %v5414
    %v5479 = vunpack.c.l.b16 %v5415
    %v5480 = vunpack.c.l.b16 %v5416
    %v5481 = vunpack.c.l.b16 %v5417
    %v5482 = vunpack.c.l.b16 %v5418
    %v5483 = vunpack.c.l.b16 %v5419
    %v5484 = vunpack.c.l.b16 %v5420
    %v5485 = vunpack.c.l.b16 %v5421
    %v5486 = vunpack.c.l.b16 %v5422
    %v5487 = vunpack.c.l.b16 %v5423
    %v5488 = vunpack.c.l.b16 %v5424
    %v5489 = vunpack.c.l.b16 %v5425
    %v5490 = vpack.c.b16 %v5459, %v5458
    %v5491 = vpack.c.b16 %v5461, %v5460
    %v5492 = vpack.c.b16 %v5463, %v5462
    %v5493 = vpack.c.b16 %v5465, %v5464
    %v5494 = vpack.c.b16 %v5467, %v5466
    %v5495 = vpack.c.b16 %v5469, %v5468
    %v5496 = vpack.c.b16 %v5471, %v5470
    %v5497 = vpack.c.b16 %v5473, %v5472
    %v5498 = vpack.c.b16 %v5475, %v5474
    %v5499 = vpack.c.b16 %v5477, %v5476
    %v5500 = vpack.c.b16 %v5479, %v5478
    %v5501 = vpack.c.b16 %v5481, %v5480
    %v5502 = vpack.c.b16 %v5483, %v5482
    %v5503 = vpack.c.b16 %v5485, %v5484
    %v5504 = vpack.c.b16 %v5487, %v5486
    %v5505 = vpack.c.b16 %v5489, %v5488
    %5522 = vmatprep.subr.bf16.mxu0 0
    %5523 = vmatpush1.bf16.msra.mxu0 %v5490
    %5524 = vmatprep.subr.bf16.mxu0 0
    %5525 = vmatpush1.bf16.msra.mxu0 %v5491
    %5526 = vmatprep.subr.bf16.mxu0 0
    %5527 = vmatpush1.bf16.msra.mxu0 %v5492
    %5528 = vmatprep.subr.bf16.mxu0 0
    %5529 = vmatpush1.bf16.msra.mxu0 %v5493
    %5530 = vmatprep.subr.bf16.mxu0 0
    %5531 = vmatpush1.bf16.msra.mxu0 %v5494
    %5532 = vmatprep.subr.bf16.mxu0 0
    %5533 = vmatpush1.bf16.msra.mxu0 %v5495
    %5534 = vmatprep.subr.bf16.mxu0 0
    %5535 = vmatpush1.bf16.msra.mxu0 %v5496
    %5536 = vmatprep.subr.bf16.mxu0 0
    %5537 = vmatpush1.bf16.msra.mxu0 %v5497
    %5538 = vmatprep.subr.bf16.mxu0 0
    %5539 = vmatpush1.bf16.msra.mxu0 %v5498
    %5540 = vmatprep.subr.bf16.mxu0 0
    %5541 = vmatpush1.bf16.msra.mxu0 %v5499
    %5542 = vmatprep.subr.bf16.mxu0 0
    %5543 = vmatpush1.bf16.msra.mxu0 %v5500
    %5544 = vmatprep.subr.bf16.mxu0 0
    %5545 = vmatpush1.bf16.msra.mxu0 %v5501
    %5546 = vmatprep.subr.bf16.mxu0 0
    %5547 = vmatpush1.bf16.msra.mxu0 %v5502
    %5548 = vmatprep.subr.bf16.mxu0 0
    %5549 = vmatpush1.bf16.msra.mxu0 %v5503
    %5550 = vmatprep.subr.bf16.mxu0 0
    %5551 = vmatpush1.bf16.msra.mxu0 %v5504
    %5552 = vmatprep.subr.bf16.mxu0 0
    %5553 = vmatpush1.bf16.msra.mxu0 %v5505
    %5554 = vmatprep.mubr.bf16.mxu0 %v5093
    %5555 = vmatmul.mubr.bf16.gmra.mrb[0].mxu0 %v5092
    %v5556 = vpop.f32.mrb[0].mxu0
    %v5557 = vadd.f32 0.0, %v5556
    %v5558 = vpop.f32.mrb[0].mxu0
    %v5559 = vpop.f32.mrb[0].mxu0
    %v5560 = vadd.f32 0.0, %v5559
    %v5561 = vpop.f32.mrb[0].mxu0
    %5562 = vdwg.mxu0
    %v5563 = vpack.c.bf16 %v5560, %v5557
    %v5564 = vld [vmem:[%s5393 + $0x4] sm:$0xf]
    %v5565 = vld [vmem:[%s5393 + $0xc] sm:$0xf]
    %v5566 = vld [vmem:[%s5393 + $0x14] sm:$0xf]
    %v5567 = vld [vmem:[%s5393 + $0x1c] sm:$0xf]
    %v5568 = vld [vmem:[%s5393 + $0x24] sm:$0xf]
    %v5569 = vld [vmem:[%s5393 + $0x2c] sm:$0xf]
    %v5570 = vld [vmem:[%s5393 + $0x34] sm:$0xf]
    %v5571 = vld [vmem:[%s5393 + $0x3c] sm:$0xf]
    %v5572 = vld [vmem:[%s5393 + $0x44] sm:$0xf]
    %v5573 = vld [vmem:[%s5393 + $0x4c] sm:$0xf]
    %v5574 = vld [vmem:[%s5393 + $0x54] sm:$0xf]
    %v5575 = vld [vmem:[%s5393 + $0x5c] sm:$0xf]
    %v5576 = vld [vmem:[%s5393 + $0x64] sm:$0xf]
    %v5577 = vld [vmem:[%s5393 + $0x6c] sm:$0xf]
    %v5578 = vld [vmem:[%s5393 + $0x74] sm:$0xf]
    %v5579 = vld [vmem:[%s5393 + $0x7c] sm:$0xf]
    %v5580 = vld [vmem:[%s5393 + $0x84] sm:$0xf]
    %v5581 = vld [vmem:[%s5393 + $0x8c] sm:$0xf]
    %v5582 = vld [vmem:[%s5393 + $0x94] sm:$0xf]
    %v5583 = vld [vmem:[%s5393 + $0x9c] sm:$0xf]
    %v5584 = vld [vmem:[%s5393 + $0xa4] sm:$0xf]
    %v5585 = vld [vmem:[%s5393 + $0xac] sm:$0xf]
    %v5586 = vld [vmem:[%s5393 + $0xb4] sm:$0xf]
    %v5587 = vld [vmem:[%s5393 + $0xbc] sm:$0xf]
    %v5588 = vld [vmem:[%s5393 + $0xc4] sm:$0xf]
    %v5589 = vld [vmem:[%s5393 + $0xcc] sm:$0xf]
    %v5590 = vld [vmem:[%s5393 + $0xd4] sm:$0xf]
    %v5591 = vld [vmem:[%s5393 + $0xdc] sm:$0xf]
    %v5592 = vld [vmem:[%s5393 + $0xe4] sm:$0xf]
    %v5593 = vld [vmem:[%s5393 + $0xec] sm:$0xf]
    %v5594 = vld [vmem:[%s5393 + $0xf4] sm:$0xf]
    %v5595 = vld [vmem:[%s5393 + $0xfc] sm:$0xf]
    %v5596 = vmul.f32 %v5557, %v4179
    %v5597 = vmul.f32 %v5560, %v4181
    %v5598 = vpack.c.bf16 %v5597, %v5596
    %5600 = vrot.lane.b32.xlu0 %v5598, 64
    %v5601 = vpop.permute.xlu0 %5600
    %5603 = vmatprep.subr.bf16.mxu0 0
    %5604 = vmatpush1.bf16.msra.mxu0 %v5601
    %5605 = vmatprep.subr.bf16.mxu0 0
    %5606 = vmatpush1.bf16.msra.mxu0 0
    %5607 = vmatprep.subr.bf16.mxu0 0
    %5608 = vmatpush1.bf16.msra.mxu0 0
    %5609 = vmatprep.subr.bf16.mxu0 0
    %5610 = vmatpush1.bf16.msra.mxu0 0
    %5611 = vmatprep.subr.bf16.mxu0 0
    %5612 = vmatpush1.bf16.msra.mxu0 0
    %5613 = vmatprep.subr.bf16.mxu0 0
    %5614 = vmatpush1.bf16.msra.mxu0 0
    %5615 = vmatprep.subr.bf16.mxu0 0
    %5616 = vmatpush1.bf16.msra.mxu0 0
    %5617 = vmatprep.subr.bf16.mxu0 0
    %5618 = vmatpush1.bf16.msra.mxu0 0
    %5619 = vmatprep.subr.bf16.mxu0 0
    %5620 = vmatpush1.bf16.msra.mxu0 0
    %5621 = vmatprep.subr.bf16.mxu0 0
    %5622 = vmatpush1.bf16.msra.mxu0 0
    %5623 = vmatprep.subr.bf16.mxu0 0
    %5624 = vmatpush1.bf16.msra.mxu0 0
    %5625 = vmatprep.subr.bf16.mxu0 0
    %5626 = vmatpush1.bf16.msra.mxu0 0
    %5627 = vmatprep.subr.bf16.mxu0 0
    %5628 = vmatpush1.bf16.msra.mxu0 0
    %5629 = vmatprep.subr.bf16.mxu0 0
    %5630 = vmatpush1.bf16.msra.mxu0 0
    %5631 = vmatprep.subr.bf16.mxu0 0
    %5632 = vmatpush1.bf16.msra.mxu0 0
    %5633 = vmatprep.subr.bf16.mxu0 0
    %5634 = vmatpush1.bf16.msra.mxu0 0
    %5635 = vmatprep.mubr.bf16.mxu0 0
    %5636 = vmatmul.mubr.bf16.gmra.mrb[0].mxu0 %v494
    %v5637 = vpop.f32.mrb[0].mxu0
    %v5638 = vadd.f32 0.0, %v5637
    %v5639 = vpop.f32.mrb[0].mxu0
    %v5640 = vpop.f32.mrb[0].mxu0
    %v5641 = vadd.f32 0.0, %v5640
    %v5642 = vpop.f32.mrb[0].mxu0
    %5643 = vdwg.mxu0
    %v5676 = vunpack.c.l.b16 %v5564
    %v5677 = vunpack.c.l.b16 %v5565
    %v5678 = vunpack.c.l.b16 %v5566
    %v5679 = vunpack.c.l.b16 %v5567
    %v5680 = vunpack.c.l.b16 %v5568
    %v5681 = vunpack.c.l.b16 %v5569
    %v5682 = vunpack.c.l.b16 %v5570
    %v5683 = vunpack.c.l.b16 %v5571
    %v5684 = vunpack.c.l.b16 %v5572
    %v5685 = vunpack.c.l.b16 %v5573
    %v5686 = vunpack.c.l.b16 %v5574
    %v5687 = vunpack.c.l.b16 %v5575
    %v5688 = vunpack.c.l.b16 %v5576
    %v5689 = vunpack.c.l.b16 %v5577
    %v5690 = vunpack.c.l.b16 %v5578
    %v5691 = vunpack.c.l.b16 %v5579
    %v5692 = vunpack.c.l.b16 %v5580
    %v5693 = vunpack.c.l.b16 %v5581
    %v5694 = vunpack.c.l.b16 %v5582
    %v5695 = vunpack.c.l.b16 %v5583
    %v5696 = vunpack.c.l.b16 %v5584
    %v5697 = vunpack.c.l.b16 %v5585
    %v5698 = vunpack.c.l.b16 %v5586
    %v5699 = vunpack.c.l.b16 %v5587
    %v5700 = vunpack.c.l.b16 %v5588
    %v5701 = vunpack.c.l.b16 %v5589
    %v5702 = vunpack.c.l.b16 %v5590
    %v5703 = vunpack.c.l.b16 %v5591
    %v5704 = vunpack.c.l.b16 %v5592
    %v5705 = vunpack.c.l.b16 %v5593
    %v5706 = vunpack.c.l.b16 %v5594
    %v5707 = vunpack.c.l.b16 %v5595
    %v5708 = vpack.c.b16 %v5677, %v5676
    %v5709 = vpack.c.b16 %v5679, %v5678
    %v5710 = vpack.c.b16 %v5681, %v5680
    %v5711 = vpack.c.b16 %v5683, %v5682
    %v5712 = vpack.c.b16 %v5685, %v5684
    %v5713 = vpack.c.b16 %v5687, %v5686
    %v5714 = vpack.c.b16 %v5689, %v5688
    %v5715 = vpack.c.b16 %v5691, %v5690
    %v5716 = vpack.c.b16 %v5693, %v5692
    %v5717 = vpack.c.b16 %v5695, %v5694
    %v5718 = vpack.c.b16 %v5697, %v5696
    %v5719 = vpack.c.b16 %v5699, %v5698
    %v5720 = vpack.c.b16 %v5701, %v5700
    %v5721 = vpack.c.b16 %v5703, %v5702
    %v5722 = vpack.c.b16 %v5705, %v5704
    %v5723 = vpack.c.b16 %v5707, %v5706
    %5740 = vmatprep.subr.bf16.mxu0 0
    %5741 = vmatpush1.bf16.msra.mxu0 %v5708
    %5742 = vmatprep.subr.bf16.mxu0 0
    %5743 = vmatpush1.bf16.msra.mxu0 %v5709
    %5744 = vmatprep.subr.bf16.mxu0 0
    %5745 = vmatpush1.bf16.msra.mxu0 %v5710
    %5746 = vmatprep.subr.bf16.mxu0 0
    %5747 = vmatpush1.bf16.msra.mxu0 %v5711
    %5748 = vmatprep.subr.bf16.mxu0 0
    %5749 = vmatpush1.bf16.msra.mxu0 %v5712
    %5750 = vmatprep.subr.bf16.mxu0 0
    %5751 = vmatpush1.bf16.msra.mxu0 %v5713
    %5752 = vmatprep.subr.bf16.mxu0 0
    %5753 = vmatpush1.bf16.msra.mxu0 %v5714
    %5754 = vmatprep.subr.bf16.mxu0 0
    %5755 = vmatpush1.bf16.msra.mxu0 %v5715
    %5756 = vmatprep.subr.bf16.mxu0 0
    %5757 = vmatpush1.bf16.msra.mxu0 %v5716
    %5758 = vmatprep.subr.bf16.mxu0 0
    %5759 = vmatpush1.bf16.msra.mxu0 %v5717
    %5760 = vmatprep.subr.bf16.mxu0 0
    %5761 = vmatpush1.bf16.msra.mxu0 %v5718
    %5762 = vmatprep.subr.bf16.mxu0 0
    %5763 = vmatpush1.bf16.msra.mxu0 %v5719
    %5764 = vmatprep.subr.bf16.mxu0 0
    %5765 = vmatpush1.bf16.msra.mxu0 %v5720
    %5766 = vmatprep.subr.bf16.mxu0 0
    %5767 = vmatpush1.bf16.msra.mxu0 %v5721
    %5768 = vmatprep.subr.bf16.mxu0 0
    %5769 = vmatpush1.bf16.msra.mxu0 %v5722
    %5770 = vmatprep.subr.bf16.mxu0 0
    %5771 = vmatpush1.bf16.msra.mxu0 %v5723
    %5772 = vmatprep.mubr.bf16.mxu0 %v4143
    %5773 = vmatmul.mubr.bf16.gmra.mrb[0].mxu0 %v4142
    %v5774 = vpop.f32.mrb[0].mxu0
    %v5775 = vadd.f32 %v5638, %v5774
    %v5776 = vpop.f32.mrb[0].mxu0
    %v5777 = vpop.f32.mrb[0].mxu0
    %v5778 = vadd.f32 %v5641, %v5777
    %v5779 = vpop.f32.mrb[0].mxu0
    %5780 = vdwg.mxu0
    %vm5781 = vcmp.ge.f32.partialorder %v5775, 0.0
    %vm5782 = vcmp.ge.f32.partialorder %v5778, 0.0
    %v5783 = vmul.f32 %v5775, 0.2
    %v5784 = vmul.f32 %v5778, 0.2
    %v5785 = vsel %vm5781, %v5775, %v5783
    %v5786 = vsel %vm5782, %v5778, %v5784
    %v5787 = vadd.f32 %v5785, %v59
    %v5788 = vadd.f32 %v5786, %v60
    %v5789 = vsel %vm82, %v5787, -inf
    %5790 = vmax.xlane.f32.xlu0 %v5789
    %v5791 = vpop.xlane.xlu0 %5790
    %v5792 = vsel %vm82, %v5788, -inf
    %5793 = vmax.xlane.f32.xlu0 %v5792
    %v5794 = vpop.xlane.xlu0 %5793
    %v5795 = vsub.f32 %v5787, %v5791
    %v5796 = vsub.f32 %v5788, %v5794
    %v5797 = vmul.f32 %v5795, 1.442695
    %v5798 = vpow.pop %v5797
    %v5799 = vmul.f32 %v5796, 1.442695
    %v5800 = vpow.pop %v5799
    %v5801 = vmul.f32 %v5798, %v41
    %v5802 = vmul.f32 %v5800, %v42
    %v5803 = vsel %vm82, %v5801, 0.0
    %5804 = vadd.xlane.f32.xlu0 %v5803
    %v5805 = vpop.xlane.xlu0 %5804
    %v5806 = vsel %vm82, %v5802, 0.0
    %5807 = vadd.xlane.f32.xlu0 %v5806
    %v5808 = vpop.xlane.xlu0 %5807
    %v5809 = vmax.f32 %v5805, 1e-20
    %v5810 = vmax.f32 %v5808, 1e-20
    %v5811 = vrcp.pop %v5809
    %v5812 = vrcp.pop %v5810
    %v5813 = vpack.c.bf16 %v5802, %v5801
    %v5815 = vsel %vm82, %v5813, 0
    %5817 = vmatprep.subr.bf16.mxu0 0
    %5818 = vmatpush1.bf16.msra.mxu0 %v5563
    %5819 = vmatprep.subr.bf16.mxu0 0
    %5820 = vmatpush1.bf16.msra.mxu0 0
    %5821 = vmatprep.subr.bf16.mxu0 0
    %5822 = vmatpush1.bf16.msra.mxu0 0
    %5823 = vmatprep.subr.bf16.mxu0 0
    %5824 = vmatpush1.bf16.msra.mxu0 0
    %5825 = vmatprep.subr.bf16.mxu0 0
    %5826 = vmatpush1.bf16.msra.mxu0 0
    %5827 = vmatprep.subr.bf16.mxu0 0
    %5828 = vmatpush1.bf16.msra.mxu0 0
    %5829 = vmatprep.subr.bf16.mxu0 0
    %5830 = vmatpush1.bf16.msra.mxu0 0
    %5831 = vmatprep.subr.bf16.mxu0 0
    %5832 = vmatpush1.bf16.msra.mxu0 0
    %5833 = vmatprep.subr.bf16.mxu0 0
    %5834 = vmatpush1.bf16.msra.mxu0 0
    %5835 = vmatprep.subr.bf16.mxu0 0
    %5836 = vmatpush1.bf16.msra.mxu0 0
    %5837 = vmatprep.subr.bf16.mxu0 0
    %5838 = vmatpush1.bf16.msra.mxu0 0
    %5839 = vmatprep.subr.bf16.mxu0 0
    %5840 = vmatpush1.bf16.msra.mxu0 0
    %5841 = vmatprep.subr.bf16.mxu0 0
    %5842 = vmatpush1.bf16.msra.mxu0 0
    %5843 = vmatprep.subr.bf16.mxu0 0
    %5844 = vmatpush1.bf16.msra.mxu0 0
    %5845 = vmatprep.subr.bf16.mxu0 0
    %5846 = vmatpush1.bf16.msra.mxu0 0
    %5847 = vmatprep.subr.bf16.mxu0 0
    %5848 = vmatpush1.bf16.msra.mxu0 0
    %5849 = vmatprep.mubr.bf16.mxu0 0
    %5850 = vmatmul.mubr.bf16.gmra.mrb[0].mxu0 %v5815
    %v5851 = vpop.f32.mrb[0].mxu0
    %v5852 = vadd.f32 0.0, %v5851
    %v5853 = vpop.f32.mrb[0].mxu0
    %v5854 = vpop.f32.mrb[0].mxu0
    %v5855 = vadd.f32 0.0, %v5854
    %v5856 = vpop.f32.mrb[0].mxu0
    %5857 = vdwg.mxu0
    %v5858 = vmul.f32 %v5811, %v5852
    %v5859 = vmul.f32 %v5812, %v5855
    %v5860 = vld [vmem:[%s6 + $0x11] ss:$0 sm:$0xff]
    %v5861 = vadd.f32 %v5858, %v5860
    %v5862 = vadd.f32 %v5859, %v5860
    %v5863 = vadd.f32 %v4449, %v5861
    %v5864 = vadd.f32 %v4450, %v5862
    %s5865 = scalar_lea.vmem %s3, 1024
    %v5866 = vld [vmem:[%s5865] sm:$0xf]
    %v5867 = vld [vmem:[%s5865 + $0x8] sm:$0xf]
    %v5868 = vld [vmem:[%s5865 + $0x10] sm:$0xf]
    %v5869 = vld [vmem:[%s5865 + $0x18] sm:$0xf]
    %v5870 = vld [vmem:[%s5865 + $0x20] sm:$0xf]
    %v5871 = vld [vmem:[%s5865 + $0x28] sm:$0xf]
    %v5872 = vld [vmem:[%s5865 + $0x30] sm:$0xf]
    %v5873 = vld [vmem:[%s5865 + $0x38] sm:$0xf]
    %v5874 = vld [vmem:[%s5865 + $0x40] sm:$0xf]
    %v5875 = vld [vmem:[%s5865 + $0x48] sm:$0xf]
    %v5876 = vld [vmem:[%s5865 + $0x50] sm:$0xf]
    %v5877 = vld [vmem:[%s5865 + $0x58] sm:$0xf]
    %v5878 = vld [vmem:[%s5865 + $0x60] sm:$0xf]
    %v5879 = vld [vmem:[%s5865 + $0x68] sm:$0xf]
    %v5880 = vld [vmem:[%s5865 + $0x70] sm:$0xf]
    %v5881 = vld [vmem:[%s5865 + $0x78] sm:$0xf]
    %v5882 = vld [vmem:[%s5865 + $0x80] sm:$0xf]
    %v5883 = vld [vmem:[%s5865 + $0x88] sm:$0xf]
    %v5884 = vld [vmem:[%s5865 + $0x90] sm:$0xf]
    %v5885 = vld [vmem:[%s5865 + $0x98] sm:$0xf]
    %v5886 = vld [vmem:[%s5865 + $0xa0] sm:$0xf]
    %v5887 = vld [vmem:[%s5865 + $0xa8] sm:$0xf]
    %v5888 = vld [vmem:[%s5865 + $0xb0] sm:$0xf]
    %v5889 = vld [vmem:[%s5865 + $0xb8] sm:$0xf]
    %v5890 = vld [vmem:[%s5865 + $0xc0] sm:$0xf]
    %v5891 = vld [vmem:[%s5865 + $0xc8] sm:$0xf]
    %v5892 = vld [vmem:[%s5865 + $0xd0] sm:$0xf]
    %v5893 = vld [vmem:[%s5865 + $0xd8] sm:$0xf]
    %v5894 = vld [vmem:[%s5865 + $0xe0] sm:$0xf]
    %v5895 = vld [vmem:[%s5865 + $0xe8] sm:$0xf]
    %v5896 = vld [vmem:[%s5865 + $0xf0] sm:$0xf]
    %v5897 = vld [vmem:[%s5865 + $0xf8] sm:$0xf]
    %v5930 = vunpack.c.l.b16 %v5866
    %v5931 = vunpack.c.l.b16 %v5867
    %v5932 = vunpack.c.l.b16 %v5868
    %v5933 = vunpack.c.l.b16 %v5869
    %v5934 = vunpack.c.l.b16 %v5870
    %v5935 = vunpack.c.l.b16 %v5871
    %v5936 = vunpack.c.l.b16 %v5872
    %v5937 = vunpack.c.l.b16 %v5873
    %v5938 = vunpack.c.l.b16 %v5874
    %v5939 = vunpack.c.l.b16 %v5875
    %v5940 = vunpack.c.l.b16 %v5876
    %v5941 = vunpack.c.l.b16 %v5877
    %v5942 = vunpack.c.l.b16 %v5878
    %v5943 = vunpack.c.l.b16 %v5879
    %v5944 = vunpack.c.l.b16 %v5880
    %v5945 = vunpack.c.l.b16 %v5881
    %v5946 = vunpack.c.l.b16 %v5882
    %v5947 = vunpack.c.l.b16 %v5883
    %v5948 = vunpack.c.l.b16 %v5884
    %v5949 = vunpack.c.l.b16 %v5885
    %v5950 = vunpack.c.l.b16 %v5886
    %v5951 = vunpack.c.l.b16 %v5887
    %v5952 = vunpack.c.l.b16 %v5888
    %v5953 = vunpack.c.l.b16 %v5889
    %v5954 = vunpack.c.l.b16 %v5890
    %v5955 = vunpack.c.l.b16 %v5891
    %v5956 = vunpack.c.l.b16 %v5892
    %v5957 = vunpack.c.l.b16 %v5893
    %v5958 = vunpack.c.l.b16 %v5894
    %v5959 = vunpack.c.l.b16 %v5895
    %v5960 = vunpack.c.l.b16 %v5896
    %v5961 = vunpack.c.l.b16 %v5897
    %v5962 = vpack.c.b16 %v5931, %v5930
    %v5963 = vpack.c.b16 %v5933, %v5932
    %v5964 = vpack.c.b16 %v5935, %v5934
    %v5965 = vpack.c.b16 %v5937, %v5936
    %v5966 = vpack.c.b16 %v5939, %v5938
    %v5967 = vpack.c.b16 %v5941, %v5940
    %v5968 = vpack.c.b16 %v5943, %v5942
    %v5969 = vpack.c.b16 %v5945, %v5944
    %v5970 = vpack.c.b16 %v5947, %v5946
    %v5971 = vpack.c.b16 %v5949, %v5948
    %v5972 = vpack.c.b16 %v5951, %v5950
    %v5973 = vpack.c.b16 %v5953, %v5952
    %v5974 = vpack.c.b16 %v5955, %v5954
    %v5975 = vpack.c.b16 %v5957, %v5956
    %v5976 = vpack.c.b16 %v5959, %v5958
    %v5977 = vpack.c.b16 %v5961, %v5960
    %5994 = vmatprep.subr.bf16.mxu0 0
    %5995 = vmatpush1.bf16.msra.mxu0 %v5962
    %5996 = vmatprep.subr.bf16.mxu0 0
    %5997 = vmatpush1.bf16.msra.mxu0 %v5963
    %5998 = vmatprep.subr.bf16.mxu0 0
    %5999 = vmatpush1.bf16.msra.mxu0 %v5964
    %6000 = vmatprep.subr.bf16.mxu0 0
    %6001 = vmatpush1.bf16.msra.mxu0 %v5965
    %6002 = vmatprep.subr.bf16.mxu0 0
    %6003 = vmatpush1.bf16.msra.mxu0 %v5966
    %6004 = vmatprep.subr.bf16.mxu0 0
    %6005 = vmatpush1.bf16.msra.mxu0 %v5967
    %6006 = vmatprep.subr.bf16.mxu0 0
    %6007 = vmatpush1.bf16.msra.mxu0 %v5968
    %6008 = vmatprep.subr.bf16.mxu0 0
    %6009 = vmatpush1.bf16.msra.mxu0 %v5969
    %6010 = vmatprep.subr.bf16.mxu0 0
    %6011 = vmatpush1.bf16.msra.mxu0 %v5970
    %6012 = vmatprep.subr.bf16.mxu0 0
    %6013 = vmatpush1.bf16.msra.mxu0 %v5971
    %6014 = vmatprep.subr.bf16.mxu0 0
    %6015 = vmatpush1.bf16.msra.mxu0 %v5972
    %6016 = vmatprep.subr.bf16.mxu0 0
    %6017 = vmatpush1.bf16.msra.mxu0 %v5973
    %6018 = vmatprep.subr.bf16.mxu0 0
    %6019 = vmatpush1.bf16.msra.mxu0 %v5974
    %6020 = vmatprep.subr.bf16.mxu0 0
    %6021 = vmatpush1.bf16.msra.mxu0 %v5975
    %6022 = vmatprep.subr.bf16.mxu0 0
    %6023 = vmatpush1.bf16.msra.mxu0 %v5976
    %6024 = vmatprep.subr.bf16.mxu0 0
    %6025 = vmatpush1.bf16.msra.mxu0 %v5977
    %6026 = vmatprep.mubr.bf16.mxu0 %v4143
    %6027 = vmatmul.mubr.bf16.gmra.mrb[0].mxu0 %v4142
    %v6028 = vpop.f32.mrb[0].mxu0
    %v6029 = vadd.f32 0.0, %v6028
    %v6030 = vpop.f32.mrb[0].mxu0
    %v6031 = vpop.f32.mrb[0].mxu0
    %v6032 = vadd.f32 0.0, %v6031
    %v6033 = vpop.f32.mrb[0].mxu0
    %6034 = vdwg.mxu0
    %v6035 = vpack.c.bf16 %v6032, %v6029
    %v6036 = vpack.c.bf16 %v3968, %v3966
    %v6037 = vpack.c.bf16 %v3969, %v3967
    %v6038 = vld [vmem:[%s5865 + $0x4] sm:$0xf]
    %v6039 = vld [vmem:[%s5865 + $0xc] sm:$0xf]
    %v6040 = vld [vmem:[%s5865 + $0x14] sm:$0xf]
    %v6041 = vld [vmem:[%s5865 + $0x1c] sm:$0xf]
    %v6042 = vld [vmem:[%s5865 + $0x24] sm:$0xf]
    %v6043 = vld [vmem:[%s5865 + $0x2c] sm:$0xf]
    %v6044 = vld [vmem:[%s5865 + $0x34] sm:$0xf]
    %v6045 = vld [vmem:[%s5865 + $0x3c] sm:$0xf]
    %v6046 = vld [vmem:[%s5865 + $0x44] sm:$0xf]
    %v6047 = vld [vmem:[%s5865 + $0x4c] sm:$0xf]
    %v6048 = vld [vmem:[%s5865 + $0x54] sm:$0xf]
    %v6049 = vld [vmem:[%s5865 + $0x5c] sm:$0xf]
    %v6050 = vld [vmem:[%s5865 + $0x64] sm:$0xf]
    %v6051 = vld [vmem:[%s5865 + $0x6c] sm:$0xf]
    %v6052 = vld [vmem:[%s5865 + $0x74] sm:$0xf]
    %v6053 = vld [vmem:[%s5865 + $0x7c] sm:$0xf]
    %v6054 = vld [vmem:[%s5865 + $0x84] sm:$0xf]
    %v6055 = vld [vmem:[%s5865 + $0x8c] sm:$0xf]
    %v6056 = vld [vmem:[%s5865 + $0x94] sm:$0xf]
    %v6057 = vld [vmem:[%s5865 + $0x9c] sm:$0xf]
    %v6058 = vld [vmem:[%s5865 + $0xa4] sm:$0xf]
    %v6059 = vld [vmem:[%s5865 + $0xac] sm:$0xf]
    %v6060 = vld [vmem:[%s5865 + $0xb4] sm:$0xf]
    %v6061 = vld [vmem:[%s5865 + $0xbc] sm:$0xf]
    %v6062 = vld [vmem:[%s5865 + $0xc4] sm:$0xf]
    %v6063 = vld [vmem:[%s5865 + $0xcc] sm:$0xf]
    %v6064 = vld [vmem:[%s5865 + $0xd4] sm:$0xf]
    %v6065 = vld [vmem:[%s5865 + $0xdc] sm:$0xf]
    %v6066 = vld [vmem:[%s5865 + $0xe4] sm:$0xf]
    %v6067 = vld [vmem:[%s5865 + $0xec] sm:$0xf]
    %v6068 = vld [vmem:[%s5865 + $0xf4] sm:$0xf]
    %v6069 = vld [vmem:[%s5865 + $0xfc] sm:$0xf]
    %v6070 = vmul.f32 %v6029, %v4179
    %v6071 = vmul.f32 %v6032, %v4181
    %v6072 = vpack.c.bf16 %v6071, %v6070
    %6074 = vrot.lane.b32.xlu0 %v6072, 64
    %v6075 = vpop.permute.xlu0 %6074
    %6077 = vmatprep.subr.bf16.mxu0 0
    %6078 = vmatpush1.bf16.msra.mxu0 %v6075
    %6079 = vmatprep.subr.bf16.mxu0 0
    %6080 = vmatpush1.bf16.msra.mxu0 0
    %6081 = vmatprep.subr.bf16.mxu0 0
    %6082 = vmatpush1.bf16.msra.mxu0 0
    %6083 = vmatprep.subr.bf16.mxu0 0
    %6084 = vmatpush1.bf16.msra.mxu0 0
    %6085 = vmatprep.subr.bf16.mxu0 0
    %6086 = vmatpush1.bf16.msra.mxu0 0
    %6087 = vmatprep.subr.bf16.mxu0 0
    %6088 = vmatpush1.bf16.msra.mxu0 0
    %6089 = vmatprep.subr.bf16.mxu0 0
    %6090 = vmatpush1.bf16.msra.mxu0 0
    %6091 = vmatprep.subr.bf16.mxu0 0
    %6092 = vmatpush1.bf16.msra.mxu0 0
    %6093 = vmatprep.subr.bf16.mxu0 0
    %6094 = vmatpush1.bf16.msra.mxu0 0
    %6095 = vmatprep.subr.bf16.mxu0 0
    %6096 = vmatpush1.bf16.msra.mxu0 0
    %6097 = vmatprep.subr.bf16.mxu0 0
    %6098 = vmatpush1.bf16.msra.mxu0 0
    %6099 = vmatprep.subr.bf16.mxu0 0
    %6100 = vmatpush1.bf16.msra.mxu0 0
    %6101 = vmatprep.subr.bf16.mxu0 0
    %6102 = vmatpush1.bf16.msra.mxu0 0
    %6103 = vmatprep.subr.bf16.mxu0 0
    %6104 = vmatpush1.bf16.msra.mxu0 0
    %6105 = vmatprep.subr.bf16.mxu0 0
    %6106 = vmatpush1.bf16.msra.mxu0 0
    %6107 = vmatprep.subr.bf16.mxu0 0
    %6108 = vmatpush1.bf16.msra.mxu0 0
    %6109 = vmatprep.mubr.bf16.mxu0 0
    %6110 = vmatmul.mubr.bf16.gmra.mrb[0].mxu0 %v494
    %v6111 = vpop.f32.mrb[0].mxu0
    %v6112 = vadd.f32 0.0, %v6111
    %v6113 = vpop.f32.mrb[0].mxu0
    %v6114 = vpop.f32.mrb[0].mxu0
    %v6115 = vadd.f32 0.0, %v6114
    %v6116 = vpop.f32.mrb[0].mxu0
    %6117 = vdwg.mxu0
    %v6150 = vunpack.c.l.b16 %v6038
    %v6151 = vunpack.c.l.b16 %v6039
    %v6152 = vunpack.c.l.b16 %v6040
    %v6153 = vunpack.c.l.b16 %v6041
    %v6154 = vunpack.c.l.b16 %v6042
    %v6155 = vunpack.c.l.b16 %v6043
    %v6156 = vunpack.c.l.b16 %v6044
    %v6157 = vunpack.c.l.b16 %v6045
    %v6158 = vunpack.c.l.b16 %v6046
    %v6159 = vunpack.c.l.b16 %v6047
    %v6160 = vunpack.c.l.b16 %v6048
    %v6161 = vunpack.c.l.b16 %v6049
    %v6162 = vunpack.c.l.b16 %v6050
    %v6163 = vunpack.c.l.b16 %v6051
    %v6164 = vunpack.c.l.b16 %v6052
    %v6165 = vunpack.c.l.b16 %v6053
    %v6166 = vunpack.c.l.b16 %v6054
    %v6167 = vunpack.c.l.b16 %v6055
    %v6168 = vunpack.c.l.b16 %v6056
    %v6169 = vunpack.c.l.b16 %v6057
    %v6170 = vunpack.c.l.b16 %v6058
    %v6171 = vunpack.c.l.b16 %v6059
    %v6172 = vunpack.c.l.b16 %v6060
    %v6173 = vunpack.c.l.b16 %v6061
    %v6174 = vunpack.c.l.b16 %v6062
    %v6175 = vunpack.c.l.b16 %v6063
    %v6176 = vunpack.c.l.b16 %v6064
    %v6177 = vunpack.c.l.b16 %v6065
    %v6178 = vunpack.c.l.b16 %v6066
    %v6179 = vunpack.c.l.b16 %v6067
    %v6180 = vunpack.c.l.b16 %v6068
    %v6181 = vunpack.c.l.b16 %v6069
    %v6182 = vpack.c.b16 %v6151, %v6150
    %v6183 = vpack.c.b16 %v6153, %v6152
    %v6184 = vpack.c.b16 %v6155, %v6154
    %v6185 = vpack.c.b16 %v6157, %v6156
    %v6186 = vpack.c.b16 %v6159, %v6158
    %v6187 = vpack.c.b16 %v6161, %v6160
    %v6188 = vpack.c.b16 %v6163, %v6162
    %v6189 = vpack.c.b16 %v6165, %v6164
    %v6190 = vpack.c.b16 %v6167, %v6166
    %v6191 = vpack.c.b16 %v6169, %v6168
    %v6192 = vpack.c.b16 %v6171, %v6170
    %v6193 = vpack.c.b16 %v6173, %v6172
    %v6194 = vpack.c.b16 %v6175, %v6174
    %v6195 = vpack.c.b16 %v6177, %v6176
    %v6196 = vpack.c.b16 %v6179, %v6178
    %v6197 = vpack.c.b16 %v6181, %v6180
    %6214 = vmatprep.subr.bf16.mxu0 0
    %6215 = vmatpush1.bf16.msra.mxu0 %v6182
    %6216 = vmatprep.subr.bf16.mxu0 0
    %6217 = vmatpush1.bf16.msra.mxu0 %v6183
    %6218 = vmatprep.subr.bf16.mxu0 0
    %6219 = vmatpush1.bf16.msra.mxu0 %v6184
    %6220 = vmatprep.subr.bf16.mxu0 0
    %6221 = vmatpush1.bf16.msra.mxu0 %v6185
    %6222 = vmatprep.subr.bf16.mxu0 0
    %6223 = vmatpush1.bf16.msra.mxu0 %v6186
    %6224 = vmatprep.subr.bf16.mxu0 0
    %6225 = vmatpush1.bf16.msra.mxu0 %v6187
    %6226 = vmatprep.subr.bf16.mxu0 0
    %6227 = vmatpush1.bf16.msra.mxu0 %v6188
    %6228 = vmatprep.subr.bf16.mxu0 0
    %6229 = vmatpush1.bf16.msra.mxu0 %v6189
    %6230 = vmatprep.subr.bf16.mxu0 0
    %6231 = vmatpush1.bf16.msra.mxu0 %v6190
    %6232 = vmatprep.subr.bf16.mxu0 0
    %6233 = vmatpush1.bf16.msra.mxu0 %v6191
    %6234 = vmatprep.subr.bf16.mxu0 0
    %6235 = vmatpush1.bf16.msra.mxu0 %v6192
    %6236 = vmatprep.subr.bf16.mxu0 0
    %6237 = vmatpush1.bf16.msra.mxu0 %v6193
    %6238 = vmatprep.subr.bf16.mxu0 0
    %6239 = vmatpush1.bf16.msra.mxu0 %v6194
    %6240 = vmatprep.subr.bf16.mxu0 0
    %6241 = vmatpush1.bf16.msra.mxu0 %v6195
    %6242 = vmatprep.subr.bf16.mxu0 0
    %6243 = vmatpush1.bf16.msra.mxu0 %v6196
    %6244 = vmatprep.subr.bf16.mxu0 0
    %6245 = vmatpush1.bf16.msra.mxu0 %v6197
    %6246 = vmatprep.mubr.bf16.mxu0 %v6037
    %6247 = vmatmul.mubr.bf16.gmra.mrb[0].mxu0 %v6036
    %v6248 = vpop.f32.mrb[0].mxu0
    %v6249 = vadd.f32 %v6112, %v6248
    %v6250 = vpop.f32.mrb[0].mxu0
    %v6251 = vpop.f32.mrb[0].mxu0
    %v6252 = vadd.f32 %v6115, %v6251
    %v6253 = vpop.f32.mrb[0].mxu0
    %6254 = vdwg.mxu0
    %vm6255 = vcmp.ge.f32.partialorder %v6249, 0.0
    %vm6256 = vcmp.ge.f32.partialorder %v6252, 0.0
    %v6257 = vmul.f32 %v6249, 0.2
    %v6258 = vmul.f32 %v6252, 0.2
    %v6259 = vsel %vm6255, %v6249, %v6257
    %v6260 = vsel %vm6256, %v6252, %v6258
    %v6261 = vadd.f32 %v6259, %v62
    %v6262 = vadd.f32 %v6260, %v63
    %v6263 = vsel %vm82, %v6261, -inf
    %6264 = vmax.xlane.f32.xlu0 %v6263
    %v6265 = vpop.xlane.xlu0 %6264
    %v6266 = vsel %vm82, %v6262, -inf
    %6267 = vmax.xlane.f32.xlu0 %v6266
    %v6268 = vpop.xlane.xlu0 %6267
    %v6269 = vsub.f32 %v6261, %v6265
    %v6270 = vsub.f32 %v6262, %v6268
    %v6271 = vmul.f32 %v6269, 1.442695
    %v6272 = vpow.pop %v6271
    %v6273 = vmul.f32 %v6270, 1.442695
    %v6274 = vpow.pop %v6273
    %v6275 = vmul.f32 %v6272, %v44
    %v6276 = vmul.f32 %v6274, %v45
    %v6277 = vsel %vm82, %v6275, 0.0
    %6278 = vadd.xlane.f32.xlu0 %v6277
    %v6279 = vpop.xlane.xlu0 %6278
    %v6280 = vsel %vm82, %v6276, 0.0
    %6281 = vadd.xlane.f32.xlu0 %v6280
    %v6282 = vpop.xlane.xlu0 %6281
    %v6283 = vmax.f32 %v6279, 1e-20
    %v6284 = vmax.f32 %v6282, 1e-20
    %v6285 = vrcp.pop %v6283
    %v6286 = vrcp.pop %v6284
    %v6287 = vpack.c.bf16 %v6276, %v6275
    %v6289 = vsel %vm82, %v6287, 0
    %6291 = vmatprep.subr.bf16.mxu0 0
    %6292 = vmatpush1.bf16.msra.mxu0 %v6035
    %6293 = vmatprep.subr.bf16.mxu0 0
    %6294 = vmatpush1.bf16.msra.mxu0 0
    %6295 = vmatprep.subr.bf16.mxu0 0
    %6296 = vmatpush1.bf16.msra.mxu0 0
    %6297 = vmatprep.subr.bf16.mxu0 0
    %6298 = vmatpush1.bf16.msra.mxu0 0
    %6299 = vmatprep.subr.bf16.mxu0 0
    %6300 = vmatpush1.bf16.msra.mxu0 0
    %6301 = vmatprep.subr.bf16.mxu0 0
    %6302 = vmatpush1.bf16.msra.mxu0 0
    %6303 = vmatprep.subr.bf16.mxu0 0
    %6304 = vmatpush1.bf16.msra.mxu0 0
    %6305 = vmatprep.subr.bf16.mxu0 0
    %6306 = vmatpush1.bf16.msra.mxu0 0
    %6307 = vmatprep.subr.bf16.mxu0 0
    %6308 = vmatpush1.bf16.msra.mxu0 0
    %6309 = vmatprep.subr.bf16.mxu0 0
    %6310 = vmatpush1.bf16.msra.mxu0 0
    %6311 = vmatprep.subr.bf16.mxu0 0
    %6312 = vmatpush1.bf16.msra.mxu0 0
    %6313 = vmatprep.subr.bf16.mxu0 0
    %6314 = vmatpush1.bf16.msra.mxu0 0
    %6315 = vmatprep.subr.bf16.mxu0 0
    %6316 = vmatpush1.bf16.msra.mxu0 0
    %6317 = vmatprep.subr.bf16.mxu0 0
    %6318 = vmatpush1.bf16.msra.mxu0 0
    %6319 = vmatprep.subr.bf16.mxu0 0
    %6320 = vmatpush1.bf16.msra.mxu0 0
    %6321 = vmatprep.subr.bf16.mxu0 0
    %6322 = vmatpush1.bf16.msra.mxu0 0
    %6323 = vmatprep.mubr.bf16.mxu0 0
    %6324 = vmatmul.mubr.bf16.gmra.mrb[0].mxu0 %v6289
    %v6325 = vpop.f32.mrb[0].mxu0
    %v6326 = vadd.f32 0.0, %v6325
    %v6327 = vpop.f32.mrb[0].mxu0
    %v6328 = vpop.f32.mrb[0].mxu0
    %v6329 = vadd.f32 0.0, %v6328
    %v6330 = vpop.f32.mrb[0].mxu0
    %6331 = vdwg.mxu0
    %v6332 = vmul.f32 %v6285, %v6326
    %v6333 = vmul.f32 %v6286, %v6329
    %v6334 = vld [vmem:[%s6 + $0x12] ss:$0 sm:$0xff]
    %v6335 = vadd.f32 %v6332, %v6334
    %v6336 = vadd.f32 %v6333, %v6334
    %s6337 = scalar_lea.vmem %s3, 1280
    %v6338 = vld [vmem:[%s6337] sm:$0xf]
    %v6339 = vld [vmem:[%s6337 + $0x8] sm:$0xf]
    %v6340 = vld [vmem:[%s6337 + $0x10] sm:$0xf]
    %v6341 = vld [vmem:[%s6337 + $0x18] sm:$0xf]
    %v6342 = vld [vmem:[%s6337 + $0x20] sm:$0xf]
    %v6343 = vld [vmem:[%s6337 + $0x28] sm:$0xf]
    %v6344 = vld [vmem:[%s6337 + $0x30] sm:$0xf]
    %v6345 = vld [vmem:[%s6337 + $0x38] sm:$0xf]
    %v6346 = vld [vmem:[%s6337 + $0x40] sm:$0xf]
    %v6347 = vld [vmem:[%s6337 + $0x48] sm:$0xf]
    %v6348 = vld [vmem:[%s6337 + $0x50] sm:$0xf]
    %v6349 = vld [vmem:[%s6337 + $0x58] sm:$0xf]
    %v6350 = vld [vmem:[%s6337 + $0x60] sm:$0xf]
    %v6351 = vld [vmem:[%s6337 + $0x68] sm:$0xf]
    %v6352 = vld [vmem:[%s6337 + $0x70] sm:$0xf]
    %v6353 = vld [vmem:[%s6337 + $0x78] sm:$0xf]
    %v6354 = vld [vmem:[%s6337 + $0x80] sm:$0xf]
    %v6355 = vld [vmem:[%s6337 + $0x88] sm:$0xf]
    %v6356 = vld [vmem:[%s6337 + $0x90] sm:$0xf]
    %v6357 = vld [vmem:[%s6337 + $0x98] sm:$0xf]
    %v6358 = vld [vmem:[%s6337 + $0xa0] sm:$0xf]
    %v6359 = vld [vmem:[%s6337 + $0xa8] sm:$0xf]
    %v6360 = vld [vmem:[%s6337 + $0xb0] sm:$0xf]
    %v6361 = vld [vmem:[%s6337 + $0xb8] sm:$0xf]
    %v6362 = vld [vmem:[%s6337 + $0xc0] sm:$0xf]
    %v6363 = vld [vmem:[%s6337 + $0xc8] sm:$0xf]
    %v6364 = vld [vmem:[%s6337 + $0xd0] sm:$0xf]
    %v6365 = vld [vmem:[%s6337 + $0xd8] sm:$0xf]
    %v6366 = vld [vmem:[%s6337 + $0xe0] sm:$0xf]
    %v6367 = vld [vmem:[%s6337 + $0xe8] sm:$0xf]
    %v6368 = vld [vmem:[%s6337 + $0xf0] sm:$0xf]
    %v6369 = vld [vmem:[%s6337 + $0xf8] sm:$0xf]
    %v6402 = vunpack.c.l.b16 %v6338
    %v6403 = vunpack.c.l.b16 %v6339
    %v6404 = vunpack.c.l.b16 %v6340
    %v6405 = vunpack.c.l.b16 %v6341
    %v6406 = vunpack.c.l.b16 %v6342
    %v6407 = vunpack.c.l.b16 %v6343
    %v6408 = vunpack.c.l.b16 %v6344
    %v6409 = vunpack.c.l.b16 %v6345
    %v6410 = vunpack.c.l.b16 %v6346
    %v6411 = vunpack.c.l.b16 %v6347
    %v6412 = vunpack.c.l.b16 %v6348
    %v6413 = vunpack.c.l.b16 %v6349
    %v6414 = vunpack.c.l.b16 %v6350
    %v6415 = vunpack.c.l.b16 %v6351
    %v6416 = vunpack.c.l.b16 %v6352
    %v6417 = vunpack.c.l.b16 %v6353
    %v6418 = vunpack.c.l.b16 %v6354
    %v6419 = vunpack.c.l.b16 %v6355
    %v6420 = vunpack.c.l.b16 %v6356
    %v6421 = vunpack.c.l.b16 %v6357
    %v6422 = vunpack.c.l.b16 %v6358
    %v6423 = vunpack.c.l.b16 %v6359
    %v6424 = vunpack.c.l.b16 %v6360
    %v6425 = vunpack.c.l.b16 %v6361
    %v6426 = vunpack.c.l.b16 %v6362
    %v6427 = vunpack.c.l.b16 %v6363
    %v6428 = vunpack.c.l.b16 %v6364
    %v6429 = vunpack.c.l.b16 %v6365
    %v6430 = vunpack.c.l.b16 %v6366
    %v6431 = vunpack.c.l.b16 %v6367
    %v6432 = vunpack.c.l.b16 %v6368
    %v6433 = vunpack.c.l.b16 %v6369
    %v6434 = vpack.c.b16 %v6403, %v6402
    %v6435 = vpack.c.b16 %v6405, %v6404
    %v6436 = vpack.c.b16 %v6407, %v6406
    %v6437 = vpack.c.b16 %v6409, %v6408
    %v6438 = vpack.c.b16 %v6411, %v6410
    %v6439 = vpack.c.b16 %v6413, %v6412
    %v6440 = vpack.c.b16 %v6415, %v6414
    %v6441 = vpack.c.b16 %v6417, %v6416
    %v6442 = vpack.c.b16 %v6419, %v6418
    %v6443 = vpack.c.b16 %v6421, %v6420
    %v6444 = vpack.c.b16 %v6423, %v6422
    %v6445 = vpack.c.b16 %v6425, %v6424
    %v6446 = vpack.c.b16 %v6427, %v6426
    %v6447 = vpack.c.b16 %v6429, %v6428
    %v6448 = vpack.c.b16 %v6431, %v6430
    %v6449 = vpack.c.b16 %v6433, %v6432
    %6466 = vmatprep.subr.bf16.mxu0 0
    %6467 = vmatpush1.bf16.msra.mxu0 %v6434
    %6468 = vmatprep.subr.bf16.mxu0 0
    %6469 = vmatpush1.bf16.msra.mxu0 %v6435
    %6470 = vmatprep.subr.bf16.mxu0 0
    %6471 = vmatpush1.bf16.msra.mxu0 %v6436
    %6472 = vmatprep.subr.bf16.mxu0 0
    %6473 = vmatpush1.bf16.msra.mxu0 %v6437
    %6474 = vmatprep.subr.bf16.mxu0 0
    %6475 = vmatpush1.bf16.msra.mxu0 %v6438
    %6476 = vmatprep.subr.bf16.mxu0 0
    %6477 = vmatpush1.bf16.msra.mxu0 %v6439
    %6478 = vmatprep.subr.bf16.mxu0 0
    %6479 = vmatpush1.bf16.msra.mxu0 %v6440
    %6480 = vmatprep.subr.bf16.mxu0 0
    %6481 = vmatpush1.bf16.msra.mxu0 %v6441
    %6482 = vmatprep.subr.bf16.mxu0 0
    %6483 = vmatpush1.bf16.msra.mxu0 %v6442
    %6484 = vmatprep.subr.bf16.mxu0 0
    %6485 = vmatpush1.bf16.msra.mxu0 %v6443
    %6486 = vmatprep.subr.bf16.mxu0 0
    %6487 = vmatpush1.bf16.msra.mxu0 %v6444
    %6488 = vmatprep.subr.bf16.mxu0 0
    %6489 = vmatpush1.bf16.msra.mxu0 %v6445
    %6490 = vmatprep.subr.bf16.mxu0 0
    %6491 = vmatpush1.bf16.msra.mxu0 %v6446
    %6492 = vmatprep.subr.bf16.mxu0 0
    %6493 = vmatpush1.bf16.msra.mxu0 %v6447
    %6494 = vmatprep.subr.bf16.mxu0 0
    %6495 = vmatpush1.bf16.msra.mxu0 %v6448
    %6496 = vmatprep.subr.bf16.mxu0 0
    %6497 = vmatpush1.bf16.msra.mxu0 %v6449
    %6498 = vmatprep.mubr.bf16.mxu0 %v6037
    %6499 = vmatmul.mubr.bf16.gmra.mrb[0].mxu0 %v6036
    %v6500 = vpop.f32.mrb[0].mxu0
    %v6501 = vadd.f32 0.0, %v6500
    %v6502 = vpop.f32.mrb[0].mxu0
    %v6503 = vpop.f32.mrb[0].mxu0
    %v6504 = vadd.f32 0.0, %v6503
    %v6505 = vpop.f32.mrb[0].mxu0
    %6506 = vdwg.mxu0
    %v6507 = vpack.c.bf16 %v6504, %v6501
    %v6508 = vld [vmem:[%s6337 + $0x4] sm:$0xf]
    %v6509 = vld [vmem:[%s6337 + $0xc] sm:$0xf]
    %v6510 = vld [vmem:[%s6337 + $0x14] sm:$0xf]
    %v6511 = vld [vmem:[%s6337 + $0x1c] sm:$0xf]
    %v6512 = vld [vmem:[%s6337 + $0x24] sm:$0xf]
    %v6513 = vld [vmem:[%s6337 + $0x2c] sm:$0xf]
    %v6514 = vld [vmem:[%s6337 + $0x34] sm:$0xf]
    %v6515 = vld [vmem:[%s6337 + $0x3c] sm:$0xf]
    %v6516 = vld [vmem:[%s6337 + $0x44] sm:$0xf]
    %v6517 = vld [vmem:[%s6337 + $0x4c] sm:$0xf]
    %v6518 = vld [vmem:[%s6337 + $0x54] sm:$0xf]
    %v6519 = vld [vmem:[%s6337 + $0x5c] sm:$0xf]
    %v6520 = vld [vmem:[%s6337 + $0x64] sm:$0xf]
    %v6521 = vld [vmem:[%s6337 + $0x6c] sm:$0xf]
    %v6522 = vld [vmem:[%s6337 + $0x74] sm:$0xf]
    %v6523 = vld [vmem:[%s6337 + $0x7c] sm:$0xf]
    %v6524 = vld [vmem:[%s6337 + $0x84] sm:$0xf]
    %v6525 = vld [vmem:[%s6337 + $0x8c] sm:$0xf]
    %v6526 = vld [vmem:[%s6337 + $0x94] sm:$0xf]
    %v6527 = vld [vmem:[%s6337 + $0x9c] sm:$0xf]
    %v6528 = vld [vmem:[%s6337 + $0xa4] sm:$0xf]
    %v6529 = vld [vmem:[%s6337 + $0xac] sm:$0xf]
    %v6530 = vld [vmem:[%s6337 + $0xb4] sm:$0xf]
    %v6531 = vld [vmem:[%s6337 + $0xbc] sm:$0xf]
    %v6532 = vld [vmem:[%s6337 + $0xc4] sm:$0xf]
    %v6533 = vld [vmem:[%s6337 + $0xcc] sm:$0xf]
    %v6534 = vld [vmem:[%s6337 + $0xd4] sm:$0xf]
    %v6535 = vld [vmem:[%s6337 + $0xdc] sm:$0xf]
    %v6536 = vld [vmem:[%s6337 + $0xe4] sm:$0xf]
    %v6537 = vld [vmem:[%s6337 + $0xec] sm:$0xf]
    %v6538 = vld [vmem:[%s6337 + $0xf4] sm:$0xf]
    %v6539 = vld [vmem:[%s6337 + $0xfc] sm:$0xf]
    %v6540 = vmul.f32 %v6501, %v4179
    %v6541 = vmul.f32 %v6504, %v4181
    %v6542 = vpack.c.bf16 %v6541, %v6540
    %6544 = vrot.lane.b32.xlu0 %v6542, 64
    %v6545 = vpop.permute.xlu0 %6544
    %6547 = vmatprep.subr.bf16.mxu0 0
    %6548 = vmatpush1.bf16.msra.mxu0 %v6545
    %6549 = vmatprep.subr.bf16.mxu0 0
    %6550 = vmatpush1.bf16.msra.mxu0 0
    %6551 = vmatprep.subr.bf16.mxu0 0
    %6552 = vmatpush1.bf16.msra.mxu0 0
    %6553 = vmatprep.subr.bf16.mxu0 0
    %6554 = vmatpush1.bf16.msra.mxu0 0
    %6555 = vmatprep.subr.bf16.mxu0 0
    %6556 = vmatpush1.bf16.msra.mxu0 0
    %6557 = vmatprep.subr.bf16.mxu0 0
    %6558 = vmatpush1.bf16.msra.mxu0 0
    %6559 = vmatprep.subr.bf16.mxu0 0
    %6560 = vmatpush1.bf16.msra.mxu0 0
    %6561 = vmatprep.subr.bf16.mxu0 0
    %6562 = vmatpush1.bf16.msra.mxu0 0
    %6563 = vmatprep.subr.bf16.mxu0 0
    %6564 = vmatpush1.bf16.msra.mxu0 0
    %6565 = vmatprep.subr.bf16.mxu0 0
    %6566 = vmatpush1.bf16.msra.mxu0 0
    %6567 = vmatprep.subr.bf16.mxu0 0
    %6568 = vmatpush1.bf16.msra.mxu0 0
    %6569 = vmatprep.subr.bf16.mxu0 0
    %6570 = vmatpush1.bf16.msra.mxu0 0
    %6571 = vmatprep.subr.bf16.mxu0 0
    %6572 = vmatpush1.bf16.msra.mxu0 0
    %6573 = vmatprep.subr.bf16.mxu0 0
    %6574 = vmatpush1.bf16.msra.mxu0 0
    %6575 = vmatprep.subr.bf16.mxu0 0
    %6576 = vmatpush1.bf16.msra.mxu0 0
    %6577 = vmatprep.subr.bf16.mxu0 0
    %6578 = vmatpush1.bf16.msra.mxu0 0
    %6579 = vmatprep.mubr.bf16.mxu0 0
    %6580 = vmatmul.mubr.bf16.gmra.mrb[0].mxu0 %v494
    %v6581 = vpop.f32.mrb[0].mxu0
    %v6582 = vadd.f32 0.0, %v6581
    %v6583 = vpop.f32.mrb[0].mxu0
    %v6584 = vpop.f32.mrb[0].mxu0
    %v6585 = vadd.f32 0.0, %v6584
    %v6586 = vpop.f32.mrb[0].mxu0
    %6587 = vdwg.mxu0
    %v6620 = vunpack.c.l.b16 %v6508
    %v6621 = vunpack.c.l.b16 %v6509
    %v6622 = vunpack.c.l.b16 %v6510
    %v6623 = vunpack.c.l.b16 %v6511
    %v6624 = vunpack.c.l.b16 %v6512
    %v6625 = vunpack.c.l.b16 %v6513
    %v6626 = vunpack.c.l.b16 %v6514
    %v6627 = vunpack.c.l.b16 %v6515
    %v6628 = vunpack.c.l.b16 %v6516
    %v6629 = vunpack.c.l.b16 %v6517
    %v6630 = vunpack.c.l.b16 %v6518
    %v6631 = vunpack.c.l.b16 %v6519
    %v6632 = vunpack.c.l.b16 %v6520
    %v6633 = vunpack.c.l.b16 %v6521
    %v6634 = vunpack.c.l.b16 %v6522
    %v6635 = vunpack.c.l.b16 %v6523
    %v6636 = vunpack.c.l.b16 %v6524
    %v6637 = vunpack.c.l.b16 %v6525
    %v6638 = vunpack.c.l.b16 %v6526
    %v6639 = vunpack.c.l.b16 %v6527
    %v6640 = vunpack.c.l.b16 %v6528
    %v6641 = vunpack.c.l.b16 %v6529
    %v6642 = vunpack.c.l.b16 %v6530
    %v6643 = vunpack.c.l.b16 %v6531
    %v6644 = vunpack.c.l.b16 %v6532
    %v6645 = vunpack.c.l.b16 %v6533
    %v6646 = vunpack.c.l.b16 %v6534
    %v6647 = vunpack.c.l.b16 %v6535
    %v6648 = vunpack.c.l.b16 %v6536
    %v6649 = vunpack.c.l.b16 %v6537
    %v6650 = vunpack.c.l.b16 %v6538
    %v6651 = vunpack.c.l.b16 %v6539
    %v6652 = vpack.c.b16 %v6621, %v6620
    %v6653 = vpack.c.b16 %v6623, %v6622
    %v6654 = vpack.c.b16 %v6625, %v6624
    %v6655 = vpack.c.b16 %v6627, %v6626
    %v6656 = vpack.c.b16 %v6629, %v6628
    %v6657 = vpack.c.b16 %v6631, %v6630
    %v6658 = vpack.c.b16 %v6633, %v6632
    %v6659 = vpack.c.b16 %v6635, %v6634
    %v6660 = vpack.c.b16 %v6637, %v6636
    %v6661 = vpack.c.b16 %v6639, %v6638
    %v6662 = vpack.c.b16 %v6641, %v6640
    %v6663 = vpack.c.b16 %v6643, %v6642
    %v6664 = vpack.c.b16 %v6645, %v6644
    %v6665 = vpack.c.b16 %v6647, %v6646
    %v6666 = vpack.c.b16 %v6649, %v6648
    %v6667 = vpack.c.b16 %v6651, %v6650
    %6684 = vmatprep.subr.bf16.mxu0 0
    %6685 = vmatpush1.bf16.msra.mxu0 %v6652
    %6686 = vmatprep.subr.bf16.mxu0 0
    %6687 = vmatpush1.bf16.msra.mxu0 %v6653
    %6688 = vmatprep.subr.bf16.mxu0 0
    %6689 = vmatpush1.bf16.msra.mxu0 %v6654
    %6690 = vmatprep.subr.bf16.mxu0 0
    %6691 = vmatpush1.bf16.msra.mxu0 %v6655
    %6692 = vmatprep.subr.bf16.mxu0 0
    %6693 = vmatpush1.bf16.msra.mxu0 %v6656
    %6694 = vmatprep.subr.bf16.mxu0 0
    %6695 = vmatpush1.bf16.msra.mxu0 %v6657
    %6696 = vmatprep.subr.bf16.mxu0 0
    %6697 = vmatpush1.bf16.msra.mxu0 %v6658
    %6698 = vmatprep.subr.bf16.mxu0 0
    %6699 = vmatpush1.bf16.msra.mxu0 %v6659
    %6700 = vmatprep.subr.bf16.mxu0 0
    %6701 = vmatpush1.bf16.msra.mxu0 %v6660
    %6702 = vmatprep.subr.bf16.mxu0 0
    %6703 = vmatpush1.bf16.msra.mxu0 %v6661
    %6704 = vmatprep.subr.bf16.mxu0 0
    %6705 = vmatpush1.bf16.msra.mxu0 %v6662
    %6706 = vmatprep.subr.bf16.mxu0 0
    %6707 = vmatpush1.bf16.msra.mxu0 %v6663
    %6708 = vmatprep.subr.bf16.mxu0 0
    %6709 = vmatpush1.bf16.msra.mxu0 %v6664
    %6710 = vmatprep.subr.bf16.mxu0 0
    %6711 = vmatpush1.bf16.msra.mxu0 %v6665
    %6712 = vmatprep.subr.bf16.mxu0 0
    %6713 = vmatpush1.bf16.msra.mxu0 %v6666
    %6714 = vmatprep.subr.bf16.mxu0 0
    %6715 = vmatpush1.bf16.msra.mxu0 %v6667
    %6716 = vmatprep.mubr.bf16.mxu0 %v4143
    %6717 = vmatmul.mubr.bf16.gmra.mrb[0].mxu0 %v4142
    %v6718 = vpop.f32.mrb[0].mxu0
    %v6719 = vadd.f32 %v6582, %v6718
    %v6720 = vpop.f32.mrb[0].mxu0
    %v6721 = vpop.f32.mrb[0].mxu0
    %v6722 = vadd.f32 %v6585, %v6721
    %v6723 = vpop.f32.mrb[0].mxu0
    %6724 = vdwg.mxu0
    %vm6725 = vcmp.ge.f32.partialorder %v6719, 0.0
    %vm6726 = vcmp.ge.f32.partialorder %v6722, 0.0
    %v6727 = vmul.f32 %v6719, 0.2
    %v6728 = vmul.f32 %v6722, 0.2
    %v6729 = vsel %vm6725, %v6719, %v6727
    %v6730 = vsel %vm6726, %v6722, %v6728
    %v6731 = vadd.f32 %v6729, %v65
    %v6732 = vadd.f32 %v6730, %v66
    %v6733 = vsel %vm82, %v6731, -inf
    %6734 = vmax.xlane.f32.xlu0 %v6733
    %v6735 = vpop.xlane.xlu0 %6734
    %v6736 = vsel %vm82, %v6732, -inf
    %6737 = vmax.xlane.f32.xlu0 %v6736
    %v6738 = vpop.xlane.xlu0 %6737
    %v6739 = vsub.f32 %v6731, %v6735
    %v6740 = vsub.f32 %v6732, %v6738
    %v6741 = vmul.f32 %v6739, 1.442695
    %v6742 = vpow.pop %v6741
    %v6743 = vmul.f32 %v6740, 1.442695
    %v6744 = vpow.pop %v6743
    %v6745 = vmul.f32 %v6742, %v47
    %v6746 = vmul.f32 %v6744, %v48
    %v6747 = vsel %vm82, %v6745, 0.0
    %6748 = vadd.xlane.f32.xlu0 %v6747
    %v6749 = vpop.xlane.xlu0 %6748
    %v6750 = vsel %vm82, %v6746, 0.0
    %6751 = vadd.xlane.f32.xlu0 %v6750
    %v6752 = vpop.xlane.xlu0 %6751
    %v6753 = vmax.f32 %v6749, 1e-20
    %v6754 = vmax.f32 %v6752, 1e-20
    %v6755 = vrcp.pop %v6753
    %v6756 = vrcp.pop %v6754
    %v6757 = vpack.c.bf16 %v6746, %v6745
    %v6759 = vsel %vm82, %v6757, 0
    %6761 = vmatprep.subr.bf16.mxu0 0
    %6762 = vmatpush1.bf16.msra.mxu0 %v6507
    %6763 = vmatprep.subr.bf16.mxu0 0
    %6764 = vmatpush1.bf16.msra.mxu0 0
    %6765 = vmatprep.subr.bf16.mxu0 0
    %6766 = vmatpush1.bf16.msra.mxu0 0
    %6767 = vmatprep.subr.bf16.mxu0 0
    %6768 = vmatpush1.bf16.msra.mxu0 0
    %6769 = vmatprep.subr.bf16.mxu0 0
    %6770 = vmatpush1.bf16.msra.mxu0 0
    %6771 = vmatprep.subr.bf16.mxu0 0
    %6772 = vmatpush1.bf16.msra.mxu0 0
    %6773 = vmatprep.subr.bf16.mxu0 0
    %6774 = vmatpush1.bf16.msra.mxu0 0
    %6775 = vmatprep.subr.bf16.mxu0 0
    %6776 = vmatpush1.bf16.msra.mxu0 0
    %6777 = vmatprep.subr.bf16.mxu0 0
    %6778 = vmatpush1.bf16.msra.mxu0 0
    %6779 = vmatprep.subr.bf16.mxu0 0
    %6780 = vmatpush1.bf16.msra.mxu0 0
    %6781 = vmatprep.subr.bf16.mxu0 0
    %6782 = vmatpush1.bf16.msra.mxu0 0
    %6783 = vmatprep.subr.bf16.mxu0 0
    %6784 = vmatpush1.bf16.msra.mxu0 0
    %6785 = vmatprep.subr.bf16.mxu0 0
    %6786 = vmatpush1.bf16.msra.mxu0 0
    %6787 = vmatprep.subr.bf16.mxu0 0
    %6788 = vmatpush1.bf16.msra.mxu0 0
    %6789 = vmatprep.subr.bf16.mxu0 0
    %6790 = vmatpush1.bf16.msra.mxu0 0
    %6791 = vmatprep.subr.bf16.mxu0 0
    %6792 = vmatpush1.bf16.msra.mxu0 0
    %6793 = vmatprep.mubr.bf16.mxu0 0
    %6794 = vmatmul.mubr.bf16.gmra.mrb[0].mxu0 %v6759
    %v6795 = vpop.f32.mrb[0].mxu0
    %v6796 = vadd.f32 0.0, %v6795
    %v6797 = vpop.f32.mrb[0].mxu0
    %v6798 = vpop.f32.mrb[0].mxu0
    %v6799 = vadd.f32 0.0, %v6798
    %v6800 = vpop.f32.mrb[0].mxu0
    %6801 = vdwg.mxu0
    %v6802 = vmul.f32 %v6755, %v6796
    %v6803 = vmul.f32 %v6756, %v6799
    %v6804 = vld [vmem:[%s6 + $0x13] ss:$0 sm:$0xff]
    %v6805 = vadd.f32 %v6802, %v6804
    %v6806 = vadd.f32 %v6803, %v6804
    %v6807 = vadd.f32 %v5863, %v6805
    %v6808 = vadd.f32 %v5864, %v6806
    %6811 = vrot.lane.b32.xlu0 %v6807, 64
    %v6812 = vpop.permute.xlu0 %6811
    %6813 = vrot.lane.b32.xlu0 %v6808, 64
    %v6814 = vpop.permute.xlu0 %6813
    %v6817 = vsel %vm391, %v4919, %v6812
    %v6818 = vsel %vm391, %v4920, %v6814
    %v6819 = vpack.c.bf16 %v6818, %v6817
    %v6820 = vld [vmem:[%s4] sm:$0xf]
    %v6821 = vld [vmem:[%s4 + $0x4] sm:$0xf]
    %v6822 = vld [vmem:[%s4 + $0x8] sm:$0xf]
    %v6823 = vld [vmem:[%s4 + $0xc] sm:$0xf]
    %v6824 = vld [vmem:[%s4 + $0x10] sm:$0xf]
    %v6825 = vld [vmem:[%s4 + $0x14] sm:$0xf]
    %v6826 = vld [vmem:[%s4 + $0x18] sm:$0xf]
    %v6827 = vld [vmem:[%s4 + $0x1c] sm:$0xf]
    %v6828 = vld [vmem:[%s4 + $0x20] sm:$0xf]
    %v6829 = vld [vmem:[%s4 + $0x24] sm:$0xf]
    %v6830 = vld [vmem:[%s4 + $0x28] sm:$0xf]
    %v6831 = vld [vmem:[%s4 + $0x2c] sm:$0xf]
    %v6832 = vld [vmem:[%s4 + $0x30] sm:$0xf]
    %v6833 = vld [vmem:[%s4 + $0x34] sm:$0xf]
    %v6834 = vld [vmem:[%s4 + $0x38] sm:$0xf]
    %v6835 = vld [vmem:[%s4 + $0x3c] sm:$0xf]
    %v6836 = vld [vmem:[%s6 + $0x14] ss:$0 sm:$0xff]
    %v6853 = vunpack.c.l.b16 %v6820
    %v6854 = vunpack.c.l.b16 %v6821
    %v6855 = vunpack.c.l.b16 %v6822
    %v6856 = vunpack.c.l.b16 %v6823
    %v6857 = vunpack.c.l.b16 %v6824
    %v6858 = vunpack.c.l.b16 %v6825
    %v6859 = vunpack.c.l.b16 %v6826
    %v6860 = vunpack.c.l.b16 %v6827
    %v6861 = vunpack.c.l.b16 %v6828
    %v6862 = vunpack.c.l.b16 %v6829
    %v6863 = vunpack.c.l.b16 %v6830
    %v6864 = vunpack.c.l.b16 %v6831
    %v6865 = vunpack.c.l.b16 %v6832
    %v6866 = vunpack.c.l.b16 %v6833
    %v6867 = vunpack.c.l.b16 %v6834
    %v6868 = vunpack.c.l.b16 %v6835
    %v6869 = vpack.c.b16 %v6854, %v6853
    %v6870 = vpack.c.b16 %v6856, %v6855
    %v6871 = vpack.c.b16 %v6858, %v6857
    %v6872 = vpack.c.b16 %v6860, %v6859
    %v6873 = vpack.c.b16 %v6862, %v6861
    %v6874 = vpack.c.b16 %v6864, %v6863
    %v6875 = vpack.c.b16 %v6866, %v6865
    %v6876 = vpack.c.b16 %v6868, %v6867
    %6885 = vmatprep.subr.bf16.mxu0 0
    %6886 = vmatpush1.bf16.msra.mxu0 %v6869
    %6887 = vmatprep.subr.bf16.mxu0 0
    %6888 = vmatpush1.bf16.msra.mxu0 %v6870
    %6889 = vmatprep.subr.bf16.mxu0 0
    %6890 = vmatpush1.bf16.msra.mxu0 %v6871
    %6891 = vmatprep.subr.bf16.mxu0 0
    %6892 = vmatpush1.bf16.msra.mxu0 %v6872
    %6893 = vmatprep.subr.bf16.mxu0 0
    %6894 = vmatpush1.bf16.msra.mxu0 %v6873
    %6895 = vmatprep.subr.bf16.mxu0 0
    %6896 = vmatpush1.bf16.msra.mxu0 %v6874
    %6897 = vmatprep.subr.bf16.mxu0 0
    %6898 = vmatpush1.bf16.msra.mxu0 %v6875
    %6899 = vmatprep.subr.bf16.mxu0 0
    %6900 = vmatpush1.bf16.msra.mxu0 %v6876
    %6901 = vmatprep.subr.bf16.mxu0 0
    %6902 = vmatpush1.bf16.msra.mxu0 0
    %6903 = vmatprep.subr.bf16.mxu0 0
    %6904 = vmatpush1.bf16.msra.mxu0 0
    %6905 = vmatprep.subr.bf16.mxu0 0
    %6906 = vmatpush1.bf16.msra.mxu0 0
    %6907 = vmatprep.subr.bf16.mxu0 0
    %6908 = vmatpush1.bf16.msra.mxu0 0
    %6909 = vmatprep.subr.bf16.mxu0 0
    %6910 = vmatpush1.bf16.msra.mxu0 0
    %6911 = vmatprep.subr.bf16.mxu0 0
    %6912 = vmatpush1.bf16.msra.mxu0 0
    %6913 = vmatprep.subr.bf16.mxu0 0
    %6914 = vmatpush1.bf16.msra.mxu0 0
    %6915 = vmatprep.subr.bf16.mxu0 0
    %6916 = vmatpush1.bf16.msra.mxu0 0
    %6917 = vmatprep.mubr.bf16.mxu0 0
    %6918 = vmatmul.mubr.bf16.gmra.mrb[0].mxu0 %v6819
    %v6919 = vpop.f32.mrb[0].mxu0
    %v6920 = vadd.f32 %v6836, %v6919
    %v6921 = vpop.f32.mrb[0].mxu0
    %v6922 = vpop.f32.mrb[0].mxu0
    %v6923 = vadd.f32 %v6836, %v6922
    %v6924 = vpop.f32.mrb[0].mxu0
    %6925 = vdwg.mxu0
    %6928 = vrot.lane.b32.xlu0 %v6335, 64
    %v6929 = vpop.permute.xlu0 %6928
    %6930 = vrot.lane.b32.xlu0 %v6336, 64
    %v6931 = vpop.permute.xlu0 %6930
    %v6934 = vsel %vm391, %v5391, %v6929
    %v6935 = vsel %vm391, %v5392, %v6931
    %6936 = vst [vmem:[#allocation2] sm:$0xff] %v6920
    %6937 = vst [vmem:[#allocation2 + $0x8] sm:$0xff] %v6934
    %6938 = vst [vmem:[#allocation2 + $0x10] sm:$0xff] %v6923
    %6939 = vst [vmem:[#allocation2 + $0x18] sm:$0xff] %v6935
    // Predicated region
    $region30: #{tpu_custom_call.1} parent=1 // pred_check
      _
    $region31: #{tpu_custom_call.1} parent=1 // pred_check_branch
      %6941 = sbr.rel (0) target = $region33
    $region32: #{tpu_custom_call.1} parent=1 // pred_region
      %s6943 = ssub.s32 512, 512
      %6944 = vsyncadd [#allocation3], %s6943
      %s6945 = sshll.u32 [#allocation2], 4
      %s6946 = int_to_ptr.vmem [resolvable:$true] %s6945
      %6951 = dma.vmem_to_hbm [thread:$0]  %s6946, 512, %s7, [#allocation3], 256, 256, 16
    $region33: #{tpu_custom_call.1} parent=1 // pred_fallthru
      _
    // Predicated region
    $region34: #{tpu_custom_call.1} parent=1 // pred_check
      _
    $region35: #{tpu_custom_call.1} parent=1 // pred_check_branch
      %6953 = sbr.rel (0) target = $region37
    $region36: #{tpu_custom_call.1} parent=1 // pred_region
      %6954 = dma.done [#allocation3], 512
    $region37: #{tpu_custom_call.1} parent=1 // pred_fallthru
      _
    %6955 = vsyncpa [#allocation3], 1

</llo_original>
